<compile_context>
chip_gen: v6e
topology: v6e:2x2x1
jax: 0.10.0
libtpu: 0.0.40
codegen_flags: <defaults>
</compile_context>

<pallas_src>
import functools

import jax
import jax.numpy as jnp
from jax.experimental import pallas as pl
from jax.experimental.pallas import tpu as pltpu


def _layernorm(x, gamma, beta, eps=1e-6):
    mean = jnp.mean(x, axis=-1, keepdims=True)
    var = jnp.mean((x - mean) ** 2, axis=-1, keepdims=True)
    return (x - mean) * jax.lax.rsqrt(var + eps) * gamma + beta


def decoder_layer_kernel(xkv_ref, enc_ref, la_mask_ref, pad_mask_ref,
                         mha1_w_ref, mha1_b_ref, mha2_w_ref, mha2_b_ref,
                         ffn_w1_ref, ffn_b1_ref, ffn_w2_ref, ffn_b2_ref,
                         ln_g_ref, ln_b_ref,
                         out_ref, aw1_ref, aw2_ref,
                         k1_scr, v1_scr, k2_scr, v2_scr,
                         *, num_heads, depth, tile_q, ff_chunk):
    H, Dh = num_heads, depth
    D = H * Dh
    TQ = tile_q
    qt = pl.program_id(1)

    # ---- K/V projections hoisted out of the query-tile loop -----------------
    # They depend only on the per-batch full x / enc blocks, so compute them once
    # per batch element (qt == 0, "arbitrary" axis) into persistent VMEM scratch
    # and reuse across all query tiles -> removes n_qt-fold redundant MXU work.
    @pl.when(qt == 0)
    def _():
        x_full = xkv_ref[0]        # (S,  D) bf16
        enc_full = enc_ref[0]      # (Se, D) bf16
        k1_scr[...] = (jnp.dot(x_full, mha1_w_ref[1],
                               preferred_element_type=jnp.float32)
                       + mha1_b_ref[1]).astype(jnp.bfloat16)
        v1_scr[...] = (jnp.dot(x_full, mha1_w_ref[2],
                               preferred_element_type=jnp.float32)
                       + mha1_b_ref[2]).astype(jnp.bfloat16)
        k2_scr[...] = (jnp.dot(enc_full, mha2_w_ref[1],
                               preferred_element_type=jnp.float32)
                       + mha2_b_ref[1]).astype(jnp.bfloat16)
        v2_scr[...] = (jnp.dot(enc_full, mha2_w_ref[2],
                               preferred_element_type=jnp.float32)
                       + mha2_b_ref[2]).astype(jnp.bfloat16)

    # Query rows of this tile, sliced from the resident (S, D) block (x is not
    # passed twice -> one less DMA stream and 2 fewer VMEM buffers per step).
    q_start = pl.multiple_of(qt * TQ, TQ)
    x_q = xkv_ref[0, pl.ds(q_start, TQ), :]            # (TQ, D) bf16

    # Hoisted mask terms (masks arrive as bf16 0/1; math stays in f32).
    neg_la = la_mask_ref[0, 0].astype(jnp.float32) * jnp.float32(-1e9)    # (TQ, S)
    neg_pad = pad_mask_ref[0, 0].astype(jnp.float32) * jnp.float32(-1e9)  # (1, Se)

    scale = jnp.float32(1.0 / (Dh ** 0.5))

    def mha(q_in_b16, w_ref, b_ref, k_scr, v_scr, neg_mask, aw_ref):
        # Q projection: bf16 operands, f32 accumulation (full-width D contraction).
        q = jnp.dot(q_in_b16, w_ref[0],
                    preferred_element_type=jnp.float32) + b_ref[0]
        tq = q.shape[0]
        skv = k_scr.shape[0]

        # Head-batched attention: one 3-D contraction per matmul, no per-head loop.
        # TODO(synk): if the Dh<128 reshapes show XLU relayouts in a bundle dump,
        # project directly into (tq, H, Dh) via lax.dot_general on (D, H, Dh) weights.
        q3 = (q * scale).reshape(tq, H, Dh).astype(jnp.bfloat16)
        k3 = k_scr[...].reshape(skv, H, Dh)
        v3 = v_scr[...].reshape(skv, H, Dh)

        logits = jnp.einsum('qhd,khd->hqk', q3, k3,
                            preferred_element_type=jnp.float32)     # (H, TQ, Skv)
        logits = logits + neg_mask                                   # broadcast over heads
        logits = logits - jnp.max(logits, axis=-1, keepdims=True)
        p = jnp.exp(logits)                                          # f32 softmax math
        # EUP approximate reciprocal: rows sum to ~1 (within test tolerance).
        attn = p * pl.reciprocal(jnp.sum(p, axis=-1, keepdims=True), approx=True)
        aw_ref[0] = attn.astype(aw_ref.dtype)                        # bf16, one store

        ctx = jnp.einsum('hqk,khd->qhd', attn.astype(jnp.bfloat16), v3,
                         preferred_element_type=jnp.float32)         # (TQ, H, Dh)
        ctx = ctx.reshape(tq, D).astype(jnp.bfloat16)
        return jnp.dot(ctx, w_ref[3],
                       preferred_element_type=jnp.float32) + b_ref[3]

    def ffn(x_in_f32):
        xb = x_in_f32.astype(jnp.bfloat16)
        tq = xb.shape[0]
        d_ff = ffn_w1_ref.shape[1]
        n_chunks = d_ff // ff_chunk
        if n_chunks <= 1:
            h = jnp.dot(xb, ffn_w1_ref[...],
                        preferred_element_type=jnp.float32) + ffn_b1_ref[0]
            h = jnp.maximum(h, 0.0).astype(jnp.bfloat16)
            acc = jnp.dot(h, ffn_w2_ref[...], preferred_element_type=jnp.float32)
        else:
            # fori_loop (not a static Python loop) bounds the live range of the
            # (TQ, ff_chunk) intermediates -> no vreg spills at large d_ff.
            def body(c, acc):
                lo = pl.multiple_of(c * ff_chunk, ff_chunk)
                h = (jnp.dot(xb, ffn_w1_ref[:, pl.ds(lo, ff_chunk)],
                             preferred_element_type=jnp.float32)
                     + ffn_b1_ref[0, pl.ds(lo, ff_chunk)])
                h = jnp.maximum(h, 0.0).astype(jnp.bfloat16)
                return acc + jnp.dot(h, ffn_w2_ref[pl.ds(lo, ff_chunk), :],
                                     preferred_element_type=jnp.float32)
            acc = jax.lax.fori_loop(0, n_chunks, body,
                                    jnp.zeros((tq, D), jnp.float32))
        return acc + ffn_b2_ref[0]

    ln_g = ln_g_ref[...]   # (3, D) f32
    ln_b = ln_b_ref[...]   # (3, D) f32

    # Block 1: masked self-attention + residual + LayerNorm (dropout = identity).
    attn1 = mha(x_q, mha1_w_ref, mha1_b_ref, k1_scr, v1_scr, neg_la, aw1_ref)
    out1 = _layernorm(x_q.astype(jnp.float32) + attn1, ln_g[0], ln_b[0])

    # Block 2: cross-attention.  PyTorch: mha2(enc_output, enc_output, out1, pad_mask)
    # with forward(v, k, q)  =>  q = out1, k = v = enc_output.
    attn2 = mha(out1.astype(jnp.bfloat16), mha2_w_ref, mha2_b_ref,
                k2_scr, v2_scr, neg_pad, aw2_ref)
    out2 = _layernorm(out1 + attn2, ln_g[1], ln_b[1])

    # Block 3: feed-forward + residual + LayerNorm.
    out3 = _layernorm(out2 + ffn(out2), ln_g[2], ln_b[2])
    out_ref[0] = out3.astype(out_ref.dtype)


def _single_buffer_kwargs():
    """pipeline_mode=pl.Buffered(1) for never-changing blocks, if supported."""
    try:
        pl.BlockSpec((8, 128), lambda *a: (0, 0), pipeline_mode=pl.Buffered(1))
        return {"pipeline_mode": pl.Buffered(1)}
    except Exception:
        return {}


def _vmem_limit_bytes():
    # Leave ~25% headroom for Mosaic internal scratch (critical on v7x: 64 MiB/TC).
    try:
        return int(pltpu.get_tpu_info().vmem_capacity_bytes) * 3 // 4
    except Exception:
        return 48 * 1024 * 1024          # safe on every TPU generation


def decoder_layer(x, enc, la_mask, pad_mask, params, num_heads,
                  *, single_buffer_weights=True):
    B, S, D = x.shape
    Se = enc.shape[1]
    H = num_heads
    depth = D // H
    d_ff = params["ffn_w1"].shape[1]

    # Query tile (flash-style).  256 fills the 256-deep MXU on v6e/v7x (and fits
    # v7x VMEM because aw outputs are bf16); on v5e 128 already fills the MXU.
    if S <= 256:
        TQ = S
    elif S % 256 == 0:
        TQ = 256
    elif S % 128 == 0:
        TQ = 128
    else:
        TQ = S
    n_qt = S // TQ

    if d_ff <= 2048:
        ff_chunk = d_ff
    else:
        ff_chunk = next((c for c in (2048, 1024, 512) if d_ff % c == 0), d_ff)

    kernel = functools.partial(decoder_layer_kernel, num_heads=H, depth=depth,
                               tile_q=TQ, ff_chunk=ff_chunk)

    bf16 = jnp.bfloat16
    xb = x.astype(bf16)
    encb = enc.astype(bf16)
    # 0/1 masks are exact in bf16 -> halves their HBM traffic.
    # TODO(synk): when the caller only ever passes the pure causal mask, synthesize
    # it in-kernel from lax.broadcasted_iota instead of DMA-ing a (B,1,S,S) tensor.
    la_b = la_mask.astype(bf16)
    pad_b = pad_mask.astype(bf16)

    sb = _single_buffer_kwargs() if single_buffer_weights else {}

    def const_spec(shape):
        # Constant index map -> DMA'd once; Buffered(1) -> single VMEM buffer
        # (never double-buffer weights whose block never changes).
        return pl.BlockSpec(shape, lambda b, qt: (0,) * len(shape), **sb)

    in_specs = [
        pl.BlockSpec((1, S, D), lambda b, qt: (b, 0, 0)),            # x (K/V + query slice)
        pl.BlockSpec((1, Se, D), lambda b, qt: (b, 0, 0)),           # enc_output
        pl.BlockSpec((1, 1, TQ, S), lambda b, qt: (b, 0, qt, 0)),    # look-ahead mask rows
        pl.BlockSpec((1, 1, 1, Se), lambda b, qt: (b, 0, 0, 0)),     # padding mask
        const_spec((4, D, D)), const_spec((4, D)),                   # mha1 W / b
        const_spec((4, D, D)), const_spec((4, D)),                   # mha2 W / b
        const_spec((D, d_ff)), const_spec((1, d_ff)),                # ffn linear1
        const_spec((d_ff, D)), const_spec((1, D)),                   # ffn linear2
        const_spec((3, D)), const_spec((3, D)),                      # layernorm gamma / beta
    ]
    out_specs = [
        pl.BlockSpec((1, TQ, D), lambda b, qt: (b, qt, 0)),
        pl.BlockSpec((1, H, TQ, S), lambda b, qt: (b, 0, qt, 0)),
        pl.BlockSpec((1, H, TQ, Se), lambda b, qt: (b, 0, qt, 0)),
    ]
    out_shape = [
        jax.ShapeDtypeStruct((B, S, D), jnp.float32),
        # bf16 attention weights: halves the dominant HBM writeback / VMEM blocks.
        jax.ShapeDtypeStruct((B, H, S, S), jnp.bfloat16),
        jax.ShapeDtypeStruct((B, H, S, Se), jnp.bfloat16),
    ]
    scratch_shapes = [
        pltpu.VMEM((S, D), bf16),    # K (self-attn), hoisted per batch element
        pltpu.VMEM((S, D), bf16),    # V (self-attn)
        pltpu.VMEM((Se, D), bf16),   # K (cross-attn)
        pltpu.VMEM((Se, D), bf16),   # V (cross-attn)
    ]

    return pl.pallas_call(
        kernel,
        grid=(B, n_qt),
        in_specs=in_specs,
        out_specs=out_specs,
        out_shape=out_shape,
        scratch_shapes=scratch_shapes,
        compiler_params=pltpu.CompilerParams(
            # batch: parallel (megacore); query tiles: arbitrary (sequential) so the
            # pl.when(qt==0) K/V scratch is valid for every later tile of a batch.
            dimension_semantics=("parallel", "arbitrary"),
            vmem_limit_bytes=_vmem_limit_bytes(),
        ),
    )(xb, encb, la_b, pad_b,
      params["mha1_w"].astype(bf16), params["mha1_b"],
      params["mha2_w"].astype(bf16), params["mha2_b"],
      params["ffn_w1"].astype(bf16), params["ffn_b1"],
      params["ffn_w2"].astype(bf16), params["ffn_b2"],
      params["ln_g"], params["ln_b"])


def reference(x, enc, la_mask, pad_mask, params, num_heads):
    """Pure-JAX f32 reference mirroring the PyTorch module (eval mode)."""
    B, S, D = x.shape
    H = num_heads
    depth = D // H

    def ln(t, g, b):
        m = t.mean(-1, keepdims=True)
        v = ((t - m) ** 2).mean(-1, keepdims=True)
        return (t - m) / jnp.sqrt(v + 1e-6) * g + b

    def mha(v_in, k_in, q_in, W, Bv, mask):
        # Argument order mirrors PyTorch MultiHeadAttention.forward(v, k, q, mask).
        Sq = q_in.shape[1]
        q = q_in @ W[0] + Bv[0]
        k = k_in @ W[1] + Bv[1]
        v = v_in @ W[2] + Bv[2]
        split = lambda t: t.reshape(B, t.shape[1], H, depth).transpose(0, 2, 1, 3)
        q, k, v = split(q), split(k), split(v)
        logits = (q @ k.transpose(0, 1, 3, 2)) / jnp.sqrt(jnp.float32(depth))
        logits = logits + mask * (-1e9)
        aw = jax.nn.softmax(logits, axis=-1)
        o = (aw @ v).transpose(0, 2, 1, 3).reshape(B, Sq, D)
        return o @ W[3] + Bv[3], aw

    a1, aw1 = mha(x, x, x, params["mha1_w"], params["mha1_b"], la_mask)
    o1 = ln(x + a1, params["ln_g"][0], params["ln_b"][0])
    a2, aw2 = mha(enc, enc, o1, params["mha2_w"], params["mha2_b"], pad_mask)
    o2 = ln(o1 + a2, params["ln_g"][1], params["ln_b"][1])
    h = jnp.maximum(o2 @ params["ffn_w1"] + params["ffn_b1"][0], 0.0)
    f = h @ params["ffn_w2"] + params["ffn_b2"][0]
    o3 = ln(o2 + f, params["ln_g"][2], params["ln_b"][2])
    return o3, aw1, aw2


if __name__ == "__main__":
    B, S, Se, D, H, d_ff = 2, 8, 8, 32, 4, 64

    key = jax.random.PRNGKey(0)
    keys = jax.random.split(key, 16)

    params = {
        "mha1_w": 0.1 * jax.random.normal(keys[0], (4, D, D), jnp.float32),
        "mha1_b": 0.1 * jax.random.normal(keys[1], (4, D), jnp.float32),
        "mha2_w": 0.1 * jax.random.normal(keys[2], (4, D, D), jnp.float32),
        "mha2_b": 0.1 * jax.random.normal(keys[3], (4, D), jnp.float32),
        "ffn_w1": 0.1 * jax.random.normal(keys[4], (D, d_ff), jnp.float32),
        "ffn_b1": 0.1 * jax.random.normal(keys[5], (1, d_ff), jnp.float32),
        "ffn_w2": 0.1 * jax.random.normal(keys[6], (d_ff, D), jnp.float32),
        "ffn_b2": 0.1 * jax.random.normal(keys[7], (1, D), jnp.float32),
        "ln_g": 1.0 + 0.05 * jax.random.normal(keys[8], (3, D), jnp.float32),
        "ln_b": 0.05 * jax.random.normal(keys[9], (3, D), jnp.float32),
    }

    x = jax.random.normal(keys[10], (B, S, D), jnp.float32)
    enc = jax.random.normal(keys[11], (B, Se, D), jnp.float32)

    # look-ahead mask: 1.0 where attending to a future position (masked out)
    la = 1.0 - jnp.tril(jnp.ones((S, S), jnp.float32))
    look_ahead_mask = jnp.broadcast_to(la[None, None], (B, 1, S, S))
    # padding mask: mask the last two encoder positions of batch element 1
    pad = jnp.zeros((B, 1, 1, Se), jnp.float32)
    padding_mask = pad.at[1, 0, 0, Se - 2:].set(1.0)

    try:
        outs = decoder_layer(x, enc, look_ahead_mask, padding_mask, params, H)
    except Exception:
        # Fallback for JAX versions without BlockSpec pipeline_mode support.
        outs = decoder_layer(x, enc, look_ahead_mask, padding_mask, params, H,
                             single_buffer_weights=False)
    out3, aw1, aw2 = outs
    jax.block_until_ready((out3, aw1, aw2))

    r_out3, r_aw1, r_aw2 = reference(x, enc, look_ahead_mask, padding_mask, params, H)
    # Tolerances account for bf16 matmul operands, bf16 attention-weight outputs,
    # and the EUP approximate reciprocal in the softmax denominator.
    assert jnp.allclose(out3, r_out3, rtol=5e-2, atol=5e-2)
    assert jnp.allclose(aw1.astype(jnp.float32), r_aw1, rtol=5e-2, atol=5e-2)
    assert jnp.allclose(aw2.astype(jnp.float32), r_aw2, rtol=5e-2, atol=5e-2)

    print("KERNEL_OK")
</pallas_src>

<mosaic_0001>
module attributes {stable_mosaic.version = 11 : i64} {
  func.func @decoder_layer_kernel(%arg0: i32, %arg1: i32, %arg2: memref<1x8x32xbf16, #tpu.memory_space<vmem>>, %arg3: memref<1x8x32xbf16, #tpu.memory_space<vmem>>, %arg4: memref<1x1x8x8xbf16, #tpu.memory_space<vmem>>, %arg5: memref<1x1x1x8xbf16, #tpu.memory_space<vmem>>, %arg6: memref<4x32x32xbf16, #tpu.memory_space<vmem>>, %arg7: memref<4x32xf32, #tpu.memory_space<vmem>>, %arg8: memref<4x32x32xbf16, #tpu.memory_space<vmem>>, %arg9: memref<4x32xf32, #tpu.memory_space<vmem>>, %arg10: memref<32x64xbf16, #tpu.memory_space<vmem>>, %arg11: memref<1x64xf32, #tpu.memory_space<vmem>>, %arg12: memref<64x32xbf16, #tpu.memory_space<vmem>>, %arg13: memref<1x32xf32, #tpu.memory_space<vmem>>, %arg14: memref<3x32xf32, #tpu.memory_space<vmem>>, %arg15: memref<3x32xf32, #tpu.memory_space<vmem>>, %arg16: memref<1x8x32xf32, #tpu.memory_space<vmem>>, %arg17: memref<1x4x8x8xbf16, #tpu.memory_space<vmem>>, %arg18: memref<1x4x8x8xbf16, #tpu.memory_space<vmem>>, %arg19: memref<8x32xbf16, #tpu.memory_space<vmem>>, %arg20: memref<8x32xbf16, #tpu.memory_space<vmem>>, %arg21: memref<8x32xbf16, #tpu.memory_space<vmem>>, %arg22: memref<8x32xbf16, #tpu.memory_space<vmem>>) attributes {dimension_semantics = [#tpu.dimension_semantics<parallel>, #tpu.dimension_semantics<arbitrary>], iteration_bounds = array<i64: 2, 1>, scalar_prefetch = 0 : i64, scratch_operands = 4 : i64, tpu.core_type = #tpu.core_type<tc>, window_params = [{transform_indices = @transform_0, window_bounds = array<i64: 1, 8, 32>}, {transform_indices = @transform_1, window_bounds = array<i64: 1, 8, 32>}, {transform_indices = @transform_2, window_bounds = array<i64: 1, 1, 8, 8>}, {transform_indices = @transform_3, window_bounds = array<i64: 1, 1, 1, 8>}, {pipeline_mode = #tpu.pipeline_mode<synchronous>, transform_indices = @transform_4, window_bounds = array<i64: 4, 32, 32>}, {pipeline_mode = #tpu.pipeline_mode<synchronous>, transform_indices = @transform_5, window_bounds = array<i64: 4, 32>}, {pipeline_mode = #tpu.pipeline_mode<synchronous>, transform_indices = @transform_6, window_bounds = array<i64: 4, 32, 32>}, {pipeline_mode = #tpu.pipeline_mode<synchronous>, transform_indices = @transform_7, window_bounds = array<i64: 4, 32>}, {pipeline_mode = #tpu.pipeline_mode<synchronous>, transform_indices = @transform_8, window_bounds = array<i64: 32, 64>}, {pipeline_mode = #tpu.pipeline_mode<synchronous>, transform_indices = @transform_9, window_bounds = array<i64: 1, 64>}, {pipeline_mode = #tpu.pipeline_mode<synchronous>, transform_indices = @transform_10, window_bounds = array<i64: 64, 32>}, {pipeline_mode = #tpu.pipeline_mode<synchronous>, transform_indices = @transform_11, window_bounds = array<i64: 1, 32>}, {pipeline_mode = #tpu.pipeline_mode<synchronous>, transform_indices = @transform_12, window_bounds = array<i64: 3, 32>}, {pipeline_mode = #tpu.pipeline_mode<synchronous>, transform_indices = @transform_13, window_bounds = array<i64: 3, 32>}, {transform_indices = @transform_14, window_bounds = array<i64: 1, 8, 32>}, {transform_indices = @transform_15, window_bounds = array<i64: 1, 4, 8, 8>}, {transform_indices = @transform_16, window_bounds = array<i64: 1, 4, 8, 8>}]} {
    %c0_i32 = arith.constant 0 : i32
    %0 = arith.cmpi eq, %arg1, %c0_i32 : i32
    %1 = arith.extui %0 : i1 to i32
    %c0_i32_0 = arith.constant 0 : i32
    %2 = arith.cmpi ne, %1, %c0_i32_0 : i32
    scf.if %2 {
      %c0_93 = arith.constant 0 : index
      %c0_94 = arith.constant 0 : index
      %c0_95 = arith.constant 0 : index
      %224 = vector.load %arg2[%c0_93, %c0_94, %c0_95] : memref<1x8x32xbf16, #tpu.memory_space<vmem>>, vector<1x8x32xbf16>
      %225 = vector.shape_cast %224 : vector<1x8x32xbf16> to vector<8x32xbf16>
      %c0_96 = arith.constant 0 : index
      %c0_97 = arith.constant 0 : index
      %c0_98 = arith.constant 0 : index
      %226 = vector.load %arg3[%c0_96, %c0_97, %c0_98] : memref<1x8x32xbf16, #tpu.memory_space<vmem>>, vector<1x8x32xbf16>
      %227 = vector.shape_cast %226 : vector<1x8x32xbf16> to vector<8x32xbf16>
      %c1 = arith.constant 1 : index
      %c0_99 = arith.constant 0 : index
      %c0_100 = arith.constant 0 : index
      %228 = vector.load %arg6[%c1, %c0_99, %c0_100] : memref<4x32x32xbf16, #tpu.memory_space<vmem>>, vector<1x32x32xbf16>
      %229 = vector.shape_cast %228 : vector<1x32x32xbf16> to vector<32x32xbf16>
      %cst_101 = arith.constant dense<0.000000e+00> : vector<8x32xf32>
      %230 = tpu.matmul %225, %229, %cst_101 {dimension_numbers = #tpu.dot_dimension_numbers<[1], [0], [0], [1], [0, 0, 1, 1], [], []>} : vector<8x32xbf16>, vector<32x32xbf16>, vector<8x32xf32> -> vector<8x32xf32>
      %c1_102 = arith.constant 1 : index
      %c0_103 = arith.constant 0 : index
      %231 = vector.load %arg7[%c1_102, %c0_103] : memref<4x32xf32, #tpu.memory_space<vmem>>, vector<1x32xf32>
      %232 = vector.shape_cast %231 : vector<1x32xf32> to vector<32xf32>
      %233 = vector.shape_cast %232 : vector<32xf32> to vector<1x32xf32>
      %234 = vector.broadcast %233 : vector<1x32xf32> to vector<8x32xf32>
      %235 = arith.addf %230, %234 : vector<8x32xf32>
      %236 = arith.truncf %235 : vector<8x32xf32> to vector<8x32xbf16>
      %c0_104 = arith.constant 0 : index
      %c0_105 = arith.constant 0 : index
      %237 = vector.load %arg19[%c0_104, %c0_105] : memref<8x32xbf16, #tpu.memory_space<vmem>>, vector<8x32xbf16>
      tpu.vector_store %arg19[%c0_104, %c0_105], %236 {strides = array<i32>} : memref<8x32xbf16, #tpu.memory_space<vmem>>, vector<8x32xbf16>,
      %c2 = arith.constant 2 : index
      %c0_106 = arith.constant 0 : index
      %c0_107 = arith.constant 0 : index
      %238 = vector.load %arg6[%c2, %c0_106, %c0_107] : memref<4x32x32xbf16, #tpu.memory_space<vmem>>, vector<1x32x32xbf16>
      %239 = vector.shape_cast %238 : vector<1x32x32xbf16> to vector<32x32xbf16>
      %cst_108 = arith.constant dense<0.000000e+00> : vector<8x32xf32>
      %240 = tpu.matmul %225, %239, %cst_108 {dimension_numbers = #tpu.dot_dimension_numbers<[1], [0], [0], [1], [0, 0, 1, 1], [], []>} : vector<8x32xbf16>, vector<32x32xbf16>, vector<8x32xf32> -> vector<8x32xf32>
      %c2_109 = arith.constant 2 : index
      %c0_110 = arith.constant 0 : index
      %241 = vector.load %arg7[%c2_109, %c0_110] : memref<4x32xf32, #tpu.memory_space<vmem>>, vector<1x32xf32>
      %242 = vector.shape_cast %241 : vector<1x32xf32> to vector<32xf32>
      %243 = vector.shape_cast %242 : vector<32xf32> to vector<1x32xf32>
      %244 = vector.broadcast %243 : vector<1x32xf32> to vector<8x32xf32>
      %245 = arith.addf %240, %244 : vector<8x32xf32>
      %246 = arith.truncf %245 : vector<8x32xf32> to vector<8x32xbf16>
      %c0_111 = arith.constant 0 : index
      %c0_112 = arith.constant 0 : index
      %247 = vector.load %arg20[%c0_111, %c0_112] : memref<8x32xbf16, #tpu.memory_space<vmem>>, vector<8x32xbf16>
      tpu.vector_store %arg20[%c0_111, %c0_112], %246 {strides = array<i32>} : memref<8x32xbf16, #tpu.memory_space<vmem>>, vector<8x32xbf16>,
      %c1_113 = arith.constant 1 : index
      %c0_114 = arith.constant 0 : index
      %c0_115 = arith.constant 0 : index
      %248 = vector.load %arg8[%c1_113, %c0_114, %c0_115] : memref<4x32x32xbf16, #tpu.memory_space<vmem>>, vector<1x32x32xbf16>
      %249 = vector.shape_cast %248 : vector<1x32x32xbf16> to vector<32x32xbf16>
      %cst_116 = arith.constant dense<0.000000e+00> : vector<8x32xf32>
      %250 = tpu.matmul %227, %249, %cst_116 {dimension_numbers = #tpu.dot_dimension_numbers<[1], [0], [0], [1], [0, 0, 1, 1], [], []>} : vector<8x32xbf16>, vector<32x32xbf16>, vector<8x32xf32> -> vector<8x32xf32>
      %c1_117 = arith.constant 1 : index
      %c0_118 = arith.constant 0 : index
      %251 = vector.load %arg9[%c1_117, %c0_118] : memref<4x32xf32, #tpu.memory_space<vmem>>, vector<1x32xf32>
      %252 = vector.shape_cast %251 : vector<1x32xf32> to vector<32xf32>
      %253 = vector.shape_cast %252 : vector<32xf32> to vector<1x32xf32>
      %254 = vector.broadcast %253 : vector<1x32xf32> to vector<8x32xf32>
      %255 = arith.addf %250, %254 : vector<8x32xf32>
      %256 = arith.truncf %255 : vector<8x32xf32> to vector<8x32xbf16>
      %c0_119 = arith.constant 0 : index
      %c0_120 = arith.constant 0 : index
      %257 = vector.load %arg21[%c0_119, %c0_120] : memref<8x32xbf16, #tpu.memory_space<vmem>>, vector<8x32xbf16>
      tpu.vector_store %arg21[%c0_119, %c0_120], %256 {strides = array<i32>} : memref<8x32xbf16, #tpu.memory_space<vmem>>, vector<8x32xbf16>,
      %c2_121 = arith.constant 2 : index
      %c0_122 = arith.constant 0 : index
      %c0_123 = arith.constant 0 : index
      %258 = vector.load %arg8[%c2_121, %c0_122, %c0_123] : memref<4x32x32xbf16, #tpu.memory_space<vmem>>, vector<1x32x32xbf16>
      %259 = vector.shape_cast %258 : vector<1x32x32xbf16> to vector<32x32xbf16>
      %cst_124 = arith.constant dense<0.000000e+00> : vector<8x32xf32>
      %260 = tpu.matmul %227, %259, %cst_124 {dimension_numbers = #tpu.dot_dimension_numbers<[1], [0], [0], [1], [0, 0, 1, 1], [], []>} : vector<8x32xbf16>, vector<32x32xbf16>, vector<8x32xf32> -> vector<8x32xf32>
      %c2_125 = arith.constant 2 : index
      %c0_126 = arith.constant 0 : index
      %261 = vector.load %arg9[%c2_125, %c0_126] : memref<4x32xf32, #tpu.memory_space<vmem>>, vector<1x32xf32>
      %262 = vector.shape_cast %261 : vector<1x32xf32> to vector<32xf32>
      %263 = vector.shape_cast %262 : vector<32xf32> to vector<1x32xf32>
      %264 = vector.broadcast %263 : vector<1x32xf32> to vector<8x32xf32>
      %265 = arith.addf %260, %264 : vector<8x32xf32>
      %266 = arith.truncf %265 : vector<8x32xf32> to vector<8x32xbf16>
      %c0_127 = arith.constant 0 : index
      %c0_128 = arith.constant 0 : index
      %267 = vector.load %arg22[%c0_127, %c0_128] : memref<8x32xbf16, #tpu.memory_space<vmem>>, vector<8x32xbf16>
      tpu.vector_store %arg22[%c0_127, %c0_128], %266 {strides = array<i32>} : memref<8x32xbf16, #tpu.memory_space<vmem>>, vector<8x32xbf16>,
    } else {
    }
    %c8_i32 = arith.constant 8 : i32
    %3 = arith.muli %arg1, %c8_i32 : i32
    %4 = tpu.assume_multiple %3, 8 : i32
    %c0 = arith.constant 0 : index
    %5 = arith.index_cast %4 : i32 to index
    %c0_1 = arith.constant 0 : index
    %6 = vector.load %arg2[%c0, %5, %c0_1] : memref<1x8x32xbf16, #tpu.memory_space<vmem>>, vector<1x8x32xbf16>
    %7 = vector.shape_cast %6 : vector<1x8x32xbf16> to vector<8x32xbf16>
    %c0_2 = arith.constant 0 : index
    %c0_3 = arith.constant 0 : index
    %c0_4 = arith.constant 0 : index
    %c0_5 = arith.constant 0 : index
    %8 = vector.load %arg4[%c0_2, %c0_3, %c0_4, %c0_5] : memref<1x1x8x8xbf16, #tpu.memory_space<vmem>>, vector<1x1x8x8xbf16>
    %9 = vector.shape_cast %8 : vector<1x1x8x8xbf16> to vector<8x8xbf16>
    %10 = arith.extf %9 : vector<8x8xbf16> to vector<8x8xf32>
    %cst = arith.constant -1.000000e+09 : f32
    %11 = vector.broadcast %cst : f32 to vector<8x8xf32>
    %12 = arith.mulf %10, %11 : vector<8x8xf32>
    %c0_6 = arith.constant 0 : index
    %c0_7 = arith.constant 0 : index
    %c0_8 = arith.constant 0 : index
    %c0_9 = arith.constant 0 : index
    %13 = vector.load %arg5[%c0_6, %c0_7, %c0_8, %c0_9] : memref<1x1x1x8xbf16, #tpu.memory_space<vmem>>, vector<1x1x1x8xbf16>
    %14 = vector.shape_cast %13 : vector<1x1x1x8xbf16> to vector<1x8xbf16>
    %15 = arith.extf %14 : vector<1x8xbf16> to vector<1x8xf32>
    %cst_10 = arith.constant -1.000000e+09 : f32
    %16 = vector.broadcast %cst_10 : f32 to vector<1x8xf32>
    %17 = arith.mulf %15, %16 : vector<1x8xf32>
    %c0_11 = arith.constant 0 : index
    %c0_12 = arith.constant 0 : index
    %18 = vector.load %arg14[%c0_11, %c0_12] : memref<3x32xf32, #tpu.memory_space<vmem>>, vector<3x32xf32>
    %c0_13 = arith.constant 0 : index
    %c0_14 = arith.constant 0 : index
    %19 = vector.load %arg15[%c0_13, %c0_14] : memref<3x32xf32, #tpu.memory_space<vmem>>, vector<3x32xf32>
    %c0_15 = arith.constant 0 : index
    %c0_16 = arith.constant 0 : index
    %c0_17 = arith.constant 0 : index
    %20 = vector.load %arg6[%c0_15, %c0_16, %c0_17] : memref<4x32x32xbf16, #tpu.memory_space<vmem>>, vector<1x32x32xbf16>
    %21 = vector.shape_cast %20 : vector<1x32x32xbf16> to vector<32x32xbf16>
    %cst_18 = arith.constant dense<0.000000e+00> : vector<8x32xf32>
    %22 = tpu.matmul %7, %21, %cst_18 {dimension_numbers = #tpu.dot_dimension_numbers<[1], [0], [0], [1], [0, 0, 1, 1], [], []>} : vector<8x32xbf16>, vector<32x32xbf16>, vector<8x32xf32> -> vector<8x32xf32>
    %c0_19 = arith.constant 0 : index
    %c0_20 = arith.constant 0 : index
    %23 = vector.load %arg7[%c0_19, %c0_20] : memref<4x32xf32, #tpu.memory_space<vmem>>, vector<1x32xf32>
    %24 = vector.shape_cast %23 : vector<1x32xf32> to vector<32xf32>
    %25 = vector.shape_cast %24 : vector<32xf32> to vector<1x32xf32>
    %26 = vector.broadcast %25 : vector<1x32xf32> to vector<8x32xf32>
    %27 = arith.addf %22, %26 : vector<8x32xf32>
    %cst_21 = arith.constant 0.353553385 : f32
    %28 = vector.broadcast %cst_21 : f32 to vector<8x32xf32>
    %29 = arith.mulf %27, %28 : vector<8x32xf32>
    %30 = vector.shape_cast %29 : vector<8x32xf32> to vector<8x4x8xf32>
    %31 = arith.truncf %30 : vector<8x4x8xf32> to vector<8x4x8xbf16>
    %c0_22 = arith.constant 0 : index
    %c0_23 = arith.constant 0 : index
    %32 = vector.load %arg19[%c0_22, %c0_23] : memref<8x32xbf16, #tpu.memory_space<vmem>>, vector<8x32xbf16>
    %33 = vector.shape_cast %32 : vector<8x32xbf16> to vector<8x4x8xbf16>
    %c0_24 = arith.constant 0 : index
    %c0_25 = arith.constant 0 : index
    %34 = vector.load %arg20[%c0_24, %c0_25] : memref<8x32xbf16, #tpu.memory_space<vmem>>, vector<8x32xbf16>
    %35 = vector.shape_cast %34 : vector<8x32xbf16> to vector<8x4x8xbf16>
    "tpu.trace_start"() <{level = 10 : i32, message = "qhd,khd->hqk"}> : () -> ()
    %cst_26 = arith.constant dense<0.000000e+00> : vector<4x8x8xf32>
    %36 = tpu.matmul %31, %33, %cst_26 {dimension_numbers = #tpu.dot_dimension_numbers<[2], [2], [0], [0], [0, 1, 0, 0, 1, 0], [1], [1]>} : vector<8x4x8xbf16>, vector<8x4x8xbf16>, vector<4x8x8xf32> -> vector<4x8x8xf32>
    "tpu.trace_stop"() : () -> ()
    %37 = vector.shape_cast %12 : vector<8x8xf32> to vector<1x8x8xf32>
    %38 = vector.broadcast %37 : vector<1x8x8xf32> to vector<4x8x8xf32>
    %39 = arith.addf %36, %38 : vector<4x8x8xf32>
    %cst_27 = arith.constant dense<0xFF800000> : vector<4x8xf32>
    %40 = vector.multi_reduction <maximumf>, %39, %cst_27 [2] : vector<4x8x8xf32> to vector<4x8xf32>
    %41 = vector.shape_cast %40 : vector<4x8xf32> to vector<4x8x1xf32>
    %42 = vector.broadcast %41 : vector<4x8x1xf32> to vector<4x8x8xf32>
    %43 = arith.subf %39, %42 : vector<4x8x8xf32>
    %44 = math.exp %43 : vector<4x8x8xf32>
    %cst_28 = arith.constant dense<0.000000e+00> : vector<4x8xf32>
    %45 = vector.multi_reduction <add>, %44, %cst_28 [2] : vector<4x8x8xf32> to vector<4x8xf32>
    %46 = vector.shape_cast %45 : vector<4x8xf32> to vector<4x8x1xf32>
    %47 = tpu.reciprocal %46 {approx = true} : vector<4x8x1xf32> -> vector<4x8x1xf32>
    %48 = vector.broadcast %47 : vector<4x8x1xf32> to vector<4x8x8xf32>
    %49 = arith.mulf %44, %48 : vector<4x8x8xf32>
    %50 = arith.truncf %49 : vector<4x8x8xf32> to vector<4x8x8xbf16>
    %c0_29 = arith.constant 0 : index
    %c0_30 = arith.constant 0 : index
    %c0_31 = arith.constant 0 : index
    %c0_32 = arith.constant 0 : index
    %51 = vector.load %arg17[%c0_29, %c0_30, %c0_31, %c0_32] : memref<1x4x8x8xbf16, #tpu.memory_space<vmem>>, vector<1x4x8x8xbf16>
    %52 = vector.shape_cast %51 : vector<1x4x8x8xbf16> to vector<4x8x8xbf16>
    %53 = vector.shape_cast %50 : vector<4x8x8xbf16> to vector<1x4x8x8xbf16>
    tpu.vector_store %arg17[%c0_29, %c0_30, %c0_31, %c0_32], %53 {strides = array<i32>} : memref<1x4x8x8xbf16, #tpu.memory_space<vmem>>, vector<1x4x8x8xbf16>,
    %54 = arith.truncf %49 : vector<4x8x8xf32> to vector<4x8x8xbf16>
    "tpu.trace_start"() <{level = 10 : i32, message = "hqk,khd->qhd"}> : () -> ()
    %cst_33 = arith.constant dense<0.000000e+00> : vector<4x8x8xf32>
    %55 = tpu.matmul %35, %54, %cst_33 {dimension_numbers = #tpu.dot_dimension_numbers<[0], [2], [2], [1], [0, 1, 0, 2, 1, 1], [1], [0]>} : vector<8x4x8xbf16>, vector<4x8x8xbf16>, vector<4x8x8xf32> -> vector<4x8x8xf32>
    %56 = tpu.transpose %55, [2, 0, 1] : vector<4x8x8xf32> -> vector<8x4x8xf32>
    "tpu.trace_stop"() : () -> ()
    %57 = vector.shape_cast %56 : vector<8x4x8xf32> to vector<8x32xf32>
    %58 = arith.truncf %57 : vector<8x32xf32> to vector<8x32xbf16>
    %c3 = arith.constant 3 : index
    %c0_34 = arith.constant 0 : index
    %c0_35 = arith.constant 0 : index
    %59 = vector.load %arg6[%c3, %c0_34, %c0_35] : memref<4x32x32xbf16, #tpu.memory_space<vmem>>, vector<1x32x32xbf16>
    %60 = vector.shape_cast %59 : vector<1x32x32xbf16> to vector<32x32xbf16>
    %cst_36 = arith.constant dense<0.000000e+00> : vector<8x32xf32>
    %61 = tpu.matmul %58, %60, %cst_36 {dimension_numbers = #tpu.dot_dimension_numbers<[1], [0], [0], [1], [0, 0, 1, 1], [], []>} : vector<8x32xbf16>, vector<32x32xbf16>, vector<8x32xf32> -> vector<8x32xf32>
    %c3_37 = arith.constant 3 : index
    %c0_38 = arith.constant 0 : index
    %62 = vector.load %arg7[%c3_37, %c0_38] : memref<4x32xf32, #tpu.memory_space<vmem>>, vector<1x32xf32>
    %63 = vector.shape_cast %62 : vector<1x32xf32> to vector<32xf32>
    %64 = vector.shape_cast %63 : vector<32xf32> to vector<1x32xf32>
    %65 = vector.broadcast %64 : vector<1x32xf32> to vector<8x32xf32>
    %66 = arith.addf %61, %65 : vector<8x32xf32>
    %67 = arith.extf %7 : vector<8x32xbf16> to vector<8x32xf32>
    %68 = arith.addf %67, %66 : vector<8x32xf32>
    %69 = vector.extract_strided_slice %18 {offsets = [0, 0], sizes = [1, 32], strides = [1, 1]} : vector<3x32xf32> to vector<1x32xf32>
    %70 = vector.shape_cast %69 : vector<1x32xf32> to vector<32xf32>
    %71 = vector.extract_strided_slice %19 {offsets = [0, 0], sizes = [1, 32], strides = [1, 1]} : vector<3x32xf32> to vector<1x32xf32>
    %72 = vector.shape_cast %71 : vector<1x32xf32> to vector<32xf32>
    %cst_39 = arith.constant dense<0.000000e+00> : vector<8xf32>
    %73 = vector.multi_reduction <add>, %68, %cst_39 [1] : vector<8x32xf32> to vector<8xf32>
    %74 = vector.shape_cast %73 : vector<8xf32> to vector<8x1xf32>
    %cst_40 = arith.constant 3.200000e+01 : f32
    %75 = vector.broadcast %cst_40 : f32 to vector<8x1xf32>
    %76 = arith.divf %74, %75 : vector<8x1xf32>
    %77 = vector.broadcast %76 : vector<8x1xf32> to vector<8x32xf32>
    %78 = arith.subf %68, %77 : vector<8x32xf32>
    %79 = arith.mulf %78, %78 : vector<8x32xf32>
    %cst_41 = arith.constant dense<0.000000e+00> : vector<8xf32>
    %80 = vector.multi_reduction <add>, %79, %cst_41 [1] : vector<8x32xf32> to vector<8xf32>
    %81 = vector.shape_cast %80 : vector<8xf32> to vector<8x1xf32>
    %cst_42 = arith.constant 3.200000e+01 : f32
    %82 = vector.broadcast %cst_42 : f32 to vector<8x1xf32>
    %83 = arith.divf %81, %82 : vector<8x1xf32>
    %84 = vector.broadcast %76 : vector<8x1xf32> to vector<8x32xf32>
    %85 = arith.subf %68, %84 : vector<8x32xf32>
    %cst_43 = arith.constant 9.99999997E-7 : f32
    %86 = vector.broadcast %cst_43 : f32 to vector<8x1xf32>
    %87 = arith.addf %83, %86 : vector<8x1xf32>
    %88 = math.rsqrt %87 : vector<8x1xf32>
    %89 = vector.broadcast %88 : vector<8x1xf32> to vector<8x32xf32>
    %90 = arith.mulf %85, %89 : vector<8x32xf32>
    %91 = vector.shape_cast %70 : vector<32xf32> to vector<1x32xf32>
    %92 = vector.broadcast %91 : vector<1x32xf32> to vector<8x32xf32>
    %93 = arith.mulf %90, %92 : vector<8x32xf32>
    %94 = vector.shape_cast %72 : vector<32xf32> to vector<1x32xf32>
    %95 = vector.broadcast %94 : vector<1x32xf32> to vector<8x32xf32>
    %96 = arith.addf %93, %95 : vector<8x32xf32>
    %97 = arith.truncf %96 : vector<8x32xf32> to vector<8x32xbf16>
    %c0_44 = arith.constant 0 : index
    %c0_45 = arith.constant 0 : index
    %c0_46 = arith.constant 0 : index
    %98 = vector.load %arg8[%c0_44, %c0_45, %c0_46] : memref<4x32x32xbf16, #tpu.memory_space<vmem>>, vector<1x32x32xbf16>
    %99 = vector.shape_cast %98 : vector<1x32x32xbf16> to vector<32x32xbf16>
    %cst_47 = arith.constant dense<0.000000e+00> : vector<8x32xf32>
    %100 = tpu.matmul %97, %99, %cst_47 {dimension_numbers = #tpu.dot_dimension_numbers<[1], [0], [0], [1], [0, 0, 1, 1], [], []>} : vector<8x32xbf16>, vector<32x32xbf16>, vector<8x32xf32> -> vector<8x32xf32>
    %c0_48 = arith.constant 0 : index
    %c0_49 = arith.constant 0 : index
    %101 = vector.load %arg9[%c0_48, %c0_49] : memref<4x32xf32, #tpu.memory_space<vmem>>, vector<1x32xf32>
    %102 = vector.shape_cast %101 : vector<1x32xf32> to vector<32xf32>
    %103 = vector.shape_cast %102 : vector<32xf32> to vector<1x32xf32>
    %104 = vector.broadcast %103 : vector<1x32xf32> to vector<8x32xf32>
    %105 = arith.addf %100, %104 : vector<8x32xf32>
    %cst_50 = arith.constant 0.353553385 : f32
    %106 = vector.broadcast %cst_50 : f32 to vector<8x32xf32>
    %107 = arith.mulf %105, %106 : vector<8x32xf32>
    %108 = vector.shape_cast %107 : vector<8x32xf32> to vector<8x4x8xf32>
    %109 = arith.truncf %108 : vector<8x4x8xf32> to vector<8x4x8xbf16>
    %c0_51 = arith.constant 0 : index
    %c0_52 = arith.constant 0 : index
    %110 = vector.load %arg21[%c0_51, %c0_52] : memref<8x32xbf16, #tpu.memory_space<vmem>>, vector<8x32xbf16>
    %111 = vector.shape_cast %110 : vector<8x32xbf16> to vector<8x4x8xbf16>
    %c0_53 = arith.constant 0 : index
    %c0_54 = arith.constant 0 : index
    %112 = vector.load %arg22[%c0_53, %c0_54] : memref<8x32xbf16, #tpu.memory_space<vmem>>, vector<8x32xbf16>
    %113 = vector.shape_cast %112 : vector<8x32xbf16> to vector<8x4x8xbf16>
    "tpu.trace_start"() <{level = 10 : i32, message = "qhd,khd->hqk"}> : () -> ()
    %cst_55 = arith.constant dense<0.000000e+00> : vector<4x8x8xf32>
    %114 = tpu.matmul %109, %111, %cst_55 {dimension_numbers = #tpu.dot_dimension_numbers<[2], [2], [0], [0], [0, 1, 0, 0, 1, 0], [1], [1]>} : vector<8x4x8xbf16>, vector<8x4x8xbf16>, vector<4x8x8xf32> -> vector<4x8x8xf32>
    "tpu.trace_stop"() : () -> ()
    %115 = vector.shape_cast %17 : vector<1x8xf32> to vector<1x1x8xf32>
    %116 = vector.broadcast %115 : vector<1x1x8xf32> to vector<4x8x8xf32>
    %117 = arith.addf %114, %116 : vector<4x8x8xf32>
    %cst_56 = arith.constant dense<0xFF800000> : vector<4x8xf32>
    %118 = vector.multi_reduction <maximumf>, %117, %cst_56 [2] : vector<4x8x8xf32> to vector<4x8xf32>
    %119 = vector.shape_cast %118 : vector<4x8xf32> to vector<4x8x1xf32>
    %120 = vector.broadcast %119 : vector<4x8x1xf32> to vector<4x8x8xf32>
    %121 = arith.subf %117, %120 : vector<4x8x8xf32>
    %122 = math.exp %121 : vector<4x8x8xf32>
    %cst_57 = arith.constant dense<0.000000e+00> : vector<4x8xf32>
    %123 = vector.multi_reduction <add>, %122, %cst_57 [2] : vector<4x8x8xf32> to vector<4x8xf32>
    %124 = vector.shape_cast %123 : vector<4x8xf32> to vector<4x8x1xf32>
    %125 = tpu.reciprocal %124 {approx = true} : vector<4x8x1xf32> -> vector<4x8x1xf32>
    %126 = vector.broadcast %125 : vector<4x8x1xf32> to vector<4x8x8xf32>
    %127 = arith.mulf %122, %126 : vector<4x8x8xf32>
    %128 = arith.truncf %127 : vector<4x8x8xf32> to vector<4x8x8xbf16>
    %c0_58 = arith.constant 0 : index
    %c0_59 = arith.constant 0 : index
    %c0_60 = arith.constant 0 : index
    %c0_61 = arith.constant 0 : index
    %129 = vector.load %arg18[%c0_58, %c0_59, %c0_60, %c0_61] : memref<1x4x8x8xbf16, #tpu.memory_space<vmem>>, vector<1x4x8x8xbf16>
    %130 = vector.shape_cast %129 : vector<1x4x8x8xbf16> to vector<4x8x8xbf16>
    %131 = vector.shape_cast %128 : vector<4x8x8xbf16> to vector<1x4x8x8xbf16>
    tpu.vector_store %arg18[%c0_58, %c0_59, %c0_60, %c0_61], %131 {strides = array<i32>} : memref<1x4x8x8xbf16, #tpu.memory_space<vmem>>, vector<1x4x8x8xbf16>,
    %132 = arith.truncf %127 : vector<4x8x8xf32> to vector<4x8x8xbf16>
    "tpu.trace_start"() <{level = 10 : i32, message = "hqk,khd->qhd"}> : () -> ()
    %cst_62 = arith.constant dense<0.000000e+00> : vector<4x8x8xf32>
    %133 = tpu.matmul %113, %132, %cst_62 {dimension_numbers = #tpu.dot_dimension_numbers<[0], [2], [2], [1], [0, 1, 0, 2, 1, 1], [1], [0]>} : vector<8x4x8xbf16>, vector<4x8x8xbf16>, vector<4x8x8xf32> -> vector<4x8x8xf32>
    %134 = tpu.transpose %133, [2, 0, 1] : vector<4x8x8xf32> -> vector<8x4x8xf32>
    "tpu.trace_stop"() : () -> ()
    %135 = vector.shape_cast %134 : vector<8x4x8xf32> to vector<8x32xf32>
    %136 = arith.truncf %135 : vector<8x32xf32> to vector<8x32xbf16>
    %c3_63 = arith.constant 3 : index
    %c0_64 = arith.constant 0 : index
    %c0_65 = arith.constant 0 : index
    %137 = vector.load %arg8[%c3_63, %c0_64, %c0_65] : memref<4x32x32xbf16, #tpu.memory_space<vmem>>, vector<1x32x32xbf16>
    %138 = vector.shape_cast %137 : vector<1x32x32xbf16> to vector<32x32xbf16>
    %cst_66 = arith.constant dense<0.000000e+00> : vector<8x32xf32>
    %139 = tpu.matmul %136, %138, %cst_66 {dimension_numbers = #tpu.dot_dimension_numbers<[1], [0], [0], [1], [0, 0, 1, 1], [], []>} : vector<8x32xbf16>, vector<32x32xbf16>, vector<8x32xf32> -> vector<8x32xf32>
    %c3_67 = arith.constant 3 : index
    %c0_68 = arith.constant 0 : index
    %140 = vector.load %arg9[%c3_67, %c0_68] : memref<4x32xf32, #tpu.memory_space<vmem>>, vector<1x32xf32>
    %141 = vector.shape_cast %140 : vector<1x32xf32> to vector<32xf32>
    %142 = vector.shape_cast %141 : vector<32xf32> to vector<1x32xf32>
    %143 = vector.broadcast %142 : vector<1x32xf32> to vector<8x32xf32>
    %144 = arith.addf %139, %143 : vector<8x32xf32>
    %145 = arith.addf %96, %144 : vector<8x32xf32>
    %146 = vector.extract_strided_slice %18 {offsets = [1, 0], sizes = [1, 32], strides = [1, 1]} : vector<3x32xf32> to vector<1x32xf32>
    %147 = vector.shape_cast %146 : vector<1x32xf32> to vector<32xf32>
    %148 = vector.extract_strided_slice %19 {offsets = [1, 0], sizes = [1, 32], strides = [1, 1]} : vector<3x32xf32> to vector<1x32xf32>
    %149 = vector.shape_cast %148 : vector<1x32xf32> to vector<32xf32>
    %cst_69 = arith.constant dense<0.000000e+00> : vector<8xf32>
    %150 = vector.multi_reduction <add>, %145, %cst_69 [1] : vector<8x32xf32> to vector<8xf32>
    %151 = vector.shape_cast %150 : vector<8xf32> to vector<8x1xf32>
    %cst_70 = arith.constant 3.200000e+01 : f32
    %152 = vector.broadcast %cst_70 : f32 to vector<8x1xf32>
    %153 = arith.divf %151, %152 : vector<8x1xf32>
    %154 = vector.broadcast %153 : vector<8x1xf32> to vector<8x32xf32>
    %155 = arith.subf %145, %154 : vector<8x32xf32>
    %156 = arith.mulf %155, %155 : vector<8x32xf32>
    %cst_71 = arith.constant dense<0.000000e+00> : vector<8xf32>
    %157 = vector.multi_reduction <add>, %156, %cst_71 [1] : vector<8x32xf32> to vector<8xf32>
    %158 = vector.shape_cast %157 : vector<8xf32> to vector<8x1xf32>
    %cst_72 = arith.constant 3.200000e+01 : f32
    %159 = vector.broadcast %cst_72 : f32 to vector<8x1xf32>
    %160 = arith.divf %158, %159 : vector<8x1xf32>
    %161 = vector.broadcast %153 : vector<8x1xf32> to vector<8x32xf32>
    %162 = arith.subf %145, %161 : vector<8x32xf32>
    %cst_73 = arith.constant 9.99999997E-7 : f32
    %163 = vector.broadcast %cst_73 : f32 to vector<8x1xf32>
    %164 = arith.addf %160, %163 : vector<8x1xf32>
    %165 = math.rsqrt %164 : vector<8x1xf32>
    %166 = vector.broadcast %165 : vector<8x1xf32> to vector<8x32xf32>
    %167 = arith.mulf %162, %166 : vector<8x32xf32>
    %168 = vector.shape_cast %147 : vector<32xf32> to vector<1x32xf32>
    %169 = vector.broadcast %168 : vector<1x32xf32> to vector<8x32xf32>
    %170 = arith.mulf %167, %169 : vector<8x32xf32>
    %171 = vector.shape_cast %149 : vector<32xf32> to vector<1x32xf32>
    %172 = vector.broadcast %171 : vector<1x32xf32> to vector<8x32xf32>
    %173 = arith.addf %170, %172 : vector<8x32xf32>
    %174 = arith.truncf %173 : vector<8x32xf32> to vector<8x32xbf16>
    %c0_74 = arith.constant 0 : index
    %c0_75 = arith.constant 0 : index
    %175 = vector.load %arg10[%c0_74, %c0_75] : memref<32x64xbf16, #tpu.memory_space<vmem>>, vector<32x64xbf16>
    %cst_76 = arith.constant dense<0.000000e+00> : vector<8x64xf32>
    %176 = tpu.matmul %174, %175, %cst_76 {dimension_numbers = #tpu.dot_dimension_numbers<[1], [0], [0], [1], [0, 0, 1, 1], [], []>} : vector<8x32xbf16>, vector<32x64xbf16>, vector<8x64xf32> -> vector<8x64xf32>
    %c0_77 = arith.constant 0 : index
    %c0_78 = arith.constant 0 : index
    %177 = vector.load %arg11[%c0_77, %c0_78] : memref<1x64xf32, #tpu.memory_space<vmem>>, vector<1x64xf32>
    %178 = vector.shape_cast %177 : vector<1x64xf32> to vector<64xf32>
    %179 = vector.shape_cast %178 : vector<64xf32> to vector<1x64xf32>
    %180 = vector.broadcast %179 : vector<1x64xf32> to vector<8x64xf32>
    %181 = arith.addf %176, %180 : vector<8x64xf32>
    %cst_79 = arith.constant 0.000000e+00 : f32
    %182 = vector.broadcast %cst_79 : f32 to vector<8x64xf32>
    %183 = arith.maximumf %181, %182 : vector<8x64xf32>
    %184 = arith.truncf %183 : vector<8x64xf32> to vector<8x64xbf16>
    %c0_80 = arith.constant 0 : index
    %c0_81 = arith.constant 0 : index
    %185 = vector.load %arg12[%c0_80, %c0_81] : memref<64x32xbf16, #tpu.memory_space<vmem>>, vector<64x32xbf16>
    %cst_82 = arith.constant dense<0.000000e+00> : vector<8x32xf32>
    %186 = tpu.matmul %184, %185, %cst_82 {dimension_numbers = #tpu.dot_dimension_numbers<[1], [0], [0], [1], [0, 0, 1, 1], [], []>} : vector<8x64xbf16>, vector<64x32xbf16>, vector<8x32xf32> -> vector<8x32xf32>
    %c0_83 = arith.constant 0 : index
    %c0_84 = arith.constant 0 : index
    %187 = vector.load %arg13[%c0_83, %c0_84] : memref<1x32xf32, #tpu.memory_space<vmem>>, vector<1x32xf32>
    %188 = vector.shape_cast %187 : vector<1x32xf32> to vector<32xf32>
    %189 = vector.shape_cast %188 : vector<32xf32> to vector<1x32xf32>
    %190 = vector.broadcast %189 : vector<1x32xf32> to vector<8x32xf32>
    %191 = arith.addf %186, %190 : vector<8x32xf32>
    %192 = arith.addf %173, %191 : vector<8x32xf32>
    %193 = vector.extract_strided_slice %18 {offsets = [2, 0], sizes = [1, 32], strides = [1, 1]} : vector<3x32xf32> to vector<1x32xf32>
    %194 = vector.shape_cast %193 : vector<1x32xf32> to vector<32xf32>
    %195 = vector.extract_strided_slice %19 {offsets = [2, 0], sizes = [1, 32], strides = [1, 1]} : vector<3x32xf32> to vector<1x32xf32>
    %196 = vector.shape_cast %195 : vector<1x32xf32> to vector<32xf32>
    %cst_85 = arith.constant dense<0.000000e+00> : vector<8xf32>
    %197 = vector.multi_reduction <add>, %192, %cst_85 [1] : vector<8x32xf32> to vector<8xf32>
    %198 = vector.shape_cast %197 : vector<8xf32> to vector<8x1xf32>
    %cst_86 = arith.constant 3.200000e+01 : f32
    %199 = vector.broadcast %cst_86 : f32 to vector<8x1xf32>
    %200 = arith.divf %198, %199 : vector<8x1xf32>
    %201 = vector.broadcast %200 : vector<8x1xf32> to vector<8x32xf32>
    %202 = arith.subf %192, %201 : vector<8x32xf32>
    %203 = arith.mulf %202, %202 : vector<8x32xf32>
    %cst_87 = arith.constant dense<0.000000e+00> : vector<8xf32>
    %204 = vector.multi_reduction <add>, %203, %cst_87 [1] : vector<8x32xf32> to vector<8xf32>
    %205 = vector.shape_cast %204 : vector<8xf32> to vector<8x1xf32>
    %cst_88 = arith.constant 3.200000e+01 : f32
    %206 = vector.broadcast %cst_88 : f32 to vector<8x1xf32>
    %207 = arith.divf %205, %206 : vector<8x1xf32>
    %208 = vector.broadcast %200 : vector<8x1xf32> to vector<8x32xf32>
    %209 = arith.subf %192, %208 : vector<8x32xf32>
    %cst_89 = arith.constant 9.99999997E-7 : f32
    %210 = vector.broadcast %cst_89 : f32 to vector<8x1xf32>
    %211 = arith.addf %207, %210 : vector<8x1xf32>
    %212 = math.rsqrt %211 : vector<8x1xf32>
    %213 = vector.broadcast %212 : vector<8x1xf32> to vector<8x32xf32>
    %214 = arith.mulf %209, %213 : vector<8x32xf32>
    %215 = vector.shape_cast %194 : vector<32xf32> to vector<1x32xf32>
    %216 = vector.broadcast %215 : vector<1x32xf32> to vector<8x32xf32>
    %217 = arith.mulf %214, %216 : vector<8x32xf32>
    %218 = vector.shape_cast %196 : vector<32xf32> to vector<1x32xf32>
    %219 = vector.broadcast %218 : vector<1x32xf32> to vector<8x32xf32>
    %220 = arith.addf %217, %219 : vector<8x32xf32>
    %c0_90 = arith.constant 0 : index
    %c0_91 = arith.constant 0 : index
    %c0_92 = arith.constant 0 : index
    %221 = vector.load %arg16[%c0_90, %c0_91, %c0_92] : memref<1x8x32xf32, #tpu.memory_space<vmem>>, vector<1x8x32xf32>
    %222 = vector.shape_cast %221 : vector<1x8x32xf32> to vector<8x32xf32>
    %223 = vector.shape_cast %220 : vector<8x32xf32> to vector<1x8x32xf32>
    tpu.vector_store %arg16[%c0_90, %c0_91, %c0_92], %223 {strides = array<i32>} : memref<1x8x32xf32, #tpu.memory_space<vmem>>, vector<1x8x32xf32>,
    return
  }
  func.func @transform_0(%arg0: i32, %arg1: i32) -> (i32, i32, i32) {
    %c0_i32 = arith.constant 0 : i32
    %c0_i32_0 = arith.constant 0 : i32
    %c0_i32_1 = arith.constant 0 : i32
    return %arg0, %c0_i32, %c0_i32_0 : i32, i32, i32
  }
  func.func @transform_1(%arg0: i32, %arg1: i32) -> (i32, i32, i32) {
    %c0_i32 = arith.constant 0 : i32
    %c0_i32_0 = arith.constant 0 : i32
    %c0_i32_1 = arith.constant 0 : i32
    return %arg0, %c0_i32, %c0_i32_0 : i32, i32, i32
  }
  func.func @transform_2(%arg0: i32, %arg1: i32) -> (i32, i32, i32, i32) {
    %c0_i32 = arith.constant 0 : i32
    %c0_i32_0 = arith.constant 0 : i32
    %c0_i32_1 = arith.constant 0 : i32
    return %arg0, %c0_i32, %arg1, %c0_i32_0 : i32, i32, i32, i32
  }
  func.func @transform_3(%arg0: i32, %arg1: i32) -> (i32, i32, i32, i32) {
    %c0_i32 = arith.constant 0 : i32
    %c0_i32_0 = arith.constant 0 : i32
    %c0_i32_1 = arith.constant 0 : i32
    %c0_i32_2 = arith.constant 0 : i32
    return %arg0, %c0_i32, %c0_i32_0, %c0_i32_1 : i32, i32, i32, i32
  }
  func.func @transform_4(%arg0: i32, %arg1: i32) -> (i32, i32, i32) {
    %c0_i32 = arith.constant 0 : i32
    %c0_i32_0 = arith.constant 0 : i32
    %c0_i32_1 = arith.constant 0 : i32
    %c0_i32_2 = arith.constant 0 : i32
    return %c0_i32, %c0_i32_0, %c0_i32_1 : i32, i32, i32
  }
  func.func @transform_5(%arg0: i32, %arg1: i32) -> (i32, i32) {
    %c0_i32 = arith.constant 0 : i32
    %c0_i32_0 = arith.constant 0 : i32
    %c0_i32_1 = arith.constant 0 : i32
    return %c0_i32, %c0_i32_0 : i32, i32
  }
  func.func @transform_6(%arg0: i32, %arg1: i32) -> (i32, i32, i32) {
    %c0_i32 = arith.constant 0 : i32
    %c0_i32_0 = arith.constant 0 : i32
    %c0_i32_1 = arith.constant 0 : i32
    %c0_i32_2 = arith.constant 0 : i32
    return %c0_i32, %c0_i32_0, %c0_i32_1 : i32, i32, i32
  }
  func.func @transform_7(%arg0: i32, %arg1: i32) -> (i32, i32) {
    %c0_i32 = arith.constant 0 : i32
    %c0_i32_0 = arith.constant 0 : i32
    %c0_i32_1 = arith.constant 0 : i32
    return %c0_i32, %c0_i32_0 : i32, i32
  }
  func.func @transform_8(%arg0: i32, %arg1: i32) -> (i32, i32) {
    %c0_i32 = arith.constant 0 : i32
    %c0_i32_0 = arith.constant 0 : i32
    %c0_i32_1 = arith.constant 0 : i32
    return %c0_i32, %c0_i32_0 : i32, i32
  }
  func.func @transform_9(%arg0: i32, %arg1: i32) -> (i32, i32) {
    %c0_i32 = arith.constant 0 : i32
    %c0_i32_0 = arith.constant 0 : i32
    %c0_i32_1 = arith.constant 0 : i32
    return %c0_i32, %c0_i32_0 : i32, i32
  }
  func.func @transform_10(%arg0: i32, %arg1: i32) -> (i32, i32) {
    %c0_i32 = arith.constant 0 : i32
    %c0_i32_0 = arith.constant 0 : i32
    %c0_i32_1 = arith.constant 0 : i32
    return %c0_i32, %c0_i32_0 : i32, i32
  }
  func.func @transform_11(%arg0: i32, %arg1: i32) -> (i32, i32) {
    %c0_i32 = arith.constant 0 : i32
    %c0_i32_0 = arith.constant 0 : i32
    %c0_i32_1 = arith.constant 0 : i32
    return %c0_i32, %c0_i32_0 : i32, i32
  }
  func.func @transform_12(%arg0: i32, %arg1: i32) -> (i32, i32) {
    %c0_i32 = arith.constant 0 : i32
    %c0_i32_0 = arith.constant 0 : i32
    %c0_i32_1 = arith.constant 0 : i32
    return %c0_i32, %c0_i32_0 : i32, i32
  }
  func.func @transform_13(%arg0: i32, %arg1: i32) -> (i32, i32) {
    %c0_i32 = arith.constant 0 : i32
    %c0_i32_0 = arith.constant 0 : i32
    %c0_i32_1 = arith.constant 0 : i32
    return %c0_i32, %c0_i32_0 : i32, i32
  }
  func.func @transform_14(%arg0: i32, %arg1: i32) -> (i32, i32, i32) {
    %c0_i32 = arith.constant 0 : i32
    %c0_i32_0 = arith.constant 0 : i32
    return %arg0, %arg1, %c0_i32 : i32, i32, i32
  }
  func.func @transform_15(%arg0: i32, %arg1: i32) -> (i32, i32, i32, i32) {
    %c0_i32 = arith.constant 0 : i32
    %c0_i32_0 = arith.constant 0 : i32
    %c0_i32_1 = arith.constant 0 : i32
    return %arg0, %c0_i32, %arg1, %c0_i32_0 : i32, i32, i32, i32
  }
  func.func @transform_16(%arg0: i32, %arg1: i32) -> (i32, i32, i32, i32) {
    %c0_i32 = arith.constant 0 : i32
    %c0_i32_0 = arith.constant 0 : i32
    %c0_i32_1 = arith.constant 0 : i32
    return %arg0, %c0_i32, %arg1, %c0_i32_0 : i32, i32, i32, i32
  }
}

module attributes {stable_mosaic.version = 11 : i64} {
  func.func @decoder_layer_kernel(%arg0: i32, %arg1: i32, %arg2: memref<1x8x32xbf16, #tpu.memory_space<vmem>>, %arg3: memref<1x8x32xbf16, #tpu.memory_space<vmem>>, %arg4: memref<1x1x8x8xbf16, #tpu.memory_space<vmem>>, %arg5: memref<1x1x1x8xbf16, #tpu.memory_space<vmem>>, %arg6: memref<4x32x32xbf16, #tpu.memory_space<vmem>>, %arg7: memref<4x32xf32, #tpu.memory_space<vmem>>, %arg8: memref<4x32x32xbf16, #tpu.memory_space<vmem>>, %arg9: memref<4x32xf32, #tpu.memory_space<vmem>>, %arg10: memref<32x64xbf16, #tpu.memory_space<vmem>>, %arg11: memref<1x64xf32, #tpu.memory_space<vmem>>, %arg12: memref<64x32xbf16, #tpu.memory_space<vmem>>, %arg13: memref<1x32xf32, #tpu.memory_space<vmem>>, %arg14: memref<3x32xf32, #tpu.memory_space<vmem>>, %arg15: memref<3x32xf32, #tpu.memory_space<vmem>>, %arg16: memref<1x8x32xf32, #tpu.memory_space<vmem>>, %arg17: memref<1x4x8x8xbf16, #tpu.memory_space<vmem>>, %arg18: memref<1x4x8x8xbf16, #tpu.memory_space<vmem>>, %arg19: memref<8x32xbf16, #tpu.memory_space<vmem>>, %arg20: memref<8x32xbf16, #tpu.memory_space<vmem>>, %arg21: memref<8x32xbf16, #tpu.memory_space<vmem>>, %arg22: memref<8x32xbf16, #tpu.memory_space<vmem>>) attributes {dimension_semantics = [#tpu.dimension_semantics<parallel>, #tpu.dimension_semantics<arbitrary>], iteration_bounds = array<i64: 2, 1>, scalar_prefetch = 0 : i64, scratch_operands = 4 : i64, tpu.core_type = #tpu.core_type<tc>, window_params = [{transform_indices = @transform_0, window_bounds = array<i64: 1, 8, 32>}, {transform_indices = @transform_1, window_bounds = array<i64: 1, 8, 32>}, {transform_indices = @transform_2, window_bounds = array<i64: 1, 1, 8, 8>}, {transform_indices = @transform_3, window_bounds = array<i64: 1, 1, 1, 8>}, {pipeline_mode = #tpu.pipeline_mode<synchronous>, transform_indices = @transform_4, window_bounds = array<i64: 4, 32, 32>}, {pipeline_mode = #tpu.pipeline_mode<synchronous>, transform_indices = @transform_5, window_bounds = array<i64: 4, 32>}, {pipeline_mode = #tpu.pipeline_mode<synchronous>, transform_indices = @transform_6, window_bounds = array<i64: 4, 32, 32>}, {pipeline_mode = #tpu.pipeline_mode<synchronous>, transform_indices = @transform_7, window_bounds = array<i64: 4, 32>}, {pipeline_mode = #tpu.pipeline_mode<synchronous>, transform_indices = @transform_8, window_bounds = array<i64: 32, 64>}, {pipeline_mode = #tpu.pipeline_mode<synchronous>, transform_indices = @transform_9, window_bounds = array<i64: 1, 64>}, {pipeline_mode = #tpu.pipeline_mode<synchronous>, transform_indices = @transform_10, window_bounds = array<i64: 64, 32>}, {pipeline_mode = #tpu.pipeline_mode<synchronous>, transform_indices = @transform_11, window_bounds = array<i64: 1, 32>}, {pipeline_mode = #tpu.pipeline_mode<synchronous>, transform_indices = @transform_12, window_bounds = array<i64: 3, 32>}, {pipeline_mode = #tpu.pipeline_mode<synchronous>, transform_indices = @transform_13, window_bounds = array<i64: 3, 32>}, {transform_indices = @transform_14, window_bounds = array<i64: 1, 8, 32>}, {transform_indices = @transform_15, window_bounds = array<i64: 1, 4, 8, 8>}, {transform_indices = @transform_16, window_bounds = array<i64: 1, 4, 8, 8>}]} {
    %c0_i32 = arith.constant 0 : i32
    %0 = arith.cmpi eq, %arg1, %c0_i32 : i32
    %1 = arith.extui %0 : i1 to i32
    %c0_i32_0 = arith.constant 0 : i32
    %2 = arith.cmpi ne, %1, %c0_i32_0 : i32
    scf.if %2 {
      %c0_93 = arith.constant 0 : index
      %c0_94 = arith.constant 0 : index
      %c0_95 = arith.constant 0 : index
      %224 = vector.load %arg2[%c0_93, %c0_94, %c0_95] : memref<1x8x32xbf16, #tpu.memory_space<vmem>>, vector<1x8x32xbf16>
      %225 = vector.shape_cast %224 : vector<1x8x32xbf16> to vector<8x32xbf16>
      %c0_96 = arith.constant 0 : index
      %c0_97 = arith.constant 0 : index
      %c0_98 = arith.constant 0 : index
      %226 = vector.load %arg3[%c0_96, %c0_97, %c0_98] : memref<1x8x32xbf16, #tpu.memory_space<vmem>>, vector<1x8x32xbf16>
      %227 = vector.shape_cast %226 : vector<1x8x32xbf16> to vector<8x32xbf16>
      %c1 = arith.constant 1 : index
      %c0_99 = arith.constant 0 : index
      %c0_100 = arith.constant 0 : index
      %228 = vector.load %arg6[%c1, %c0_99, %c0_100] : memref<4x32x32xbf16, #tpu.memory_space<vmem>>, vector<1x32x32xbf16>
      %229 = vector.shape_cast %228 : vector<1x32x32xbf16> to vector<32x32xbf16>
      %cst_101 = arith.constant dense<0.000000e+00> : vector<8x32xf32>
      %230 = tpu.matmul %225, %229, %cst_101 {dimension_numbers = #tpu.dot_dimension_numbers<[1], [0], [0], [1], [0, 0, 1, 1], [], []>} : vector<8x32xbf16>, vector<32x32xbf16>, vector<8x32xf32> -> vector<8x32xf32>
      %c1_102 = arith.constant 1 : index
      %c0_103 = arith.constant 0 : index
      %231 = vector.load %arg7[%c1_102, %c0_103] : memref<4x32xf32, #tpu.memory_space<vmem>>, vector<1x32xf32>
      %232 = vector.shape_cast %231 : vector<1x32xf32> to vector<32xf32>
      %233 = vector.shape_cast %232 : vector<32xf32> to vector<1x32xf32>
      %234 = vector.broadcast %233 : vector<1x32xf32> to vector<8x32xf32>
      %235 = arith.addf %230, %234 : vector<8x32xf32>
      %236 = arith.truncf %235 : vector<8x32xf32> to vector<8x32xbf16>
      %c0_104 = arith.constant 0 : index
      %c0_105 = arith.constant 0 : index
      %237 = vector.load %arg19[%c0_104, %c0_105] : memref<8x32xbf16, #tpu.memory_space<vmem>>, vector<8x32xbf16>
      tpu.vector_store %arg19[%c0_104, %c0_105], %236 {strides = array<i32>} : memref<8x32xbf16, #tpu.memory_space<vmem>>, vector<8x32xbf16>,
      %c2 = arith.constant 2 : index
      %c0_106 = arith.constant 0 : index
      %c0_107 = arith.constant 0 : index
      %238 = vector.load %arg6[%c2, %c0_106, %c0_107] : memref<4x32x32xbf16, #tpu.memory_space<vmem>>, vector<1x32x32xbf16>
      %239 = vector.shape_cast %238 : vector<1x32x32xbf16> to vector<32x32xbf16>
      %cst_108 = arith.constant dense<0.000000e+00> : vector<8x32xf32>
      %240 = tpu.matmul %225, %239, %cst_108 {dimension_numbers = #tpu.dot_dimension_numbers<[1], [0], [0], [1], [0, 0, 1, 1], [], []>} : vector<8x32xbf16>, vector<32x32xbf16>, vector<8x32xf32> -> vector<8x32xf32>
      %c2_109 = arith.constant 2 : index
      %c0_110 = arith.constant 0 : index
      %241 = vector.load %arg7[%c2_109, %c0_110] : memref<4x32xf32, #tpu.memory_space<vmem>>, vector<1x32xf32>
      %242 = vector.shape_cast %241 : vector<1x32xf32> to vector<32xf32>
      %243 = vector.shape_cast %242 : vector<32xf32> to vector<1x32xf32>
      %244 = vector.broadcast %243 : vector<1x32xf32> to vector<8x32xf32>
      %245 = arith.addf %240, %244 : vector<8x32xf32>
      %246 = arith.truncf %245 : vector<8x32xf32> to vector<8x32xbf16>
      %c0_111 = arith.constant 0 : index
      %c0_112 = arith.constant 0 : index
      %247 = vector.load %arg20[%c0_111, %c0_112] : memref<8x32xbf16, #tpu.memory_space<vmem>>, vector<8x32xbf16>
      tpu.vector_store %arg20[%c0_111, %c0_112], %246 {strides = array<i32>} : memref<8x32xbf16, #tpu.memory_space<vmem>>, vector<8x32xbf16>,
      %c1_113 = arith.constant 1 : index
      %c0_114 = arith.constant 0 : index
      %c0_115 = arith.constant 0 : index
      %248 = vector.load %arg8[%c1_113, %c0_114, %c0_115] : memref<4x32x32xbf16, #tpu.memory_space<vmem>>, vector<1x32x32xbf16>
      %249 = vector.shape_cast %248 : vector<1x32x32xbf16> to vector<32x32xbf16>
      %cst_116 = arith.constant dense<0.000000e+00> : vector<8x32xf32>
      %250 = tpu.matmul %227, %249, %cst_116 {dimension_numbers = #tpu.dot_dimension_numbers<[1], [0], [0], [1], [0, 0, 1, 1], [], []>} : vector<8x32xbf16>, vector<32x32xbf16>, vector<8x32xf32> -> vector<8x32xf32>
      %c1_117 = arith.constant 1 : index
      %c0_118 = arith.constant 0 : index
      %251 = vector.load %arg9[%c1_117, %c0_118] : memref<4x32xf32, #tpu.memory_space<vmem>>, vector<1x32xf32>
      %252 = vector.shape_cast %251 : vector<1x32xf32> to vector<32xf32>
      %253 = vector.shape_cast %252 : vector<32xf32> to vector<1x32xf32>
      %254 = vector.broadcast %253 : vector<1x32xf32> to vector<8x32xf32>
      %255 = arith.addf %250, %254 : vector<8x32xf32>
      %256 = arith.truncf %255 : vector<8x32xf32> to vector<8x32xbf16>
      %c0_119 = arith.constant 0 : index
      %c0_120 = arith.constant 0 : index
      %257 = vector.load %arg21[%c0_119, %c0_120] : memref<8x32xbf16, #tpu.memory_space<vmem>>, vector<8x32xbf16>
      tpu.vector_store %arg21[%c0_119, %c0_120], %256 {strides = array<i32>} : memref<8x32xbf16, #tpu.memory_space<vmem>>, vector<8x32xbf16>,
      %c2_121 = arith.constant 2 : index
      %c0_122 = arith.constant 0 : index
      %c0_123 = arith.constant 0 : index
      %258 = vector.load %arg8[%c2_121, %c0_122, %c0_123] : memref<4x32x32xbf16, #tpu.memory_space<vmem>>, vector<1x32x32xbf16>
      %259 = vector.shape_cast %258 : vector<1x32x32xbf16> to vector<32x32xbf16>
      %cst_124 = arith.constant dense<0.000000e+00> : vector<8x32xf32>
      %260 = tpu.matmul %227, %259, %cst_124 {dimension_numbers = #tpu.dot_dimension_numbers<[1], [0], [0], [1], [0, 0, 1, 1], [], []>} : vector<8x32xbf16>, vector<32x32xbf16>, vector<8x32xf32> -> vector<8x32xf32>
      %c2_125 = arith.constant 2 : index
      %c0_126 = arith.constant 0 : index
      %261 = vector.load %arg9[%c2_125, %c0_126] : memref<4x32xf32, #tpu.memory_space<vmem>>, vector<1x32xf32>
      %262 = vector.shape_cast %261 : vector<1x32xf32> to vector<32xf32>
      %263 = vector.shape_cast %262 : vector<32xf32> to vector<1x32xf32>
      %264 = vector.broadcast %263 : vector<1x32xf32> to vector<8x32xf32>
      %265 = arith.addf %260, %264 : vector<8x32xf32>
      %266 = arith.truncf %265 : vector<8x32xf32> to vector<8x32xbf16>
      %c0_127 = arith.constant 0 : index
      %c0_128 = arith.constant 0 : index
      %267 = vector.load %arg22[%c0_127, %c0_128] : memref<8x32xbf16, #tpu.memory_space<vmem>>, vector<8x32xbf16>
      tpu.vector_store %arg22[%c0_127, %c0_128], %266 {strides = array<i32>} : memref<8x32xbf16, #tpu.memory_space<vmem>>, vector<8x32xbf16>,
    } else {
    }
    %c8_i32 = arith.constant 8 : i32
    %3 = arith.muli %arg1, %c8_i32 : i32
    %4 = tpu.assume_multiple %3, 8 : i32
    %c0 = arith.constant 0 : index
    %5 = arith.index_cast %4 : i32 to index
    %c0_1 = arith.constant 0 : index
    %6 = vector.load %arg2[%c0, %5, %c0_1] : memref<1x8x32xbf16, #tpu.memory_space<vmem>>, vector<1x8x32xbf16>
    %7 = vector.shape_cast %6 : vector<1x8x32xbf16> to vector<8x32xbf16>
    %c0_2 = arith.constant 0 : index
    %c0_3 = arith.constant 0 : index
    %c0_4 = arith.constant 0 : index
    %c0_5 = arith.constant 0 : index
    %8 = vector.load %arg4[%c0_2, %c0_3, %c0_4, %c0_5] : memref<1x1x8x8xbf16, #tpu.memory_space<vmem>>, vector<1x1x8x8xbf16>
    %9 = vector.shape_cast %8 : vector<1x1x8x8xbf16> to vector<8x8xbf16>
    %10 = arith.extf %9 : vector<8x8xbf16> to vector<8x8xf32>
    %cst = arith.constant -1.000000e+09 : f32
    %11 = vector.broadcast %cst : f32 to vector<8x8xf32>
    %12 = arith.mulf %10, %11 : vector<8x8xf32>
    %c0_6 = arith.constant 0 : index
    %c0_7 = arith.constant 0 : index
    %c0_8 = arith.constant 0 : index
    %c0_9 = arith.constant 0 : index
    %13 = vector.load %arg5[%c0_6, %c0_7, %c0_8, %c0_9] : memref<1x1x1x8xbf16, #tpu.memory_space<vmem>>, vector<1x1x1x8xbf16>
    %14 = vector.shape_cast %13 : vector<1x1x1x8xbf16> to vector<1x8xbf16>
    %15 = arith.extf %14 : vector<1x8xbf16> to vector<1x8xf32>
    %cst_10 = arith.constant -1.000000e+09 : f32
    %16 = vector.broadcast %cst_10 : f32 to vector<1x8xf32>
    %17 = arith.mulf %15, %16 : vector<1x8xf32>
    %c0_11 = arith.constant 0 : index
    %c0_12 = arith.constant 0 : index
    %18 = vector.load %arg14[%c0_11, %c0_12] : memref<3x32xf32, #tpu.memory_space<vmem>>, vector<3x32xf32>
    %c0_13 = arith.constant 0 : index
    %c0_14 = arith.constant 0 : index
    %19 = vector.load %arg15[%c0_13, %c0_14] : memref<3x32xf32, #tpu.memory_space<vmem>>, vector<3x32xf32>
    %c0_15 = arith.constant 0 : index
    %c0_16 = arith.constant 0 : index
    %c0_17 = arith.constant 0 : index
    %20 = vector.load %arg6[%c0_15, %c0_16, %c0_17] : memref<4x32x32xbf16, #tpu.memory_space<vmem>>, vector<1x32x32xbf16>
    %21 = vector.shape_cast %20 : vector<1x32x32xbf16> to vector<32x32xbf16>
    %cst_18 = arith.constant dense<0.000000e+00> : vector<8x32xf32>
    %22 = tpu.matmul %7, %21, %cst_18 {dimension_numbers = #tpu.dot_dimension_numbers<[1], [0], [0], [1], [0, 0, 1, 1], [], []>} : vector<8x32xbf16>, vector<32x32xbf16>, vector<8x32xf32> -> vector<8x32xf32>
    %c0_19 = arith.constant 0 : index
    %c0_20 = arith.constant 0 : index
    %23 = vector.load %arg7[%c0_19, %c0_20] : memref<4x32xf32, #tpu.memory_space<vmem>>, vector<1x32xf32>
    %24 = vector.shape_cast %23 : vector<1x32xf32> to vector<32xf32>
    %25 = vector.shape_cast %24 : vector<32xf32> to vector<1x32xf32>
    %26 = vector.broadcast %25 : vector<1x32xf32> to vector<8x32xf32>
    %27 = arith.addf %22, %26 : vector<8x32xf32>
    %cst_21 = arith.constant 0.353553385 : f32
    %28 = vector.broadcast %cst_21 : f32 to vector<8x32xf32>
    %29 = arith.mulf %27, %28 : vector<8x32xf32>
    %30 = vector.shape_cast %29 : vector<8x32xf32> to vector<8x4x8xf32>
    %31 = arith.truncf %30 : vector<8x4x8xf32> to vector<8x4x8xbf16>
    %c0_22 = arith.constant 0 : index
    %c0_23 = arith.constant 0 : index
    %32 = vector.load %arg19[%c0_22, %c0_23] : memref<8x32xbf16, #tpu.memory_space<vmem>>, vector<8x32xbf16>
    %33 = vector.shape_cast %32 : vector<8x32xbf16> to vector<8x4x8xbf16>
    %c0_24 = arith.constant 0 : index
    %c0_25 = arith.constant 0 : index
    %34 = vector.load %arg20[%c0_24, %c0_25] : memref<8x32xbf16, #tpu.memory_space<vmem>>, vector<8x32xbf16>
    %35 = vector.shape_cast %34 : vector<8x32xbf16> to vector<8x4x8xbf16>
    "tpu.trace_start"() <{level = 10 : i32, message = "qhd,khd->hqk"}> : () -> ()
    %cst_26 = arith.constant dense<0.000000e+00> : vector<4x8x8xf32>
    %36 = tpu.matmul %31, %33, %cst_26 {dimension_numbers = #tpu.dot_dimension_numbers<[2], [2], [0], [0], [0, 1, 0, 0, 1, 0], [1], [1]>} : vector<8x4x8xbf16>, vector<8x4x8xbf16>, vector<4x8x8xf32> -> vector<4x8x8xf32>
    "tpu.trace_stop"() : () -> ()
    %37 = vector.shape_cast %12 : vector<8x8xf32> to vector<1x8x8xf32>
    %38 = vector.broadcast %37 : vector<1x8x8xf32> to vector<4x8x8xf32>
    %39 = arith.addf %36, %38 : vector<4x8x8xf32>
    %cst_27 = arith.constant dense<0xFF800000> : vector<4x8xf32>
    %40 = vector.multi_reduction <maximumf>, %39, %cst_27 [2] : vector<4x8x8xf32> to vector<4x8xf32>
    %41 = vector.shape_cast %40 : vector<4x8xf32> to vector<4x8x1xf32>
    %42 = vector.broadcast %41 : vector<4x8x1xf32> to vector<4x8x8xf32>
    %43 = arith.subf %39, %42 : vector<4x8x8xf32>
    %44 = math.exp %43 : vector<4x8x8xf32>
    %cst_28 = arith.constant dense<0.000000e+00> : vector<4x8xf32>
    %45 = vector.multi_reduction <add>, %44, %cst_28 [2] : vector<4x8x8xf32> to vector<4x8xf32>
    %46 = vector.shape_cast %45 : vector<4x8xf32> to vector<4x8x1xf32>
    %47 = tpu.reciprocal %46 {approx = true} : vector<4x8x1xf32> -> vector<4x8x1xf32>
    %48 = vector.broadcast %47 : vector<4x8x1xf32> to vector<4x8x8xf32>
    %49 = arith.mulf %44, %48 : vector<4x8x8xf32>
    %50 = arith.truncf %49 : vector<4x8x8xf32> to vector<4x8x8xbf16>
    %c0_29 = arith.constant 0 : index
    %c0_30 = arith.constant 0 : index
    %c0_31 = arith.constant 0 : index
    %c0_32 = arith.constant 0 : index
    %51 = vector.load %arg17[%c0_29, %c0_30, %c0_31, %c0_32] : memref<1x4x8x8xbf16, #tpu.memory_space<vmem>>, vector<1x4x8x8xbf16>
    %52 = vector.shape_cast %51 : vector<1x4x8x8xbf16> to vector<4x8x8xbf16>
    %53 = vector.shape_cast %50 : vector<4x8x8xbf16> to vector<1x4x8x8xbf16>
    tpu.vector_store %arg17[%c0_29, %c0_30, %c0_31, %c0_32], %53 {strides = array<i32>} : memref<1x4x8x8xbf16, #tpu.memory_space<vmem>>, vector<1x4x8x8xbf16>,
    %54 = arith.truncf %49 : vector<4x8x8xf32> to vector<4x8x8xbf16>
    "tpu.trace_start"() <{level = 10 : i32, message = "hqk,khd->qhd"}> : () -> ()
    %cst_33 = arith.constant dense<0.000000e+00> : vector<4x8x8xf32>
    %55 = tpu.matmul %35, %54, %cst_33 {dimension_numbers = #tpu.dot_dimension_numbers<[0], [2], [2], [1], [0, 1, 0, 2, 1, 1], [1], [0]>} : vector<8x4x8xbf16>, vector<4x8x8xbf16>, vector<4x8x8xf32> -> vector<4x8x8xf32>
    %56 = tpu.transpose %55, [2, 0, 1] : vector<4x8x8xf32> -> vector<8x4x8xf32>
    "tpu.trace_stop"() : () -> ()
    %57 = vector.shape_cast %56 : vector<8x4x8xf32> to vector<8x32xf32>
    %58 = arith.truncf %57 : vector<8x32xf32> to vector<8x32xbf16>
    %c3 = arith.constant 3 : index
    %c0_34 = arith.constant 0 : index
    %c0_35 = arith.constant 0 : index
    %59 = vector.load %arg6[%c3, %c0_34, %c0_35] : memref<4x32x32xbf16, #tpu.memory_space<vmem>>, vector<1x32x32xbf16>
    %60 = vector.shape_cast %59 : vector<1x32x32xbf16> to vector<32x32xbf16>
    %cst_36 = arith.constant dense<0.000000e+00> : vector<8x32xf32>
    %61 = tpu.matmul %58, %60, %cst_36 {dimension_numbers = #tpu.dot_dimension_numbers<[1], [0], [0], [1], [0, 0, 1, 1], [], []>} : vector<8x32xbf16>, vector<32x32xbf16>, vector<8x32xf32> -> vector<8x32xf32>
    %c3_37 = arith.constant 3 : index
    %c0_38 = arith.constant 0 : index
    %62 = vector.load %arg7[%c3_37, %c0_38] : memref<4x32xf32, #tpu.memory_space<vmem>>, vector<1x32xf32>
    %63 = vector.shape_cast %62 : vector<1x32xf32> to vector<32xf32>
    %64 = vector.shape_cast %63 : vector<32xf32> to vector<1x32xf32>
    %65 = vector.broadcast %64 : vector<1x32xf32> to vector<8x32xf32>
    %66 = arith.addf %61, %65 : vector<8x32xf32>
    %67 = arith.extf %7 : vector<8x32xbf16> to vector<8x32xf32>
    %68 = arith.addf %67, %66 : vector<8x32xf32>
    %69 = vector.extract_strided_slice %18 {offsets = [0, 0], sizes = [1, 32], strides = [1, 1]} : vector<3x32xf32> to vector<1x32xf32>
    %70 = vector.shape_cast %69 : vector<1x32xf32> to vector<32xf32>
    %71 = vector.extract_strided_slice %19 {offsets = [0, 0], sizes = [1, 32], strides = [1, 1]} : vector<3x32xf32> to vector<1x32xf32>
    %72 = vector.shape_cast %71 : vector<1x32xf32> to vector<32xf32>
    %cst_39 = arith.constant dense<0.000000e+00> : vector<8xf32>
    %73 = vector.multi_reduction <add>, %68, %cst_39 [1] : vector<8x32xf32> to vector<8xf32>
    %74 = vector.shape_cast %73 : vector<8xf32> to vector<8x1xf32>
    %cst_40 = arith.constant 3.200000e+01 : f32
    %75 = vector.broadcast %cst_40 : f32 to vector<8x1xf32>
    %76 = arith.divf %74, %75 : vector<8x1xf32>
    %77 = vector.broadcast %76 : vector<8x1xf32> to vector<8x32xf32>
    %78 = arith.subf %68, %77 : vector<8x32xf32>
    %79 = arith.mulf %78, %78 : vector<8x32xf32>
    %cst_41 = arith.constant dense<0.000000e+00> : vector<8xf32>
    %80 = vector.multi_reduction <add>, %79, %cst_41 [1] : vector<8x32xf32> to vector<8xf32>
    %81 = vector.shape_cast %80 : vector<8xf32> to vector<8x1xf32>
    %cst_42 = arith.constant 3.200000e+01 : f32
    %82 = vector.broadcast %cst_42 : f32 to vector<8x1xf32>
    %83 = arith.divf %81, %82 : vector<8x1xf32>
    %84 = vector.broadcast %76 : vector<8x1xf32> to vector<8x32xf32>
    %85 = arith.subf %68, %84 : vector<8x32xf32>
    %cst_43 = arith.constant 9.99999997E-7 : f32
    %86 = vector.broadcast %cst_43 : f32 to vector<8x1xf32>
    %87 = arith.addf %83, %86 : vector<8x1xf32>
    %88 = math.rsqrt %87 : vector<8x1xf32>
    %89 = vector.broadcast %88 : vector<8x1xf32> to vector<8x32xf32>
    %90 = arith.mulf %85, %89 : vector<8x32xf32>
    %91 = vector.shape_cast %70 : vector<32xf32> to vector<1x32xf32>
    %92 = vector.broadcast %91 : vector<1x32xf32> to vector<8x32xf32>
    %93 = arith.mulf %90, %92 : vector<8x32xf32>
    %94 = vector.shape_cast %72 : vector<32xf32> to vector<1x32xf32>
    %95 = vector.broadcast %94 : vector<1x32xf32> to vector<8x32xf32>
    %96 = arith.addf %93, %95 : vector<8x32xf32>
    %97 = arith.truncf %96 : vector<8x32xf32> to vector<8x32xbf16>
    %c0_44 = arith.constant 0 : index
    %c0_45 = arith.constant 0 : index
    %c0_46 = arith.constant 0 : index
    %98 = vector.load %arg8[%c0_44, %c0_45, %c0_46] : memref<4x32x32xbf16, #tpu.memory_space<vmem>>, vector<1x32x32xbf16>
    %99 = vector.shape_cast %98 : vector<1x32x32xbf16> to vector<32x32xbf16>
    %cst_47 = arith.constant dense<0.000000e+00> : vector<8x32xf32>
    %100 = tpu.matmul %97, %99, %cst_47 {dimension_numbers = #tpu.dot_dimension_numbers<[1], [0], [0], [1], [0, 0, 1, 1], [], []>} : vector<8x32xbf16>, vector<32x32xbf16>, vector<8x32xf32> -> vector<8x32xf32>
    %c0_48 = arith.constant 0 : index
    %c0_49 = arith.constant 0 : index
    %101 = vector.load %arg9[%c0_48, %c0_49] : memref<4x32xf32, #tpu.memory_space<vmem>>, vector<1x32xf32>
    %102 = vector.shape_cast %101 : vector<1x32xf32> to vector<32xf32>
    %103 = vector.shape_cast %102 : vector<32xf32> to vector<1x32xf32>
    %104 = vector.broadcast %103 : vector<1x32xf32> to vector<8x32xf32>
    %105 = arith.addf %100, %104 : vector<8x32xf32>
    %cst_50 = arith.constant 0.353553385 : f32
    %106 = vector.broadcast %cst_50 : f32 to vector<8x32xf32>
    %107 = arith.mulf %105, %106 : vector<8x32xf32>
    %108 = vector.shape_cast %107 : vector<8x32xf32> to vector<8x4x8xf32>
    %109 = arith.truncf %108 : vector<8x4x8xf32> to vector<8x4x8xbf16>
    %c0_51 = arith.constant 0 : index
    %c0_52 = arith.constant 0 : index
    %110 = vector.load %arg21[%c0_51, %c0_52] : memref<8x32xbf16, #tpu.memory_space<vmem>>, vector<8x32xbf16>
    %111 = vector.shape_cast %110 : vector<8x32xbf16> to vector<8x4x8xbf16>
    %c0_53 = arith.constant 0 : index
    %c0_54 = arith.constant 0 : index
    %112 = vector.load %arg22[%c0_53, %c0_54] : memref<8x32xbf16, #tpu.memory_space<vmem>>, vector<8x32xbf16>
    %113 = vector.shape_cast %112 : vector<8x32xbf16> to vector<8x4x8xbf16>
    "tpu.trace_start"() <{level = 10 : i32, message = "qhd,khd->hqk"}> : () -> ()
    %cst_55 = arith.constant dense<0.000000e+00> : vector<4x8x8xf32>
    %114 = tpu.matmul %109, %111, %cst_55 {dimension_numbers = #tpu.dot_dimension_numbers<[2], [2], [0], [0], [0, 1, 0, 0, 1, 0], [1], [1]>} : vector<8x4x8xbf16>, vector<8x4x8xbf16>, vector<4x8x8xf32> -> vector<4x8x8xf32>
    "tpu.trace_stop"() : () -> ()
    %115 = vector.shape_cast %17 : vector<1x8xf32> to vector<1x1x8xf32>
    %116 = vector.broadcast %115 : vector<1x1x8xf32> to vector<4x8x8xf32>
    %117 = arith.addf %114, %116 : vector<4x8x8xf32>
    %cst_56 = arith.constant dense<0xFF800000> : vector<4x8xf32>
    %118 = vector.multi_reduction <maximumf>, %117, %cst_56 [2] : vector<4x8x8xf32> to vector<4x8xf32>
    %119 = vector.shape_cast %118 : vector<4x8xf32> to vector<4x8x1xf32>
    %120 = vector.broadcast %119 : vector<4x8x1xf32> to vector<4x8x8xf32>
    %121 = arith.subf %117, %120 : vector<4x8x8xf32>
    %122 = math.exp %121 : vector<4x8x8xf32>
    %cst_57 = arith.constant dense<0.000000e+00> : vector<4x8xf32>
    %123 = vector.multi_reduction <add>, %122, %cst_57 [2] : vector<4x8x8xf32> to vector<4x8xf32>
    %124 = vector.shape_cast %123 : vector<4x8xf32> to vector<4x8x1xf32>
    %125 = tpu.reciprocal %124 {approx = true} : vector<4x8x1xf32> -> vector<4x8x1xf32>
    %126 = vector.broadcast %125 : vector<4x8x1xf32> to vector<4x8x8xf32>
    %127 = arith.mulf %122, %126 : vector<4x8x8xf32>
    %128 = arith.truncf %127 : vector<4x8x8xf32> to vector<4x8x8xbf16>
    %c0_58 = arith.constant 0 : index
    %c0_59 = arith.constant 0 : index
    %c0_60 = arith.constant 0 : index
    %c0_61 = arith.constant 0 : index
    %129 = vector.load %arg18[%c0_58, %c0_59, %c0_60, %c0_61] : memref<1x4x8x8xbf16, #tpu.memory_space<vmem>>, vector<1x4x8x8xbf16>
    %130 = vector.shape_cast %129 : vector<1x4x8x8xbf16> to vector<4x8x8xbf16>
    %131 = vector.shape_cast %128 : vector<4x8x8xbf16> to vector<1x4x8x8xbf16>
    tpu.vector_store %arg18[%c0_58, %c0_59, %c0_60, %c0_61], %131 {strides = array<i32>} : memref<1x4x8x8xbf16, #tpu.memory_space<vmem>>, vector<1x4x8x8xbf16>,
    %132 = arith.truncf %127 : vector<4x8x8xf32> to vector<4x8x8xbf16>
    "tpu.trace_start"() <{level = 10 : i32, message = "hqk,khd->qhd"}> : () -> ()
    %cst_62 = arith.constant dense<0.000000e+00> : vector<4x8x8xf32>
    %133 = tpu.matmul %113, %132, %cst_62 {dimension_numbers = #tpu.dot_dimension_numbers<[0], [2], [2], [1], [0, 1, 0, 2, 1, 1], [1], [0]>} : vector<8x4x8xbf16>, vector<4x8x8xbf16>, vector<4x8x8xf32> -> vector<4x8x8xf32>
    %134 = tpu.transpose %133, [2, 0, 1] : vector<4x8x8xf32> -> vector<8x4x8xf32>
    "tpu.trace_stop"() : () -> ()
    %135 = vector.shape_cast %134 : vector<8x4x8xf32> to vector<8x32xf32>
    %136 = arith.truncf %135 : vector<8x32xf32> to vector<8x32xbf16>
    %c3_63 = arith.constant 3 : index
    %c0_64 = arith.constant 0 : index
    %c0_65 = arith.constant 0 : index
    %137 = vector.load %arg8[%c3_63, %c0_64, %c0_65] : memref<4x32x32xbf16, #tpu.memory_space<vmem>>, vector<1x32x32xbf16>
    %138 = vector.shape_cast %137 : vector<1x32x32xbf16> to vector<32x32xbf16>
    %cst_66 = arith.constant dense<0.000000e+00> : vector<8x32xf32>
    %139 = tpu.matmul %136, %138, %cst_66 {dimension_numbers = #tpu.dot_dimension_numbers<[1], [0], [0], [1], [0, 0, 1, 1], [], []>} : vector<8x32xbf16>, vector<32x32xbf16>, vector<8x32xf32> -> vector<8x32xf32>
    %c3_67 = arith.constant 3 : index
    %c0_68 = arith.constant 0 : index
    %140 = vector.load %arg9[%c3_67, %c0_68] : memref<4x32xf32, #tpu.memory_space<vmem>>, vector<1x32xf32>
    %141 = vector.shape_cast %140 : vector<1x32xf32> to vector<32xf32>
    %142 = vector.shape_cast %141 : vector<32xf32> to vector<1x32xf32>
    %143 = vector.broadcast %142 : vector<1x32xf32> to vector<8x32xf32>
    %144 = arith.addf %139, %143 : vector<8x32xf32>
    %145 = arith.addf %96, %144 : vector<8x32xf32>
    %146 = vector.extract_strided_slice %18 {offsets = [1, 0], sizes = [1, 32], strides = [1, 1]} : vector<3x32xf32> to vector<1x32xf32>
    %147 = vector.shape_cast %146 : vector<1x32xf32> to vector<32xf32>
    %148 = vector.extract_strided_slice %19 {offsets = [1, 0], sizes = [1, 32], strides = [1, 1]} : vector<3x32xf32> to vector<1x32xf32>
    %149 = vector.shape_cast %148 : vector<1x32xf32> to vector<32xf32>
    %cst_69 = arith.constant dense<0.000000e+00> : vector<8xf32>
    %150 = vector.multi_reduction <add>, %145, %cst_69 [1] : vector<8x32xf32> to vector<8xf32>
    %151 = vector.shape_cast %150 : vector<8xf32> to vector<8x1xf32>
    %cst_70 = arith.constant 3.200000e+01 : f32
    %152 = vector.broadcast %cst_70 : f32 to vector<8x1xf32>
    %153 = arith.divf %151, %152 : vector<8x1xf32>
    %154 = vector.broadcast %153 : vector<8x1xf32> to vector<8x32xf32>
    %155 = arith.subf %145, %154 : vector<8x32xf32>
    %156 = arith.mulf %155, %155 : vector<8x32xf32>
    %cst_71 = arith.constant dense<0.000000e+00> : vector<8xf32>
    %157 = vector.multi_reduction <add>, %156, %cst_71 [1] : vector<8x32xf32> to vector<8xf32>
    %158 = vector.shape_cast %157 : vector<8xf32> to vector<8x1xf32>
    %cst_72 = arith.constant 3.200000e+01 : f32
    %159 = vector.broadcast %cst_72 : f32 to vector<8x1xf32>
    %160 = arith.divf %158, %159 : vector<8x1xf32>
    %161 = vector.broadcast %153 : vector<8x1xf32> to vector<8x32xf32>
    %162 = arith.subf %145, %161 : vector<8x32xf32>
    %cst_73 = arith.constant 9.99999997E-7 : f32
    %163 = vector.broadcast %cst_73 : f32 to vector<8x1xf32>
    %164 = arith.addf %160, %163 : vector<8x1xf32>
    %165 = math.rsqrt %164 : vector<8x1xf32>
    %166 = vector.broadcast %165 : vector<8x1xf32> to vector<8x32xf32>
    %167 = arith.mulf %162, %166 : vector<8x32xf32>
    %168 = vector.shape_cast %147 : vector<32xf32> to vector<1x32xf32>
    %169 = vector.broadcast %168 : vector<1x32xf32> to vector<8x32xf32>
    %170 = arith.mulf %167, %169 : vector<8x32xf32>
    %171 = vector.shape_cast %149 : vector<32xf32> to vector<1x32xf32>
    %172 = vector.broadcast %171 : vector<1x32xf32> to vector<8x32xf32>
    %173 = arith.addf %170, %172 : vector<8x32xf32>
    %174 = arith.truncf %173 : vector<8x32xf32> to vector<8x32xbf16>
    %c0_74 = arith.constant 0 : index
    %c0_75 = arith.constant 0 : index
    %175 = vector.load %arg10[%c0_74, %c0_75] : memref<32x64xbf16, #tpu.memory_space<vmem>>, vector<32x64xbf16>
    %cst_76 = arith.constant dense<0.000000e+00> : vector<8x64xf32>
    %176 = tpu.matmul %174, %175, %cst_76 {dimension_numbers = #tpu.dot_dimension_numbers<[1], [0], [0], [1], [0, 0, 1, 1], [], []>} : vector<8x32xbf16>, vector<32x64xbf16>, vector<8x64xf32> -> vector<8x64xf32>
    %c0_77 = arith.constant 0 : index
    %c0_78 = arith.constant 0 : index
    %177 = vector.load %arg11[%c0_77, %c0_78] : memref<1x64xf32, #tpu.memory_space<vmem>>, vector<1x64xf32>
    %178 = vector.shape_cast %177 : vector<1x64xf32> to vector<64xf32>
    %179 = vector.shape_cast %178 : vector<64xf32> to vector<1x64xf32>
    %180 = vector.broadcast %179 : vector<1x64xf32> to vector<8x64xf32>
    %181 = arith.addf %176, %180 : vector<8x64xf32>
    %cst_79 = arith.constant 0.000000e+00 : f32
    %182 = vector.broadcast %cst_79 : f32 to vector<8x64xf32>
    %183 = arith.maximumf %181, %182 : vector<8x64xf32>
    %184 = arith.truncf %183 : vector<8x64xf32> to vector<8x64xbf16>
    %c0_80 = arith.constant 0 : index
    %c0_81 = arith.constant 0 : index
    %185 = vector.load %arg12[%c0_80, %c0_81] : memref<64x32xbf16, #tpu.memory_space<vmem>>, vector<64x32xbf16>
    %cst_82 = arith.constant dense<0.000000e+00> : vector<8x32xf32>
    %186 = tpu.matmul %184, %185, %cst_82 {dimension_numbers = #tpu.dot_dimension_numbers<[1], [0], [0], [1], [0, 0, 1, 1], [], []>} : vector<8x64xbf16>, vector<64x32xbf16>, vector<8x32xf32> -> vector<8x32xf32>
    %c0_83 = arith.constant 0 : index
    %c0_84 = arith.constant 0 : index
    %187 = vector.load %arg13[%c0_83, %c0_84] : memref<1x32xf32, #tpu.memory_space<vmem>>, vector<1x32xf32>
    %188 = vector.shape_cast %187 : vector<1x32xf32> to vector<32xf32>
    %189 = vector.shape_cast %188 : vector<32xf32> to vector<1x32xf32>
    %190 = vector.broadcast %189 : vector<1x32xf32> to vector<8x32xf32>
    %191 = arith.addf %186, %190 : vector<8x32xf32>
    %192 = arith.addf %173, %191 : vector<8x32xf32>
    %193 = vector.extract_strided_slice %18 {offsets = [2, 0], sizes = [1, 32], strides = [1, 1]} : vector<3x32xf32> to vector<1x32xf32>
    %194 = vector.shape_cast %193 : vector<1x32xf32> to vector<32xf32>
    %195 = vector.extract_strided_slice %19 {offsets = [2, 0], sizes = [1, 32], strides = [1, 1]} : vector<3x32xf32> to vector<1x32xf32>
    %196 = vector.shape_cast %195 : vector<1x32xf32> to vector<32xf32>
    %cst_85 = arith.constant dense<0.000000e+00> : vector<8xf32>
    %197 = vector.multi_reduction <add>, %192, %cst_85 [1] : vector<8x32xf32> to vector<8xf32>
    %198 = vector.shape_cast %197 : vector<8xf32> to vector<8x1xf32>
    %cst_86 = arith.constant 3.200000e+01 : f32
    %199 = vector.broadcast %cst_86 : f32 to vector<8x1xf32>
    %200 = arith.divf %198, %199 : vector<8x1xf32>
    %201 = vector.broadcast %200 : vector<8x1xf32> to vector<8x32xf32>
    %202 = arith.subf %192, %201 : vector<8x32xf32>
    %203 = arith.mulf %202, %202 : vector<8x32xf32>
    %cst_87 = arith.constant dense<0.000000e+00> : vector<8xf32>
    %204 = vector.multi_reduction <add>, %203, %cst_87 [1] : vector<8x32xf32> to vector<8xf32>
    %205 = vector.shape_cast %204 : vector<8xf32> to vector<8x1xf32>
    %cst_88 = arith.constant 3.200000e+01 : f32
    %206 = vector.broadcast %cst_88 : f32 to vector<8x1xf32>
    %207 = arith.divf %205, %206 : vector<8x1xf32>
    %208 = vector.broadcast %200 : vector<8x1xf32> to vector<8x32xf32>
    %209 = arith.subf %192, %208 : vector<8x32xf32>
    %cst_89 = arith.constant 9.99999997E-7 : f32
    %210 = vector.broadcast %cst_89 : f32 to vector<8x1xf32>
    %211 = arith.addf %207, %210 : vector<8x1xf32>
    %212 = math.rsqrt %211 : vector<8x1xf32>
    %213 = vector.broadcast %212 : vector<8x1xf32> to vector<8x32xf32>
    %214 = arith.mulf %209, %213 : vector<8x32xf32>
    %215 = vector.shape_cast %194 : vector<32xf32> to vector<1x32xf32>
    %216 = vector.broadcast %215 : vector<1x32xf32> to vector<8x32xf32>
    %217 = arith.mulf %214, %216 : vector<8x32xf32>
    %218 = vector.shape_cast %196 : vector<32xf32> to vector<1x32xf32>
    %219 = vector.broadcast %218 : vector<1x32xf32> to vector<8x32xf32>
    %220 = arith.addf %217, %219 : vector<8x32xf32>
    %c0_90 = arith.constant 0 : index
    %c0_91 = arith.constant 0 : index
    %c0_92 = arith.constant 0 : index
    %221 = vector.load %arg16[%c0_90, %c0_91, %c0_92] : memref<1x8x32xf32, #tpu.memory_space<vmem>>, vector<1x8x32xf32>
    %222 = vector.shape_cast %221 : vector<1x8x32xf32> to vector<8x32xf32>
    %223 = vector.shape_cast %220 : vector<8x32xf32> to vector<1x8x32xf32>
    tpu.vector_store %arg16[%c0_90, %c0_91, %c0_92], %223 {strides = array<i32>} : memref<1x8x32xf32, #tpu.memory_space<vmem>>, vector<1x8x32xf32>,
    return
  }
  func.func @transform_0(%arg0: i32, %arg1: i32) -> (i32, i32, i32) {
    %c0_i32 = arith.constant 0 : i32
    %c0_i32_0 = arith.constant 0 : i32
    %c0_i32_1 = arith.constant 0 : i32
    return %arg0, %c0_i32, %c0_i32_0 : i32, i32, i32
  }
  func.func @transform_1(%arg0: i32, %arg1: i32) -> (i32, i32, i32) {
    %c0_i32 = arith.constant 0 : i32
    %c0_i32_0 = arith.constant 0 : i32
    %c0_i32_1 = arith.constant 0 : i32
    return %arg0, %c0_i32, %c0_i32_0 : i32, i32, i32
  }
  func.func @transform_2(%arg0: i32, %arg1: i32) -> (i32, i32, i32, i32) {
    %c0_i32 = arith.constant 0 : i32
    %c0_i32_0 = arith.constant 0 : i32
    %c0_i32_1 = arith.constant 0 : i32
    return %arg0, %c0_i32, %arg1, %c0_i32_0 : i32, i32, i32, i32
  }
  func.func @transform_3(%arg0: i32, %arg1: i32) -> (i32, i32, i32, i32) {
    %c0_i32 = arith.constant 0 : i32
    %c0_i32_0 = arith.constant 0 : i32
    %c0_i32_1 = arith.constant 0 : i32
    %c0_i32_2 = arith.constant 0 : i32
    return %arg0, %c0_i32, %c0_i32_0, %c0_i32_1 : i32, i32, i32, i32
  }
  func.func @transform_4(%arg0: i32, %arg1: i32) -> (i32, i32, i32) {
    %c0_i32 = arith.constant 0 : i32
    %c0_i32_0 = arith.constant 0 : i32
    %c0_i32_1 = arith.constant 0 : i32
    %c0_i32_2 = arith.constant 0 : i32
    return %c0_i32, %c0_i32_0, %c0_i32_1 : i32, i32, i32
  }
  func.func @transform_5(%arg0: i32, %arg1: i32) -> (i32, i32) {
    %c0_i32 = arith.constant 0 : i32
    %c0_i32_0 = arith.constant 0 : i32
    %c0_i32_1 = arith.constant 0 : i32
    return %c0_i32, %c0_i32_0 : i32, i32
  }
  func.func @transform_6(%arg0: i32, %arg1: i32) -> (i32, i32, i32) {
    %c0_i32 = arith.constant 0 : i32
    %c0_i32_0 = arith.constant 0 : i32
    %c0_i32_1 = arith.constant 0 : i32
    %c0_i32_2 = arith.constant 0 : i32
    return %c0_i32, %c0_i32_0, %c0_i32_1 : i32, i32, i32
  }
  func.func @transform_7(%arg0: i32, %arg1: i32) -> (i32, i32) {
    %c0_i32 = arith.constant 0 : i32
    %c0_i32_0 = arith.constant 0 : i32
    %c0_i32_1 = arith.constant 0 : i32
    return %c0_i32, %c0_i32_0 : i32, i32
  }
  func.func @transform_8(%arg0: i32, %arg1: i32) -> (i32, i32) {
    %c0_i32 = arith.constant 0 : i32
    %c0_i32_0 = arith.constant 0 : i32
    %c0_i32_1 = arith.constant 0 : i32
    return %c0_i32, %c0_i32_0 : i32, i32
  }
  func.func @transform_9(%arg0: i32, %arg1: i32) -> (i32, i32) {
    %c0_i32 = arith.constant 0 : i32
    %c0_i32_0 = arith.constant 0 : i32
    %c0_i32_1 = arith.constant 0 : i32
    return %c0_i32, %c0_i32_0 : i32, i32
  }
  func.func @transform_10(%arg0: i32, %arg1: i32) -> (i32, i32) {
    %c0_i32 = arith.constant 0 : i32
    %c0_i32_0 = arith.constant 0 : i32
    %c0_i32_1 = arith.constant 0 : i32
    return %c0_i32, %c0_i32_0 : i32, i32
  }
  func.func @transform_11(%arg0: i32, %arg1: i32) -> (i32, i32) {
    %c0_i32 = arith.constant 0 : i32
    %c0_i32_0 = arith.constant 0 : i32
    %c0_i32_1 = arith.constant 0 : i32
    return %c0_i32, %c0_i32_0 : i32, i32
  }
  func.func @transform_12(%arg0: i32, %arg1: i32) -> (i32, i32) {
    %c0_i32 = arith.constant 0 : i32
    %c0_i32_0 = arith.constant 0 : i32
    %c0_i32_1 = arith.constant 0 : i32
    return %c0_i32, %c0_i32_0 : i32, i32
  }
  func.func @transform_13(%arg0: i32, %arg1: i32) -> (i32, i32) {
    %c0_i32 = arith.constant 0 : i32
    %c0_i32_0 = arith.constant 0 : i32
    %c0_i32_1 = arith.constant 0 : i32
    return %c0_i32, %c0_i32_0 : i32, i32
  }
  func.func @transform_14(%arg0: i32, %arg1: i32) -> (i32, i32, i32) {
    %c0_i32 = arith.constant 0 : i32
    %c0_i32_0 = arith.constant 0 : i32
    return %arg0, %arg1, %c0_i32 : i32, i32, i32
  }
  func.func @transform_15(%arg0: i32, %arg1: i32) -> (i32, i32, i32, i32) {
    %c0_i32 = arith.constant 0 : i32
    %c0_i32_0 = arith.constant 0 : i32
    %c0_i32_1 = arith.constant 0 : i32
    return %arg0, %c0_i32, %arg1, %c0_i32_0 : i32, i32, i32, i32
  }
  func.func @transform_16(%arg0: i32, %arg1: i32) -> (i32, i32, i32, i32) {
    %c0_i32 = arith.constant 0 : i32
    %c0_i32_0 = arith.constant 0 : i32
    %c0_i32_1 = arith.constant 0 : i32
    return %arg0, %c0_i32, %arg1, %c0_i32_0 : i32, i32, i32, i32
  }
}

</mosaic_0001>

<llo_original>
// kernel: tpu_custom_call.1
$region0: #{tpu_custom_call.1}
  #allocation0 [shape = 'u32[]', space=smem, size = 0x4, offset = 0x4, fixed_abs, tag = 'smem constant byte address 0x4 - core index']
  #allocation1 [shape = 'u32[144,128]{1,0:T(1,128)}', space=vmem, size = 0x12000, scoped, tag = 'internal scratch']
  #allocation2 [shape = 'bf16[8,32]{1,0:T(8,128)(2,1)}', space=vmem, size = 0x800, scoped, tag = 'scratch operand']
  #allocation3 [shape = 'bf16[8,32]{1,0:T(8,128)(2,1)}', space=vmem, size = 0x800, scoped, tag = 'scratch operand']
  #allocation4 [shape = 'bf16[8,32]{1,0:T(8,128)(2,1)}', space=vmem, size = 0x800, scoped, tag = 'scratch operand']
  #allocation5 [shape = 'bf16[8,32]{1,0:T(8,128)(2,1)}', space=vmem, size = 0x800, scoped, tag = 'scratch operand']
  %s0 = inlined_call_operand.vmem [shape: bf16[2,8,32], index: 0, kind: input, shape index: {}]
  %s1 = inlined_call_operand.vmem [shape: bf16[2,8,32], index: 1, kind: input, shape index: {}]
  %s2 = inlined_call_operand.vmem [shape: bf16[2,1,8,8], index: 2, kind: input, shape index: {}]
  %s3 = inlined_call_operand.vmem [shape: bf16[2,1,1,8], index: 3, kind: input, shape index: {}]
  %s4 = inlined_call_operand.hbm [shape: bf16[4,32,32], index: 4, kind: input, shape index: {}]
  %s5 = inlined_call_operand.vmem [shape: f32[4,32], index: 5, kind: input, shape index: {}]
  %s6 = inlined_call_operand.hbm [shape: bf16[4,32,32], index: 6, kind: input, shape index: {}]
  %s7 = inlined_call_operand.vmem [shape: f32[4,32], index: 7, kind: input, shape index: {}]
  %s8 = inlined_call_operand.vmem [shape: bf16[32,64], index: 8, kind: input, shape index: {}]
  %s9 = inlined_call_operand.hbm [shape: f32[1,64], index: 9, kind: input, shape index: {}]
  %s10 = inlined_call_operand.vmem [shape: bf16[64,32], index: 10, kind: input, shape index: {}]
  %s11 = inlined_call_operand.hbm [shape: f32[1,32], index: 11, kind: input, shape index: {}]
  %s12 = inlined_call_operand.vmem [shape: f32[3,32], index: 12, kind: input, shape index: {}]
  %s13 = inlined_call_operand.vmem [shape: f32[3,32], index: 13, kind: input, shape index: {}]
  %s14 = inlined_call_operand.hbm [shape: f32[2,8,32], index: 14, kind: output, shape index: {0}]
  %s15 = inlined_call_operand.hbm [shape: bf16[2,4,8,8], index: 15, kind: output, shape index: {1}]
  %s16 = inlined_call_operand.hbm [shape: bf16[2,4,8,8], index: 16, kind: output, shape index: {2}]
  %17 = xla_tuple %s14, %s15, %s16
  %s18 = sld [smem:[#allocation0]]
  $region125: #{tpu_custom_call.1} parent=0
    _
  %s20 = ssub.s32 1, %s18
  %s21 = scalar_select 0, %s20, %s18
  $region1: #{tpu_custom_call.1} parent=0
    #allocation6 [shape = 'u8[32768]{0}', space=vmem, size = 0x8000, scoped, tag = 'input window, operand 4, single buffered']
    #allocation7 [shape = 's32[2]{0}', space=sflag, size = 0x8, scoped, tag = 'scoped memory for tpu_custom_call.1']
    #allocation8 [shape = 's32[2]{0}', space=sflag, size = 0x8, scoped, tag = 'scoped memory for tpu_custom_call.1']
    #allocation9 [shape = 'u8[32768]{0}', space=vmem, size = 0x8000, scoped, tag = 'input window, operand 6, single buffered']
    #allocation10 [shape = 's32[1]{0}', space=sflag, size = 0x4, scoped, tag = 'scoped memory for tpu_custom_call.1']
    #allocation11 [shape = 'u8[512]{0}', space=vmem, size = 0x400, scoped, tag = 'input window, operand 9, single buffered']
    #allocation12 [shape = 'u8[512]{0}', space=vmem, size = 0x400, scoped, tag = 'input window, operand 11, single buffered']
    #allocation13 [shape = 's32[1]{0}', space=sflag, size = 0x4, scoped, tag = 'scoped memory for tpu_custom_call.1']
    #allocation14 [shape = 'u8[8192]{0}', space=vmem, size = 0x2000, scoped, tag = 'output window, operand 0']
    #allocation15 [shape = 'u8[16384]{0}', space=vmem, size = 0x4000, scoped, tag = 'output window, operand 1']
    #allocation16 [shape = 's32[2]{0}', space=sflag, size = 0x8, scoped, tag = 'scoped memory for tpu_custom_call.1']
    #allocation17 [shape = 'u8[16384]{0}', space=vmem, size = 0x4000, scoped, tag = 'output window, operand 2']
    %22 = vsyncpa [#allocation7], 0
    %23 = vsyncpa [#allocation10], 0
    %24 = vsyncpa [#allocation13], 0
    %25 = vsyncpa [#allocation8], 0
    %s26 = scalar_lea.sflag [#allocation8], 1
    %27 = vsyncpa %s26, 0
    %28 = vsyncpa [#allocation16], 0
    %s29 = scalar_lea.sflag [#allocation16], 1
    %30 = vsyncpa %s29, 0
    loop: start=0, step=1, limit=4
    $region2: #{tpu_custom_call.1} parent=1 // loop_pre_header
      _
    $region3: #{tpu_custom_call.1} parent=1 // loop_header
      %s32 = sphi 0, %s36
      %p33 = scmp.ge.s32.totalorder %s32, 4
      %s39 = sphi 0, %s51
      %s40 = sphi 0, %s47
      %s41 = sphi 0, %s39
      %s42 = sphi 0, %s40
      %s43 = sphi 0, %s41
      %s44 = sphi 0, %s42
      %s54 = sphi 0, %s56
      %s57 = sphi 0, %s54
      %s58 = sphi 0, %s57
      %s74 = sphi 0, %s58
      %s80 = sphi 0, %s82
      %s83 = sphi 0, %s80
      %s84 = sphi 0, %s83
      %s100 = sphi 0, %s84
      %s108 = sphi 0, %s110
      %s111 = sphi 0, %s108
      %s112 = sphi 0, %s111
      %s128 = sphi 0, %s112
      %s134 = sphi 0, %s136
      %s137 = sphi 0, %s134
      %s138 = sphi 0, %s137
      %s154 = sphi 0, %s138
      %s158 = sphi 0, %s158
      %s160 = sphi 0, %s158
      %s161 = sphi 0, %s160
      %s175 = sphi 0, %s161
      %s179 = sphi 0, %s179
      %s181 = sphi 0, %s179
      %s182 = sphi 0, %s181
      %s196 = sphi 0, %s182
      %s200 = sphi 0, %s200
      %s202 = sphi 0, %s200
      %s203 = sphi 0, %s202
      %s217 = sphi 0, %s203
      %s221 = sphi 0, %s221
      %s223 = sphi 0, %s221
      %s224 = sphi 0, %s223
      %s238 = sphi 0, %s224
      %s242 = sphi 0, %s242
      %s244 = sphi 0, %s242
      %s245 = sphi 0, %s244
      %s259 = sphi 0, %s245
      %s263 = sphi 0, %s263
      %s265 = sphi 0, %s263
      %s266 = sphi 0, %s265
      %s280 = sphi 0, %s266
      %s284 = sphi 0, %s284
      %s286 = sphi 0, %s284
      %s287 = sphi 0, %s286
      %s301 = sphi 0, %s287
      %s305 = sphi 0, %s305
      %s307 = sphi 0, %s305
      %s308 = sphi 0, %s307
      %s322 = sphi 0, %s308
      %s326 = sphi 0, %s326
      %s328 = sphi 0, %s326
      %s329 = sphi 0, %s328
      %s343 = sphi 0, %s329
      %s347 = sphi 0, %s347
      %s349 = sphi 0, %s347
      %s350 = sphi 0, %s349
      %s364 = sphi 0, %s350
      %s372 = sphi 0, %s374
      %s375 = sphi 0, %s372
      %s376 = sphi 0, %s375
      %s392 = sphi 0, %s376
      %s400 = sphi 0, %s402
      %s403 = sphi 0, %s400
      %s404 = sphi 0, %s403
      %s420 = sphi 0, %s404
      %s428 = sphi 0, %s430
      %s431 = sphi 0, %s428
      %s432 = sphi 0, %s431
      %s448 = sphi 0, %s432
    $region4: #{tpu_custom_call.1} parent=1 // loop_header_branch
      %35 = sbr.rel (%p33) target = $region8
    $region5: #{tpu_custom_call.1} parent=1 // loop_body
      %s37 = ssub.s32 %s32, 1
      %s38 = ssub.s32 %s32, 2
      %s45 = sadd.s32 1, %s40
      %p46 = scmp.ge.s32.totalorder %s45, 1
      %s47 = scalar_select %p46, 0, %s45
      %s48 = sadd.s32 1, %s39
      %s49 = scalar_select %p46, %s48, %s39
      %p50 = scmp.ge.s32.totalorder %s49, 2
      %s51 = scalar_select %p50, 0, %s49
      %s52 = ssub.s32 %s39, %s51
      %p53 = scmp.eq.s32.totalorder %s52, 0
      %s55 = sadd.s32 %s54, 1
      %s56 = scalar_select %p53, %s54, %s55
      %p59 = pneg %p53
      %p60 = scmp.eq.s32.totalorder %s32, 1
      %p61 = por %p59, %p60
      %p62 = scmp.ne.s32.totalorder %s54, %s57
      %p63 = scmp.eq.s32.totalorder %s32, 0
      %p64 = por %p62, %p63
      %p65 = scmp.ne.s32.totalorder %s54, %s57
      %p66 = scmp.eq.s32.totalorder %s37, 1
      %p67 = por %p65, %p66
      %p68 = scmp.ne.s32.totalorder %s57, %s58
      %p69 = scmp.eq.s32.totalorder %s37, 0
      %p70 = por %p68, %p69
      %p71 = scmp.ne.s32.totalorder %s57, %s58
      %p72 = scmp.eq.s32.totalorder %s38, 1
      %p73 = por %p71, %p72
      %p75 = scmp.ne.s32.totalorder %s58, %s74
      %p76 = scmp.eq.s32.totalorder %s38, 0
      %p77 = por %p75, %p76
      %s78 = ssub.s32 %s39, %s51
      %p79 = scmp.eq.s32.totalorder %s78, 0
      %s81 = sadd.s32 %s80, 1
      %s82 = scalar_select %p79, %s80, %s81
      %p85 = pneg %p79
      %p86 = scmp.eq.s32.totalorder %s32, 1
      %p87 = por %p85, %p86
      %p88 = scmp.ne.s32.totalorder %s80, %s83
      %p89 = scmp.eq.s32.totalorder %s32, 0
      %p90 = por %p88, %p89
      %p91 = scmp.ne.s32.totalorder %s80, %s83
      %p92 = scmp.eq.s32.totalorder %s37, 1
      %p93 = por %p91, %p92
      %p94 = scmp.ne.s32.totalorder %s83, %s84
      %p95 = scmp.eq.s32.totalorder %s37, 0
      %p96 = por %p94, %p95
      %p97 = scmp.ne.s32.totalorder %s83, %s84
      %p98 = scmp.eq.s32.totalorder %s38, 1
      %p99 = por %p97, %p98
      %p101 = scmp.ne.s32.totalorder %s84, %s100
      %p102 = scmp.eq.s32.totalorder %s38, 0
      %p103 = por %p101, %p102
      %s104 = ssub.s32 %s39, %s51
      %s105 = ssub.s32 %s40, %s47
      %s106 = sor.u32 %s104, %s105
      %p107 = scmp.eq.s32.totalorder %s106, 0
      %s109 = sadd.s32 %s108, 1
      %s110 = scalar_select %p107, %s108, %s109
      %p113 = pneg %p107
      %p114 = scmp.eq.s32.totalorder %s32, 1
      %p115 = por %p113, %p114
      %p116 = scmp.ne.s32.totalorder %s108, %s111
      %p117 = scmp.eq.s32.totalorder %s32, 0
      %p118 = por %p116, %p117
      %p119 = scmp.ne.s32.totalorder %s108, %s111
      %p120 = scmp.eq.s32.totalorder %s37, 1
      %p121 = por %p119, %p120
      %p122 = scmp.ne.s32.totalorder %s111, %s112
      %p123 = scmp.eq.s32.totalorder %s37, 0
      %p124 = por %p122, %p123
      %p125 = scmp.ne.s32.totalorder %s111, %s112
      %p126 = scmp.eq.s32.totalorder %s38, 1
      %p127 = por %p125, %p126
      %p129 = scmp.ne.s32.totalorder %s112, %s128
      %p130 = scmp.eq.s32.totalorder %s38, 0
      %p131 = por %p129, %p130
      %s132 = ssub.s32 %s39, %s51
      %p133 = scmp.eq.s32.totalorder %s132, 0
      %s135 = sadd.s32 %s134, 1
      %s136 = scalar_select %p133, %s134, %s135
      %p139 = pneg %p133
      %p140 = scmp.eq.s32.totalorder %s32, 1
      %p141 = por %p139, %p140
      %p142 = scmp.ne.s32.totalorder %s134, %s137
      %p143 = scmp.eq.s32.totalorder %s32, 0
      %p144 = por %p142, %p143
      %p145 = scmp.ne.s32.totalorder %s134, %s137
      %p146 = scmp.eq.s32.totalorder %s37, 1
      %p147 = por %p145, %p146
      %p148 = scmp.ne.s32.totalorder %s137, %s138
      %p149 = scmp.eq.s32.totalorder %s37, 0
      %p150 = por %p148, %p149
      %p151 = scmp.ne.s32.totalorder %s137, %s138
      %p152 = scmp.eq.s32.totalorder %s38, 1
      %p153 = por %p151, %p152
      %p155 = scmp.ne.s32.totalorder %s138, %s154
      %p156 = scmp.eq.s32.totalorder %s38, 0
      %p157 = por %p155, %p156
      %s159 = sadd.s32 %s158, 1
      %p162 = scmp.eq.s32.totalorder %s32, 1
      %p163 = scmp.ne.s32.totalorder %s158, %s160
      %p164 = scmp.eq.s32.totalorder %s32, 0
      %p165 = por %p163, %p164
      %p166 = scmp.ne.s32.totalorder %s158, %s160
      %p167 = scmp.eq.s32.totalorder %s37, 1
      %p168 = por %p166, %p167
      %p169 = scmp.ne.s32.totalorder %s160, %s161
      %p170 = scmp.eq.s32.totalorder %s37, 0
      %p171 = por %p169, %p170
      %p172 = scmp.ne.s32.totalorder %s160, %s161
      %p173 = scmp.eq.s32.totalorder %s38, 1
      %p174 = por %p172, %p173
      %p176 = scmp.ne.s32.totalorder %s161, %s175
      %p177 = scmp.eq.s32.totalorder %s38, 0
      %p178 = por %p176, %p177
      %s180 = sadd.s32 %s179, 1
      %p183 = scmp.eq.s32.totalorder %s32, 1
      %p184 = scmp.ne.s32.totalorder %s179, %s181
      %p185 = scmp.eq.s32.totalorder %s32, 0
      %p186 = por %p184, %p185
      %p187 = scmp.ne.s32.totalorder %s179, %s181
      %p188 = scmp.eq.s32.totalorder %s37, 1
      %p189 = por %p187, %p188
      %p190 = scmp.ne.s32.totalorder %s181, %s182
      %p191 = scmp.eq.s32.totalorder %s37, 0
      %p192 = por %p190, %p191
      %p193 = scmp.ne.s32.totalorder %s181, %s182
      %p194 = scmp.eq.s32.totalorder %s38, 1
      %p195 = por %p193, %p194
      %p197 = scmp.ne.s32.totalorder %s182, %s196
      %p198 = scmp.eq.s32.totalorder %s38, 0
      %p199 = por %p197, %p198
      %s201 = sadd.s32 %s200, 1
      %p204 = scmp.eq.s32.totalorder %s32, 1
      %p205 = scmp.ne.s32.totalorder %s200, %s202
      %p206 = scmp.eq.s32.totalorder %s32, 0
      %p207 = por %p205, %p206
      %p208 = scmp.ne.s32.totalorder %s200, %s202
      %p209 = scmp.eq.s32.totalorder %s37, 1
      %p210 = por %p208, %p209
      %p211 = scmp.ne.s32.totalorder %s202, %s203
      %p212 = scmp.eq.s32.totalorder %s37, 0
      %p213 = por %p211, %p212
      %p214 = scmp.ne.s32.totalorder %s202, %s203
      %p215 = scmp.eq.s32.totalorder %s38, 1
      %p216 = por %p214, %p215
      %p218 = scmp.ne.s32.totalorder %s203, %s217
      %p219 = scmp.eq.s32.totalorder %s38, 0
      %p220 = por %p218, %p219
      %s222 = sadd.s32 %s221, 1
      %p225 = scmp.eq.s32.totalorder %s32, 1
      %p226 = scmp.ne.s32.totalorder %s221, %s223
      %p227 = scmp.eq.s32.totalorder %s32, 0
      %p228 = por %p226, %p227
      %p229 = scmp.ne.s32.totalorder %s221, %s223
      %p230 = scmp.eq.s32.totalorder %s37, 1
      %p231 = por %p229, %p230
      %p232 = scmp.ne.s32.totalorder %s223, %s224
      %p233 = scmp.eq.s32.totalorder %s37, 0
      %p234 = por %p232, %p233
      %p235 = scmp.ne.s32.totalorder %s223, %s224
      %p236 = scmp.eq.s32.totalorder %s38, 1
      %p237 = por %p235, %p236
      %p239 = scmp.ne.s32.totalorder %s224, %s238
      %p240 = scmp.eq.s32.totalorder %s38, 0
      %p241 = por %p239, %p240
      %s243 = sadd.s32 %s242, 1
      %p246 = scmp.eq.s32.totalorder %s32, 1
      %p247 = scmp.ne.s32.totalorder %s242, %s244
      %p248 = scmp.eq.s32.totalorder %s32, 0
      %p249 = por %p247, %p248
      %p250 = scmp.ne.s32.totalorder %s242, %s244
      %p251 = scmp.eq.s32.totalorder %s37, 1
      %p252 = por %p250, %p251
      %p253 = scmp.ne.s32.totalorder %s244, %s245
      %p254 = scmp.eq.s32.totalorder %s37, 0
      %p255 = por %p253, %p254
      %p256 = scmp.ne.s32.totalorder %s244, %s245
      %p257 = scmp.eq.s32.totalorder %s38, 1
      %p258 = por %p256, %p257
      %p260 = scmp.ne.s32.totalorder %s245, %s259
      %p261 = scmp.eq.s32.totalorder %s38, 0
      %p262 = por %p260, %p261
      %s264 = sadd.s32 %s263, 1
      %p267 = scmp.eq.s32.totalorder %s32, 1
      %p268 = scmp.ne.s32.totalorder %s263, %s265
      %p269 = scmp.eq.s32.totalorder %s32, 0
      %p270 = por %p268, %p269
      %p271 = scmp.ne.s32.totalorder %s263, %s265
      %p272 = scmp.eq.s32.totalorder %s37, 1
      %p273 = por %p271, %p272
      %p274 = scmp.ne.s32.totalorder %s265, %s266
      %p275 = scmp.eq.s32.totalorder %s37, 0
      %p276 = por %p274, %p275
      %p277 = scmp.ne.s32.totalorder %s265, %s266
      %p278 = scmp.eq.s32.totalorder %s38, 1
      %p279 = por %p277, %p278
      %p281 = scmp.ne.s32.totalorder %s266, %s280
      %p282 = scmp.eq.s32.totalorder %s38, 0
      %p283 = por %p281, %p282
      %s285 = sadd.s32 %s284, 1
      %p288 = scmp.eq.s32.totalorder %s32, 1
      %p289 = scmp.ne.s32.totalorder %s284, %s286
      %p290 = scmp.eq.s32.totalorder %s32, 0
      %p291 = por %p289, %p290
      %p292 = scmp.ne.s32.totalorder %s284, %s286
      %p293 = scmp.eq.s32.totalorder %s37, 1
      %p294 = por %p292, %p293
      %p295 = scmp.ne.s32.totalorder %s286, %s287
      %p296 = scmp.eq.s32.totalorder %s37, 0
      %p297 = por %p295, %p296
      %p298 = scmp.ne.s32.totalorder %s286, %s287
      %p299 = scmp.eq.s32.totalorder %s38, 1
      %p300 = por %p298, %p299
      %p302 = scmp.ne.s32.totalorder %s287, %s301
      %p303 = scmp.eq.s32.totalorder %s38, 0
      %p304 = por %p302, %p303
      %s306 = sadd.s32 %s305, 1
      %p309 = scmp.eq.s32.totalorder %s32, 1
      %p310 = scmp.ne.s32.totalorder %s305, %s307
      %p311 = scmp.eq.s32.totalorder %s32, 0
      %p312 = por %p310, %p311
      %p313 = scmp.ne.s32.totalorder %s305, %s307
      %p314 = scmp.eq.s32.totalorder %s37, 1
      %p315 = por %p313, %p314
      %p316 = scmp.ne.s32.totalorder %s307, %s308
      %p317 = scmp.eq.s32.totalorder %s37, 0
      %p318 = por %p316, %p317
      %p319 = scmp.ne.s32.totalorder %s307, %s308
      %p320 = scmp.eq.s32.totalorder %s38, 1
      %p321 = por %p319, %p320
      %p323 = scmp.ne.s32.totalorder %s308, %s322
      %p324 = scmp.eq.s32.totalorder %s38, 0
      %p325 = por %p323, %p324
      %s327 = sadd.s32 %s326, 1
      %p330 = scmp.eq.s32.totalorder %s32, 1
      %p331 = scmp.ne.s32.totalorder %s326, %s328
      %p332 = scmp.eq.s32.totalorder %s32, 0
      %p333 = por %p331, %p332
      %p334 = scmp.ne.s32.totalorder %s326, %s328
      %p335 = scmp.eq.s32.totalorder %s37, 1
      %p336 = por %p334, %p335
      %p337 = scmp.ne.s32.totalorder %s328, %s329
      %p338 = scmp.eq.s32.totalorder %s37, 0
      %p339 = por %p337, %p338
      %p340 = scmp.ne.s32.totalorder %s328, %s329
      %p341 = scmp.eq.s32.totalorder %s38, 1
      %p342 = por %p340, %p341
      %p344 = scmp.ne.s32.totalorder %s329, %s343
      %p345 = scmp.eq.s32.totalorder %s38, 0
      %p346 = por %p344, %p345
      %s348 = sadd.s32 %s347, 1
      %p351 = scmp.eq.s32.totalorder %s32, 1
      %p352 = scmp.ne.s32.totalorder %s347, %s349
      %p353 = scmp.eq.s32.totalorder %s32, 0
      %p354 = por %p352, %p353
      %p355 = scmp.ne.s32.totalorder %s347, %s349
      %p356 = scmp.eq.s32.totalorder %s37, 1
      %p357 = por %p355, %p356
      %p358 = scmp.ne.s32.totalorder %s349, %s350
      %p359 = scmp.eq.s32.totalorder %s37, 0
      %p360 = por %p358, %p359
      %p361 = scmp.ne.s32.totalorder %s349, %s350
      %p362 = scmp.eq.s32.totalorder %s38, 1
      %p363 = por %p361, %p362
      %p365 = scmp.ne.s32.totalorder %s350, %s364
      %p366 = scmp.eq.s32.totalorder %s38, 0
      %p367 = por %p365, %p366
      %s368 = ssub.s32 %s39, %s51
      %s369 = ssub.s32 %s40, %s47
      %s370 = sor.u32 %s368, %s369
      %p371 = scmp.eq.s32.totalorder %s370, 0
      %s373 = sadd.s32 %s372, 1
      %s374 = scalar_select %p371, %s372, %s373
      %p377 = pneg %p371
      %p378 = scmp.eq.s32.totalorder %s32, 1
      %p379 = por %p377, %p378
      %p380 = scmp.ne.s32.totalorder %s372, %s375
      %p381 = scmp.eq.s32.totalorder %s32, 0
      %p382 = por %p380, %p381
      %p383 = scmp.ne.s32.totalorder %s372, %s375
      %p384 = scmp.eq.s32.totalorder %s37, 1
      %p385 = por %p383, %p384
      %p386 = scmp.ne.s32.totalorder %s375, %s376
      %p387 = scmp.eq.s32.totalorder %s37, 0
      %p388 = por %p386, %p387
      %p389 = scmp.ne.s32.totalorder %s375, %s376
      %p390 = scmp.eq.s32.totalorder %s38, 1
      %p391 = por %p389, %p390
      %p393 = scmp.ne.s32.totalorder %s376, %s392
      %p394 = scmp.eq.s32.totalorder %s38, 0
      %p395 = por %p393, %p394
      %s396 = ssub.s32 %s39, %s51
      %s397 = ssub.s32 %s40, %s47
      %s398 = sor.u32 %s396, %s397
      %p399 = scmp.eq.s32.totalorder %s398, 0
      %s401 = sadd.s32 %s400, 1
      %s402 = scalar_select %p399, %s400, %s401
      %p405 = pneg %p399
      %p406 = scmp.eq.s32.totalorder %s32, 1
      %p407 = por %p405, %p406
      %p408 = scmp.ne.s32.totalorder %s400, %s403
      %p409 = scmp.eq.s32.totalorder %s32, 0
      %p410 = por %p408, %p409
      %p411 = scmp.ne.s32.totalorder %s400, %s403
      %p412 = scmp.eq.s32.totalorder %s37, 1
      %p413 = por %p411, %p412
      %p414 = scmp.ne.s32.totalorder %s403, %s404
      %p415 = scmp.eq.s32.totalorder %s37, 0
      %p416 = por %p414, %p415
      %p417 = scmp.ne.s32.totalorder %s403, %s404
      %p418 = scmp.eq.s32.totalorder %s38, 1
      %p419 = por %p417, %p418
      %p421 = scmp.ne.s32.totalorder %s404, %s420
      %p422 = scmp.eq.s32.totalorder %s38, 0
      %p423 = por %p421, %p422
      %s424 = ssub.s32 %s39, %s51
      %s425 = ssub.s32 %s40, %s47
      %s426 = sor.u32 %s424, %s425
      %p427 = scmp.eq.s32.totalorder %s426, 0
      %s429 = sadd.s32 %s428, 1
      %s430 = scalar_select %p427, %s428, %s429
      %p433 = pneg %p427
      %p434 = scmp.eq.s32.totalorder %s32, 1
      %p435 = por %p433, %p434
      %p436 = scmp.ne.s32.totalorder %s428, %s431
      %p437 = scmp.eq.s32.totalorder %s32, 0
      %p438 = por %p436, %p437
      %p439 = scmp.ne.s32.totalorder %s428, %s431
      %p440 = scmp.eq.s32.totalorder %s37, 1
      %p441 = por %p439, %p440
      %p442 = scmp.ne.s32.totalorder %s431, %s432
      %p443 = scmp.eq.s32.totalorder %s37, 0
      %p444 = por %p442, %p443
      %p445 = scmp.ne.s32.totalorder %s431, %s432
      %p446 = scmp.eq.s32.totalorder %s38, 1
      %p447 = por %p445, %p446
      %p449 = scmp.ne.s32.totalorder %s432, %s448
      %p450 = scmp.eq.s32.totalorder %s38, 0
      %p451 = por %p449, %p450
      %p452 = scmp.le.s32.totalorder 1, %s32
      %p453 = scmp.lt.s32.totalorder %s32, 3
      %p454 = pnand %p452, %p453
      %p455 = pneg %p454
      // Predicated region
      $region9: #{tpu_custom_call.1} parent=5 // pred_check
        _
      $region10: #{tpu_custom_call.1} parent=5 // pred_check_branch
        %457 = sbr.rel (%p454) target = $region12
      $region11: #{tpu_custom_call.1} parent=5 // pred_region
        %s458 = ssub.s32 %s32, 1
        // Predicated region
        $region13: #{tpu_custom_call.1} parent=11 // pred_check
          %p459 = pneg %p171
        $region14: #{tpu_custom_call.1} parent=11 // pred_check_branch
          %461 = sbr.rel (%p459) target = $region16
        $region15: #{tpu_custom_call.1} parent=11 // pred_region
          %s463 = ssub.s32 1024, 1024
          %464 = vsyncadd [#allocation7], %s463
          %s465 = sshll.u32 [#allocation6], 4
          %s466 = int_to_ptr.vmem [resolvable:$true] %s465
          %471 = dma.hbm_to_vmem [thread:$0]  %s4, 1024, %s466, [#allocation7], 64, 64, 4
        $region16: #{tpu_custom_call.1} parent=11 // pred_fallthru
          _
        // Predicated region
        $region17: #{tpu_custom_call.1} parent=11 // pred_check
          %p472 = pneg %p192
        $region18: #{tpu_custom_call.1} parent=11 // pred_check_branch
          %474 = sbr.rel (%p472) target = $region20
        $region19: #{tpu_custom_call.1} parent=11 // pred_region
          _
        $region20: #{tpu_custom_call.1} parent=11 // pred_fallthru
          _
        // Predicated region
        $region21: #{tpu_custom_call.1} parent=11 // pred_check
          %p475 = pneg %p213
        $region22: #{tpu_custom_call.1} parent=11 // pred_check_branch
          %477 = sbr.rel (%p475) target = $region24
        $region23: #{tpu_custom_call.1} parent=11 // pred_region
          %s479 = ssub.s32 1024, 1024
          %480 = vsyncadd [#allocation10], %s479
          %s481 = sshll.u32 [#allocation9], 4
          %s482 = int_to_ptr.vmem [resolvable:$true] %s481
          %487 = dma.hbm_to_vmem [thread:$0]  %s6, 1024, %s482, [#allocation10], 64, 64, 4
        $region24: #{tpu_custom_call.1} parent=11 // pred_fallthru
          _
        // Predicated region
        $region25: #{tpu_custom_call.1} parent=11 // pred_check
          %p488 = pneg %p234
        $region26: #{tpu_custom_call.1} parent=11 // pred_check_branch
          %490 = sbr.rel (%p488) target = $region28
        $region27: #{tpu_custom_call.1} parent=11 // pred_region
          _
        $region28: #{tpu_custom_call.1} parent=11 // pred_fallthru
          _
        // Predicated region
        $region29: #{tpu_custom_call.1} parent=11 // pred_check
          %p491 = pneg %p255
        $region30: #{tpu_custom_call.1} parent=11 // pred_check_branch
          %493 = sbr.rel (%p491) target = $region32
        $region31: #{tpu_custom_call.1} parent=11 // pred_region
          _
        $region32: #{tpu_custom_call.1} parent=11 // pred_fallthru
          _
        // Predicated region
        $region33: #{tpu_custom_call.1} parent=11 // pred_check
          %p494 = pneg %p276
        $region34: #{tpu_custom_call.1} parent=11 // pred_check_branch
          %496 = sbr.rel (%p494) target = $region36
        $region35: #{tpu_custom_call.1} parent=11 // pred_region
          %s498 = ssub.s32 16, 16
          %499 = vsyncadd [#allocation10], %s498
          %s501 = sshll.u32 [#allocation11], 4
          %s502 = int_to_ptr.vmem [resolvable:$true] %s501
          %504 = dma.hbm_to_vmem [thread:$0]  %s9, 16, %s502, [#allocation10]
        $region36: #{tpu_custom_call.1} parent=11 // pred_fallthru
          _
        // Predicated region
        $region37: #{tpu_custom_call.1} parent=11 // pred_check
          %p505 = pneg %p297
        $region38: #{tpu_custom_call.1} parent=11 // pred_check_branch
          %507 = sbr.rel (%p505) target = $region40
        $region39: #{tpu_custom_call.1} parent=11 // pred_region
          _
        $region40: #{tpu_custom_call.1} parent=11 // pred_fallthru
          _
        // Predicated region
        $region41: #{tpu_custom_call.1} parent=11 // pred_check
          %p508 = pneg %p318
        $region42: #{tpu_custom_call.1} parent=11 // pred_check_branch
          %510 = sbr.rel (%p508) target = $region44
        $region43: #{tpu_custom_call.1} parent=11 // pred_region
          %s512 = ssub.s32 16, 16
          %513 = vsyncadd [#allocation13], %s512
          %s515 = sshll.u32 [#allocation12], 4
          %s516 = int_to_ptr.vmem [resolvable:$true] %s515
          %518 = dma.hbm_to_vmem [thread:$0]  %s11, 16, %s516, [#allocation13]
        $region44: #{tpu_custom_call.1} parent=11 // pred_fallthru
          _
        // Predicated region
        $region45: #{tpu_custom_call.1} parent=11 // pred_check
          %p519 = pneg %p339
        $region46: #{tpu_custom_call.1} parent=11 // pred_check_branch
          %521 = sbr.rel (%p519) target = $region48
        $region47: #{tpu_custom_call.1} parent=11 // pred_region
          _
        $region48: #{tpu_custom_call.1} parent=11 // pred_fallthru
          _
        // Predicated region
        $region49: #{tpu_custom_call.1} parent=11 // pred_check
          %p522 = pneg %p360
        $region50: #{tpu_custom_call.1} parent=11 // pred_check_branch
          %524 = sbr.rel (%p522) target = $region52
        $region51: #{tpu_custom_call.1} parent=11 // pred_region
          _
        $region52: #{tpu_custom_call.1} parent=11 // pred_fallthru
          _
      $region12: #{tpu_custom_call.1} parent=5 // pred_fallthru
        _
      %p525 = scmp.lt.s32.totalorder %s32, 2
      // Predicated region
      $region53: #{tpu_custom_call.1} parent=5 // pred_check
        %p526 = pneg %p525
      $region54: #{tpu_custom_call.1} parent=5 // pred_check_branch
        %528 = sbr.rel (%p526) target = $region56
      $region55: #{tpu_custom_call.1} parent=5 // pred_region
        // Predicated region
        $region57: #{tpu_custom_call.1} parent=55 // pred_check
          %p529 = pneg %p64
        $region58: #{tpu_custom_call.1} parent=55 // pred_check_branch
          %531 = sbr.rel (%p529) target = $region60
        $region59: #{tpu_custom_call.1} parent=55 // pred_region
          %p532 = scmp.lt.s32.totalorder %s39, 1
          %s533 = scalar_select %p532, %s39, 1
          %s534 = smul.addr %s533, 4
          %s535 = scalar_lea.vmem %s0, %s534
        $region60: #{tpu_custom_call.1} parent=55 // pred_fallthru
          _
        // Predicated region
        $region61: #{tpu_custom_call.1} parent=55 // pred_check
          %p536 = pneg %p90
        $region62: #{tpu_custom_call.1} parent=55 // pred_check_branch
          %538 = sbr.rel (%p536) target = $region64
        $region63: #{tpu_custom_call.1} parent=55 // pred_region
          %p539 = scmp.lt.s32.totalorder %s39, 1
          %s540 = scalar_select %p539, %s39, 1
          %s541 = smul.addr %s540, 4
          %s542 = scalar_lea.vmem %s1, %s541
        $region64: #{tpu_custom_call.1} parent=55 // pred_fallthru
          _
        // Predicated region
        $region65: #{tpu_custom_call.1} parent=55 // pred_check
          %p543 = pneg %p118
        $region66: #{tpu_custom_call.1} parent=55 // pred_check_branch
          %545 = sbr.rel (%p543) target = $region68
        $region67: #{tpu_custom_call.1} parent=55 // pred_region
          %p546 = scmp.lt.s32.totalorder %s39, 1
          %s547 = scalar_select %p546, %s39, 1
          %p548 = scmp.lt.s32.totalorder %s40, 0
          %s549 = scalar_select %p548, %s40, 0
          %s550 = sadd.s32 %s549, %s547
          %s551 = smul.addr %s550, 4
          %s552 = scalar_lea.vmem %s2, %s551
        $region68: #{tpu_custom_call.1} parent=55 // pred_fallthru
          _
        // Predicated region
        $region69: #{tpu_custom_call.1} parent=55 // pred_check
          %p553 = pneg %p144
        $region70: #{tpu_custom_call.1} parent=55 // pred_check_branch
          %555 = sbr.rel (%p553) target = $region72
        $region71: #{tpu_custom_call.1} parent=55 // pred_region
          %p556 = scmp.lt.s32.totalorder %s39, 1
          %s557 = scalar_select %p556, %s39, 1
          %s558 = scalar_lea.vmem %s3, %s557
        $region72: #{tpu_custom_call.1} parent=55 // pred_fallthru
          _
      $region56: #{tpu_custom_call.1} parent=5 // pred_fallthru
        _
      %p559 = scmp.le.s32.totalorder 1, %s32
      %p560 = scmp.lt.s32.totalorder %s32, 3
      %p561 = pnand %p559, %p560
      %p562 = pneg %p561
      // Predicated region
      $region73: #{tpu_custom_call.1} parent=5 // pred_check
        _
      $region74: #{tpu_custom_call.1} parent=5 // pred_check_branch
        %564 = sbr.rel (%p561) target = $region76
      $region75: #{tpu_custom_call.1} parent=5 // pred_region
        %s565 = ssub.s32 %s32, 1
        // Predicated region
        $region77: #{tpu_custom_call.1} parent=75 // pred_check
          %p566 = pneg %p171
        $region78: #{tpu_custom_call.1} parent=75 // pred_check_branch
          %568 = sbr.rel (%p566) target = $region80
        $region79: #{tpu_custom_call.1} parent=75 // pred_region
          %569 = dma.done [#allocation7], 1024
        $region80: #{tpu_custom_call.1} parent=75 // pred_fallthru
          _
        // Predicated region
        $region81: #{tpu_custom_call.1} parent=75 // pred_check
          %p570 = pneg %p213
        $region82: #{tpu_custom_call.1} parent=75 // pred_check_branch
          %572 = sbr.rel (%p570) target = $region84
        $region83: #{tpu_custom_call.1} parent=75 // pred_region
          %573 = dma.done [#allocation10], 1024
        $region84: #{tpu_custom_call.1} parent=75 // pred_fallthru
          _
        // Predicated region
        $region85: #{tpu_custom_call.1} parent=75 // pred_check
          %p574 = pneg %p276
        $region86: #{tpu_custom_call.1} parent=75 // pred_check_branch
          %576 = sbr.rel (%p574) target = $region88
        $region87: #{tpu_custom_call.1} parent=75 // pred_region
          %577 = dma.done [#allocation10], 16
        $region88: #{tpu_custom_call.1} parent=75 // pred_fallthru
          _
        // Predicated region
        $region89: #{tpu_custom_call.1} parent=75 // pred_check
          %p578 = pneg %p318
        $region90: #{tpu_custom_call.1} parent=75 // pred_check_branch
          %580 = sbr.rel (%p578) target = $region92
        $region91: #{tpu_custom_call.1} parent=75 // pred_region
          %581 = dma.done [#allocation13], 16
        $region92: #{tpu_custom_call.1} parent=75 // pred_fallthru
          _
        %p582 = scmp.lt.s32.totalorder %s41, 1
        %s583 = scalar_select %p582, %s41, 1
        %s584 = smul.addr %s583, 4
        %s585 = scalar_lea.vmem %s0, %s584
        %p586 = pneg %p70
        %p587 = pneg %p67
        %p588 = scmp.lt.s32.totalorder %s41, 1
        %s589 = scalar_select %p588, %s41, 1
        %s590 = smul.addr %s589, 4
        %s591 = scalar_lea.vmem %s1, %s590
        %p592 = pneg %p96
        %p593 = pneg %p93
        %p594 = scmp.lt.s32.totalorder %s41, 1
        %s595 = scalar_select %p594, %s41, 1
        %p596 = scmp.lt.s32.totalorder %s42, 0
        %s597 = scalar_select %p596, %s42, 0
        %s598 = sadd.s32 %s597, %s595
        %s599 = smul.addr %s598, 4
        %s600 = scalar_lea.vmem %s2, %s599
        %p601 = pneg %p124
        %p602 = pneg %p121
        %p603 = scmp.lt.s32.totalorder %s41, 1
        %s604 = scalar_select %p603, %s41, 1
        %s605 = scalar_lea.vmem %s3, %s604
        %p606 = pneg %p150
        %p607 = pneg %p147
        %p608 = pneg %p171
        %p609 = pneg %p168
        %p610 = pneg %p192
        %p611 = pneg %p189
        %p612 = pneg %p213
        %p613 = pneg %p210
        %p614 = pneg %p234
        %p615 = pneg %p231
        %p616 = pneg %p255
        %p617 = pneg %p252
        %p618 = pneg %p276
        %p619 = pneg %p273
        %p620 = pneg %p297
        %p621 = pneg %p294
        %p622 = pneg %p318
        %p623 = pneg %p315
        %p624 = pneg %p339
        %p625 = pneg %p336
        %p626 = pneg %p360
        %p627 = pneg %p357
        %p628 = pneg %p388
        %p629 = pneg %p385
        %s630 = sand.u32 %s375, 1
        %s631 = scalar_lea.sflag [#allocation8], %s630
        %s632 = sand.u32 %s375, 1
        %s633 = smul.addr %s632, 8
        %s634 = scalar_lea.vmem [#allocation14], %s633
        %p635 = pneg %p416
        %p636 = pneg %p413
        %s637 = sand.u32 %s37, 1
        %s638 = scalar_lea.sflag [#allocation16], %s637
        %s639 = sand.u32 %s403, 1
        %s640 = smul.addr %s639, 16
        %s641 = scalar_lea.vmem [#allocation15], %s640
        %p642 = pneg %p444
        %p643 = pneg %p441
        %s644 = sand.u32 %s37, 1
        %s645 = scalar_lea.sflag [#allocation16], %s644
        %s646 = sand.u32 %s431, 1
        %s647 = smul.addr %s646, 16
        %s648 = scalar_lea.vmem [#allocation17], %s647
        %p649 = scmp.lt.s32.totalorder %s41, 1
        %s650 = scalar_select %p649, %s41, 1
        %s651 = smul.addr %s650, 4
        %s652 = scalar_lea.vmem %s0, %s651
        %p653 = scmp.lt.s32.totalorder %s41, 1
        %s654 = scalar_select %p653, %s41, 1
        %s655 = smul.addr %s654, 4
        %s656 = scalar_lea.vmem %s1, %s655
        %p657 = scmp.lt.s32.totalorder %s41, 1
        %s658 = scalar_select %p657, %s41, 1
        %p659 = scmp.lt.s32.totalorder %s42, 0
        %s660 = scalar_select %p659, %s42, 0
        %s661 = sadd.s32 %s660, %s658
        %s662 = smul.addr %s661, 4
        %s663 = scalar_lea.vmem %s2, %s662
        %p664 = scmp.lt.s32.totalorder %s41, 1
        %s665 = scalar_select %p664, %s41, 1
        %s666 = scalar_lea.vmem %s3, %s665
        %p668 = scmp.eq.s32.totalorder %s42, 0
        // Predicated region
        $region93: #{tpu_custom_call.1} parent=75 // pred_check
          %p669 = pneg %p668
        $region94: #{tpu_custom_call.1} parent=75 // pred_check_branch
          %671 = sbr.rel (%p669) target = $region96
        $region95: #{tpu_custom_call.1} parent=75 // pred_region
          %v672 = vld [vmem:[%s652] sm:$0xf]
          %v673 = vld [vmem:[%s656] sm:$0xf]
          %s674 = scalar_lea.vmem [#allocation6], 16
          %v675 = vld [vmem:[%s674] sm:$0xf]
          %v676 = vld [vmem:[%s674 + $0x4] sm:$0xf]
          %v677 = vld [vmem:[%s674 + $0x8] sm:$0xf]
          %v678 = vld [vmem:[%s674 + $0xc] sm:$0xf]
          %v679 = vld [vmem:[%s5 + $0x1] sm:$0x1]
          %v680 = vlaneseq
          %v681 = vshrl.u32 %v680, 7
          %v682 = vsub.s32 0, %v681
          %v683 = vrot.slane %v679, %v682
          %v688 = vunpack.c.l.b16 %v675
          %v689 = vunpack.c.l.b16 %v676
          %v690 = vunpack.c.l.b16 %v677
          %v691 = vunpack.c.l.b16 %v678
          %v692 = vpack.c.b16 %v689, %v688
          %v693 = vpack.c.b16 %v691, %v690
          %vm696 = vcmask 261120
          %v698 = vsel %vm696, %v672, 0
          %700 = vmatprep.subr.bf16.mxu0 0
          %701 = vmatpush1.bf16.msra.mxu0 0
          %702 = vmatprep.subr.bf16.mxu0 0
          %703 = vmatpush1.bf16.msra.mxu0 0
          %704 = vmatprep.subr.bf16.mxu0 0
          %705 = vmatpush1.bf16.msra.mxu0 0
          %706 = vmatprep.subr.bf16.mxu0 0
          %707 = vmatpush1.bf16.msra.mxu0 0
          %708 = vmatprep.subr.bf16.mxu0 0
          %709 = vmatpush1.bf16.msra.mxu0 0
          %710 = vmatprep.subr.bf16.mxu0 0
          %711 = vmatpush1.bf16.msra.mxu0 0
          %712 = vmatprep.subr.bf16.mxu0 0
          %713 = vmatpush1.bf16.msra.mxu0 %v693
          %714 = vmatprep.subr.bf16.mxu0 0
          %715 = vmatpush1.bf16.msra.mxu0 %v692
          %716 = vmatprep.subr.bf16.mxu0 0
          %717 = vmatpush2.bf16.msra.mxu0 0
          %718 = vmatprep.subr.bf16.mxu0 0
          %719 = vmatpush2.bf16.msra.mxu0 0
          %720 = vmatprep.subr.bf16.mxu0 0
          %721 = vmatpush2.bf16.msra.mxu0 0
          %722 = vmatprep.subr.bf16.mxu0 0
          %723 = vmatpush2.bf16.msra.mxu0 0
          %724 = vmatprep.subr.bf16.mxu0 0
          %725 = vmatpush2.bf16.msra.mxu0 0
          %726 = vmatprep.subr.bf16.mxu0 0
          %727 = vmatpush2.bf16.msra.mxu0 0
          %728 = vmatprep.subr.bf16.mxu0 0
          %729 = vmatpush2.bf16.msra.mxu0 0
          %730 = vmatprep.subr.bf16.mxu0 0
          %731 = vmatpush2.bf16.msra.mxu0 0
          %732 = vmatprep.mubr.bf16.mxu0 0
          %733 = vmatmul.mubr.bf16.gmra.mxu0 %v698
          %v734 = vpop.f32.mrf.mxu0
          %v735 = vadd.f32 %v683, %v734
          %v736 = vpop.f32.mrf.mxu0
          %v737 = vpop.f32.mrf.mxu0
          %v738 = vpop.f32.mrf.mxu0
          %739 = vdwg.mxu0
          %v740 = vpack.c.bf16 %v735, %v735
          %vm741 = vcmask 257024
          %742 = vst.msk [vmem:[#allocation2] sm:$0xf] %vm741, %v740
          %s743 = scalar_lea.vmem [#allocation6], 32
          %v744 = vld [vmem:[%s743] sm:$0xf]
          %v745 = vld [vmem:[%s743 + $0x4] sm:$0xf]
          %v746 = vld [vmem:[%s743 + $0x8] sm:$0xf]
          %v747 = vld [vmem:[%s743 + $0xc] sm:$0xf]
          %v748 = vld [vmem:[%s5 + $0x2] sm:$0x1]
          %v749 = vlaneseq
          %v750 = vshrl.u32 %v749, 7
          %v751 = vsub.s32 0, %v750
          %v752 = vrot.slane %v748, %v751
          %v757 = vunpack.c.l.b16 %v744
          %v758 = vunpack.c.l.b16 %v745
          %v759 = vunpack.c.l.b16 %v746
          %v760 = vunpack.c.l.b16 %v747
          %v761 = vpack.c.b16 %v758, %v757
          %v762 = vpack.c.b16 %v760, %v759
          %765 = vmatprep.subr.bf16.mxu0 0
          %766 = vmatpush1.bf16.msra.mxu0 0
          %767 = vmatprep.subr.bf16.mxu0 0
          %768 = vmatpush1.bf16.msra.mxu0 0
          %769 = vmatprep.subr.bf16.mxu0 0
          %770 = vmatpush1.bf16.msra.mxu0 0
          %771 = vmatprep.subr.bf16.mxu0 0
          %772 = vmatpush1.bf16.msra.mxu0 0
          %773 = vmatprep.subr.bf16.mxu0 0
          %774 = vmatpush1.bf16.msra.mxu0 0
          %775 = vmatprep.subr.bf16.mxu0 0
          %776 = vmatpush1.bf16.msra.mxu0 0
          %777 = vmatprep.subr.bf16.mxu0 0
          %778 = vmatpush1.bf16.msra.mxu0 %v762
          %779 = vmatprep.subr.bf16.mxu0 0
          %780 = vmatpush1.bf16.msra.mxu0 %v761
          %781 = vmatprep.subr.bf16.mxu0 0
          %782 = vmatpush2.bf16.msra.mxu0 0
          %783 = vmatprep.subr.bf16.mxu0 0
          %784 = vmatpush2.bf16.msra.mxu0 0
          %785 = vmatprep.subr.bf16.mxu0 0
          %786 = vmatpush2.bf16.msra.mxu0 0
          %787 = vmatprep.subr.bf16.mxu0 0
          %788 = vmatpush2.bf16.msra.mxu0 0
          %789 = vmatprep.subr.bf16.mxu0 0
          %790 = vmatpush2.bf16.msra.mxu0 0
          %791 = vmatprep.subr.bf16.mxu0 0
          %792 = vmatpush2.bf16.msra.mxu0 0
          %793 = vmatprep.subr.bf16.mxu0 0
          %794 = vmatpush2.bf16.msra.mxu0 0
          %795 = vmatprep.subr.bf16.mxu0 0
          %796 = vmatpush2.bf16.msra.mxu0 0
          %797 = vmatprep.mubr.bf16.mxu0 0
          %798 = vmatmul.mubr.bf16.gmra.mxu0 %v698
          %v799 = vpop.f32.mrf.mxu0
          %v800 = vadd.f32 %v752, %v799
          %v801 = vpop.f32.mrf.mxu0
          %v802 = vpop.f32.mrf.mxu0
          %v803 = vpop.f32.mrf.mxu0
          %804 = vdwg.mxu0
          %v805 = vpack.c.bf16 %v800, %v800
          %806 = vst.msk [vmem:[#allocation3] sm:$0xf] %vm741, %v805
          %s807 = scalar_lea.vmem [#allocation9], 16
          %v808 = vld [vmem:[%s807] sm:$0xf]
          %v809 = vld [vmem:[%s807 + $0x4] sm:$0xf]
          %v810 = vld [vmem:[%s807 + $0x8] sm:$0xf]
          %v811 = vld [vmem:[%s807 + $0xc] sm:$0xf]
          %v812 = vld [vmem:[%s7 + $0x1] sm:$0x1]
          %v813 = vlaneseq
          %v814 = vshrl.u32 %v813, 7
          %v815 = vsub.s32 0, %v814
          %v816 = vrot.slane %v812, %v815
          %v821 = vunpack.c.l.b16 %v808
          %v822 = vunpack.c.l.b16 %v809
          %v823 = vunpack.c.l.b16 %v810
          %v824 = vunpack.c.l.b16 %v811
          %v825 = vpack.c.b16 %v822, %v821
          %v826 = vpack.c.b16 %v824, %v823
          %v830 = vsel %vm696, %v673, 0
          %832 = vmatprep.subr.bf16.mxu0 0
          %833 = vmatpush1.bf16.msra.mxu0 0
          %834 = vmatprep.subr.bf16.mxu0 0
          %835 = vmatpush1.bf16.msra.mxu0 0
          %836 = vmatprep.subr.bf16.mxu0 0
          %837 = vmatpush1.bf16.msra.mxu0 0
          %838 = vmatprep.subr.bf16.mxu0 0
          %839 = vmatpush1.bf16.msra.mxu0 0
          %840 = vmatprep.subr.bf16.mxu0 0
          %841 = vmatpush1.bf16.msra.mxu0 0
          %842 = vmatprep.subr.bf16.mxu0 0
          %843 = vmatpush1.bf16.msra.mxu0 0
          %844 = vmatprep.subr.bf16.mxu0 0
          %845 = vmatpush1.bf16.msra.mxu0 %v826
          %846 = vmatprep.subr.bf16.mxu0 0
          %847 = vmatpush1.bf16.msra.mxu0 %v825
          %848 = vmatprep.subr.bf16.mxu0 0
          %849 = vmatpush2.bf16.msra.mxu0 0
          %850 = vmatprep.subr.bf16.mxu0 0
          %851 = vmatpush2.bf16.msra.mxu0 0
          %852 = vmatprep.subr.bf16.mxu0 0
          %853 = vmatpush2.bf16.msra.mxu0 0
          %854 = vmatprep.subr.bf16.mxu0 0
          %855 = vmatpush2.bf16.msra.mxu0 0
          %856 = vmatprep.subr.bf16.mxu0 0
          %857 = vmatpush2.bf16.msra.mxu0 0
          %858 = vmatprep.subr.bf16.mxu0 0
          %859 = vmatpush2.bf16.msra.mxu0 0
          %860 = vmatprep.subr.bf16.mxu0 0
          %861 = vmatpush2.bf16.msra.mxu0 0
          %862 = vmatprep.subr.bf16.mxu0 0
          %863 = vmatpush2.bf16.msra.mxu0 0
          %864 = vmatprep.mubr.bf16.mxu0 0
          %865 = vmatmul.mubr.bf16.gmra.mxu0 %v830
          %v866 = vpop.f32.mrf.mxu0
          %v867 = vadd.f32 %v816, %v866
          %v868 = vpop.f32.mrf.mxu0
          %v869 = vpop.f32.mrf.mxu0
          %v870 = vpop.f32.mrf.mxu0
          %871 = vdwg.mxu0
          %v872 = vpack.c.bf16 %v867, %v867
          %873 = vst.msk [vmem:[#allocation4] sm:$0xf] %vm741, %v872
          %s874 = scalar_lea.vmem [#allocation9], 32
          %v875 = vld [vmem:[%s874] sm:$0xf]
          %v876 = vld [vmem:[%s874 + $0x4] sm:$0xf]
          %v877 = vld [vmem:[%s874 + $0x8] sm:$0xf]
          %v878 = vld [vmem:[%s874 + $0xc] sm:$0xf]
          %v879 = vld [vmem:[%s7 + $0x2] sm:$0x1]
          %v880 = vlaneseq
          %v881 = vshrl.u32 %v880, 7
          %v882 = vsub.s32 0, %v881
          %v883 = vrot.slane %v879, %v882
          %v888 = vunpack.c.l.b16 %v875
          %v889 = vunpack.c.l.b16 %v876
          %v890 = vunpack.c.l.b16 %v877
          %v891 = vunpack.c.l.b16 %v878
          %v892 = vpack.c.b16 %v889, %v888
          %v893 = vpack.c.b16 %v891, %v890
          %896 = vmatprep.subr.bf16.mxu0 0
          %897 = vmatpush1.bf16.msra.mxu0 0
          %898 = vmatprep.subr.bf16.mxu0 0
          %899 = vmatpush1.bf16.msra.mxu0 0
          %900 = vmatprep.subr.bf16.mxu0 0
          %901 = vmatpush1.bf16.msra.mxu0 0
          %902 = vmatprep.subr.bf16.mxu0 0
          %903 = vmatpush1.bf16.msra.mxu0 0
          %904 = vmatprep.subr.bf16.mxu0 0
          %905 = vmatpush1.bf16.msra.mxu0 0
          %906 = vmatprep.subr.bf16.mxu0 0
          %907 = vmatpush1.bf16.msra.mxu0 0
          %908 = vmatprep.subr.bf16.mxu0 0
          %909 = vmatpush1.bf16.msra.mxu0 %v893
          %910 = vmatprep.subr.bf16.mxu0 0
          %911 = vmatpush1.bf16.msra.mxu0 %v892
          %912 = vmatprep.subr.bf16.mxu0 0
          %913 = vmatpush2.bf16.msra.mxu0 0
          %914 = vmatprep.subr.bf16.mxu0 0
          %915 = vmatpush2.bf16.msra.mxu0 0
          %916 = vmatprep.subr.bf16.mxu0 0
          %917 = vmatpush2.bf16.msra.mxu0 0
          %918 = vmatprep.subr.bf16.mxu0 0
          %919 = vmatpush2.bf16.msra.mxu0 0
          %920 = vmatprep.subr.bf16.mxu0 0
          %921 = vmatpush2.bf16.msra.mxu0 0
          %922 = vmatprep.subr.bf16.mxu0 0
          %923 = vmatpush2.bf16.msra.mxu0 0
          %924 = vmatprep.subr.bf16.mxu0 0
          %925 = vmatpush2.bf16.msra.mxu0 0
          %926 = vmatprep.subr.bf16.mxu0 0
          %927 = vmatpush2.bf16.msra.mxu0 0
          %928 = vmatprep.mubr.bf16.mxu0 0
          %929 = vmatmul.mubr.bf16.gmra.mxu0 %v830
          %v930 = vpop.f32.mrf.mxu0
          %v931 = vadd.f32 %v883, %v930
          %v932 = vpop.f32.mrf.mxu0
          %v933 = vpop.f32.mrf.mxu0
          %v934 = vpop.f32.mrf.mxu0
          %935 = vdwg.mxu0
          %v936 = vpack.c.bf16 %v931, %v931
          %937 = vst.msk [vmem:[#allocation5] sm:$0xf] %vm741, %v936
        $region96: #{tpu_custom_call.1} parent=75 // pred_fallthru
          _
        %s938 = smul.u32 %s42, 8
        %s939 = sshra.s32 %s938, 3
        %s940 = sand.u32 %s938, 7
        %s941 = smul.addr %s939, 4
        %s942 = scalar_lea.vmem %s652, %s941
        %v943 = vld [vmem:[%s942] sm:$0xf]
        %v944 = vld [vmem:[%s663] sm:$0xf]
        %v945 = vunpack.c.l.bf16 %v944
        %v946 = vmul.f32 %v945, -1e+09
        %v947 = vld [vmem:[%s666] sm:$0x1]
        %v948 = vunpack.c.l.bf16 %v947
        %v949 = vmul.f32 %v948, -1e+09
        %v950 = vld [vmem:[%s12] sm:$0x7]
        %v951 = vld [vmem:[%s13] sm:$0x7]
        %v952 = vld [vmem:[#allocation6] sm:$0xf]
        %v953 = vld [vmem:[#allocation6 + $0x4] sm:$0xf]
        %v954 = vld [vmem:[#allocation6 + $0x8] sm:$0xf]
        %v955 = vld [vmem:[#allocation6 + $0xc] sm:$0xf]
        %v956 = vld [vmem:[%s5] sm:$0x1]
        %v957 = vlaneseq
        %v958 = vshrl.u32 %v957, 7
        %v959 = vsub.s32 0, %v958
        %v960 = vrot.slane %v956, %v959
        %v965 = vunpack.c.l.b16 %v952
        %v966 = vunpack.c.l.b16 %v953
        %v967 = vunpack.c.l.b16 %v954
        %v968 = vunpack.c.l.b16 %v955
        %v969 = vpack.c.b16 %v966, %v965
        %v970 = vpack.c.b16 %v968, %v967
        %vm973 = vcmask 261120
        %v975 = vsel %vm973, %v943, 0
        %977 = vmatprep.subr.bf16.mxu0 0
        %978 = vmatpush1.bf16.msra.mxu0 0
        %979 = vmatprep.subr.bf16.mxu0 0
        %980 = vmatpush1.bf16.msra.mxu0 0
        %981 = vmatprep.subr.bf16.mxu0 0
        %982 = vmatpush1.bf16.msra.mxu0 0
        %983 = vmatprep.subr.bf16.mxu0 0
        %984 = vmatpush1.bf16.msra.mxu0 0
        %985 = vmatprep.subr.bf16.mxu0 0
        %986 = vmatpush1.bf16.msra.mxu0 0
        %987 = vmatprep.subr.bf16.mxu0 0
        %988 = vmatpush1.bf16.msra.mxu0 0
        %989 = vmatprep.subr.bf16.mxu0 0
        %990 = vmatpush1.bf16.msra.mxu0 %v970
        %991 = vmatprep.subr.bf16.mxu0 0
        %992 = vmatpush1.bf16.msra.mxu0 %v969
        %993 = vmatprep.subr.bf16.mxu0 0
        %994 = vmatpush2.bf16.msra.mxu0 0
        %995 = vmatprep.subr.bf16.mxu0 0
        %996 = vmatpush2.bf16.msra.mxu0 0
        %997 = vmatprep.subr.bf16.mxu0 0
        %998 = vmatpush2.bf16.msra.mxu0 0
        %999 = vmatprep.subr.bf16.mxu0 0
        %1000 = vmatpush2.bf16.msra.mxu0 0
        %1001 = vmatprep.subr.bf16.mxu0 0
        %1002 = vmatpush2.bf16.msra.mxu0 0
        %1003 = vmatprep.subr.bf16.mxu0 0
        %1004 = vmatpush2.bf16.msra.mxu0 0
        %1005 = vmatprep.subr.bf16.mxu0 0
        %1006 = vmatpush2.bf16.msra.mxu0 0
        %1007 = vmatprep.subr.bf16.mxu0 0
        %1008 = vmatpush2.bf16.msra.mxu0 0
        %1009 = vmatprep.mubr.bf16.mxu0 0
        %1010 = vmatmul.mubr.bf16.gmra.mxu0 %v975
        %v1011 = vpop.f32.mrf.mxu0
        %v1012 = vadd.f32 %v960, %v1011
        %v1013 = vpop.f32.mrf.mxu0
        %v1014 = vpop.f32.mrf.mxu0
        %v1015 = vpop.f32.mrf.mxu0
        %1016 = vdwg.mxu0
        %v1017 = vmul.f32 %v1012, 0.35355338
        %1019 = vrot.lane.b32.xlu0 %v1017, 120
        %v1020 = vpop.permute.xlu0 %1019
        %1022 = vrot.lane.b32.xlu0 %v1017, 112
        %v1023 = vpop.permute.xlu0 %1022
        %1025 = vrot.lane.b32.xlu0 %v1017, 104
        %v1026 = vpop.permute.xlu0 %1025
        %v1028 = vcombine.low %v1017, %v1023
        %v1029 = vcombine.high %v1017, %v1023
        %v1031 = vunpack.c.l.s4 1983009808
        %v1032 = vunpack.c.0.s8 %v1031
        %v1033 = vlaneseq
        %v1034 = vshrl.u32 %v1033, 7
        %v1035 = vsub.s32 %v1032, %v1034
        %v1036 = vrot.slane %v1028, %v1035
        %v1038 = vunpack.c.l.s4 1983009808
        %v1039 = vunpack.c.0.s8 %v1038
        %v1040 = vlaneseq
        %v1041 = vshrl.u32 %v1040, 7
        %v1042 = vsub.s32 %v1039, %v1041
        %v1043 = vrot.slane %v1029, %v1042
        %v1044 = vcombine.low %v1020, %v1026
        %v1045 = vcombine.high %v1020, %v1026
        %v1047 = vunpack.c.l.s4 1983009808
        %v1048 = vunpack.c.0.s8 %v1047
        %v1049 = vlaneseq
        %v1050 = vshrl.u32 %v1049, 7
        %v1051 = vsub.s32 %v1048, %v1050
        %v1052 = vrot.slane %v1044, %v1051
        %v1054 = vunpack.c.l.s4 1983009808
        %v1055 = vunpack.c.0.s8 %v1054
        %v1056 = vlaneseq
        %v1057 = vshrl.u32 %v1056, 7
        %v1058 = vsub.s32 %v1055, %v1057
        %v1059 = vrot.slane %v1045, %v1058
        %v1060 = vcombine.low %v1036, %v1052
        %v1061 = vcombine.high %v1036, %v1052
        %v1063 = vunpack.c.l.s4 1934713408
        %v1064 = vunpack.c.0.s8 %v1063
        %v1065 = vlaneseq
        %v1066 = vshrl.u32 %v1065, 7
        %v1067 = vsub.s32 %v1064, %v1066
        %v1068 = vrot.slane %v1060, %v1067
        %v1070 = vunpack.c.l.s4 1934713408
        %v1071 = vunpack.c.0.s8 %v1070
        %v1072 = vlaneseq
        %v1073 = vshrl.u32 %v1072, 7
        %v1074 = vsub.s32 %v1071, %v1073
        %v1075 = vrot.slane %v1061, %v1074
        %v1076 = vcombine.low %v1043, %v1059
        %v1077 = vcombine.high %v1043, %v1059
        %v1079 = vunpack.c.l.s4 1934713408
        %v1080 = vunpack.c.0.s8 %v1079
        %v1081 = vlaneseq
        %v1082 = vshrl.u32 %v1081, 7
        %v1083 = vsub.s32 %v1080, %v1082
        %v1084 = vrot.slane %v1076, %v1083
        %v1086 = vunpack.c.l.s4 1934713408
        %v1087 = vunpack.c.0.s8 %v1086
        %v1088 = vlaneseq
        %v1089 = vshrl.u32 %v1088, 7
        %v1090 = vsub.s32 %v1087, %v1089
        %v1091 = vrot.slane %v1077, %v1090
        %v1092 = vcombine.high %v1068, 0.0
        %v1093 = vcombine.high %v1075, 0.0
        %v1094 = vcombine.high %v1084, 0.0
        %v1095 = vcombine.high %v1091, 0.0
        %v1096 = vpack.c.bf16 %v1068, %v1068
        %v1097 = vpack.c.bf16 %v1092, %v1092
        %v1098 = vpack.c.bf16 %v1075, %v1075
        %v1099 = vpack.c.bf16 %v1093, %v1093
        %v1100 = vpack.c.bf16 %v1084, %v1084
        %v1101 = vpack.c.bf16 %v1094, %v1094
        %v1102 = vpack.c.bf16 %v1091, %v1091
        %v1103 = vpack.c.bf16 %v1095, %v1095
        %v1104 = vld [vmem:[#allocation2] sm:$0xf]
        %1106 = vrot.lane.b32.xlu0 %v1104, 120
        %v1107 = vpop.permute.xlu0 %1106
        %1109 = vrot.lane.b32.xlu0 %v1104, 112
        %v1110 = vpop.permute.xlu0 %1109
        %1112 = vrot.lane.b32.xlu0 %v1104, 104
        %v1113 = vpop.permute.xlu0 %1112
        %v1115 = vld [vmem:[#allocation3] sm:$0xf]
        %1117 = vrot.lane.b32.xlu0 %v1115, 120
        %v1118 = vpop.permute.xlu0 %1117
        %1120 = vrot.lane.b32.xlu0 %v1115, 112
        %v1121 = vpop.permute.xlu0 %1120
        %1123 = vrot.lane.b32.xlu0 %v1115, 104
        %v1124 = vpop.permute.xlu0 %1123
        %v1126 = vcombine.low %v1096, %v1100
        %v1128 = vunpack.c.l.s4 1983009808
        %v1129 = vunpack.c.0.s8 %v1128
        %v1130 = vlaneseq
        %v1131 = vshrl.u32 %v1130, 7
        %v1132 = vsub.s32 %v1129, %v1131
        %v1133 = vrot.slane %v1126, %v1132
        %v1134 = vcombine.low %v1098, %v1102
        %v1136 = vunpack.c.l.s4 1983009808
        %v1137 = vunpack.c.0.s8 %v1136
        %v1138 = vlaneseq
        %v1139 = vshrl.u32 %v1138, 7
        %v1140 = vsub.s32 %v1137, %v1139
        %v1141 = vrot.slane %v1134, %v1140
        %v1142 = vcombine.low %v1133, %v1141
        %v1144 = vunpack.c.l.s4 1934713408
        %v1145 = vunpack.c.0.s8 %v1144
        %v1146 = vlaneseq
        %v1147 = vshrl.u32 %v1146, 7
        %v1148 = vsub.s32 %v1145, %v1147
        %v1149 = vrot.slane %v1142, %v1148
        %v1150 = vcombine.high %v1149, 0
        %v1151 = vcombine.low %v1097, %v1101
        %v1153 = vunpack.c.l.s4 1983009808
        %v1154 = vunpack.c.0.s8 %v1153
        %v1155 = vlaneseq
        %v1156 = vshrl.u32 %v1155, 7
        %v1157 = vsub.s32 %v1154, %v1156
        %v1158 = vrot.slane %v1151, %v1157
        %v1159 = vcombine.low %v1099, %v1103
        %v1161 = vunpack.c.l.s4 1983009808
        %v1162 = vunpack.c.0.s8 %v1161
        %v1163 = vlaneseq
        %v1164 = vshrl.u32 %v1163, 7
        %v1165 = vsub.s32 %v1162, %v1164
        %v1166 = vrot.slane %v1159, %v1165
        %v1167 = vcombine.low %v1158, %v1166
        %v1169 = vunpack.c.l.s4 1934713408
        %v1170 = vunpack.c.0.s8 %v1169
        %v1171 = vlaneseq
        %v1172 = vshrl.u32 %v1171, 7
        %v1173 = vsub.s32 %v1170, %v1172
        %v1174 = vrot.slane %v1167, %v1173
        %v1175 = vcombine.high %v1174, 0
        %v1178 = vpack.i.b16 %v1174, %v1149
        %v1179 = vshrl.u32 %v1149, 16
        %v1180 = vshrl.u32 %v1174, 16
        %v1181 = vpack.i.b16 %v1180, %v1179
        %v1184 = vpack.i.b16 %v1175, %v1150
        %v1185 = vshrl.u32 %v1150, 16
        %v1186 = vshrl.u32 %v1175, 16
        %v1187 = vpack.i.b16 %v1186, %v1185
        %1188 = vxpose.xlu0.c.b16.start [1/8] %v1104, 128
        %1189 = vxpose.xlu0.c.b16.cont [2/8] 0, 128
        %1190 = vxpose.xlu0.c.b16.cont [3/8] 0, 128
        %1191 = vxpose.xlu0.c.b16.cont [4/8] 0, 128
        %1192 = vxpose.xlu0.c.b16.cont [5/8] 0, 128
        %1193 = vxpose.xlu0.c.b16.cont [6/8] 0, 128
        %1194 = vxpose.xlu0.c.b16.cont [7/8] 0, 128
        %1195 = vxpose.xlu0.c.b16.end [8/8] 0, 128
        %v1196 = vpop.trf.xlu0
        %v1197 = vpop.trf.xlu0
        %v1198 = vpop.trf.xlu0
        %v1199 = vpop.trf.xlu0
        %v1200 = vpop.trf.xlu0
        %v1201 = vpop.trf.xlu0
        %v1202 = vpop.trf.xlu0
        %v1203 = vpop.trf.xlu0
        %1204 = vxpose.xlu0.c.b16.start [1/8] %v1107, 128
        %1205 = vxpose.xlu0.c.b16.cont [2/8] 0, 128
        %1206 = vxpose.xlu0.c.b16.cont [3/8] 0, 128
        %1207 = vxpose.xlu0.c.b16.cont [4/8] 0, 128
        %1208 = vxpose.xlu0.c.b16.cont [5/8] 0, 128
        %1209 = vxpose.xlu0.c.b16.cont [6/8] 0, 128
        %1210 = vxpose.xlu0.c.b16.cont [7/8] 0, 128
        %1211 = vxpose.xlu0.c.b16.end [8/8] 0, 128
        %v1212 = vpop.trf.xlu0
        %v1213 = vpop.trf.xlu0
        %v1214 = vpop.trf.xlu0
        %v1215 = vpop.trf.xlu0
        %v1216 = vpop.trf.xlu0
        %v1217 = vpop.trf.xlu0
        %v1218 = vpop.trf.xlu0
        %v1219 = vpop.trf.xlu0
        %1220 = vxpose.xlu0.c.b16.start [1/8] %v1110, 128
        %1221 = vxpose.xlu0.c.b16.cont [2/8] 0, 128
        %1222 = vxpose.xlu0.c.b16.cont [3/8] 0, 128
        %1223 = vxpose.xlu0.c.b16.cont [4/8] 0, 128
        %1224 = vxpose.xlu0.c.b16.cont [5/8] 0, 128
        %1225 = vxpose.xlu0.c.b16.cont [6/8] 0, 128
        %1226 = vxpose.xlu0.c.b16.cont [7/8] 0, 128
        %1227 = vxpose.xlu0.c.b16.end [8/8] 0, 128
        %v1228 = vpop.trf.xlu0
        %v1229 = vpop.trf.xlu0
        %v1230 = vpop.trf.xlu0
        %v1231 = vpop.trf.xlu0
        %v1232 = vpop.trf.xlu0
        %v1233 = vpop.trf.xlu0
        %v1234 = vpop.trf.xlu0
        %v1235 = vpop.trf.xlu0
        %1236 = vxpose.xlu0.c.b16.start [1/8] %v1113, 128
        %1237 = vxpose.xlu0.c.b16.cont [2/8] 0, 128
        %1238 = vxpose.xlu0.c.b16.cont [3/8] 0, 128
        %1239 = vxpose.xlu0.c.b16.cont [4/8] 0, 128
        %1240 = vxpose.xlu0.c.b16.cont [5/8] 0, 128
        %1241 = vxpose.xlu0.c.b16.cont [6/8] 0, 128
        %1242 = vxpose.xlu0.c.b16.cont [7/8] 0, 128
        %1243 = vxpose.xlu0.c.b16.end [8/8] 0, 128
        %v1244 = vpop.trf.xlu0
        %v1245 = vpop.trf.xlu0
        %v1246 = vpop.trf.xlu0
        %v1247 = vpop.trf.xlu0
        %v1248 = vpop.trf.xlu0
        %v1249 = vpop.trf.xlu0
        %v1250 = vpop.trf.xlu0
        %v1251 = vpop.trf.xlu0
        %vm1252 = vcmask 64512
        %v1254 = vsel %vm1252, %v1178, 0
        %vm1256 = vcmask 1043456
        %v1258 = vsel %vm1256, %v1196, 0
        %1260 = vmatprep.subr.bf16.mxu0 0
        %1261 = vmatpush1.bf16.msra.mxu0 0
        %1262 = vmatprep.subr.bf16.mxu0 0
        %1263 = vmatpush1.bf16.msra.mxu0 0
        %1264 = vmatprep.subr.bf16.mxu0 0
        %1265 = vmatpush1.bf16.msra.mxu0 0
        %1266 = vmatprep.subr.bf16.mxu0 0
        %1267 = vmatpush1.bf16.msra.mxu0 0
        %1268 = vmatprep.subr.bf16.mxu0 0
        %1269 = vmatpush1.bf16.msra.mxu0 0
        %1270 = vmatprep.subr.bf16.mxu0 0
        %1271 = vmatpush1.bf16.msra.mxu0 0
        %1272 = vmatprep.subr.bf16.mxu0 0
        %1273 = vmatpush1.bf16.msra.mxu0 0
        %1274 = vmatprep.subr.bf16.mxu0 0
        %1275 = vmatpush1.bf16.msra.mxu0 %v1258
        %1276 = vmatprep.subr.bf16.mxu0 0
        %1277 = vmatpush2.bf16.msra.mxu0 0
        %1278 = vmatprep.subr.bf16.mxu0 0
        %1279 = vmatpush2.bf16.msra.mxu0 0
        %1280 = vmatprep.subr.bf16.mxu0 0
        %1281 = vmatpush2.bf16.msra.mxu0 0
        %1282 = vmatprep.subr.bf16.mxu0 0
        %1283 = vmatpush2.bf16.msra.mxu0 0
        %1284 = vmatprep.subr.bf16.mxu0 0
        %1285 = vmatpush2.bf16.msra.mxu0 0
        %1286 = vmatprep.subr.bf16.mxu0 0
        %1287 = vmatpush2.bf16.msra.mxu0 0
        %1288 = vmatprep.subr.bf16.mxu0 0
        %1289 = vmatpush2.bf16.msra.mxu0 0
        %1290 = vmatprep.subr.bf16.mxu0 0
        %1291 = vmatpush2.bf16.msra.mxu0 0
        %1292 = vmatprep.mubr.bf16.mxu0 0
        %1293 = vmatmul.mubr.bf16.gmra.mxu0 %v1254
        %v1294 = vpop.f32.mrf.mxu0
        %v1295 = vadd.f32 %v946, %v1294
        %v1296 = vpop.f32.mrf.mxu0
        %v1297 = vpop.f32.mrf.mxu0
        %v1298 = vpop.f32.mrf.mxu0
        %1299 = vdwg.mxu0
        %v1301 = vsel %vm1252, %v1181, 0
        %v1304 = vsel %vm1256, %v1212, 0
        %1306 = vmatprep.subr.bf16.mxu0 0
        %1307 = vmatpush1.bf16.msra.mxu0 0
        %1308 = vmatprep.subr.bf16.mxu0 0
        %1309 = vmatpush1.bf16.msra.mxu0 0
        %1310 = vmatprep.subr.bf16.mxu0 0
        %1311 = vmatpush1.bf16.msra.mxu0 0
        %1312 = vmatprep.subr.bf16.mxu0 0
        %1313 = vmatpush1.bf16.msra.mxu0 0
        %1314 = vmatprep.subr.bf16.mxu0 0
        %1315 = vmatpush1.bf16.msra.mxu0 0
        %1316 = vmatprep.subr.bf16.mxu0 0
        %1317 = vmatpush1.bf16.msra.mxu0 0
        %1318 = vmatprep.subr.bf16.mxu0 0
        %1319 = vmatpush1.bf16.msra.mxu0 0
        %1320 = vmatprep.subr.bf16.mxu0 0
        %1321 = vmatpush1.bf16.msra.mxu0 %v1304
        %1322 = vmatprep.subr.bf16.mxu0 0
        %1323 = vmatpush2.bf16.msra.mxu0 0
        %1324 = vmatprep.subr.bf16.mxu0 0
        %1325 = vmatpush2.bf16.msra.mxu0 0
        %1326 = vmatprep.subr.bf16.mxu0 0
        %1327 = vmatpush2.bf16.msra.mxu0 0
        %1328 = vmatprep.subr.bf16.mxu0 0
        %1329 = vmatpush2.bf16.msra.mxu0 0
        %1330 = vmatprep.subr.bf16.mxu0 0
        %1331 = vmatpush2.bf16.msra.mxu0 0
        %1332 = vmatprep.subr.bf16.mxu0 0
        %1333 = vmatpush2.bf16.msra.mxu0 0
        %1334 = vmatprep.subr.bf16.mxu0 0
        %1335 = vmatpush2.bf16.msra.mxu0 0
        %1336 = vmatprep.subr.bf16.mxu0 0
        %1337 = vmatpush2.bf16.msra.mxu0 0
        %1338 = vmatprep.mubr.bf16.mxu0 0
        %1339 = vmatmul.mubr.bf16.gmra.mxu0 %v1301
        %v1340 = vpop.f32.mrf.mxu0
        %v1341 = vadd.f32 %v946, %v1340
        %v1342 = vpop.f32.mrf.mxu0
        %v1343 = vpop.f32.mrf.mxu0
        %v1344 = vpop.f32.mrf.mxu0
        %1345 = vdwg.mxu0
        %v1347 = vsel %vm1252, %v1184, 0
        %v1350 = vsel %vm1256, %v1228, 0
        %1352 = vmatprep.subr.bf16.mxu0 0
        %1353 = vmatpush1.bf16.msra.mxu0 0
        %1354 = vmatprep.subr.bf16.mxu0 0
        %1355 = vmatpush1.bf16.msra.mxu0 0
        %1356 = vmatprep.subr.bf16.mxu0 0
        %1357 = vmatpush1.bf16.msra.mxu0 0
        %1358 = vmatprep.subr.bf16.mxu0 0
        %1359 = vmatpush1.bf16.msra.mxu0 0
        %1360 = vmatprep.subr.bf16.mxu0 0
        %1361 = vmatpush1.bf16.msra.mxu0 0
        %1362 = vmatprep.subr.bf16.mxu0 0
        %1363 = vmatpush1.bf16.msra.mxu0 0
        %1364 = vmatprep.subr.bf16.mxu0 0
        %1365 = vmatpush1.bf16.msra.mxu0 0
        %1366 = vmatprep.subr.bf16.mxu0 0
        %1367 = vmatpush1.bf16.msra.mxu0 %v1350
        %1368 = vmatprep.subr.bf16.mxu0 0
        %1369 = vmatpush2.bf16.msra.mxu0 0
        %1370 = vmatprep.subr.bf16.mxu0 0
        %1371 = vmatpush2.bf16.msra.mxu0 0
        %1372 = vmatprep.subr.bf16.mxu0 0
        %1373 = vmatpush2.bf16.msra.mxu0 0
        %1374 = vmatprep.subr.bf16.mxu0 0
        %1375 = vmatpush2.bf16.msra.mxu0 0
        %1376 = vmatprep.subr.bf16.mxu0 0
        %1377 = vmatpush2.bf16.msra.mxu0 0
        %1378 = vmatprep.subr.bf16.mxu0 0
        %1379 = vmatpush2.bf16.msra.mxu0 0
        %1380 = vmatprep.subr.bf16.mxu0 0
        %1381 = vmatpush2.bf16.msra.mxu0 0
        %1382 = vmatprep.subr.bf16.mxu0 0
        %1383 = vmatpush2.bf16.msra.mxu0 0
        %1384 = vmatprep.mubr.bf16.mxu0 0
        %1385 = vmatmul.mubr.bf16.gmra.mxu0 %v1347
        %v1386 = vpop.f32.mrf.mxu0
        %v1387 = vadd.f32 %v946, %v1386
        %v1388 = vpop.f32.mrf.mxu0
        %v1389 = vpop.f32.mrf.mxu0
        %v1390 = vpop.f32.mrf.mxu0
        %1391 = vdwg.mxu0
        %v1393 = vsel %vm1252, %v1187, 0
        %v1396 = vsel %vm1256, %v1244, 0
        %1398 = vmatprep.subr.bf16.mxu0 0
        %1399 = vmatpush1.bf16.msra.mxu0 0
        %1400 = vmatprep.subr.bf16.mxu0 0
        %1401 = vmatpush1.bf16.msra.mxu0 0
        %1402 = vmatprep.subr.bf16.mxu0 0
        %1403 = vmatpush1.bf16.msra.mxu0 0
        %1404 = vmatprep.subr.bf16.mxu0 0
        %1405 = vmatpush1.bf16.msra.mxu0 0
        %1406 = vmatprep.subr.bf16.mxu0 0
        %1407 = vmatpush1.bf16.msra.mxu0 0
        %1408 = vmatprep.subr.bf16.mxu0 0
        %1409 = vmatpush1.bf16.msra.mxu0 0
        %1410 = vmatprep.subr.bf16.mxu0 0
        %1411 = vmatpush1.bf16.msra.mxu0 0
        %1412 = vmatprep.subr.bf16.mxu0 0
        %1413 = vmatpush1.bf16.msra.mxu0 %v1396
        %1414 = vmatprep.subr.bf16.mxu0 0
        %1415 = vmatpush2.bf16.msra.mxu0 0
        %1416 = vmatprep.subr.bf16.mxu0 0
        %1417 = vmatpush2.bf16.msra.mxu0 0
        %1418 = vmatprep.subr.bf16.mxu0 0
        %1419 = vmatpush2.bf16.msra.mxu0 0
        %1420 = vmatprep.subr.bf16.mxu0 0
        %1421 = vmatpush2.bf16.msra.mxu0 0
        %1422 = vmatprep.subr.bf16.mxu0 0
        %1423 = vmatpush2.bf16.msra.mxu0 0
        %1424 = vmatprep.subr.bf16.mxu0 0
        %1425 = vmatpush2.bf16.msra.mxu0 0
        %1426 = vmatprep.subr.bf16.mxu0 0
        %1427 = vmatpush2.bf16.msra.mxu0 0
        %1428 = vmatprep.subr.bf16.mxu0 0
        %1429 = vmatpush2.bf16.msra.mxu0 0
        %1430 = vmatprep.mubr.bf16.mxu0 0
        %1431 = vmatmul.mubr.bf16.gmra.mxu0 %v1393
        %v1432 = vpop.f32.mrf.mxu0
        %v1433 = vadd.f32 %v946, %v1432
        %v1434 = vpop.f32.mrf.mxu0
        %v1435 = vpop.f32.mrf.mxu0
        %v1436 = vpop.f32.mrf.mxu0
        %1437 = vdwg.mxu0
        %v1438 = vsel %vm1252, %v1295, -inf
        %1439 = vmax.xlane.f32.xlu0 %v1438
        %v1440 = vpop.xlane.xlu0 %1439
        %v1441 = vsel %vm1252, %v1341, -inf
        %1442 = vmax.xlane.f32.xlu0 %v1441
        %v1443 = vpop.xlane.xlu0 %1442
        %v1444 = vsel %vm1252, %v1387, -inf
        %1445 = vmax.xlane.f32.xlu0 %v1444
        %v1446 = vpop.xlane.xlu0 %1445
        %v1447 = vsel %vm1252, %v1433, -inf
        %1448 = vmax.xlane.f32.xlu0 %v1447
        %v1449 = vpop.xlane.xlu0 %1448
        %v1450 = vsub.f32 %v1295, %v1440
        %v1451 = vsub.f32 %v1341, %v1443
        %v1452 = vsub.f32 %v1387, %v1446
        %v1453 = vsub.f32 %v1433, %v1449
        %v1454 = vmul.f32 %v1450, 1.442695
        %v1455 = vpow.pop %v1454
        %v1456 = vmul.f32 %v1451, 1.442695
        %v1457 = vpow.pop %v1456
        %v1458 = vmul.f32 %v1452, 1.442695
        %v1459 = vpow.pop %v1458
        %v1460 = vmul.f32 %v1453, 1.442695
        %v1461 = vpow.pop %v1460
        %v1462 = vsel %vm1252, %v1455, 0.0
        %1463 = vadd.xlane.f32.xlu0 %v1462
        %v1464 = vpop.xlane.xlu0 %1463
        %v1465 = vsel %vm1252, %v1457, 0.0
        %1466 = vadd.xlane.f32.xlu0 %v1465
        %v1467 = vpop.xlane.xlu0 %1466
        %v1468 = vsel %vm1252, %v1459, 0.0
        %1469 = vadd.xlane.f32.xlu0 %v1468
        %v1470 = vpop.xlane.xlu0 %1469
        %v1471 = vsel %vm1252, %v1461, 0.0
        %1472 = vadd.xlane.f32.xlu0 %v1471
        %v1473 = vpop.xlane.xlu0 %1472
        %v1474 = vrcp.pop %v1464
        %v1475 = vrcp.pop %v1467
        %v1476 = vrcp.pop %v1470
        %v1477 = vrcp.pop %v1473
        %v1478 = vmul.f32 %v1455, %v1474
        %v1479 = vmul.f32 %v1457, %v1475
        %v1480 = vmul.f32 %v1459, %v1476
        %v1481 = vmul.f32 %v1461, %v1477
        %v1482 = vpack.c.bf16 %v1478, %v1478
        %v1483 = vpack.c.bf16 %v1479, %v1479
        %v1484 = vpack.c.bf16 %v1480, %v1480
        %v1485 = vpack.c.bf16 %v1481, %v1481
        %vm1486 = vcmask 60416
        %1487 = vst.msk [vmem:[%s641] sm:$0xf] %vm1486, %v1482
        %1488 = vst.msk [vmem:[%s641 + $0x4] sm:$0xf] %vm1486, %v1483
        %1489 = vst.msk [vmem:[%s641 + $0x8] sm:$0xf] %vm1486, %v1484
        %1490 = vst.msk [vmem:[%s641 + $0xc] sm:$0xf] %vm1486, %v1485
        %1491 = vxpose.xlu0.c.b16.start [1/8] %v1115, 128
        %1492 = vxpose.xlu0.c.b16.cont [2/8] 0, 128
        %1493 = vxpose.xlu0.c.b16.cont [3/8] 0, 128
        %1494 = vxpose.xlu0.c.b16.cont [4/8] 0, 128
        %1495 = vxpose.xlu0.c.b16.cont [5/8] 0, 128
        %1496 = vxpose.xlu0.c.b16.cont [6/8] 0, 128
        %1497 = vxpose.xlu0.c.b16.cont [7/8] 0, 128
        %1498 = vxpose.xlu0.c.b16.end [8/8] 0, 128
        %v1499 = vpop.trf.xlu0
        %v1500 = vpop.trf.xlu0
        %v1501 = vpop.trf.xlu0
        %v1502 = vpop.trf.xlu0
        %v1503 = vpop.trf.xlu0
        %v1504 = vpop.trf.xlu0
        %v1505 = vpop.trf.xlu0
        %v1506 = vpop.trf.xlu0
        %1507 = vxpose.xlu0.c.b16.start [1/8] %v1118, 128
        %1508 = vxpose.xlu0.c.b16.cont [2/8] 0, 128
        %1509 = vxpose.xlu0.c.b16.cont [3/8] 0, 128
        %1510 = vxpose.xlu0.c.b16.cont [4/8] 0, 128
        %1511 = vxpose.xlu0.c.b16.cont [5/8] 0, 128
        %1512 = vxpose.xlu0.c.b16.cont [6/8] 0, 128
        %1513 = vxpose.xlu0.c.b16.cont [7/8] 0, 128
        %1514 = vxpose.xlu0.c.b16.end [8/8] 0, 128
        %v1515 = vpop.trf.xlu0
        %v1516 = vpop.trf.xlu0
        %v1517 = vpop.trf.xlu0
        %v1518 = vpop.trf.xlu0
        %v1519 = vpop.trf.xlu0
        %v1520 = vpop.trf.xlu0
        %v1521 = vpop.trf.xlu0
        %v1522 = vpop.trf.xlu0
        %1523 = vxpose.xlu0.c.b16.start [1/8] %v1121, 128
        %1524 = vxpose.xlu0.c.b16.cont [2/8] 0, 128
        %1525 = vxpose.xlu0.c.b16.cont [3/8] 0, 128
        %1526 = vxpose.xlu0.c.b16.cont [4/8] 0, 128
        %1527 = vxpose.xlu0.c.b16.cont [5/8] 0, 128
        %1528 = vxpose.xlu0.c.b16.cont [6/8] 0, 128
        %1529 = vxpose.xlu0.c.b16.cont [7/8] 0, 128
        %1530 = vxpose.xlu0.c.b16.end [8/8] 0, 128
        %v1531 = vpop.trf.xlu0
        %v1532 = vpop.trf.xlu0
        %v1533 = vpop.trf.xlu0
        %v1534 = vpop.trf.xlu0
        %v1535 = vpop.trf.xlu0
        %v1536 = vpop.trf.xlu0
        %v1537 = vpop.trf.xlu0
        %v1538 = vpop.trf.xlu0
        %1539 = vxpose.xlu0.c.b16.start [1/8] %v1124, 128
        %1540 = vxpose.xlu0.c.b16.cont [2/8] 0, 128
        %1541 = vxpose.xlu0.c.b16.cont [3/8] 0, 128
        %1542 = vxpose.xlu0.c.b16.cont [4/8] 0, 128
        %1543 = vxpose.xlu0.c.b16.cont [5/8] 0, 128
        %1544 = vxpose.xlu0.c.b16.cont [6/8] 0, 128
        %1545 = vxpose.xlu0.c.b16.cont [7/8] 0, 128
        %1546 = vxpose.xlu0.c.b16.end [8/8] 0, 128
        %v1547 = vpop.trf.xlu0
        %v1548 = vpop.trf.xlu0
        %v1549 = vpop.trf.xlu0
        %v1550 = vpop.trf.xlu0
        %v1551 = vpop.trf.xlu0
        %v1552 = vpop.trf.xlu0
        %v1553 = vpop.trf.xlu0
        %v1554 = vpop.trf.xlu0
        %v1556 = vsel %vm1252, %v1499, 0
        %v1559 = vsel %vm1252, %v1482, 0
        %1561 = vmatprep.subr.bf16.mxu0 0
        %1562 = vmatpush1.bf16.xpose.msra.mxu0 0
        %1563 = vmatprep.subr.bf16.mxu0 0
        %1564 = vmatpush1.bf16.xpose.msra.mxu0 0
        %1565 = vmatprep.subr.bf16.mxu0 0
        %1566 = vmatpush1.bf16.xpose.msra.mxu0 0
        %1567 = vmatprep.subr.bf16.mxu0 0
        %1568 = vmatpush1.bf16.xpose.msra.mxu0 0
        %1569 = vmatprep.subr.bf16.mxu0 0
        %1570 = vmatpush1.bf16.xpose.msra.mxu0 0
        %1571 = vmatprep.subr.bf16.mxu0 0
        %1572 = vmatpush1.bf16.xpose.msra.mxu0 0
        %1573 = vmatprep.subr.bf16.mxu0 0
        %1574 = vmatpush1.bf16.xpose.msra.mxu0 0
        %1575 = vmatprep.subr.bf16.mxu0 0
        %1576 = vmatpush1.bf16.xpose.msra.mxu0 %v1559
        %1577 = vmatprep.subr.bf16.mxu0 0
        %1578 = vmatpush2.bf16.xpose.msra.mxu0 0
        %1579 = vmatprep.subr.bf16.mxu0 0
        %1580 = vmatpush2.bf16.xpose.msra.mxu0 0
        %1581 = vmatprep.subr.bf16.mxu0 0
        %1582 = vmatpush2.bf16.xpose.msra.mxu0 0
        %1583 = vmatprep.subr.bf16.mxu0 0
        %1584 = vmatpush2.bf16.xpose.msra.mxu0 0
        %1585 = vmatprep.subr.bf16.mxu0 0
        %1586 = vmatpush2.bf16.xpose.msra.mxu0 0
        %1587 = vmatprep.subr.bf16.mxu0 0
        %1588 = vmatpush2.bf16.xpose.msra.mxu0 0
        %1589 = vmatprep.subr.bf16.mxu0 0
        %1590 = vmatpush2.bf16.xpose.msra.mxu0 0
        %1591 = vmatprep.subr.bf16.mxu0 0
        %1592 = vmatpush2.bf16.xpose.msra.mxu0 0
        %1593 = vmatprep.mubr.bf16.mxu0 0
        %1594 = vmatmul.mubr.bf16.gmra.mxu0 %v1556
        %v1595 = vpop.f32.mrf.mxu0
        %v1596 = vadd.f32 0.0, %v1595
        %v1597 = vpop.f32.mrf.mxu0
        %v1598 = vpop.f32.mrf.mxu0
        %v1599 = vpop.f32.mrf.mxu0
        %1600 = vdwg.mxu0
        %v1602 = vsel %vm1252, %v1515, 0
        %v1605 = vsel %vm1252, %v1483, 0
        %1607 = vmatprep.subr.bf16.mxu0 0
        %1608 = vmatpush1.bf16.xpose.msra.mxu0 0
        %1609 = vmatprep.subr.bf16.mxu0 0
        %1610 = vmatpush1.bf16.xpose.msra.mxu0 0
        %1611 = vmatprep.subr.bf16.mxu0 0
        %1612 = vmatpush1.bf16.xpose.msra.mxu0 0
        %1613 = vmatprep.subr.bf16.mxu0 0
        %1614 = vmatpush1.bf16.xpose.msra.mxu0 0
        %1615 = vmatprep.subr.bf16.mxu0 0
        %1616 = vmatpush1.bf16.xpose.msra.mxu0 0
        %1617 = vmatprep.subr.bf16.mxu0 0
        %1618 = vmatpush1.bf16.xpose.msra.mxu0 0
        %1619 = vmatprep.subr.bf16.mxu0 0
        %1620 = vmatpush1.bf16.xpose.msra.mxu0 0
        %1621 = vmatprep.subr.bf16.mxu0 0
        %1622 = vmatpush1.bf16.xpose.msra.mxu0 %v1605
        %1623 = vmatprep.subr.bf16.mxu0 0
        %1624 = vmatpush2.bf16.xpose.msra.mxu0 0
        %1625 = vmatprep.subr.bf16.mxu0 0
        %1626 = vmatpush2.bf16.xpose.msra.mxu0 0
        %1627 = vmatprep.subr.bf16.mxu0 0
        %1628 = vmatpush2.bf16.xpose.msra.mxu0 0
        %1629 = vmatprep.subr.bf16.mxu0 0
        %1630 = vmatpush2.bf16.xpose.msra.mxu0 0
        %1631 = vmatprep.subr.bf16.mxu0 0
        %1632 = vmatpush2.bf16.xpose.msra.mxu0 0
        %1633 = vmatprep.subr.bf16.mxu0 0
        %1634 = vmatpush2.bf16.xpose.msra.mxu0 0
        %1635 = vmatprep.subr.bf16.mxu0 0
        %1636 = vmatpush2.bf16.xpose.msra.mxu0 0
        %1637 = vmatprep.subr.bf16.mxu0 0
        %1638 = vmatpush2.bf16.xpose.msra.mxu0 0
        %1639 = vmatprep.mubr.bf16.mxu0 0
        %1640 = vmatmul.mubr.bf16.gmra.mxu0 %v1602
        %v1641 = vpop.f32.mrf.mxu0
        %v1642 = vadd.f32 0.0, %v1641
        %v1643 = vpop.f32.mrf.mxu0
        %v1644 = vpop.f32.mrf.mxu0
        %v1645 = vpop.f32.mrf.mxu0
        %1646 = vdwg.mxu0
        %v1648 = vsel %vm1252, %v1531, 0
        %v1651 = vsel %vm1252, %v1484, 0
        %1653 = vmatprep.subr.bf16.mxu0 0
        %1654 = vmatpush1.bf16.xpose.msra.mxu0 0
        %1655 = vmatprep.subr.bf16.mxu0 0
        %1656 = vmatpush1.bf16.xpose.msra.mxu0 0
        %1657 = vmatprep.subr.bf16.mxu0 0
        %1658 = vmatpush1.bf16.xpose.msra.mxu0 0
        %1659 = vmatprep.subr.bf16.mxu0 0
        %1660 = vmatpush1.bf16.xpose.msra.mxu0 0
        %1661 = vmatprep.subr.bf16.mxu0 0
        %1662 = vmatpush1.bf16.xpose.msra.mxu0 0
        %1663 = vmatprep.subr.bf16.mxu0 0
        %1664 = vmatpush1.bf16.xpose.msra.mxu0 0
        %1665 = vmatprep.subr.bf16.mxu0 0
        %1666 = vmatpush1.bf16.xpose.msra.mxu0 0
        %1667 = vmatprep.subr.bf16.mxu0 0
        %1668 = vmatpush1.bf16.xpose.msra.mxu0 %v1651
        %1669 = vmatprep.subr.bf16.mxu0 0
        %1670 = vmatpush2.bf16.xpose.msra.mxu0 0
        %1671 = vmatprep.subr.bf16.mxu0 0
        %1672 = vmatpush2.bf16.xpose.msra.mxu0 0
        %1673 = vmatprep.subr.bf16.mxu0 0
        %1674 = vmatpush2.bf16.xpose.msra.mxu0 0
        %1675 = vmatprep.subr.bf16.mxu0 0
        %1676 = vmatpush2.bf16.xpose.msra.mxu0 0
        %1677 = vmatprep.subr.bf16.mxu0 0
        %1678 = vmatpush2.bf16.xpose.msra.mxu0 0
        %1679 = vmatprep.subr.bf16.mxu0 0
        %1680 = vmatpush2.bf16.xpose.msra.mxu0 0
        %1681 = vmatprep.subr.bf16.mxu0 0
        %1682 = vmatpush2.bf16.xpose.msra.mxu0 0
        %1683 = vmatprep.subr.bf16.mxu0 0
        %1684 = vmatpush2.bf16.xpose.msra.mxu0 0
        %1685 = vmatprep.mubr.bf16.mxu0 0
        %1686 = vmatmul.mubr.bf16.gmra.mxu0 %v1648
        %v1687 = vpop.f32.mrf.mxu0
        %v1688 = vadd.f32 0.0, %v1687
        %v1689 = vpop.f32.mrf.mxu0
        %v1690 = vpop.f32.mrf.mxu0
        %v1691 = vpop.f32.mrf.mxu0
        %1692 = vdwg.mxu0
        %v1694 = vsel %vm1252, %v1547, 0
        %v1697 = vsel %vm1252, %v1485, 0
        %1699 = vmatprep.subr.bf16.mxu0 0
        %1700 = vmatpush1.bf16.xpose.msra.mxu0 0
        %1701 = vmatprep.subr.bf16.mxu0 0
        %1702 = vmatpush1.bf16.xpose.msra.mxu0 0
        %1703 = vmatprep.subr.bf16.mxu0 0
        %1704 = vmatpush1.bf16.xpose.msra.mxu0 0
        %1705 = vmatprep.subr.bf16.mxu0 0
        %1706 = vmatpush1.bf16.xpose.msra.mxu0 0
        %1707 = vmatprep.subr.bf16.mxu0 0
        %1708 = vmatpush1.bf16.xpose.msra.mxu0 0
        %1709 = vmatprep.subr.bf16.mxu0 0
        %1710 = vmatpush1.bf16.xpose.msra.mxu0 0
        %1711 = vmatprep.subr.bf16.mxu0 0
        %1712 = vmatpush1.bf16.xpose.msra.mxu0 0
        %1713 = vmatprep.subr.bf16.mxu0 0
        %1714 = vmatpush1.bf16.xpose.msra.mxu0 %v1697
        %1715 = vmatprep.subr.bf16.mxu0 0
        %1716 = vmatpush2.bf16.xpose.msra.mxu0 0
        %1717 = vmatprep.subr.bf16.mxu0 0
        %1718 = vmatpush2.bf16.xpose.msra.mxu0 0
        %1719 = vmatprep.subr.bf16.mxu0 0
        %1720 = vmatpush2.bf16.xpose.msra.mxu0 0
        %1721 = vmatprep.subr.bf16.mxu0 0
        %1722 = vmatpush2.bf16.xpose.msra.mxu0 0
        %1723 = vmatprep.subr.bf16.mxu0 0
        %1724 = vmatpush2.bf16.xpose.msra.mxu0 0
        %1725 = vmatprep.subr.bf16.mxu0 0
        %1726 = vmatpush2.bf16.xpose.msra.mxu0 0
        %1727 = vmatprep.subr.bf16.mxu0 0
        %1728 = vmatpush2.bf16.xpose.msra.mxu0 0
        %1729 = vmatprep.subr.bf16.mxu0 0
        %1730 = vmatpush2.bf16.xpose.msra.mxu0 0
        %1731 = vmatprep.mubr.bf16.mxu0 0
        %1732 = vmatmul.mubr.bf16.gmra.mxu0 %v1694
        %v1733 = vpop.f32.mrf.mxu0
        %v1734 = vadd.f32 0.0, %v1733
        %v1735 = vpop.f32.mrf.mxu0
        %v1736 = vpop.f32.mrf.mxu0
        %v1737 = vpop.f32.mrf.mxu0
        %1738 = vdwg.mxu0
        %1739 = vxpose.xlu0.b32.start [1/16] %v1596, 128
        %1740 = vxpose.xlu0.b32.cont [2/16] 0.0, 128
        %1741 = vxpose.xlu0.b32.cont [3/16] 0.0, 128
        %1742 = vxpose.xlu0.b32.cont [4/16] 0.0, 128
        %1743 = vxpose.xlu0.b32.cont [5/16] 0.0, 128
        %1744 = vxpose.xlu0.b32.cont [6/16] 0.0, 128
        %1745 = vxpose.xlu0.b32.cont [7/16] 0.0, 128
        %1746 = vxpose.xlu0.b32.cont [8/16] 0.0, 128
        %1747 = vxpose.xlu0.b32.cont [9/16] 0.0, 128
        %1748 = vxpose.xlu0.b32.cont [10/16] 0.0, 128
        %1749 = vxpose.xlu0.b32.cont [11/16] 0.0, 128
        %1750 = vxpose.xlu0.b32.cont [12/16] 0.0, 128
        %1751 = vxpose.xlu0.b32.cont [13/16] 0.0, 128
        %1752 = vxpose.xlu0.b32.cont [14/16] 0.0, 128
        %1753 = vxpose.xlu0.b32.cont [15/16] 0.0, 128
        %1754 = vxpose.xlu0.b32.end [16/16] 0.0, 128
        %v1755 = vpop.trf.xlu0
        %v1756 = vpop.trf.xlu0
        %v1757 = vpop.trf.xlu0
        %v1758 = vpop.trf.xlu0
        %v1759 = vpop.trf.xlu0
        %v1760 = vpop.trf.xlu0
        %v1761 = vpop.trf.xlu0
        %v1762 = vpop.trf.xlu0
        %v1763 = vpop.trf.xlu0
        %v1764 = vpop.trf.xlu0
        %v1765 = vpop.trf.xlu0
        %v1766 = vpop.trf.xlu0
        %v1767 = vpop.trf.xlu0
        %v1768 = vpop.trf.xlu0
        %v1769 = vpop.trf.xlu0
        %v1770 = vpop.trf.xlu0
        %1771 = vxpose.xlu0.b32.start [1/16] %v1642, 128
        %1772 = vxpose.xlu0.b32.cont [2/16] 0.0, 128
        %1773 = vxpose.xlu0.b32.cont [3/16] 0.0, 128
        %1774 = vxpose.xlu0.b32.cont [4/16] 0.0, 128
        %1775 = vxpose.xlu0.b32.cont [5/16] 0.0, 128
        %1776 = vxpose.xlu0.b32.cont [6/16] 0.0, 128
        %1777 = vxpose.xlu0.b32.cont [7/16] 0.0, 128
        %1778 = vxpose.xlu0.b32.cont [8/16] 0.0, 128
        %1779 = vxpose.xlu0.b32.cont [9/16] 0.0, 128
        %1780 = vxpose.xlu0.b32.cont [10/16] 0.0, 128
        %1781 = vxpose.xlu0.b32.cont [11/16] 0.0, 128
        %1782 = vxpose.xlu0.b32.cont [12/16] 0.0, 128
        %1783 = vxpose.xlu0.b32.cont [13/16] 0.0, 128
        %1784 = vxpose.xlu0.b32.cont [14/16] 0.0, 128
        %1785 = vxpose.xlu0.b32.cont [15/16] 0.0, 128
        %1786 = vxpose.xlu0.b32.end [16/16] 0.0, 128
        %v1787 = vpop.trf.xlu0
        %v1788 = vpop.trf.xlu0
        %v1789 = vpop.trf.xlu0
        %v1790 = vpop.trf.xlu0
        %v1791 = vpop.trf.xlu0
        %v1792 = vpop.trf.xlu0
        %v1793 = vpop.trf.xlu0
        %v1794 = vpop.trf.xlu0
        %v1795 = vpop.trf.xlu0
        %v1796 = vpop.trf.xlu0
        %v1797 = vpop.trf.xlu0
        %v1798 = vpop.trf.xlu0
        %v1799 = vpop.trf.xlu0
        %v1800 = vpop.trf.xlu0
        %v1801 = vpop.trf.xlu0
        %v1802 = vpop.trf.xlu0
        %1803 = vxpose.xlu0.b32.start [1/16] %v1688, 128
        %1804 = vxpose.xlu0.b32.cont [2/16] 0.0, 128
        %1805 = vxpose.xlu0.b32.cont [3/16] 0.0, 128
        %1806 = vxpose.xlu0.b32.cont [4/16] 0.0, 128
        %1807 = vxpose.xlu0.b32.cont [5/16] 0.0, 128
        %1808 = vxpose.xlu0.b32.cont [6/16] 0.0, 128
        %1809 = vxpose.xlu0.b32.cont [7/16] 0.0, 128
        %1810 = vxpose.xlu0.b32.cont [8/16] 0.0, 128
        %1811 = vxpose.xlu0.b32.cont [9/16] 0.0, 128
        %1812 = vxpose.xlu0.b32.cont [10/16] 0.0, 128
        %1813 = vxpose.xlu0.b32.cont [11/16] 0.0, 128
        %1814 = vxpose.xlu0.b32.cont [12/16] 0.0, 128
        %1815 = vxpose.xlu0.b32.cont [13/16] 0.0, 128
        %1816 = vxpose.xlu0.b32.cont [14/16] 0.0, 128
        %1817 = vxpose.xlu0.b32.cont [15/16] 0.0, 128
        %1818 = vxpose.xlu0.b32.end [16/16] 0.0, 128
        %v1819 = vpop.trf.xlu0
        %v1820 = vpop.trf.xlu0
        %v1821 = vpop.trf.xlu0
        %v1822 = vpop.trf.xlu0
        %v1823 = vpop.trf.xlu0
        %v1824 = vpop.trf.xlu0
        %v1825 = vpop.trf.xlu0
        %v1826 = vpop.trf.xlu0
        %v1827 = vpop.trf.xlu0
        %v1828 = vpop.trf.xlu0
        %v1829 = vpop.trf.xlu0
        %v1830 = vpop.trf.xlu0
        %v1831 = vpop.trf.xlu0
        %v1832 = vpop.trf.xlu0
        %v1833 = vpop.trf.xlu0
        %v1834 = vpop.trf.xlu0
        %1835 = vxpose.xlu0.b32.start [1/16] %v1734, 128
        %1836 = vxpose.xlu0.b32.cont [2/16] 0.0, 128
        %1837 = vxpose.xlu0.b32.cont [3/16] 0.0, 128
        %1838 = vxpose.xlu0.b32.cont [4/16] 0.0, 128
        %1839 = vxpose.xlu0.b32.cont [5/16] 0.0, 128
        %1840 = vxpose.xlu0.b32.cont [6/16] 0.0, 128
        %1841 = vxpose.xlu0.b32.cont [7/16] 0.0, 128
        %1842 = vxpose.xlu0.b32.cont [8/16] 0.0, 128
        %1843 = vxpose.xlu0.b32.cont [9/16] 0.0, 128
        %1844 = vxpose.xlu0.b32.cont [10/16] 0.0, 128
        %1845 = vxpose.xlu0.b32.cont [11/16] 0.0, 128
        %1846 = vxpose.xlu0.b32.cont [12/16] 0.0, 128
        %1847 = vxpose.xlu0.b32.cont [13/16] 0.0, 128
        %1848 = vxpose.xlu0.b32.cont [14/16] 0.0, 128
        %1849 = vxpose.xlu0.b32.cont [15/16] 0.0, 128
        %1850 = vxpose.xlu0.b32.end [16/16] 0.0, 128
        %v1851 = vpop.trf.xlu0
        %v1852 = vpop.trf.xlu0
        %v1853 = vpop.trf.xlu0
        %v1854 = vpop.trf.xlu0
        %v1855 = vpop.trf.xlu0
        %v1856 = vpop.trf.xlu0
        %v1857 = vpop.trf.xlu0
        %v1858 = vpop.trf.xlu0
        %v1859 = vpop.trf.xlu0
        %v1860 = vpop.trf.xlu0
        %v1861 = vpop.trf.xlu0
        %v1862 = vpop.trf.xlu0
        %v1863 = vpop.trf.xlu0
        %v1864 = vpop.trf.xlu0
        %v1865 = vpop.trf.xlu0
        %v1866 = vpop.trf.xlu0
        %v1867 = vcombine.low %v1755, %v1819
        %v1868 = vcombine.high %v1755, %v1819
        %v1870 = vunpack.c.l.s4 1983009808
        %v1871 = vunpack.c.0.s8 %v1870
        %v1872 = vlaneseq
        %v1873 = vshrl.u32 %v1872, 7
        %v1874 = vsub.s32 %v1871, %v1873
        %v1875 = vrot.slane %v1867, %v1874
        %v1877 = vunpack.c.l.s4 1983009808
        %v1878 = vunpack.c.0.s8 %v1877
        %v1879 = vlaneseq
        %v1880 = vshrl.u32 %v1879, 7
        %v1881 = vsub.s32 %v1878, %v1880
        %v1882 = vrot.slane %v1868, %v1881
        %v1883 = vcombine.low %v1787, %v1851
        %v1884 = vcombine.high %v1787, %v1851
        %v1886 = vunpack.c.l.s4 1983009808
        %v1887 = vunpack.c.0.s8 %v1886
        %v1888 = vlaneseq
        %v1889 = vshrl.u32 %v1888, 7
        %v1890 = vsub.s32 %v1887, %v1889
        %v1891 = vrot.slane %v1883, %v1890
        %v1893 = vunpack.c.l.s4 1983009808
        %v1894 = vunpack.c.0.s8 %v1893
        %v1895 = vlaneseq
        %v1896 = vshrl.u32 %v1895, 7
        %v1897 = vsub.s32 %v1894, %v1896
        %v1898 = vrot.slane %v1884, %v1897
        %v1899 = vcombine.low %v1875, %v1891
        %v1900 = vcombine.high %v1875, %v1891
        %v1902 = vunpack.c.l.s4 1934713408
        %v1903 = vunpack.c.0.s8 %v1902
        %v1904 = vlaneseq
        %v1905 = vshrl.u32 %v1904, 7
        %v1906 = vsub.s32 %v1903, %v1905
        %v1907 = vrot.slane %v1899, %v1906
        %v1909 = vunpack.c.l.s4 1934713408
        %v1910 = vunpack.c.0.s8 %v1909
        %v1911 = vlaneseq
        %v1912 = vshrl.u32 %v1911, 7
        %v1913 = vsub.s32 %v1910, %v1912
        %v1914 = vrot.slane %v1900, %v1913
        %v1915 = vcombine.low %v1882, %v1898
        %v1916 = vcombine.high %v1882, %v1898
        %v1918 = vunpack.c.l.s4 1934713408
        %v1919 = vunpack.c.0.s8 %v1918
        %v1920 = vlaneseq
        %v1921 = vshrl.u32 %v1920, 7
        %v1922 = vsub.s32 %v1919, %v1921
        %v1923 = vrot.slane %v1915, %v1922
        %v1925 = vunpack.c.l.s4 1934713408
        %v1926 = vunpack.c.0.s8 %v1925
        %v1927 = vlaneseq
        %v1928 = vshrl.u32 %v1927, 7
        %v1929 = vsub.s32 %v1926, %v1928
        %v1930 = vrot.slane %v1916, %v1929
        %v1931 = vcombine.high %v1907, 0.0
        %v1932 = vcombine.high %v1914, 0.0
        %v1933 = vcombine.high %v1923, 0.0
        %v1934 = vcombine.high %v1930, 0.0
        %v1935 = vcombine.low %v1907, %v1914
        %v1937 = vunpack.c.l.s4 1983009808
        %v1938 = vunpack.c.0.s8 %v1937
        %v1939 = vlaneseq
        %v1940 = vshrl.u32 %v1939, 7
        %v1941 = vsub.s32 %v1938, %v1940
        %v1942 = vrot.slane %v1935, %v1941
        %v1943 = vcombine.low %v1931, %v1932
        %v1945 = vunpack.c.l.s4 1983009808
        %v1946 = vunpack.c.0.s8 %v1945
        %v1947 = vlaneseq
        %v1948 = vshrl.u32 %v1947, 7
        %v1949 = vsub.s32 %v1946, %v1948
        %v1950 = vrot.slane %v1943, %v1949
        %v1951 = vcombine.low %v1923, %v1930
        %v1953 = vunpack.c.l.s4 1983009808
        %v1954 = vunpack.c.0.s8 %v1953
        %v1955 = vlaneseq
        %v1956 = vshrl.u32 %v1955, 7
        %v1957 = vsub.s32 %v1954, %v1956
        %v1958 = vrot.slane %v1951, %v1957
        %v1959 = vcombine.low %v1933, %v1934
        %v1961 = vunpack.c.l.s4 1983009808
        %v1962 = vunpack.c.0.s8 %v1961
        %v1963 = vlaneseq
        %v1964 = vshrl.u32 %v1963, 7
        %v1965 = vsub.s32 %v1962, %v1964
        %v1966 = vrot.slane %v1959, %v1965
        %v1967 = vcombine.low %v1942, %v1950
        %v1968 = vcombine.high %v1942, %v1950
        %v1970 = vunpack.c.l.s4 1934713408
        %v1971 = vunpack.c.0.s8 %v1970
        %v1972 = vlaneseq
        %v1973 = vshrl.u32 %v1972, 7
        %v1974 = vsub.s32 %v1971, %v1973
        %v1975 = vrot.slane %v1967, %v1974
        %v1977 = vunpack.c.l.s4 1934713408
        %v1978 = vunpack.c.0.s8 %v1977
        %v1979 = vlaneseq
        %v1980 = vshrl.u32 %v1979, 7
        %v1981 = vsub.s32 %v1978, %v1980
        %v1982 = vrot.slane %v1968, %v1981
        %v1983 = vcombine.low %v1958, %v1966
        %v1984 = vcombine.high %v1958, %v1966
        %v1986 = vunpack.c.l.s4 1934713408
        %v1987 = vunpack.c.0.s8 %v1986
        %v1988 = vlaneseq
        %v1989 = vshrl.u32 %v1988, 7
        %v1990 = vsub.s32 %v1987, %v1989
        %v1991 = vrot.slane %v1983, %v1990
        %v1993 = vunpack.c.l.s4 1934713408
        %v1994 = vunpack.c.0.s8 %v1993
        %v1995 = vlaneseq
        %v1996 = vshrl.u32 %v1995, 7
        %v1997 = vsub.s32 %v1994, %v1996
        %v1998 = vrot.slane %v1984, %v1997
        %v1999 = vcombine.low %v1975, %v1991
        %v2000 = vcombine.high %v1975, %v1991
        %v2001 = vcombine.low %v1982, %v1998
        %v2002 = vcombine.high %v1982, %v1998
        %2004 = vrot.lane.b32.xlu0 %v2000, 8
        %v2005 = vpop.permute.xlu0 %2004
        %2008 = vrot.lane.b32.xlu0 %v2001, 16
        %v2009 = vpop.permute.xlu0 %2008
        %2012 = vrot.lane.b32.xlu0 %v2002, 24
        %v2013 = vpop.permute.xlu0 %2012
        %v2015 = vsel %vm1252, %v1999, %v2005
        %vm2016 = vcmask 130048
        %v2017 = vsel %vm2016, %v2015, %v2009
        %vm2018 = vcmask 195584
        %v2019 = vsel %vm2018, %v2017, %v2013
        %v2020 = vpack.c.bf16 %v2019, %v2019
        %s2021 = scalar_lea.vmem [#allocation6], 48
        %v2022 = vld [vmem:[%s2021] sm:$0xf]
        %v2023 = vld [vmem:[%s2021 + $0x4] sm:$0xf]
        %v2024 = vld [vmem:[%s2021 + $0x8] sm:$0xf]
        %v2025 = vld [vmem:[%s2021 + $0xc] sm:$0xf]
        %v2026 = vld [vmem:[%s5 + $0x3] sm:$0x1]
        %v2027 = vlaneseq
        %v2028 = vshrl.u32 %v2027, 7
        %v2029 = vsub.s32 0, %v2028
        %v2030 = vrot.slane %v2026, %v2029
        %v2035 = vunpack.c.l.b16 %v2022
        %v2036 = vunpack.c.l.b16 %v2023
        %v2037 = vunpack.c.l.b16 %v2024
        %v2038 = vunpack.c.l.b16 %v2025
        %v2039 = vpack.c.b16 %v2036, %v2035
        %v2040 = vpack.c.b16 %v2038, %v2037
        %v2044 = vsel %vm973, %v2020, 0
        %2046 = vmatprep.subr.bf16.mxu0 0
        %2047 = vmatpush1.bf16.msra.mxu0 0
        %2048 = vmatprep.subr.bf16.mxu0 0
        %2049 = vmatpush1.bf16.msra.mxu0 0
        %2050 = vmatprep.subr.bf16.mxu0 0
        %2051 = vmatpush1.bf16.msra.mxu0 0
        %2052 = vmatprep.subr.bf16.mxu0 0
        %2053 = vmatpush1.bf16.msra.mxu0 0
        %2054 = vmatprep.subr.bf16.mxu0 0
        %2055 = vmatpush1.bf16.msra.mxu0 0
        %2056 = vmatprep.subr.bf16.mxu0 0
        %2057 = vmatpush1.bf16.msra.mxu0 0
        %2058 = vmatprep.subr.bf16.mxu0 0
        %2059 = vmatpush1.bf16.msra.mxu0 %v2040
        %2060 = vmatprep.subr.bf16.mxu0 0
        %2061 = vmatpush1.bf16.msra.mxu0 %v2039
        %2062 = vmatprep.subr.bf16.mxu0 0
        %2063 = vmatpush2.bf16.msra.mxu0 0
        %2064 = vmatprep.subr.bf16.mxu0 0
        %2065 = vmatpush2.bf16.msra.mxu0 0
        %2066 = vmatprep.subr.bf16.mxu0 0
        %2067 = vmatpush2.bf16.msra.mxu0 0
        %2068 = vmatprep.subr.bf16.mxu0 0
        %2069 = vmatpush2.bf16.msra.mxu0 0
        %2070 = vmatprep.subr.bf16.mxu0 0
        %2071 = vmatpush2.bf16.msra.mxu0 0
        %2072 = vmatprep.subr.bf16.mxu0 0
        %2073 = vmatpush2.bf16.msra.mxu0 0
        %2074 = vmatprep.subr.bf16.mxu0 0
        %2075 = vmatpush2.bf16.msra.mxu0 0
        %2076 = vmatprep.subr.bf16.mxu0 0
        %2077 = vmatpush2.bf16.msra.mxu0 0
        %2078 = vmatprep.mubr.bf16.mxu0 0
        %2079 = vmatmul.mubr.bf16.gmra.mxu0 %v2044
        %v2080 = vpop.f32.mrf.mxu0
        %v2081 = vadd.f32 %v2030, %v2080
        %v2082 = vpop.f32.mrf.mxu0
        %v2083 = vpop.f32.mrf.mxu0
        %v2084 = vpop.f32.mrf.mxu0
        %2085 = vdwg.mxu0
        %v2086 = vunpack.c.l.bf16 %v943
        %v2087 = vadd.f32 %v2086, %v2081
        %v2088 = vsel %vm973, %v2087, 0.0
        %2089 = vadd.xlane.f32.xlu0 %v2088
        %v2090 = vpop.xlane.xlu0 %2089
        %v2091 = vrcp.pop 32.0
        %v2092 = vmul.f32 %v2090, %v2091
        %v2093 = vsub.f32 %v2087, %v2092
        %v2094 = vmul.f32 %v2093, %v2093
        %v2095 = vsel %vm973, %v2094, 0.0
        %2096 = vadd.xlane.f32.xlu0 %v2095
        %v2097 = vpop.xlane.xlu0 %2096
        %v2098 = vmul.f32 %v2097, %v2091
        %v2099 = vadd.f32 %v2098, 1e-06
        %v2100 = vrsqrt.pop %v2099
        %v2101 = vmul.f32 %v2093, %v2100
        %v2102 = vlaneseq
        %v2103 = vshrl.u32 %v2102, 7
        %v2104 = vsub.s32 0, %v2103
        %v2105 = vrot.slane %v950, %v2104
        %v2106 = vmul.f32 %v2101, %v2105
        %v2107 = vlaneseq
        %v2108 = vshrl.u32 %v2107, 7
        %v2109 = vsub.s32 0, %v2108
        %v2110 = vrot.slane %v951, %v2109
        %v2111 = vadd.f32 %v2106, %v2110
        %v2112 = vpack.c.bf16 %v2111, %v2111
        %v2113 = vld [vmem:[#allocation9] sm:$0xf]
        %v2114 = vld [vmem:[#allocation9 + $0x4] sm:$0xf]
        %v2115 = vld [vmem:[#allocation9 + $0x8] sm:$0xf]
        %v2116 = vld [vmem:[#allocation9 + $0xc] sm:$0xf]
        %v2117 = vld [vmem:[%s7] sm:$0x1]
        %v2118 = vlaneseq
        %v2119 = vshrl.u32 %v2118, 7
        %v2120 = vsub.s32 0, %v2119
        %v2121 = vrot.slane %v2117, %v2120
        %v2126 = vunpack.c.l.b16 %v2113
        %v2127 = vunpack.c.l.b16 %v2114
        %v2128 = vunpack.c.l.b16 %v2115
        %v2129 = vunpack.c.l.b16 %v2116
        %v2130 = vpack.c.b16 %v2127, %v2126
        %v2131 = vpack.c.b16 %v2129, %v2128
        %v2135 = vsel %vm973, %v2112, 0
        %2137 = vmatprep.subr.bf16.mxu0 0
        %2138 = vmatpush1.bf16.msra.mxu0 0
        %2139 = vmatprep.subr.bf16.mxu0 0
        %2140 = vmatpush1.bf16.msra.mxu0 0
        %2141 = vmatprep.subr.bf16.mxu0 0
        %2142 = vmatpush1.bf16.msra.mxu0 0
        %2143 = vmatprep.subr.bf16.mxu0 0
        %2144 = vmatpush1.bf16.msra.mxu0 0
        %2145 = vmatprep.subr.bf16.mxu0 0
        %2146 = vmatpush1.bf16.msra.mxu0 0
        %2147 = vmatprep.subr.bf16.mxu0 0
        %2148 = vmatpush1.bf16.msra.mxu0 0
        %2149 = vmatprep.subr.bf16.mxu0 0
        %2150 = vmatpush1.bf16.msra.mxu0 %v2131
        %2151 = vmatprep.subr.bf16.mxu0 0
        %2152 = vmatpush1.bf16.msra.mxu0 %v2130
        %2153 = vmatprep.subr.bf16.mxu0 0
        %2154 = vmatpush2.bf16.msra.mxu0 0
        %2155 = vmatprep.subr.bf16.mxu0 0
        %2156 = vmatpush2.bf16.msra.mxu0 0
        %2157 = vmatprep.subr.bf16.mxu0 0
        %2158 = vmatpush2.bf16.msra.mxu0 0
        %2159 = vmatprep.subr.bf16.mxu0 0
        %2160 = vmatpush2.bf16.msra.mxu0 0
        %2161 = vmatprep.subr.bf16.mxu0 0
        %2162 = vmatpush2.bf16.msra.mxu0 0
        %2163 = vmatprep.subr.bf16.mxu0 0
        %2164 = vmatpush2.bf16.msra.mxu0 0
        %2165 = vmatprep.subr.bf16.mxu0 0
        %2166 = vmatpush2.bf16.msra.mxu0 0
        %2167 = vmatprep.subr.bf16.mxu0 0
        %2168 = vmatpush2.bf16.msra.mxu0 0
        %2169 = vmatprep.mubr.bf16.mxu0 0
        %2170 = vmatmul.mubr.bf16.gmra.mxu0 %v2135
        %v2171 = vpop.f32.mrf.mxu0
        %v2172 = vadd.f32 %v2121, %v2171
        %v2173 = vpop.f32.mrf.mxu0
        %v2174 = vpop.f32.mrf.mxu0
        %v2175 = vpop.f32.mrf.mxu0
        %2176 = vdwg.mxu0
        %v2177 = vmul.f32 %v2172, 0.35355338
        %2179 = vrot.lane.b32.xlu0 %v2177, 120
        %v2180 = vpop.permute.xlu0 %2179
        %2182 = vrot.lane.b32.xlu0 %v2177, 112
        %v2183 = vpop.permute.xlu0 %2182
        %2185 = vrot.lane.b32.xlu0 %v2177, 104
        %v2186 = vpop.permute.xlu0 %2185
        %v2188 = vcombine.low %v2177, %v2183
        %v2189 = vcombine.high %v2177, %v2183
        %v2191 = vunpack.c.l.s4 1983009808
        %v2192 = vunpack.c.0.s8 %v2191
        %v2193 = vlaneseq
        %v2194 = vshrl.u32 %v2193, 7
        %v2195 = vsub.s32 %v2192, %v2194
        %v2196 = vrot.slane %v2188, %v2195
        %v2198 = vunpack.c.l.s4 1983009808
        %v2199 = vunpack.c.0.s8 %v2198
        %v2200 = vlaneseq
        %v2201 = vshrl.u32 %v2200, 7
        %v2202 = vsub.s32 %v2199, %v2201
        %v2203 = vrot.slane %v2189, %v2202
        %v2204 = vcombine.low %v2180, %v2186
        %v2205 = vcombine.high %v2180, %v2186
        %v2207 = vunpack.c.l.s4 1983009808
        %v2208 = vunpack.c.0.s8 %v2207
        %v2209 = vlaneseq
        %v2210 = vshrl.u32 %v2209, 7
        %v2211 = vsub.s32 %v2208, %v2210
        %v2212 = vrot.slane %v2204, %v2211
        %v2214 = vunpack.c.l.s4 1983009808
        %v2215 = vunpack.c.0.s8 %v2214
        %v2216 = vlaneseq
        %v2217 = vshrl.u32 %v2216, 7
        %v2218 = vsub.s32 %v2215, %v2217
        %v2219 = vrot.slane %v2205, %v2218
        %v2220 = vcombine.low %v2196, %v2212
        %v2221 = vcombine.high %v2196, %v2212
        %v2223 = vunpack.c.l.s4 1934713408
        %v2224 = vunpack.c.0.s8 %v2223
        %v2225 = vlaneseq
        %v2226 = vshrl.u32 %v2225, 7
        %v2227 = vsub.s32 %v2224, %v2226
        %v2228 = vrot.slane %v2220, %v2227
        %v2230 = vunpack.c.l.s4 1934713408
        %v2231 = vunpack.c.0.s8 %v2230
        %v2232 = vlaneseq
        %v2233 = vshrl.u32 %v2232, 7
        %v2234 = vsub.s32 %v2231, %v2233
        %v2235 = vrot.slane %v2221, %v2234
        %v2236 = vcombine.low %v2203, %v2219
        %v2237 = vcombine.high %v2203, %v2219
        %v2239 = vunpack.c.l.s4 1934713408
        %v2240 = vunpack.c.0.s8 %v2239
        %v2241 = vlaneseq
        %v2242 = vshrl.u32 %v2241, 7
        %v2243 = vsub.s32 %v2240, %v2242
        %v2244 = vrot.slane %v2236, %v2243
        %v2246 = vunpack.c.l.s4 1934713408
        %v2247 = vunpack.c.0.s8 %v2246
        %v2248 = vlaneseq
        %v2249 = vshrl.u32 %v2248, 7
        %v2250 = vsub.s32 %v2247, %v2249
        %v2251 = vrot.slane %v2237, %v2250
        %v2252 = vcombine.high %v2228, 0.0
        %v2253 = vcombine.high %v2235, 0.0
        %v2254 = vcombine.high %v2244, 0.0
        %v2255 = vcombine.high %v2251, 0.0
        %v2256 = vpack.c.bf16 %v2228, %v2228
        %v2257 = vpack.c.bf16 %v2252, %v2252
        %v2258 = vpack.c.bf16 %v2235, %v2235
        %v2259 = vpack.c.bf16 %v2253, %v2253
        %v2260 = vpack.c.bf16 %v2244, %v2244
        %v2261 = vpack.c.bf16 %v2254, %v2254
        %v2262 = vpack.c.bf16 %v2251, %v2251
        %v2263 = vpack.c.bf16 %v2255, %v2255
        %v2264 = vld [vmem:[#allocation4] sm:$0xf]
        %2266 = vrot.lane.b32.xlu0 %v2264, 120
        %v2267 = vpop.permute.xlu0 %2266
        %2269 = vrot.lane.b32.xlu0 %v2264, 112
        %v2270 = vpop.permute.xlu0 %2269
        %2272 = vrot.lane.b32.xlu0 %v2264, 104
        %v2273 = vpop.permute.xlu0 %2272
        %v2275 = vld [vmem:[#allocation5] sm:$0xf]
        %2277 = vrot.lane.b32.xlu0 %v2275, 120
        %v2278 = vpop.permute.xlu0 %2277
        %2280 = vrot.lane.b32.xlu0 %v2275, 112
        %v2281 = vpop.permute.xlu0 %2280
        %2283 = vrot.lane.b32.xlu0 %v2275, 104
        %v2284 = vpop.permute.xlu0 %2283
        %v2286 = vlaneseq
        %v2287 = vshrl.u32 %v2286, 7
        %v2288 = vsub.s32 0, %v2287
        %v2289 = vrot.slane %v949, %v2288
        %v2290 = vcombine.low %v2256, %v2260
        %v2292 = vunpack.c.l.s4 1983009808
        %v2293 = vunpack.c.0.s8 %v2292
        %v2294 = vlaneseq
        %v2295 = vshrl.u32 %v2294, 7
        %v2296 = vsub.s32 %v2293, %v2295
        %v2297 = vrot.slane %v2290, %v2296
        %v2298 = vcombine.low %v2258, %v2262
        %v2300 = vunpack.c.l.s4 1983009808
        %v2301 = vunpack.c.0.s8 %v2300
        %v2302 = vlaneseq
        %v2303 = vshrl.u32 %v2302, 7
        %v2304 = vsub.s32 %v2301, %v2303
        %v2305 = vrot.slane %v2298, %v2304
        %v2306 = vcombine.low %v2297, %v2305
        %v2308 = vunpack.c.l.s4 1934713408
        %v2309 = vunpack.c.0.s8 %v2308
        %v2310 = vlaneseq
        %v2311 = vshrl.u32 %v2310, 7
        %v2312 = vsub.s32 %v2309, %v2311
        %v2313 = vrot.slane %v2306, %v2312
        %v2314 = vcombine.high %v2313, 0
        %v2315 = vcombine.low %v2257, %v2261
        %v2317 = vunpack.c.l.s4 1983009808
        %v2318 = vunpack.c.0.s8 %v2317
        %v2319 = vlaneseq
        %v2320 = vshrl.u32 %v2319, 7
        %v2321 = vsub.s32 %v2318, %v2320
        %v2322 = vrot.slane %v2315, %v2321
        %v2323 = vcombine.low %v2259, %v2263
        %v2325 = vunpack.c.l.s4 1983009808
        %v2326 = vunpack.c.0.s8 %v2325
        %v2327 = vlaneseq
        %v2328 = vshrl.u32 %v2327, 7
        %v2329 = vsub.s32 %v2326, %v2328
        %v2330 = vrot.slane %v2323, %v2329
        %v2331 = vcombine.low %v2322, %v2330
        %v2333 = vunpack.c.l.s4 1934713408
        %v2334 = vunpack.c.0.s8 %v2333
        %v2335 = vlaneseq
        %v2336 = vshrl.u32 %v2335, 7
        %v2337 = vsub.s32 %v2334, %v2336
        %v2338 = vrot.slane %v2331, %v2337
        %v2339 = vcombine.high %v2338, 0
        %v2342 = vpack.i.b16 %v2338, %v2313
        %v2343 = vshrl.u32 %v2313, 16
        %v2344 = vshrl.u32 %v2338, 16
        %v2345 = vpack.i.b16 %v2344, %v2343
        %v2348 = vpack.i.b16 %v2339, %v2314
        %v2349 = vshrl.u32 %v2314, 16
        %v2350 = vshrl.u32 %v2339, 16
        %v2351 = vpack.i.b16 %v2350, %v2349
        %2352 = vxpose.xlu0.c.b16.start [1/8] %v2264, 128
        %2353 = vxpose.xlu0.c.b16.cont [2/8] 0, 128
        %2354 = vxpose.xlu0.c.b16.cont [3/8] 0, 128
        %2355 = vxpose.xlu0.c.b16.cont [4/8] 0, 128
        %2356 = vxpose.xlu0.c.b16.cont [5/8] 0, 128
        %2357 = vxpose.xlu0.c.b16.cont [6/8] 0, 128
        %2358 = vxpose.xlu0.c.b16.cont [7/8] 0, 128
        %2359 = vxpose.xlu0.c.b16.end [8/8] 0, 128
        %v2360 = vpop.trf.xlu0
        %v2361 = vpop.trf.xlu0
        %v2362 = vpop.trf.xlu0
        %v2363 = vpop.trf.xlu0
        %v2364 = vpop.trf.xlu0
        %v2365 = vpop.trf.xlu0
        %v2366 = vpop.trf.xlu0
        %v2367 = vpop.trf.xlu0
        %2368 = vxpose.xlu0.c.b16.start [1/8] %v2267, 128
        %2369 = vxpose.xlu0.c.b16.cont [2/8] 0, 128
        %2370 = vxpose.xlu0.c.b16.cont [3/8] 0, 128
        %2371 = vxpose.xlu0.c.b16.cont [4/8] 0, 128
        %2372 = vxpose.xlu0.c.b16.cont [5/8] 0, 128
        %2373 = vxpose.xlu0.c.b16.cont [6/8] 0, 128
        %2374 = vxpose.xlu0.c.b16.cont [7/8] 0, 128
        %2375 = vxpose.xlu0.c.b16.end [8/8] 0, 128
        %v2376 = vpop.trf.xlu0
        %v2377 = vpop.trf.xlu0
        %v2378 = vpop.trf.xlu0
        %v2379 = vpop.trf.xlu0
        %v2380 = vpop.trf.xlu0
        %v2381 = vpop.trf.xlu0
        %v2382 = vpop.trf.xlu0
        %v2383 = vpop.trf.xlu0
        %2384 = vxpose.xlu0.c.b16.start [1/8] %v2270, 128
        %2385 = vxpose.xlu0.c.b16.cont [2/8] 0, 128
        %2386 = vxpose.xlu0.c.b16.cont [3/8] 0, 128
        %2387 = vxpose.xlu0.c.b16.cont [4/8] 0, 128
        %2388 = vxpose.xlu0.c.b16.cont [5/8] 0, 128
        %2389 = vxpose.xlu0.c.b16.cont [6/8] 0, 128
        %2390 = vxpose.xlu0.c.b16.cont [7/8] 0, 128
        %2391 = vxpose.xlu0.c.b16.end [8/8] 0, 128
        %v2392 = vpop.trf.xlu0
        %v2393 = vpop.trf.xlu0
        %v2394 = vpop.trf.xlu0
        %v2395 = vpop.trf.xlu0
        %v2396 = vpop.trf.xlu0
        %v2397 = vpop.trf.xlu0
        %v2398 = vpop.trf.xlu0
        %v2399 = vpop.trf.xlu0
        %2400 = vxpose.xlu0.c.b16.start [1/8] %v2273, 128
        %2401 = vxpose.xlu0.c.b16.cont [2/8] 0, 128
        %2402 = vxpose.xlu0.c.b16.cont [3/8] 0, 128
        %2403 = vxpose.xlu0.c.b16.cont [4/8] 0, 128
        %2404 = vxpose.xlu0.c.b16.cont [5/8] 0, 128
        %2405 = vxpose.xlu0.c.b16.cont [6/8] 0, 128
        %2406 = vxpose.xlu0.c.b16.cont [7/8] 0, 128
        %2407 = vxpose.xlu0.c.b16.end [8/8] 0, 128
        %v2408 = vpop.trf.xlu0
        %v2409 = vpop.trf.xlu0
        %v2410 = vpop.trf.xlu0
        %v2411 = vpop.trf.xlu0
        %v2412 = vpop.trf.xlu0
        %v2413 = vpop.trf.xlu0
        %v2414 = vpop.trf.xlu0
        %v2415 = vpop.trf.xlu0
        %v2417 = vsel %vm1252, %v2342, 0
        %v2420 = vsel %vm1256, %v2360, 0
        %2422 = vmatprep.subr.bf16.mxu0 0
        %2423 = vmatpush1.bf16.msra.mxu0 0
        %2424 = vmatprep.subr.bf16.mxu0 0
        %2425 = vmatpush1.bf16.msra.mxu0 0
        %2426 = vmatprep.subr.bf16.mxu0 0
        %2427 = vmatpush1.bf16.msra.mxu0 0
        %2428 = vmatprep.subr.bf16.mxu0 0
        %2429 = vmatpush1.bf16.msra.mxu0 0
        %2430 = vmatprep.subr.bf16.mxu0 0
        %2431 = vmatpush1.bf16.msra.mxu0 0
        %2432 = vmatprep.subr.bf16.mxu0 0
        %2433 = vmatpush1.bf16.msra.mxu0 0
        %2434 = vmatprep.subr.bf16.mxu0 0
        %2435 = vmatpush1.bf16.msra.mxu0 0
        %2436 = vmatprep.subr.bf16.mxu0 0
        %2437 = vmatpush1.bf16.msra.mxu0 %v2420
        %2438 = vmatprep.subr.bf16.mxu0 0
        %2439 = vmatpush2.bf16.msra.mxu0 0
        %2440 = vmatprep.subr.bf16.mxu0 0
        %2441 = vmatpush2.bf16.msra.mxu0 0
        %2442 = vmatprep.subr.bf16.mxu0 0
        %2443 = vmatpush2.bf16.msra.mxu0 0
        %2444 = vmatprep.subr.bf16.mxu0 0
        %2445 = vmatpush2.bf16.msra.mxu0 0
        %2446 = vmatprep.subr.bf16.mxu0 0
        %2447 = vmatpush2.bf16.msra.mxu0 0
        %2448 = vmatprep.subr.bf16.mxu0 0
        %2449 = vmatpush2.bf16.msra.mxu0 0
        %2450 = vmatprep.subr.bf16.mxu0 0
        %2451 = vmatpush2.bf16.msra.mxu0 0
        %2452 = vmatprep.subr.bf16.mxu0 0
        %2453 = vmatpush2.bf16.msra.mxu0 0
        %2454 = vmatprep.mubr.bf16.mxu0 0
        %2455 = vmatmul.mubr.bf16.gmra.mxu0 %v2417
        %v2456 = vpop.f32.mrf.mxu0
        %v2457 = vadd.f32 %v2289, %v2456
        %v2458 = vpop.f32.mrf.mxu0
        %v2459 = vpop.f32.mrf.mxu0
        %v2460 = vpop.f32.mrf.mxu0
        %2461 = vdwg.mxu0
        %v2463 = vsel %vm1252, %v2345, 0
        %v2466 = vsel %vm1256, %v2376, 0
        %2468 = vmatprep.subr.bf16.mxu0 0
        %2469 = vmatpush1.bf16.msra.mxu0 0
        %2470 = vmatprep.subr.bf16.mxu0 0
        %2471 = vmatpush1.bf16.msra.mxu0 0
        %2472 = vmatprep.subr.bf16.mxu0 0
        %2473 = vmatpush1.bf16.msra.mxu0 0
        %2474 = vmatprep.subr.bf16.mxu0 0
        %2475 = vmatpush1.bf16.msra.mxu0 0
        %2476 = vmatprep.subr.bf16.mxu0 0
        %2477 = vmatpush1.bf16.msra.mxu0 0
        %2478 = vmatprep.subr.bf16.mxu0 0
        %2479 = vmatpush1.bf16.msra.mxu0 0
        %2480 = vmatprep.subr.bf16.mxu0 0
        %2481 = vmatpush1.bf16.msra.mxu0 0
        %2482 = vmatprep.subr.bf16.mxu0 0
        %2483 = vmatpush1.bf16.msra.mxu0 %v2466
        %2484 = vmatprep.subr.bf16.mxu0 0
        %2485 = vmatpush2.bf16.msra.mxu0 0
        %2486 = vmatprep.subr.bf16.mxu0 0
        %2487 = vmatpush2.bf16.msra.mxu0 0
        %2488 = vmatprep.subr.bf16.mxu0 0
        %2489 = vmatpush2.bf16.msra.mxu0 0
        %2490 = vmatprep.subr.bf16.mxu0 0
        %2491 = vmatpush2.bf16.msra.mxu0 0
        %2492 = vmatprep.subr.bf16.mxu0 0
        %2493 = vmatpush2.bf16.msra.mxu0 0
        %2494 = vmatprep.subr.bf16.mxu0 0
        %2495 = vmatpush2.bf16.msra.mxu0 0
        %2496 = vmatprep.subr.bf16.mxu0 0
        %2497 = vmatpush2.bf16.msra.mxu0 0
        %2498 = vmatprep.subr.bf16.mxu0 0
        %2499 = vmatpush2.bf16.msra.mxu0 0
        %2500 = vmatprep.mubr.bf16.mxu0 0
        %2501 = vmatmul.mubr.bf16.gmra.mxu0 %v2463
        %v2502 = vpop.f32.mrf.mxu0
        %v2503 = vadd.f32 %v2289, %v2502
        %v2504 = vpop.f32.mrf.mxu0
        %v2505 = vpop.f32.mrf.mxu0
        %v2506 = vpop.f32.mrf.mxu0
        %2507 = vdwg.mxu0
        %v2509 = vsel %vm1252, %v2348, 0
        %v2512 = vsel %vm1256, %v2392, 0
        %2514 = vmatprep.subr.bf16.mxu0 0
        %2515 = vmatpush1.bf16.msra.mxu0 0
        %2516 = vmatprep.subr.bf16.mxu0 0
        %2517 = vmatpush1.bf16.msra.mxu0 0
        %2518 = vmatprep.subr.bf16.mxu0 0
        %2519 = vmatpush1.bf16.msra.mxu0 0
        %2520 = vmatprep.subr.bf16.mxu0 0
        %2521 = vmatpush1.bf16.msra.mxu0 0
        %2522 = vmatprep.subr.bf16.mxu0 0
        %2523 = vmatpush1.bf16.msra.mxu0 0
        %2524 = vmatprep.subr.bf16.mxu0 0
        %2525 = vmatpush1.bf16.msra.mxu0 0
        %2526 = vmatprep.subr.bf16.mxu0 0
        %2527 = vmatpush1.bf16.msra.mxu0 0
        %2528 = vmatprep.subr.bf16.mxu0 0
        %2529 = vmatpush1.bf16.msra.mxu0 %v2512
        %2530 = vmatprep.subr.bf16.mxu0 0
        %2531 = vmatpush2.bf16.msra.mxu0 0
        %2532 = vmatprep.subr.bf16.mxu0 0
        %2533 = vmatpush2.bf16.msra.mxu0 0
        %2534 = vmatprep.subr.bf16.mxu0 0
        %2535 = vmatpush2.bf16.msra.mxu0 0
        %2536 = vmatprep.subr.bf16.mxu0 0
        %2537 = vmatpush2.bf16.msra.mxu0 0
        %2538 = vmatprep.subr.bf16.mxu0 0
        %2539 = vmatpush2.bf16.msra.mxu0 0
        %2540 = vmatprep.subr.bf16.mxu0 0
        %2541 = vmatpush2.bf16.msra.mxu0 0
        %2542 = vmatprep.subr.bf16.mxu0 0
        %2543 = vmatpush2.bf16.msra.mxu0 0
        %2544 = vmatprep.subr.bf16.mxu0 0
        %2545 = vmatpush2.bf16.msra.mxu0 0
        %2546 = vmatprep.mubr.bf16.mxu0 0
        %2547 = vmatmul.mubr.bf16.gmra.mxu0 %v2509
        %v2548 = vpop.f32.mrf.mxu0
        %v2549 = vadd.f32 %v2289, %v2548
        %v2550 = vpop.f32.mrf.mxu0
        %v2551 = vpop.f32.mrf.mxu0
        %v2552 = vpop.f32.mrf.mxu0
        %2553 = vdwg.mxu0
        %v2555 = vsel %vm1252, %v2351, 0
        %v2558 = vsel %vm1256, %v2408, 0
        %2560 = vmatprep.subr.bf16.mxu0 0
        %2561 = vmatpush1.bf16.msra.mxu0 0
        %2562 = vmatprep.subr.bf16.mxu0 0
        %2563 = vmatpush1.bf16.msra.mxu0 0
        %2564 = vmatprep.subr.bf16.mxu0 0
        %2565 = vmatpush1.bf16.msra.mxu0 0
        %2566 = vmatprep.subr.bf16.mxu0 0
        %2567 = vmatpush1.bf16.msra.mxu0 0
        %2568 = vmatprep.subr.bf16.mxu0 0
        %2569 = vmatpush1.bf16.msra.mxu0 0
        %2570 = vmatprep.subr.bf16.mxu0 0
        %2571 = vmatpush1.bf16.msra.mxu0 0
        %2572 = vmatprep.subr.bf16.mxu0 0
        %2573 = vmatpush1.bf16.msra.mxu0 0
        %2574 = vmatprep.subr.bf16.mxu0 0
        %2575 = vmatpush1.bf16.msra.mxu0 %v2558
        %2576 = vmatprep.subr.bf16.mxu0 0
        %2577 = vmatpush2.bf16.msra.mxu0 0
        %2578 = vmatprep.subr.bf16.mxu0 0
        %2579 = vmatpush2.bf16.msra.mxu0 0
        %2580 = vmatprep.subr.bf16.mxu0 0
        %2581 = vmatpush2.bf16.msra.mxu0 0
        %2582 = vmatprep.subr.bf16.mxu0 0
        %2583 = vmatpush2.bf16.msra.mxu0 0
        %2584 = vmatprep.subr.bf16.mxu0 0
        %2585 = vmatpush2.bf16.msra.mxu0 0
        %2586 = vmatprep.subr.bf16.mxu0 0
        %2587 = vmatpush2.bf16.msra.mxu0 0
        %2588 = vmatprep.subr.bf16.mxu0 0
        %2589 = vmatpush2.bf16.msra.mxu0 0
        %2590 = vmatprep.subr.bf16.mxu0 0
        %2591 = vmatpush2.bf16.msra.mxu0 0
        %2592 = vmatprep.mubr.bf16.mxu0 0
        %2593 = vmatmul.mubr.bf16.gmra.mxu0 %v2555
        %v2594 = vpop.f32.mrf.mxu0
        %v2595 = vadd.f32 %v2289, %v2594
        %v2596 = vpop.f32.mrf.mxu0
        %v2597 = vpop.f32.mrf.mxu0
        %v2598 = vpop.f32.mrf.mxu0
        %2599 = vdwg.mxu0
        %v2600 = vsel %vm1252, %v2457, -inf
        %2601 = vmax.xlane.f32.xlu0 %v2600
        %v2602 = vpop.xlane.xlu0 %2601
        %v2603 = vsel %vm1252, %v2503, -inf
        %2604 = vmax.xlane.f32.xlu0 %v2603
        %v2605 = vpop.xlane.xlu0 %2604
        %v2606 = vsel %vm1252, %v2549, -inf
        %2607 = vmax.xlane.f32.xlu0 %v2606
        %v2608 = vpop.xlane.xlu0 %2607
        %v2609 = vsel %vm1252, %v2595, -inf
        %2610 = vmax.xlane.f32.xlu0 %v2609
        %v2611 = vpop.xlane.xlu0 %2610
        %v2612 = vsub.f32 %v2457, %v2602
        %v2613 = vsub.f32 %v2503, %v2605
        %v2614 = vsub.f32 %v2549, %v2608
        %v2615 = vsub.f32 %v2595, %v2611
        %v2616 = vmul.f32 %v2612, 1.442695
        %v2617 = vpow.pop %v2616
        %v2618 = vmul.f32 %v2613, 1.442695
        %v2619 = vpow.pop %v2618
        %v2620 = vmul.f32 %v2614, 1.442695
        %v2621 = vpow.pop %v2620
        %v2622 = vmul.f32 %v2615, 1.442695
        %v2623 = vpow.pop %v2622
        %v2624 = vsel %vm1252, %v2617, 0.0
        %2625 = vadd.xlane.f32.xlu0 %v2624
        %v2626 = vpop.xlane.xlu0 %2625
        %v2627 = vsel %vm1252, %v2619, 0.0
        %2628 = vadd.xlane.f32.xlu0 %v2627
        %v2629 = vpop.xlane.xlu0 %2628
        %v2630 = vsel %vm1252, %v2621, 0.0
        %2631 = vadd.xlane.f32.xlu0 %v2630
        %v2632 = vpop.xlane.xlu0 %2631
        %v2633 = vsel %vm1252, %v2623, 0.0
        %2634 = vadd.xlane.f32.xlu0 %v2633
        %v2635 = vpop.xlane.xlu0 %2634
        %v2636 = vrcp.pop %v2626
        %v2637 = vrcp.pop %v2629
        %v2638 = vrcp.pop %v2632
        %v2639 = vrcp.pop %v2635
        %v2640 = vmul.f32 %v2617, %v2636
        %v2641 = vmul.f32 %v2619, %v2637
        %v2642 = vmul.f32 %v2621, %v2638
        %v2643 = vmul.f32 %v2623, %v2639
        %v2644 = vpack.c.bf16 %v2640, %v2640
        %v2645 = vpack.c.bf16 %v2641, %v2641
        %v2646 = vpack.c.bf16 %v2642, %v2642
        %v2647 = vpack.c.bf16 %v2643, %v2643
        %2648 = vst.msk [vmem:[%s648] sm:$0xf] %vm1486, %v2644
        %2649 = vst.msk [vmem:[%s648 + $0x4] sm:$0xf] %vm1486, %v2645
        %2650 = vst.msk [vmem:[%s648 + $0x8] sm:$0xf] %vm1486, %v2646
        %2651 = vst.msk [vmem:[%s648 + $0xc] sm:$0xf] %vm1486, %v2647
        %2652 = vxpose.xlu0.c.b16.start [1/8] %v2275, 128
        %2653 = vxpose.xlu0.c.b16.cont [2/8] 0, 128
        %2654 = vxpose.xlu0.c.b16.cont [3/8] 0, 128
        %2655 = vxpose.xlu0.c.b16.cont [4/8] 0, 128
        %2656 = vxpose.xlu0.c.b16.cont [5/8] 0, 128
        %2657 = vxpose.xlu0.c.b16.cont [6/8] 0, 128
        %2658 = vxpose.xlu0.c.b16.cont [7/8] 0, 128
        %2659 = vxpose.xlu0.c.b16.end [8/8] 0, 128
        %v2660 = vpop.trf.xlu0
        %v2661 = vpop.trf.xlu0
        %v2662 = vpop.trf.xlu0
        %v2663 = vpop.trf.xlu0
        %v2664 = vpop.trf.xlu0
        %v2665 = vpop.trf.xlu0
        %v2666 = vpop.trf.xlu0
        %v2667 = vpop.trf.xlu0
        %2668 = vxpose.xlu0.c.b16.start [1/8] %v2278, 128
        %2669 = vxpose.xlu0.c.b16.cont [2/8] 0, 128
        %2670 = vxpose.xlu0.c.b16.cont [3/8] 0, 128
        %2671 = vxpose.xlu0.c.b16.cont [4/8] 0, 128
        %2672 = vxpose.xlu0.c.b16.cont [5/8] 0, 128
        %2673 = vxpose.xlu0.c.b16.cont [6/8] 0, 128
        %2674 = vxpose.xlu0.c.b16.cont [7/8] 0, 128
        %2675 = vxpose.xlu0.c.b16.end [8/8] 0, 128
        %v2676 = vpop.trf.xlu0
        %v2677 = vpop.trf.xlu0
        %v2678 = vpop.trf.xlu0
        %v2679 = vpop.trf.xlu0
        %v2680 = vpop.trf.xlu0
        %v2681 = vpop.trf.xlu0
        %v2682 = vpop.trf.xlu0
        %v2683 = vpop.trf.xlu0
        %2684 = vxpose.xlu0.c.b16.start [1/8] %v2281, 128
        %2685 = vxpose.xlu0.c.b16.cont [2/8] 0, 128
        %2686 = vxpose.xlu0.c.b16.cont [3/8] 0, 128
        %2687 = vxpose.xlu0.c.b16.cont [4/8] 0, 128
        %2688 = vxpose.xlu0.c.b16.cont [5/8] 0, 128
        %2689 = vxpose.xlu0.c.b16.cont [6/8] 0, 128
        %2690 = vxpose.xlu0.c.b16.cont [7/8] 0, 128
        %2691 = vxpose.xlu0.c.b16.end [8/8] 0, 128
        %v2692 = vpop.trf.xlu0
        %v2693 = vpop.trf.xlu0
        %v2694 = vpop.trf.xlu0
        %v2695 = vpop.trf.xlu0
        %v2696 = vpop.trf.xlu0
        %v2697 = vpop.trf.xlu0
        %v2698 = vpop.trf.xlu0
        %v2699 = vpop.trf.xlu0
        %2700 = vxpose.xlu0.c.b16.start [1/8] %v2284, 128
        %2701 = vxpose.xlu0.c.b16.cont [2/8] 0, 128
        %2702 = vxpose.xlu0.c.b16.cont [3/8] 0, 128
        %2703 = vxpose.xlu0.c.b16.cont [4/8] 0, 128
        %2704 = vxpose.xlu0.c.b16.cont [5/8] 0, 128
        %2705 = vxpose.xlu0.c.b16.cont [6/8] 0, 128
        %2706 = vxpose.xlu0.c.b16.cont [7/8] 0, 128
        %2707 = vxpose.xlu0.c.b16.end [8/8] 0, 128
        %v2708 = vpop.trf.xlu0
        %v2709 = vpop.trf.xlu0
        %v2710 = vpop.trf.xlu0
        %v2711 = vpop.trf.xlu0
        %v2712 = vpop.trf.xlu0
        %v2713 = vpop.trf.xlu0
        %v2714 = vpop.trf.xlu0
        %v2715 = vpop.trf.xlu0
        %v2717 = vsel %vm1252, %v2660, 0
        %v2720 = vsel %vm1252, %v2644, 0
        %2722 = vmatprep.subr.bf16.mxu0 0
        %2723 = vmatpush1.bf16.xpose.msra.mxu0 0
        %2724 = vmatprep.subr.bf16.mxu0 0
        %2725 = vmatpush1.bf16.xpose.msra.mxu0 0
        %2726 = vmatprep.subr.bf16.mxu0 0
        %2727 = vmatpush1.bf16.xpose.msra.mxu0 0
        %2728 = vmatprep.subr.bf16.mxu0 0
        %2729 = vmatpush1.bf16.xpose.msra.mxu0 0
        %2730 = vmatprep.subr.bf16.mxu0 0
        %2731 = vmatpush1.bf16.xpose.msra.mxu0 0
        %2732 = vmatprep.subr.bf16.mxu0 0
        %2733 = vmatpush1.bf16.xpose.msra.mxu0 0
        %2734 = vmatprep.subr.bf16.mxu0 0
        %2735 = vmatpush1.bf16.xpose.msra.mxu0 0
        %2736 = vmatprep.subr.bf16.mxu0 0
        %2737 = vmatpush1.bf16.xpose.msra.mxu0 %v2720
        %2738 = vmatprep.subr.bf16.mxu0 0
        %2739 = vmatpush2.bf16.xpose.msra.mxu0 0
        %2740 = vmatprep.subr.bf16.mxu0 0
        %2741 = vmatpush2.bf16.xpose.msra.mxu0 0
        %2742 = vmatprep.subr.bf16.mxu0 0
        %2743 = vmatpush2.bf16.xpose.msra.mxu0 0
        %2744 = vmatprep.subr.bf16.mxu0 0
        %2745 = vmatpush2.bf16.xpose.msra.mxu0 0
        %2746 = vmatprep.subr.bf16.mxu0 0
        %2747 = vmatpush2.bf16.xpose.msra.mxu0 0
        %2748 = vmatprep.subr.bf16.mxu0 0
        %2749 = vmatpush2.bf16.xpose.msra.mxu0 0
        %2750 = vmatprep.subr.bf16.mxu0 0
        %2751 = vmatpush2.bf16.xpose.msra.mxu0 0
        %2752 = vmatprep.subr.bf16.mxu0 0
        %2753 = vmatpush2.bf16.xpose.msra.mxu0 0
        %2754 = vmatprep.mubr.bf16.mxu0 0
        %2755 = vmatmul.mubr.bf16.gmra.mxu0 %v2717
        %v2756 = vpop.f32.mrf.mxu0
        %v2757 = vadd.f32 0.0, %v2756
        %v2758 = vpop.f32.mrf.mxu0
        %v2759 = vpop.f32.mrf.mxu0
        %v2760 = vpop.f32.mrf.mxu0
        %2761 = vdwg.mxu0
        %v2763 = vsel %vm1252, %v2676, 0
        %v2766 = vsel %vm1252, %v2645, 0
        %2768 = vmatprep.subr.bf16.mxu0 0
        %2769 = vmatpush1.bf16.xpose.msra.mxu0 0
        %2770 = vmatprep.subr.bf16.mxu0 0
        %2771 = vmatpush1.bf16.xpose.msra.mxu0 0
        %2772 = vmatprep.subr.bf16.mxu0 0
        %2773 = vmatpush1.bf16.xpose.msra.mxu0 0
        %2774 = vmatprep.subr.bf16.mxu0 0
        %2775 = vmatpush1.bf16.xpose.msra.mxu0 0
        %2776 = vmatprep.subr.bf16.mxu0 0
        %2777 = vmatpush1.bf16.xpose.msra.mxu0 0
        %2778 = vmatprep.subr.bf16.mxu0 0
        %2779 = vmatpush1.bf16.xpose.msra.mxu0 0
        %2780 = vmatprep.subr.bf16.mxu0 0
        %2781 = vmatpush1.bf16.xpose.msra.mxu0 0
        %2782 = vmatprep.subr.bf16.mxu0 0
        %2783 = vmatpush1.bf16.xpose.msra.mxu0 %v2766
        %2784 = vmatprep.subr.bf16.mxu0 0
        %2785 = vmatpush2.bf16.xpose.msra.mxu0 0
        %2786 = vmatprep.subr.bf16.mxu0 0
        %2787 = vmatpush2.bf16.xpose.msra.mxu0 0
        %2788 = vmatprep.subr.bf16.mxu0 0
        %2789 = vmatpush2.bf16.xpose.msra.mxu0 0
        %2790 = vmatprep.subr.bf16.mxu0 0
        %2791 = vmatpush2.bf16.xpose.msra.mxu0 0
        %2792 = vmatprep.subr.bf16.mxu0 0
        %2793 = vmatpush2.bf16.xpose.msra.mxu0 0
        %2794 = vmatprep.subr.bf16.mxu0 0
        %2795 = vmatpush2.bf16.xpose.msra.mxu0 0
        %2796 = vmatprep.subr.bf16.mxu0 0
        %2797 = vmatpush2.bf16.xpose.msra.mxu0 0
        %2798 = vmatprep.subr.bf16.mxu0 0
        %2799 = vmatpush2.bf16.xpose.msra.mxu0 0
        %2800 = vmatprep.mubr.bf16.mxu0 0
        %2801 = vmatmul.mubr.bf16.gmra.mxu0 %v2763
        %v2802 = vpop.f32.mrf.mxu0
        %v2803 = vadd.f32 0.0, %v2802
        %v2804 = vpop.f32.mrf.mxu0
        %v2805 = vpop.f32.mrf.mxu0
        %v2806 = vpop.f32.mrf.mxu0
        %2807 = vdwg.mxu0
        %v2809 = vsel %vm1252, %v2692, 0
        %v2812 = vsel %vm1252, %v2646, 0
        %2814 = vmatprep.subr.bf16.mxu0 0
        %2815 = vmatpush1.bf16.xpose.msra.mxu0 0
        %2816 = vmatprep.subr.bf16.mxu0 0
        %2817 = vmatpush1.bf16.xpose.msra.mxu0 0
        %2818 = vmatprep.subr.bf16.mxu0 0
        %2819 = vmatpush1.bf16.xpose.msra.mxu0 0
        %2820 = vmatprep.subr.bf16.mxu0 0
        %2821 = vmatpush1.bf16.xpose.msra.mxu0 0
        %2822 = vmatprep.subr.bf16.mxu0 0
        %2823 = vmatpush1.bf16.xpose.msra.mxu0 0
        %2824 = vmatprep.subr.bf16.mxu0 0
        %2825 = vmatpush1.bf16.xpose.msra.mxu0 0
        %2826 = vmatprep.subr.bf16.mxu0 0
        %2827 = vmatpush1.bf16.xpose.msra.mxu0 0
        %2828 = vmatprep.subr.bf16.mxu0 0
        %2829 = vmatpush1.bf16.xpose.msra.mxu0 %v2812
        %2830 = vmatprep.subr.bf16.mxu0 0
        %2831 = vmatpush2.bf16.xpose.msra.mxu0 0
        %2832 = vmatprep.subr.bf16.mxu0 0
        %2833 = vmatpush2.bf16.xpose.msra.mxu0 0
        %2834 = vmatprep.subr.bf16.mxu0 0
        %2835 = vmatpush2.bf16.xpose.msra.mxu0 0
        %2836 = vmatprep.subr.bf16.mxu0 0
        %2837 = vmatpush2.bf16.xpose.msra.mxu0 0
        %2838 = vmatprep.subr.bf16.mxu0 0
        %2839 = vmatpush2.bf16.xpose.msra.mxu0 0
        %2840 = vmatprep.subr.bf16.mxu0 0
        %2841 = vmatpush2.bf16.xpose.msra.mxu0 0
        %2842 = vmatprep.subr.bf16.mxu0 0
        %2843 = vmatpush2.bf16.xpose.msra.mxu0 0
        %2844 = vmatprep.subr.bf16.mxu0 0
        %2845 = vmatpush2.bf16.xpose.msra.mxu0 0
        %2846 = vmatprep.mubr.bf16.mxu0 0
        %2847 = vmatmul.mubr.bf16.gmra.mxu0 %v2809
        %v2848 = vpop.f32.mrf.mxu0
        %v2849 = vadd.f32 0.0, %v2848
        %v2850 = vpop.f32.mrf.mxu0
        %v2851 = vpop.f32.mrf.mxu0
        %v2852 = vpop.f32.mrf.mxu0
        %2853 = vdwg.mxu0
        %v2855 = vsel %vm1252, %v2708, 0
        %v2858 = vsel %vm1252, %v2647, 0
        %2860 = vmatprep.subr.bf16.mxu0 0
        %2861 = vmatpush1.bf16.xpose.msra.mxu0 0
        %2862 = vmatprep.subr.bf16.mxu0 0
        %2863 = vmatpush1.bf16.xpose.msra.mxu0 0
        %2864 = vmatprep.subr.bf16.mxu0 0
        %2865 = vmatpush1.bf16.xpose.msra.mxu0 0
        %2866 = vmatprep.subr.bf16.mxu0 0
        %2867 = vmatpush1.bf16.xpose.msra.mxu0 0
        %2868 = vmatprep.subr.bf16.mxu0 0
        %2869 = vmatpush1.bf16.xpose.msra.mxu0 0
        %2870 = vmatprep.subr.bf16.mxu0 0
        %2871 = vmatpush1.bf16.xpose.msra.mxu0 0
        %2872 = vmatprep.subr.bf16.mxu0 0
        %2873 = vmatpush1.bf16.xpose.msra.mxu0 0
        %2874 = vmatprep.subr.bf16.mxu0 0
        %2875 = vmatpush1.bf16.xpose.msra.mxu0 %v2858
        %2876 = vmatprep.subr.bf16.mxu0 0
        %2877 = vmatpush2.bf16.xpose.msra.mxu0 0
        %2878 = vmatprep.subr.bf16.mxu0 0
        %2879 = vmatpush2.bf16.xpose.msra.mxu0 0
        %2880 = vmatprep.subr.bf16.mxu0 0
        %2881 = vmatpush2.bf16.xpose.msra.mxu0 0
        %2882 = vmatprep.subr.bf16.mxu0 0
        %2883 = vmatpush2.bf16.xpose.msra.mxu0 0
        %2884 = vmatprep.subr.bf16.mxu0 0
        %2885 = vmatpush2.bf16.xpose.msra.mxu0 0
        %2886 = vmatprep.subr.bf16.mxu0 0
        %2887 = vmatpush2.bf16.xpose.msra.mxu0 0
        %2888 = vmatprep.subr.bf16.mxu0 0
        %2889 = vmatpush2.bf16.xpose.msra.mxu0 0
        %2890 = vmatprep.subr.bf16.mxu0 0
        %2891 = vmatpush2.bf16.xpose.msra.mxu0 0
        %2892 = vmatprep.mubr.bf16.mxu0 0
        %2893 = vmatmul.mubr.bf16.gmra.mxu0 %v2855
        %v2894 = vpop.f32.mrf.mxu0
        %v2895 = vadd.f32 0.0, %v2894
        %v2896 = vpop.f32.mrf.mxu0
        %v2897 = vpop.f32.mrf.mxu0
        %v2898 = vpop.f32.mrf.mxu0
        %2899 = vdwg.mxu0
        %2900 = vxpose.xlu0.b32.start [1/16] %v2757, 128
        %2901 = vxpose.xlu0.b32.cont [2/16] 0.0, 128
        %2902 = vxpose.xlu0.b32.cont [3/16] 0.0, 128
        %2903 = vxpose.xlu0.b32.cont [4/16] 0.0, 128
        %2904 = vxpose.xlu0.b32.cont [5/16] 0.0, 128
        %2905 = vxpose.xlu0.b32.cont [6/16] 0.0, 128
        %2906 = vxpose.xlu0.b32.cont [7/16] 0.0, 128
        %2907 = vxpose.xlu0.b32.cont [8/16] 0.0, 128
        %2908 = vxpose.xlu0.b32.cont [9/16] 0.0, 128
        %2909 = vxpose.xlu0.b32.cont [10/16] 0.0, 128
        %2910 = vxpose.xlu0.b32.cont [11/16] 0.0, 128
        %2911 = vxpose.xlu0.b32.cont [12/16] 0.0, 128
        %2912 = vxpose.xlu0.b32.cont [13/16] 0.0, 128
        %2913 = vxpose.xlu0.b32.cont [14/16] 0.0, 128
        %2914 = vxpose.xlu0.b32.cont [15/16] 0.0, 128
        %2915 = vxpose.xlu0.b32.end [16/16] 0.0, 128
        %v2916 = vpop.trf.xlu0
        %v2917 = vpop.trf.xlu0
        %v2918 = vpop.trf.xlu0
        %v2919 = vpop.trf.xlu0
        %v2920 = vpop.trf.xlu0
        %v2921 = vpop.trf.xlu0
        %v2922 = vpop.trf.xlu0
        %v2923 = vpop.trf.xlu0
        %v2924 = vpop.trf.xlu0
        %v2925 = vpop.trf.xlu0
        %v2926 = vpop.trf.xlu0
        %v2927 = vpop.trf.xlu0
        %v2928 = vpop.trf.xlu0
        %v2929 = vpop.trf.xlu0
        %v2930 = vpop.trf.xlu0
        %v2931 = vpop.trf.xlu0
        %2932 = vxpose.xlu0.b32.start [1/16] %v2803, 128
        %2933 = vxpose.xlu0.b32.cont [2/16] 0.0, 128
        %2934 = vxpose.xlu0.b32.cont [3/16] 0.0, 128
        %2935 = vxpose.xlu0.b32.cont [4/16] 0.0, 128
        %2936 = vxpose.xlu0.b32.cont [5/16] 0.0, 128
        %2937 = vxpose.xlu0.b32.cont [6/16] 0.0, 128
        %2938 = vxpose.xlu0.b32.cont [7/16] 0.0, 128
        %2939 = vxpose.xlu0.b32.cont [8/16] 0.0, 128
        %2940 = vxpose.xlu0.b32.cont [9/16] 0.0, 128
        %2941 = vxpose.xlu0.b32.cont [10/16] 0.0, 128
        %2942 = vxpose.xlu0.b32.cont [11/16] 0.0, 128
        %2943 = vxpose.xlu0.b32.cont [12/16] 0.0, 128
        %2944 = vxpose.xlu0.b32.cont [13/16] 0.0, 128
        %2945 = vxpose.xlu0.b32.cont [14/16] 0.0, 128
        %2946 = vxpose.xlu0.b32.cont [15/16] 0.0, 128
        %2947 = vxpose.xlu0.b32.end [16/16] 0.0, 128
        %v2948 = vpop.trf.xlu0
        %v2949 = vpop.trf.xlu0
        %v2950 = vpop.trf.xlu0
        %v2951 = vpop.trf.xlu0
        %v2952 = vpop.trf.xlu0
        %v2953 = vpop.trf.xlu0
        %v2954 = vpop.trf.xlu0
        %v2955 = vpop.trf.xlu0
        %v2956 = vpop.trf.xlu0
        %v2957 = vpop.trf.xlu0
        %v2958 = vpop.trf.xlu0
        %v2959 = vpop.trf.xlu0
        %v2960 = vpop.trf.xlu0
        %v2961 = vpop.trf.xlu0
        %v2962 = vpop.trf.xlu0
        %v2963 = vpop.trf.xlu0
        %2964 = vxpose.xlu0.b32.start [1/16] %v2849, 128
        %2965 = vxpose.xlu0.b32.cont [2/16] 0.0, 128
        %2966 = vxpose.xlu0.b32.cont [3/16] 0.0, 128
        %2967 = vxpose.xlu0.b32.cont [4/16] 0.0, 128
        %2968 = vxpose.xlu0.b32.cont [5/16] 0.0, 128
        %2969 = vxpose.xlu0.b32.cont [6/16] 0.0, 128
        %2970 = vxpose.xlu0.b32.cont [7/16] 0.0, 128
        %2971 = vxpose.xlu0.b32.cont [8/16] 0.0, 128
        %2972 = vxpose.xlu0.b32.cont [9/16] 0.0, 128
        %2973 = vxpose.xlu0.b32.cont [10/16] 0.0, 128
        %2974 = vxpose.xlu0.b32.cont [11/16] 0.0, 128
        %2975 = vxpose.xlu0.b32.cont [12/16] 0.0, 128
        %2976 = vxpose.xlu0.b32.cont [13/16] 0.0, 128
        %2977 = vxpose.xlu0.b32.cont [14/16] 0.0, 128
        %2978 = vxpose.xlu0.b32.cont [15/16] 0.0, 128
        %2979 = vxpose.xlu0.b32.end [16/16] 0.0, 128
        %v2980 = vpop.trf.xlu0
        %v2981 = vpop.trf.xlu0
        %v2982 = vpop.trf.xlu0
        %v2983 = vpop.trf.xlu0
        %v2984 = vpop.trf.xlu0
        %v2985 = vpop.trf.xlu0
        %v2986 = vpop.trf.xlu0
        %v2987 = vpop.trf.xlu0
        %v2988 = vpop.trf.xlu0
        %v2989 = vpop.trf.xlu0
        %v2990 = vpop.trf.xlu0
        %v2991 = vpop.trf.xlu0
        %v2992 = vpop.trf.xlu0
        %v2993 = vpop.trf.xlu0
        %v2994 = vpop.trf.xlu0
        %v2995 = vpop.trf.xlu0
        %2996 = vxpose.xlu0.b32.start [1/16] %v2895, 128
        %2997 = vxpose.xlu0.b32.cont [2/16] 0.0, 128
        %2998 = vxpose.xlu0.b32.cont [3/16] 0.0, 128
        %2999 = vxpose.xlu0.b32.cont [4/16] 0.0, 128
        %3000 = vxpose.xlu0.b32.cont [5/16] 0.0, 128
        %3001 = vxpose.xlu0.b32.cont [6/16] 0.0, 128
        %3002 = vxpose.xlu0.b32.cont [7/16] 0.0, 128
        %3003 = vxpose.xlu0.b32.cont [8/16] 0.0, 128
        %3004 = vxpose.xlu0.b32.cont [9/16] 0.0, 128
        %3005 = vxpose.xlu0.b32.cont [10/16] 0.0, 128
        %3006 = vxpose.xlu0.b32.cont [11/16] 0.0, 128
        %3007 = vxpose.xlu0.b32.cont [12/16] 0.0, 128
        %3008 = vxpose.xlu0.b32.cont [13/16] 0.0, 128
        %3009 = vxpose.xlu0.b32.cont [14/16] 0.0, 128
        %3010 = vxpose.xlu0.b32.cont [15/16] 0.0, 128
        %3011 = vxpose.xlu0.b32.end [16/16] 0.0, 128
        %v3012 = vpop.trf.xlu0
        %v3013 = vpop.trf.xlu0
        %v3014 = vpop.trf.xlu0
        %v3015 = vpop.trf.xlu0
        %v3016 = vpop.trf.xlu0
        %v3017 = vpop.trf.xlu0
        %v3018 = vpop.trf.xlu0
        %v3019 = vpop.trf.xlu0
        %v3020 = vpop.trf.xlu0
        %v3021 = vpop.trf.xlu0
        %v3022 = vpop.trf.xlu0
        %v3023 = vpop.trf.xlu0
        %v3024 = vpop.trf.xlu0
        %v3025 = vpop.trf.xlu0
        %v3026 = vpop.trf.xlu0
        %v3027 = vpop.trf.xlu0
        %v3028 = vcombine.low %v2916, %v2980
        %v3029 = vcombine.high %v2916, %v2980
        %v3031 = vunpack.c.l.s4 1983009808
        %v3032 = vunpack.c.0.s8 %v3031
        %v3033 = vlaneseq
        %v3034 = vshrl.u32 %v3033, 7
        %v3035 = vsub.s32 %v3032, %v3034
        %v3036 = vrot.slane %v3028, %v3035
        %v3038 = vunpack.c.l.s4 1983009808
        %v3039 = vunpack.c.0.s8 %v3038
        %v3040 = vlaneseq
        %v3041 = vshrl.u32 %v3040, 7
        %v3042 = vsub.s32 %v3039, %v3041
        %v3043 = vrot.slane %v3029, %v3042
        %v3044 = vcombine.low %v2948, %v3012
        %v3045 = vcombine.high %v2948, %v3012
        %v3047 = vunpack.c.l.s4 1983009808
        %v3048 = vunpack.c.0.s8 %v3047
        %v3049 = vlaneseq
        %v3050 = vshrl.u32 %v3049, 7
        %v3051 = vsub.s32 %v3048, %v3050
        %v3052 = vrot.slane %v3044, %v3051
        %v3054 = vunpack.c.l.s4 1983009808
        %v3055 = vunpack.c.0.s8 %v3054
        %v3056 = vlaneseq
        %v3057 = vshrl.u32 %v3056, 7
        %v3058 = vsub.s32 %v3055, %v3057
        %v3059 = vrot.slane %v3045, %v3058
        %v3060 = vcombine.low %v3036, %v3052
        %v3061 = vcombine.high %v3036, %v3052
        %v3063 = vunpack.c.l.s4 1934713408
        %v3064 = vunpack.c.0.s8 %v3063
        %v3065 = vlaneseq
        %v3066 = vshrl.u32 %v3065, 7
        %v3067 = vsub.s32 %v3064, %v3066
        %v3068 = vrot.slane %v3060, %v3067
        %v3070 = vunpack.c.l.s4 1934713408
        %v3071 = vunpack.c.0.s8 %v3070
        %v3072 = vlaneseq
        %v3073 = vshrl.u32 %v3072, 7
        %v3074 = vsub.s32 %v3071, %v3073
        %v3075 = vrot.slane %v3061, %v3074
        %v3076 = vcombine.low %v3043, %v3059
        %v3077 = vcombine.high %v3043, %v3059
        %v3079 = vunpack.c.l.s4 1934713408
        %v3080 = vunpack.c.0.s8 %v3079
        %v3081 = vlaneseq
        %v3082 = vshrl.u32 %v3081, 7
        %v3083 = vsub.s32 %v3080, %v3082
        %v3084 = vrot.slane %v3076, %v3083
        %v3086 = vunpack.c.l.s4 1934713408
        %v3087 = vunpack.c.0.s8 %v3086
        %v3088 = vlaneseq
        %v3089 = vshrl.u32 %v3088, 7
        %v3090 = vsub.s32 %v3087, %v3089
        %v3091 = vrot.slane %v3077, %v3090
        %v3092 = vcombine.high %v3068, 0.0
        %v3093 = vcombine.high %v3075, 0.0
        %v3094 = vcombine.high %v3084, 0.0
        %v3095 = vcombine.high %v3091, 0.0
        %v3096 = vcombine.low %v3068, %v3075
        %v3098 = vunpack.c.l.s4 1983009808
        %v3099 = vunpack.c.0.s8 %v3098
        %v3100 = vlaneseq
        %v3101 = vshrl.u32 %v3100, 7
        %v3102 = vsub.s32 %v3099, %v3101
        %v3103 = vrot.slane %v3096, %v3102
        %v3104 = vcombine.low %v3092, %v3093
        %v3106 = vunpack.c.l.s4 1983009808
        %v3107 = vunpack.c.0.s8 %v3106
        %v3108 = vlaneseq
        %v3109 = vshrl.u32 %v3108, 7
        %v3110 = vsub.s32 %v3107, %v3109
        %v3111 = vrot.slane %v3104, %v3110
        %v3112 = vcombine.low %v3084, %v3091
        %v3114 = vunpack.c.l.s4 1983009808
        %v3115 = vunpack.c.0.s8 %v3114
        %v3116 = vlaneseq
        %v3117 = vshrl.u32 %v3116, 7
        %v3118 = vsub.s32 %v3115, %v3117
        %v3119 = vrot.slane %v3112, %v3118
        %v3120 = vcombine.low %v3094, %v3095
        %v3122 = vunpack.c.l.s4 1983009808
        %v3123 = vunpack.c.0.s8 %v3122
        %v3124 = vlaneseq
        %v3125 = vshrl.u32 %v3124, 7
        %v3126 = vsub.s32 %v3123, %v3125
        %v3127 = vrot.slane %v3120, %v3126
        %v3128 = vcombine.low %v3103, %v3111
        %v3129 = vcombine.high %v3103, %v3111
        %v3131 = vunpack.c.l.s4 1934713408
        %v3132 = vunpack.c.0.s8 %v3131
        %v3133 = vlaneseq
        %v3134 = vshrl.u32 %v3133, 7
        %v3135 = vsub.s32 %v3132, %v3134
        %v3136 = vrot.slane %v3128, %v3135
        %v3138 = vunpack.c.l.s4 1934713408
        %v3139 = vunpack.c.0.s8 %v3138
        %v3140 = vlaneseq
        %v3141 = vshrl.u32 %v3140, 7
        %v3142 = vsub.s32 %v3139, %v3141
        %v3143 = vrot.slane %v3129, %v3142
        %v3144 = vcombine.low %v3119, %v3127
        %v3145 = vcombine.high %v3119, %v3127
        %v3147 = vunpack.c.l.s4 1934713408
        %v3148 = vunpack.c.0.s8 %v3147
        %v3149 = vlaneseq
        %v3150 = vshrl.u32 %v3149, 7
        %v3151 = vsub.s32 %v3148, %v3150
        %v3152 = vrot.slane %v3144, %v3151
        %v3154 = vunpack.c.l.s4 1934713408
        %v3155 = vunpack.c.0.s8 %v3154
        %v3156 = vlaneseq
        %v3157 = vshrl.u32 %v3156, 7
        %v3158 = vsub.s32 %v3155, %v3157
        %v3159 = vrot.slane %v3145, %v3158
        %v3160 = vcombine.low %v3136, %v3152
        %v3161 = vcombine.high %v3136, %v3152
        %v3162 = vcombine.low %v3143, %v3159
        %v3163 = vcombine.high %v3143, %v3159
        %3165 = vrot.lane.b32.xlu0 %v3161, 8
        %v3166 = vpop.permute.xlu0 %3165
        %3169 = vrot.lane.b32.xlu0 %v3162, 16
        %v3170 = vpop.permute.xlu0 %3169
        %3173 = vrot.lane.b32.xlu0 %v3163, 24
        %v3174 = vpop.permute.xlu0 %3173
        %v3176 = vsel %vm1252, %v3160, %v3166
        %v3177 = vsel %vm2016, %v3176, %v3170
        %v3178 = vsel %vm2018, %v3177, %v3174
        %v3179 = vpack.c.bf16 %v3178, %v3178
        %s3180 = scalar_lea.vmem [#allocation9], 48
        %v3181 = vld [vmem:[%s3180] sm:$0xf]
        %v3182 = vld [vmem:[%s3180 + $0x4] sm:$0xf]
        %v3183 = vld [vmem:[%s3180 + $0x8] sm:$0xf]
        %v3184 = vld [vmem:[%s3180 + $0xc] sm:$0xf]
        %v3185 = vld [vmem:[%s7 + $0x3] sm:$0x1]
        %v3186 = vlaneseq
        %v3187 = vshrl.u32 %v3186, 7
        %v3188 = vsub.s32 0, %v3187
        %v3189 = vrot.slane %v3185, %v3188
        %v3194 = vunpack.c.l.b16 %v3181
        %v3195 = vunpack.c.l.b16 %v3182
        %v3196 = vunpack.c.l.b16 %v3183
        %v3197 = vunpack.c.l.b16 %v3184
        %v3198 = vpack.c.b16 %v3195, %v3194
        %v3199 = vpack.c.b16 %v3197, %v3196
        %v3203 = vsel %vm973, %v3179, 0
        %3205 = vmatprep.subr.bf16.mxu0 0
        %3206 = vmatpush1.bf16.msra.mxu0 0
        %3207 = vmatprep.subr.bf16.mxu0 0
        %3208 = vmatpush1.bf16.msra.mxu0 0
        %3209 = vmatprep.subr.bf16.mxu0 0
        %3210 = vmatpush1.bf16.msra.mxu0 0
        %3211 = vmatprep.subr.bf16.mxu0 0
        %3212 = vmatpush1.bf16.msra.mxu0 0
        %3213 = vmatprep.subr.bf16.mxu0 0
        %3214 = vmatpush1.bf16.msra.mxu0 0
        %3215 = vmatprep.subr.bf16.mxu0 0
        %3216 = vmatpush1.bf16.msra.mxu0 0
        %3217 = vmatprep.subr.bf16.mxu0 0
        %3218 = vmatpush1.bf16.msra.mxu0 %v3199
        %3219 = vmatprep.subr.bf16.mxu0 0
        %3220 = vmatpush1.bf16.msra.mxu0 %v3198
        %3221 = vmatprep.subr.bf16.mxu0 0
        %3222 = vmatpush2.bf16.msra.mxu0 0
        %3223 = vmatprep.subr.bf16.mxu0 0
        %3224 = vmatpush2.bf16.msra.mxu0 0
        %3225 = vmatprep.subr.bf16.mxu0 0
        %3226 = vmatpush2.bf16.msra.mxu0 0
        %3227 = vmatprep.subr.bf16.mxu0 0
        %3228 = vmatpush2.bf16.msra.mxu0 0
        %3229 = vmatprep.subr.bf16.mxu0 0
        %3230 = vmatpush2.bf16.msra.mxu0 0
        %3231 = vmatprep.subr.bf16.mxu0 0
        %3232 = vmatpush2.bf16.msra.mxu0 0
        %3233 = vmatprep.subr.bf16.mxu0 0
        %3234 = vmatpush2.bf16.msra.mxu0 0
        %3235 = vmatprep.subr.bf16.mxu0 0
        %3236 = vmatpush2.bf16.msra.mxu0 0
        %3237 = vmatprep.mubr.bf16.mxu0 0
        %3238 = vmatmul.mubr.bf16.gmra.mxu0 %v3203
        %v3239 = vpop.f32.mrf.mxu0
        %v3240 = vadd.f32 %v3189, %v3239
        %v3241 = vpop.f32.mrf.mxu0
        %v3242 = vpop.f32.mrf.mxu0
        %v3243 = vpop.f32.mrf.mxu0
        %3244 = vdwg.mxu0
        %v3245 = vadd.f32 %v2111, %v3240
        %v3246 = vsel %vm973, %v3245, 0.0
        %3247 = vadd.xlane.f32.xlu0 %v3246
        %v3248 = vpop.xlane.xlu0 %3247
        %v3249 = vmul.f32 %v3248, %v2091
        %v3250 = vsub.f32 %v3245, %v3249
        %v3251 = vmul.f32 %v3250, %v3250
        %v3252 = vsel %vm973, %v3251, 0.0
        %3253 = vadd.xlane.f32.xlu0 %v3252
        %v3254 = vpop.xlane.xlu0 %3253
        %v3255 = vmul.f32 %v3254, %v2091
        %v3256 = vadd.f32 %v3255, 1e-06
        %v3257 = vrsqrt.pop %v3256
        %v3258 = vmul.f32 %v3250, %v3257
        %v3259 = vlaneseq
        %v3260 = vshrl.u32 %v3259, 7
        %v3261 = vsub.s32 1, %v3260
        %v3262 = vrot.slane %v950, %v3261
        %v3263 = vmul.f32 %v3258, %v3262
        %v3264 = vlaneseq
        %v3265 = vshrl.u32 %v3264, 7
        %v3266 = vsub.s32 1, %v3265
        %v3267 = vrot.slane %v951, %v3266
        %v3268 = vadd.f32 %v3263, %v3267
        %v3269 = vpack.c.bf16 %v3268, %v3268
        %v3270 = vld [vmem:[%s8] sm:$0xf]
        %v3271 = vld [vmem:[%s8 + $0x4] sm:$0xf]
        %v3272 = vld [vmem:[%s8 + $0x8] sm:$0xf]
        %v3273 = vld [vmem:[%s8 + $0xc] sm:$0xf]
        %v3274 = vld [vmem:[#allocation11] sm:$0x1]
        %v3276 = vlaneseq
        %v3277 = vshrl.u32 %v3276, 7
        %v3278 = vsub.s32 0, %v3277
        %v3279 = vrot.slane %v3274, %v3278
        %v3285 = vunpack.c.l.b16 %v3270
        %v3286 = vunpack.c.l.b16 %v3271
        %v3287 = vunpack.c.l.b16 %v3272
        %v3288 = vunpack.c.l.b16 %v3273
        %v3289 = vpack.c.b16 %v3286, %v3285
        %v3290 = vpack.c.b16 %v3288, %v3287
        %v3294 = vsel %vm973, %v3269, 0
        %3296 = vmatprep.subr.bf16.mxu0 0
        %3297 = vmatpush1.bf16.msra.mxu0 0
        %3298 = vmatprep.subr.bf16.mxu0 0
        %3299 = vmatpush1.bf16.msra.mxu0 0
        %3300 = vmatprep.subr.bf16.mxu0 0
        %3301 = vmatpush1.bf16.msra.mxu0 0
        %3302 = vmatprep.subr.bf16.mxu0 0
        %3303 = vmatpush1.bf16.msra.mxu0 0
        %3304 = vmatprep.subr.bf16.mxu0 0
        %3305 = vmatpush1.bf16.msra.mxu0 0
        %3306 = vmatprep.subr.bf16.mxu0 0
        %3307 = vmatpush1.bf16.msra.mxu0 0
        %3308 = vmatprep.subr.bf16.mxu0 0
        %3309 = vmatpush1.bf16.msra.mxu0 %v3290
        %3310 = vmatprep.subr.bf16.mxu0 0
        %3311 = vmatpush1.bf16.msra.mxu0 %v3289
        %3312 = vmatprep.subr.bf16.mxu0 0
        %3313 = vmatpush2.bf16.msra.mxu0 0
        %3314 = vmatprep.subr.bf16.mxu0 0
        %3315 = vmatpush2.bf16.msra.mxu0 0
        %3316 = vmatprep.subr.bf16.mxu0 0
        %3317 = vmatpush2.bf16.msra.mxu0 0
        %3318 = vmatprep.subr.bf16.mxu0 0
        %3319 = vmatpush2.bf16.msra.mxu0 0
        %3320 = vmatprep.subr.bf16.mxu0 0
        %3321 = vmatpush2.bf16.msra.mxu0 0
        %3322 = vmatprep.subr.bf16.mxu0 0
        %3323 = vmatpush2.bf16.msra.mxu0 0
        %3324 = vmatprep.subr.bf16.mxu0 0
        %3325 = vmatpush2.bf16.msra.mxu0 0
        %3326 = vmatprep.subr.bf16.mxu0 0
        %3327 = vmatpush2.bf16.msra.mxu0 0
        %3328 = vmatprep.mubr.bf16.mxu0 0
        %3329 = vmatmul.mubr.bf16.gmra.mxu0 %v3294
        %v3330 = vpop.f32.mrf.mxu0
        %v3331 = vadd.f32 %v3279, %v3330
        %v3332 = vpop.f32.mrf.mxu0
        %v3333 = vpop.f32.mrf.mxu0
        %v3334 = vpop.f32.mrf.mxu0
        %3335 = vdwg.mxu0
        %v3336 = vmax.f32 %v3331, 0.0
        %v3337 = vpack.c.bf16 %v3336, %v3336
        %v3338 = vld [vmem:[%s10] sm:$0xf]
        %v3339 = vld [vmem:[%s10 + $0x4] sm:$0xf]
        %v3340 = vld [vmem:[%s10 + $0x8] sm:$0xf]
        %v3341 = vld [vmem:[%s10 + $0xc] sm:$0xf]
        %v3342 = vld [vmem:[%s10 + $0x10] sm:$0xf]
        %v3343 = vld [vmem:[%s10 + $0x14] sm:$0xf]
        %v3344 = vld [vmem:[%s10 + $0x18] sm:$0xf]
        %v3345 = vld [vmem:[%s10 + $0x1c] sm:$0xf]
        %v3346 = vld [vmem:[#allocation12] sm:$0x1]
        %v3348 = vlaneseq
        %v3349 = vshrl.u32 %v3348, 7
        %v3350 = vsub.s32 0, %v3349
        %v3351 = vrot.slane %v3346, %v3350
        %v3361 = vunpack.c.l.b16 %v3338
        %v3362 = vunpack.c.l.b16 %v3339
        %v3363 = vunpack.c.l.b16 %v3340
        %v3364 = vunpack.c.l.b16 %v3341
        %v3365 = vunpack.c.l.b16 %v3342
        %v3366 = vunpack.c.l.b16 %v3343
        %v3367 = vunpack.c.l.b16 %v3344
        %v3368 = vunpack.c.l.b16 %v3345
        %v3369 = vpack.c.b16 %v3362, %v3361
        %v3370 = vpack.c.b16 %v3364, %v3363
        %v3371 = vpack.c.b16 %v3366, %v3365
        %v3372 = vpack.c.b16 %v3368, %v3367
        %vm3377 = vcmask 523264
        %v3379 = vsel %vm3377, %v3337, 0
        %3381 = vmatprep.subr.bf16.mxu0 0
        %3382 = vmatpush1.bf16.msra.mxu0 0
        %3383 = vmatprep.subr.bf16.mxu0 0
        %3384 = vmatpush1.bf16.msra.mxu0 0
        %3385 = vmatprep.subr.bf16.mxu0 0
        %3386 = vmatpush1.bf16.msra.mxu0 0
        %3387 = vmatprep.subr.bf16.mxu0 0
        %3388 = vmatpush1.bf16.msra.mxu0 0
        %3389 = vmatprep.subr.bf16.mxu0 0
        %3390 = vmatpush1.bf16.msra.mxu0 %v3372
        %3391 = vmatprep.subr.bf16.mxu0 0
        %3392 = vmatpush1.bf16.msra.mxu0 %v3371
        %3393 = vmatprep.subr.bf16.mxu0 0
        %3394 = vmatpush1.bf16.msra.mxu0 %v3370
        %3395 = vmatprep.subr.bf16.mxu0 0
        %3396 = vmatpush1.bf16.msra.mxu0 %v3369
        %3397 = vmatprep.subr.bf16.mxu0 0
        %3398 = vmatpush2.bf16.msra.mxu0 0
        %3399 = vmatprep.subr.bf16.mxu0 0
        %3400 = vmatpush2.bf16.msra.mxu0 0
        %3401 = vmatprep.subr.bf16.mxu0 0
        %3402 = vmatpush2.bf16.msra.mxu0 0
        %3403 = vmatprep.subr.bf16.mxu0 0
        %3404 = vmatpush2.bf16.msra.mxu0 0
        %3405 = vmatprep.subr.bf16.mxu0 0
        %3406 = vmatpush2.bf16.msra.mxu0 0
        %3407 = vmatprep.subr.bf16.mxu0 0
        %3408 = vmatpush2.bf16.msra.mxu0 0
        %3409 = vmatprep.subr.bf16.mxu0 0
        %3410 = vmatpush2.bf16.msra.mxu0 0
        %3411 = vmatprep.subr.bf16.mxu0 0
        %3412 = vmatpush2.bf16.msra.mxu0 0
        %3413 = vmatprep.mubr.bf16.mxu0 0
        %3414 = vmatmul.mubr.bf16.gmra.mxu0 %v3379
        %v3415 = vpop.f32.mrf.mxu0
        %v3416 = vadd.f32 %v3351, %v3415
        %v3417 = vpop.f32.mrf.mxu0
        %v3418 = vpop.f32.mrf.mxu0
        %v3419 = vpop.f32.mrf.mxu0
        %3420 = vdwg.mxu0
        %v3421 = vadd.f32 %v3268, %v3416
        %v3422 = vsel %vm973, %v3421, 0.0
        %3423 = vadd.xlane.f32.xlu0 %v3422
        %v3424 = vpop.xlane.xlu0 %3423
        %v3425 = vmul.f32 %v3424, %v2091
        %v3426 = vsub.f32 %v3421, %v3425
        %v3427 = vmul.f32 %v3426, %v3426
        %v3428 = vsel %vm973, %v3427, 0.0
        %3429 = vadd.xlane.f32.xlu0 %v3428
        %v3430 = vpop.xlane.xlu0 %3429
        %v3431 = vmul.f32 %v3430, %v2091
        %v3432 = vadd.f32 %v3431, 1e-06
        %v3433 = vrsqrt.pop %v3432
        %v3434 = vmul.f32 %v3426, %v3433
        %v3435 = vlaneseq
        %v3436 = vshrl.u32 %v3435, 7
        %v3437 = vsub.s32 2, %v3436
        %v3438 = vrot.slane %v950, %v3437
        %v3439 = vmul.f32 %v3434, %v3438
        %v3440 = vlaneseq
        %v3441 = vshrl.u32 %v3440, 7
        %v3442 = vsub.s32 2, %v3441
        %v3443 = vrot.slane %v951, %v3442
        %v3444 = vadd.f32 %v3439, %v3443
        %3445 = vst.msk [vmem:[%s634] sm:$0xff] %vm973, %v3444
        %s3446 = sand.u32 %s375, 1
        %s3447 = scalar_lea.sflag [#allocation8], %s3446
        %s3448 = sand.u32 %s375, 1
        %s3449 = smul.addr %s3448, 8
        %s3450 = scalar_lea.vmem [#allocation14], %s3449
        %s3451 = sand.u32 %s37, 1
        %s3452 = scalar_lea.sflag [#allocation16], %s3451
        %s3453 = sand.u32 %s403, 1
        %s3454 = smul.addr %s3453, 16
        %s3455 = scalar_lea.vmem [#allocation15], %s3454
        %s3456 = sand.u32 %s37, 1
        %s3457 = scalar_lea.sflag [#allocation16], %s3456
        %s3458 = sand.u32 %s431, 1
        %s3459 = smul.addr %s3458, 16
        %s3460 = scalar_lea.vmem [#allocation17], %s3459
        // Predicated region
        $region97: #{tpu_custom_call.1} parent=75 // pred_check
          %p3461 = pneg %p385
        $region98: #{tpu_custom_call.1} parent=75 // pred_check_branch
          %3463 = sbr.rel (%p3461) target = $region100
        $region99: #{tpu_custom_call.1} parent=75 // pred_region
          %s3465 = ssub.s32 128, 128
          %3466 = vsyncadd %s3447, %s3465
          %s3467 = sadd.s32 %s42, %s41
          %s3468 = smul.addr %s3467, 128
          %s3469 = scalar_lea.hbm %s14, %s3468
          %s3471 = sshll.u32 %s3450, 4
          %s3472 = int_to_ptr.vmem [resolvable:$true] %s3471
          %3474 = dma.vmem_to_hbm [thread:$0]  %s3472, 128, %s3469, %s3447
        $region100: #{tpu_custom_call.1} parent=75 // pred_fallthru
          _
        // Predicated region
        $region101: #{tpu_custom_call.1} parent=75 // pred_check
          %p3475 = pneg %p413
        $region102: #{tpu_custom_call.1} parent=75 // pred_check_branch
          %3477 = sbr.rel (%p3475) target = $region104
        $region103: #{tpu_custom_call.1} parent=75 // pred_region
          %s3479 = ssub.s32 256, 256
          %3480 = vsyncadd %s3452, %s3479
          %s3481 = smul.addr %s41, 4
          %s3482 = sadd.s32 %s42, %s3481
          %s3483 = smul.addr %s3482, 64
          %s3484 = scalar_lea.hbm %s15, %s3483
          %s3485 = sshll.u32 %s3455, 4
          %s3486 = int_to_ptr.vmem [resolvable:$true] %s3485
          %3491 = dma.vmem_to_hbm [thread:$0]  %s3486, 256, %s3484, %s3452, 64, 64, 4
        $region104: #{tpu_custom_call.1} parent=75 // pred_fallthru
          _
        // Predicated region
        $region105: #{tpu_custom_call.1} parent=75 // pred_check
          %p3492 = pneg %p441
        $region106: #{tpu_custom_call.1} parent=75 // pred_check_branch
          %3494 = sbr.rel (%p3492) target = $region108
        $region107: #{tpu_custom_call.1} parent=75 // pred_region
          %s3496 = ssub.s32 256, 256
          %3497 = vsyncadd %s3457, %s3496
          %s3498 = smul.addr %s41, 4
          %s3499 = sadd.s32 %s42, %s3498
          %s3500 = smul.addr %s3499, 64
          %s3501 = scalar_lea.hbm %s16, %s3500
          %s3502 = sshll.u32 %s3460, 4
          %s3503 = int_to_ptr.vmem [resolvable:$true] %s3502
          %3508 = dma.vmem_to_hbm [thread:$0]  %s3503, 256, %s3501, %s3457, 64, 64, 4
        $region108: #{tpu_custom_call.1} parent=75 // pred_fallthru
          _
      $region76: #{tpu_custom_call.1} parent=5 // pred_fallthru
        _
      %p3509 = scmp.le.s32.totalorder 2, %s32
      // Predicated region
      $region109: #{tpu_custom_call.1} parent=5 // pred_check
        %p3510 = pneg %p3509
      $region110: #{tpu_custom_call.1} parent=5 // pred_check_branch
        %3512 = sbr.rel (%p3510) target = $region112
      $region111: #{tpu_custom_call.1} parent=5 // pred_region
        %s3513 = ssub.s32 %s32, 2
        // Predicated region
        $region113: #{tpu_custom_call.1} parent=111 // pred_check
          %p3514 = pneg %p391
        $region114: #{tpu_custom_call.1} parent=111 // pred_check_branch
          %3516 = sbr.rel (%p3514) target = $region116
        $region115: #{tpu_custom_call.1} parent=111 // pred_region
          %s3517 = sand.u32 %s376, 1
          %s3518 = scalar_lea.sflag [#allocation8], %s3517
          %s3519 = sand.u32 %s376, 1
          %s3520 = smul.addr %s3519, 8
          %s3521 = scalar_lea.vmem [#allocation14], %s3520
          %3522 = dma.done %s3518, 128
        $region116: #{tpu_custom_call.1} parent=111 // pred_fallthru
          _
        // Predicated region
        $region117: #{tpu_custom_call.1} parent=111 // pred_check
          %p3523 = pneg %p419
        $region118: #{tpu_custom_call.1} parent=111 // pred_check_branch
          %3525 = sbr.rel (%p3523) target = $region120
        $region119: #{tpu_custom_call.1} parent=111 // pred_region
          %s3526 = sand.u32 %s38, 1
          %s3527 = scalar_lea.sflag [#allocation16], %s3526
          %s3528 = sand.u32 %s404, 1
          %s3529 = smul.addr %s3528, 16
          %s3530 = scalar_lea.vmem [#allocation15], %s3529
          %3531 = dma.done %s3527, 256
        $region120: #{tpu_custom_call.1} parent=111 // pred_fallthru
          _
        // Predicated region
        $region121: #{tpu_custom_call.1} parent=111 // pred_check
          %p3532 = pneg %p447
        $region122: #{tpu_custom_call.1} parent=111 // pred_check_branch
          %3534 = sbr.rel (%p3532) target = $region124
        $region123: #{tpu_custom_call.1} parent=111 // pred_region
          %s3535 = sand.u32 %s38, 1
          %s3536 = scalar_lea.sflag [#allocation16], %s3535
          %s3537 = sand.u32 %s432, 1
          %s3538 = smul.addr %s3537, 16
          %s3539 = scalar_lea.vmem [#allocation17], %s3538
          %3540 = dma.done %s3536, 256
        $region124: #{tpu_custom_call.1} parent=111 // pred_fallthru
          _
      $region112: #{tpu_custom_call.1} parent=5 // pred_fallthru
        _
    $region6: #{tpu_custom_call.1} parent=1 // loop_footer
      %s36 = sadd.s32 1, %s32
    $region7: #{tpu_custom_call.1} parent=1 // loop_footer_branch
      %31 = sbr.rel target = $region3
    $region8: #{tpu_custom_call.1} parent=1 // loop_exit
      _
    %3541 = vsyncpa [#allocation7], 1
    %s3542 = scalar_lea.sflag [#allocation7], 1
    %3543 = vsyncpa %s3542, 1
    %3544 = vsyncpa [#allocation10], 1
    %3545 = vsyncpa [#allocation13], 1
    %3546 = vsyncpa [#allocation8], 1
    %s3547 = scalar_lea.sflag [#allocation8], 1
    %3548 = vsyncpa %s3547, 1
    %3549 = vsyncpa [#allocation16], 1
    %s3550 = scalar_lea.sflag [#allocation16], 1
    %3551 = vsyncpa %s3550, 1

// kernel: tpu_custom_call.1
$region0: #{tpu_custom_call.1}
  #allocation0 [shape = 'u32[]', space=smem, size = 0x4, offset = 0x4, fixed_abs, tag = 'smem constant byte address 0x4 - core index']
  #allocation1 [shape = 'u32[144,128]{1,0:T(1,128)}', space=vmem, size = 0x12000, scoped, tag = 'internal scratch']
  #allocation2 [shape = 'bf16[8,32]{1,0:T(8,128)(2,1)}', space=vmem, size = 0x800, scoped, tag = 'scratch operand']
  #allocation3 [shape = 'bf16[8,32]{1,0:T(8,128)(2,1)}', space=vmem, size = 0x800, scoped, tag = 'scratch operand']
  #allocation4 [shape = 'bf16[8,32]{1,0:T(8,128)(2,1)}', space=vmem, size = 0x800, scoped, tag = 'scratch operand']
  #allocation5 [shape = 'bf16[8,32]{1,0:T(8,128)(2,1)}', space=vmem, size = 0x800, scoped, tag = 'scratch operand']
  %s0 = inlined_call_operand.vmem [shape: bf16[2,8,32], index: 0, kind: input, shape index: {}]
  %s1 = inlined_call_operand.vmem [shape: bf16[2,8,32], index: 1, kind: input, shape index: {}]
  %s2 = inlined_call_operand.vmem [shape: bf16[2,1,8,8], index: 2, kind: input, shape index: {}]
  %s3 = inlined_call_operand.vmem [shape: bf16[2,1,1,8], index: 3, kind: input, shape index: {}]
  %s4 = inlined_call_operand.hbm [shape: bf16[4,32,32], index: 4, kind: input, shape index: {}]
  %s5 = inlined_call_operand.vmem [shape: f32[4,32], index: 5, kind: input, shape index: {}]
  %s6 = inlined_call_operand.hbm [shape: bf16[4,32,32], index: 6, kind: input, shape index: {}]
  %s7 = inlined_call_operand.vmem [shape: f32[4,32], index: 7, kind: input, shape index: {}]
  %s8 = inlined_call_operand.vmem [shape: bf16[32,64], index: 8, kind: input, shape index: {}]
  %s9 = inlined_call_operand.hbm [shape: f32[1,64], index: 9, kind: input, shape index: {}]
  %s10 = inlined_call_operand.vmem [shape: bf16[64,32], index: 10, kind: input, shape index: {}]
  %s11 = inlined_call_operand.hbm [shape: f32[1,32], index: 11, kind: input, shape index: {}]
  %s12 = inlined_call_operand.vmem [shape: f32[3,32], index: 12, kind: input, shape index: {}]
  %s13 = inlined_call_operand.vmem [shape: f32[3,32], index: 13, kind: input, shape index: {}]
  %s14 = inlined_call_operand.hbm [shape: f32[2,8,32], index: 14, kind: output, shape index: {0}]
  %s15 = inlined_call_operand.hbm [shape: bf16[2,4,8,8], index: 15, kind: output, shape index: {1}]
  %s16 = inlined_call_operand.hbm [shape: bf16[2,4,8,8], index: 16, kind: output, shape index: {2}]
  %17 = xla_tuple %s14, %s15, %s16
  %s18 = sld [smem:[#allocation0]]
  $region125: #{tpu_custom_call.1} parent=0
    _
  %s20 = ssub.s32 1, %s18
  %s21 = scalar_select 0, %s20, %s18
  $region1: #{tpu_custom_call.1} parent=0
    #allocation6 [shape = 'u8[32768]{0}', space=vmem, size = 0x8000, scoped, tag = 'input window, operand 4, single buffered']
    #allocation7 [shape = 's32[2]{0}', space=sflag, size = 0x8, scoped, tag = 'scoped memory for tpu_custom_call.1']
    #allocation8 [shape = 's32[2]{0}', space=sflag, size = 0x8, scoped, tag = 'scoped memory for tpu_custom_call.1']
    #allocation9 [shape = 'u8[32768]{0}', space=vmem, size = 0x8000, scoped, tag = 'input window, operand 6, single buffered']
    #allocation10 [shape = 's32[1]{0}', space=sflag, size = 0x4, scoped, tag = 'scoped memory for tpu_custom_call.1']
    #allocation11 [shape = 'u8[512]{0}', space=vmem, size = 0x400, scoped, tag = 'input window, operand 9, single buffered']
    #allocation12 [shape = 'u8[512]{0}', space=vmem, size = 0x400, scoped, tag = 'input window, operand 11, single buffered']
    #allocation13 [shape = 's32[1]{0}', space=sflag, size = 0x4, scoped, tag = 'scoped memory for tpu_custom_call.1']
    #allocation14 [shape = 'u8[8192]{0}', space=vmem, size = 0x2000, scoped, tag = 'output window, operand 0']
    #allocation15 [shape = 'u8[16384]{0}', space=vmem, size = 0x4000, scoped, tag = 'output window, operand 1']
    #allocation16 [shape = 's32[2]{0}', space=sflag, size = 0x8, scoped, tag = 'scoped memory for tpu_custom_call.1']
    #allocation17 [shape = 'u8[16384]{0}', space=vmem, size = 0x4000, scoped, tag = 'output window, operand 2']
    %22 = vsyncpa [#allocation7], 0
    %23 = vsyncpa [#allocation10], 0
    %24 = vsyncpa [#allocation13], 0
    %25 = vsyncpa [#allocation8], 0
    %s26 = scalar_lea.sflag [#allocation8], 1
    %27 = vsyncpa %s26, 0
    %28 = vsyncpa [#allocation16], 0
    %s29 = scalar_lea.sflag [#allocation16], 1
    %30 = vsyncpa %s29, 0
    loop: start=0, step=1, limit=4
    $region2: #{tpu_custom_call.1} parent=1 // loop_pre_header
      _
    $region3: #{tpu_custom_call.1} parent=1 // loop_header
      %s32 = sphi 0, %s36
      %p33 = scmp.ge.s32.totalorder %s32, 4
      %s39 = sphi 0, %s51
      %s40 = sphi 0, %s47
      %s41 = sphi 0, %s39
      %s42 = sphi 0, %s40
      %s43 = sphi 0, %s41
      %s44 = sphi 0, %s42
      %s54 = sphi 0, %s56
      %s57 = sphi 0, %s54
      %s58 = sphi 0, %s57
      %s74 = sphi 0, %s58
      %s80 = sphi 0, %s82
      %s83 = sphi 0, %s80
      %s84 = sphi 0, %s83
      %s100 = sphi 0, %s84
      %s108 = sphi 0, %s110
      %s111 = sphi 0, %s108
      %s112 = sphi 0, %s111
      %s128 = sphi 0, %s112
      %s134 = sphi 0, %s136
      %s137 = sphi 0, %s134
      %s138 = sphi 0, %s137
      %s154 = sphi 0, %s138
      %s158 = sphi 0, %s158
      %s160 = sphi 0, %s158
      %s161 = sphi 0, %s160
      %s175 = sphi 0, %s161
      %s179 = sphi 0, %s179
      %s181 = sphi 0, %s179
      %s182 = sphi 0, %s181
      %s196 = sphi 0, %s182
      %s200 = sphi 0, %s200
      %s202 = sphi 0, %s200
      %s203 = sphi 0, %s202
      %s217 = sphi 0, %s203
      %s221 = sphi 0, %s221
      %s223 = sphi 0, %s221
      %s224 = sphi 0, %s223
      %s238 = sphi 0, %s224
      %s242 = sphi 0, %s242
      %s244 = sphi 0, %s242
      %s245 = sphi 0, %s244
      %s259 = sphi 0, %s245
      %s263 = sphi 0, %s263
      %s265 = sphi 0, %s263
      %s266 = sphi 0, %s265
      %s280 = sphi 0, %s266
      %s284 = sphi 0, %s284
      %s286 = sphi 0, %s284
      %s287 = sphi 0, %s286
      %s301 = sphi 0, %s287
      %s305 = sphi 0, %s305
      %s307 = sphi 0, %s305
      %s308 = sphi 0, %s307
      %s322 = sphi 0, %s308
      %s326 = sphi 0, %s326
      %s328 = sphi 0, %s326
      %s329 = sphi 0, %s328
      %s343 = sphi 0, %s329
      %s347 = sphi 0, %s347
      %s349 = sphi 0, %s347
      %s350 = sphi 0, %s349
      %s364 = sphi 0, %s350
      %s372 = sphi 0, %s374
      %s375 = sphi 0, %s372
      %s376 = sphi 0, %s375
      %s392 = sphi 0, %s376
      %s400 = sphi 0, %s402
      %s403 = sphi 0, %s400
      %s404 = sphi 0, %s403
      %s420 = sphi 0, %s404
      %s428 = sphi 0, %s430
      %s431 = sphi 0, %s428
      %s432 = sphi 0, %s431
      %s448 = sphi 0, %s432
    $region4: #{tpu_custom_call.1} parent=1 // loop_header_branch
      %35 = sbr.rel (%p33) target = $region8
    $region5: #{tpu_custom_call.1} parent=1 // loop_body
      %s37 = ssub.s32 %s32, 1
      %s38 = ssub.s32 %s32, 2
      %s45 = sadd.s32 1, %s40
      %p46 = scmp.ge.s32.totalorder %s45, 1
      %s47 = scalar_select %p46, 0, %s45
      %s48 = sadd.s32 1, %s39
      %s49 = scalar_select %p46, %s48, %s39
      %p50 = scmp.ge.s32.totalorder %s49, 2
      %s51 = scalar_select %p50, 0, %s49
      %s52 = ssub.s32 %s39, %s51
      %p53 = scmp.eq.s32.totalorder %s52, 0
      %s55 = sadd.s32 %s54, 1
      %s56 = scalar_select %p53, %s54, %s55
      %p59 = pneg %p53
      %p60 = scmp.eq.s32.totalorder %s32, 1
      %p61 = por %p59, %p60
      %p62 = scmp.ne.s32.totalorder %s54, %s57
      %p63 = scmp.eq.s32.totalorder %s32, 0
      %p64 = por %p62, %p63
      %p65 = scmp.ne.s32.totalorder %s54, %s57
      %p66 = scmp.eq.s32.totalorder %s37, 1
      %p67 = por %p65, %p66
      %p68 = scmp.ne.s32.totalorder %s57, %s58
      %p69 = scmp.eq.s32.totalorder %s37, 0
      %p70 = por %p68, %p69
      %p71 = scmp.ne.s32.totalorder %s57, %s58
      %p72 = scmp.eq.s32.totalorder %s38, 1
      %p73 = por %p71, %p72
      %p75 = scmp.ne.s32.totalorder %s58, %s74
      %p76 = scmp.eq.s32.totalorder %s38, 0
      %p77 = por %p75, %p76
      %s78 = ssub.s32 %s39, %s51
      %p79 = scmp.eq.s32.totalorder %s78, 0
      %s81 = sadd.s32 %s80, 1
      %s82 = scalar_select %p79, %s80, %s81
      %p85 = pneg %p79
      %p86 = scmp.eq.s32.totalorder %s32, 1
      %p87 = por %p85, %p86
      %p88 = scmp.ne.s32.totalorder %s80, %s83
      %p89 = scmp.eq.s32.totalorder %s32, 0
      %p90 = por %p88, %p89
      %p91 = scmp.ne.s32.totalorder %s80, %s83
      %p92 = scmp.eq.s32.totalorder %s37, 1
      %p93 = por %p91, %p92
      %p94 = scmp.ne.s32.totalorder %s83, %s84
      %p95 = scmp.eq.s32.totalorder %s37, 0
      %p96 = por %p94, %p95
      %p97 = scmp.ne.s32.totalorder %s83, %s84
      %p98 = scmp.eq.s32.totalorder %s38, 1
      %p99 = por %p97, %p98
      %p101 = scmp.ne.s32.totalorder %s84, %s100
      %p102 = scmp.eq.s32.totalorder %s38, 0
      %p103 = por %p101, %p102
      %s104 = ssub.s32 %s39, %s51
      %s105 = ssub.s32 %s40, %s47
      %s106 = sor.u32 %s104, %s105
      %p107 = scmp.eq.s32.totalorder %s106, 0
      %s109 = sadd.s32 %s108, 1
      %s110 = scalar_select %p107, %s108, %s109
      %p113 = pneg %p107
      %p114 = scmp.eq.s32.totalorder %s32, 1
      %p115 = por %p113, %p114
      %p116 = scmp.ne.s32.totalorder %s108, %s111
      %p117 = scmp.eq.s32.totalorder %s32, 0
      %p118 = por %p116, %p117
      %p119 = scmp.ne.s32.totalorder %s108, %s111
      %p120 = scmp.eq.s32.totalorder %s37, 1
      %p121 = por %p119, %p120
      %p122 = scmp.ne.s32.totalorder %s111, %s112
      %p123 = scmp.eq.s32.totalorder %s37, 0
      %p124 = por %p122, %p123
      %p125 = scmp.ne.s32.totalorder %s111, %s112
      %p126 = scmp.eq.s32.totalorder %s38, 1
      %p127 = por %p125, %p126
      %p129 = scmp.ne.s32.totalorder %s112, %s128
      %p130 = scmp.eq.s32.totalorder %s38, 0
      %p131 = por %p129, %p130
      %s132 = ssub.s32 %s39, %s51
      %p133 = scmp.eq.s32.totalorder %s132, 0
      %s135 = sadd.s32 %s134, 1
      %s136 = scalar_select %p133, %s134, %s135
      %p139 = pneg %p133
      %p140 = scmp.eq.s32.totalorder %s32, 1
      %p141 = por %p139, %p140
      %p142 = scmp.ne.s32.totalorder %s134, %s137
      %p143 = scmp.eq.s32.totalorder %s32, 0
      %p144 = por %p142, %p143
      %p145 = scmp.ne.s32.totalorder %s134, %s137
      %p146 = scmp.eq.s32.totalorder %s37, 1
      %p147 = por %p145, %p146
      %p148 = scmp.ne.s32.totalorder %s137, %s138
      %p149 = scmp.eq.s32.totalorder %s37, 0
      %p150 = por %p148, %p149
      %p151 = scmp.ne.s32.totalorder %s137, %s138
      %p152 = scmp.eq.s32.totalorder %s38, 1
      %p153 = por %p151, %p152
      %p155 = scmp.ne.s32.totalorder %s138, %s154
      %p156 = scmp.eq.s32.totalorder %s38, 0
      %p157 = por %p155, %p156
      %s159 = sadd.s32 %s158, 1
      %p162 = scmp.eq.s32.totalorder %s32, 1
      %p163 = scmp.ne.s32.totalorder %s158, %s160
      %p164 = scmp.eq.s32.totalorder %s32, 0
      %p165 = por %p163, %p164
      %p166 = scmp.ne.s32.totalorder %s158, %s160
      %p167 = scmp.eq.s32.totalorder %s37, 1
      %p168 = por %p166, %p167
      %p169 = scmp.ne.s32.totalorder %s160, %s161
      %p170 = scmp.eq.s32.totalorder %s37, 0
      %p171 = por %p169, %p170
      %p172 = scmp.ne.s32.totalorder %s160, %s161
      %p173 = scmp.eq.s32.totalorder %s38, 1
      %p174 = por %p172, %p173
      %p176 = scmp.ne.s32.totalorder %s161, %s175
      %p177 = scmp.eq.s32.totalorder %s38, 0
      %p178 = por %p176, %p177
      %s180 = sadd.s32 %s179, 1
      %p183 = scmp.eq.s32.totalorder %s32, 1
      %p184 = scmp.ne.s32.totalorder %s179, %s181
      %p185 = scmp.eq.s32.totalorder %s32, 0
      %p186 = por %p184, %p185
      %p187 = scmp.ne.s32.totalorder %s179, %s181
      %p188 = scmp.eq.s32.totalorder %s37, 1
      %p189 = por %p187, %p188
      %p190 = scmp.ne.s32.totalorder %s181, %s182
      %p191 = scmp.eq.s32.totalorder %s37, 0
      %p192 = por %p190, %p191
      %p193 = scmp.ne.s32.totalorder %s181, %s182
      %p194 = scmp.eq.s32.totalorder %s38, 1
      %p195 = por %p193, %p194
      %p197 = scmp.ne.s32.totalorder %s182, %s196
      %p198 = scmp.eq.s32.totalorder %s38, 0
      %p199 = por %p197, %p198
      %s201 = sadd.s32 %s200, 1
      %p204 = scmp.eq.s32.totalorder %s32, 1
      %p205 = scmp.ne.s32.totalorder %s200, %s202
      %p206 = scmp.eq.s32.totalorder %s32, 0
      %p207 = por %p205, %p206
      %p208 = scmp.ne.s32.totalorder %s200, %s202
      %p209 = scmp.eq.s32.totalorder %s37, 1
      %p210 = por %p208, %p209
      %p211 = scmp.ne.s32.totalorder %s202, %s203
      %p212 = scmp.eq.s32.totalorder %s37, 0
      %p213 = por %p211, %p212
      %p214 = scmp.ne.s32.totalorder %s202, %s203
      %p215 = scmp.eq.s32.totalorder %s38, 1
      %p216 = por %p214, %p215
      %p218 = scmp.ne.s32.totalorder %s203, %s217
      %p219 = scmp.eq.s32.totalorder %s38, 0
      %p220 = por %p218, %p219
      %s222 = sadd.s32 %s221, 1
      %p225 = scmp.eq.s32.totalorder %s32, 1
      %p226 = scmp.ne.s32.totalorder %s221, %s223
      %p227 = scmp.eq.s32.totalorder %s32, 0
      %p228 = por %p226, %p227
      %p229 = scmp.ne.s32.totalorder %s221, %s223
      %p230 = scmp.eq.s32.totalorder %s37, 1
      %p231 = por %p229, %p230
      %p232 = scmp.ne.s32.totalorder %s223, %s224
      %p233 = scmp.eq.s32.totalorder %s37, 0
      %p234 = por %p232, %p233
      %p235 = scmp.ne.s32.totalorder %s223, %s224
      %p236 = scmp.eq.s32.totalorder %s38, 1
      %p237 = por %p235, %p236
      %p239 = scmp.ne.s32.totalorder %s224, %s238
      %p240 = scmp.eq.s32.totalorder %s38, 0
      %p241 = por %p239, %p240
      %s243 = sadd.s32 %s242, 1
      %p246 = scmp.eq.s32.totalorder %s32, 1
      %p247 = scmp.ne.s32.totalorder %s242, %s244
      %p248 = scmp.eq.s32.totalorder %s32, 0
      %p249 = por %p247, %p248
      %p250 = scmp.ne.s32.totalorder %s242, %s244
      %p251 = scmp.eq.s32.totalorder %s37, 1
      %p252 = por %p250, %p251
      %p253 = scmp.ne.s32.totalorder %s244, %s245
      %p254 = scmp.eq.s32.totalorder %s37, 0
      %p255 = por %p253, %p254
      %p256 = scmp.ne.s32.totalorder %s244, %s245
      %p257 = scmp.eq.s32.totalorder %s38, 1
      %p258 = por %p256, %p257
      %p260 = scmp.ne.s32.totalorder %s245, %s259
      %p261 = scmp.eq.s32.totalorder %s38, 0
      %p262 = por %p260, %p261
      %s264 = sadd.s32 %s263, 1
      %p267 = scmp.eq.s32.totalorder %s32, 1
      %p268 = scmp.ne.s32.totalorder %s263, %s265
      %p269 = scmp.eq.s32.totalorder %s32, 0
      %p270 = por %p268, %p269
      %p271 = scmp.ne.s32.totalorder %s263, %s265
      %p272 = scmp.eq.s32.totalorder %s37, 1
      %p273 = por %p271, %p272
      %p274 = scmp.ne.s32.totalorder %s265, %s266
      %p275 = scmp.eq.s32.totalorder %s37, 0
      %p276 = por %p274, %p275
      %p277 = scmp.ne.s32.totalorder %s265, %s266
      %p278 = scmp.eq.s32.totalorder %s38, 1
      %p279 = por %p277, %p278
      %p281 = scmp.ne.s32.totalorder %s266, %s280
      %p282 = scmp.eq.s32.totalorder %s38, 0
      %p283 = por %p281, %p282
      %s285 = sadd.s32 %s284, 1
      %p288 = scmp.eq.s32.totalorder %s32, 1
      %p289 = scmp.ne.s32.totalorder %s284, %s286
      %p290 = scmp.eq.s32.totalorder %s32, 0
      %p291 = por %p289, %p290
      %p292 = scmp.ne.s32.totalorder %s284, %s286
      %p293 = scmp.eq.s32.totalorder %s37, 1
      %p294 = por %p292, %p293
      %p295 = scmp.ne.s32.totalorder %s286, %s287
      %p296 = scmp.eq.s32.totalorder %s37, 0
      %p297 = por %p295, %p296
      %p298 = scmp.ne.s32.totalorder %s286, %s287
      %p299 = scmp.eq.s32.totalorder %s38, 1
      %p300 = por %p298, %p299
      %p302 = scmp.ne.s32.totalorder %s287, %s301
      %p303 = scmp.eq.s32.totalorder %s38, 0
      %p304 = por %p302, %p303
      %s306 = sadd.s32 %s305, 1
      %p309 = scmp.eq.s32.totalorder %s32, 1
      %p310 = scmp.ne.s32.totalorder %s305, %s307
      %p311 = scmp.eq.s32.totalorder %s32, 0
      %p312 = por %p310, %p311
      %p313 = scmp.ne.s32.totalorder %s305, %s307
      %p314 = scmp.eq.s32.totalorder %s37, 1
      %p315 = por %p313, %p314
      %p316 = scmp.ne.s32.totalorder %s307, %s308
      %p317 = scmp.eq.s32.totalorder %s37, 0
      %p318 = por %p316, %p317
      %p319 = scmp.ne.s32.totalorder %s307, %s308
      %p320 = scmp.eq.s32.totalorder %s38, 1
      %p321 = por %p319, %p320
      %p323 = scmp.ne.s32.totalorder %s308, %s322
      %p324 = scmp.eq.s32.totalorder %s38, 0
      %p325 = por %p323, %p324
      %s327 = sadd.s32 %s326, 1
      %p330 = scmp.eq.s32.totalorder %s32, 1
      %p331 = scmp.ne.s32.totalorder %s326, %s328
      %p332 = scmp.eq.s32.totalorder %s32, 0
      %p333 = por %p331, %p332
      %p334 = scmp.ne.s32.totalorder %s326, %s328
      %p335 = scmp.eq.s32.totalorder %s37, 1
      %p336 = por %p334, %p335
      %p337 = scmp.ne.s32.totalorder %s328, %s329
      %p338 = scmp.eq.s32.totalorder %s37, 0
      %p339 = por %p337, %p338
      %p340 = scmp.ne.s32.totalorder %s328, %s329
      %p341 = scmp.eq.s32.totalorder %s38, 1
      %p342 = por %p340, %p341
      %p344 = scmp.ne.s32.totalorder %s329, %s343
      %p345 = scmp.eq.s32.totalorder %s38, 0
      %p346 = por %p344, %p345
      %s348 = sadd.s32 %s347, 1
      %p351 = scmp.eq.s32.totalorder %s32, 1
      %p352 = scmp.ne.s32.totalorder %s347, %s349
      %p353 = scmp.eq.s32.totalorder %s32, 0
      %p354 = por %p352, %p353
      %p355 = scmp.ne.s32.totalorder %s347, %s349
      %p356 = scmp.eq.s32.totalorder %s37, 1
      %p357 = por %p355, %p356
      %p358 = scmp.ne.s32.totalorder %s349, %s350
      %p359 = scmp.eq.s32.totalorder %s37, 0
      %p360 = por %p358, %p359
      %p361 = scmp.ne.s32.totalorder %s349, %s350
      %p362 = scmp.eq.s32.totalorder %s38, 1
      %p363 = por %p361, %p362
      %p365 = scmp.ne.s32.totalorder %s350, %s364
      %p366 = scmp.eq.s32.totalorder %s38, 0
      %p367 = por %p365, %p366
      %s368 = ssub.s32 %s39, %s51
      %s369 = ssub.s32 %s40, %s47
      %s370 = sor.u32 %s368, %s369
      %p371 = scmp.eq.s32.totalorder %s370, 0
      %s373 = sadd.s32 %s372, 1
      %s374 = scalar_select %p371, %s372, %s373
      %p377 = pneg %p371
      %p378 = scmp.eq.s32.totalorder %s32, 1
      %p379 = por %p377, %p378
      %p380 = scmp.ne.s32.totalorder %s372, %s375
      %p381 = scmp.eq.s32.totalorder %s32, 0
      %p382 = por %p380, %p381
      %p383 = scmp.ne.s32.totalorder %s372, %s375
      %p384 = scmp.eq.s32.totalorder %s37, 1
      %p385 = por %p383, %p384
      %p386 = scmp.ne.s32.totalorder %s375, %s376
      %p387 = scmp.eq.s32.totalorder %s37, 0
      %p388 = por %p386, %p387
      %p389 = scmp.ne.s32.totalorder %s375, %s376
      %p390 = scmp.eq.s32.totalorder %s38, 1
      %p391 = por %p389, %p390
      %p393 = scmp.ne.s32.totalorder %s376, %s392
      %p394 = scmp.eq.s32.totalorder %s38, 0
      %p395 = por %p393, %p394
      %s396 = ssub.s32 %s39, %s51
      %s397 = ssub.s32 %s40, %s47
      %s398 = sor.u32 %s396, %s397
      %p399 = scmp.eq.s32.totalorder %s398, 0
      %s401 = sadd.s32 %s400, 1
      %s402 = scalar_select %p399, %s400, %s401
      %p405 = pneg %p399
      %p406 = scmp.eq.s32.totalorder %s32, 1
      %p407 = por %p405, %p406
      %p408 = scmp.ne.s32.totalorder %s400, %s403
      %p409 = scmp.eq.s32.totalorder %s32, 0
      %p410 = por %p408, %p409
      %p411 = scmp.ne.s32.totalorder %s400, %s403
      %p412 = scmp.eq.s32.totalorder %s37, 1
      %p413 = por %p411, %p412
      %p414 = scmp.ne.s32.totalorder %s403, %s404
      %p415 = scmp.eq.s32.totalorder %s37, 0
      %p416 = por %p414, %p415
      %p417 = scmp.ne.s32.totalorder %s403, %s404
      %p418 = scmp.eq.s32.totalorder %s38, 1
      %p419 = por %p417, %p418
      %p421 = scmp.ne.s32.totalorder %s404, %s420
      %p422 = scmp.eq.s32.totalorder %s38, 0
      %p423 = por %p421, %p422
      %s424 = ssub.s32 %s39, %s51
      %s425 = ssub.s32 %s40, %s47
      %s426 = sor.u32 %s424, %s425
      %p427 = scmp.eq.s32.totalorder %s426, 0
      %s429 = sadd.s32 %s428, 1
      %s430 = scalar_select %p427, %s428, %s429
      %p433 = pneg %p427
      %p434 = scmp.eq.s32.totalorder %s32, 1
      %p435 = por %p433, %p434
      %p436 = scmp.ne.s32.totalorder %s428, %s431
      %p437 = scmp.eq.s32.totalorder %s32, 0
      %p438 = por %p436, %p437
      %p439 = scmp.ne.s32.totalorder %s428, %s431
      %p440 = scmp.eq.s32.totalorder %s37, 1
      %p441 = por %p439, %p440
      %p442 = scmp.ne.s32.totalorder %s431, %s432
      %p443 = scmp.eq.s32.totalorder %s37, 0
      %p444 = por %p442, %p443
      %p445 = scmp.ne.s32.totalorder %s431, %s432
      %p446 = scmp.eq.s32.totalorder %s38, 1
      %p447 = por %p445, %p446
      %p449 = scmp.ne.s32.totalorder %s432, %s448
      %p450 = scmp.eq.s32.totalorder %s38, 0
      %p451 = por %p449, %p450
      %p452 = scmp.le.s32.totalorder 1, %s32
      %p453 = scmp.lt.s32.totalorder %s32, 3
      %p454 = pnand %p452, %p453
      %p455 = pneg %p454
      // Predicated region
      $region9: #{tpu_custom_call.1} parent=5 // pred_check
        _
      $region10: #{tpu_custom_call.1} parent=5 // pred_check_branch
        %457 = sbr.rel (%p454) target = $region12
      $region11: #{tpu_custom_call.1} parent=5 // pred_region
        %s458 = ssub.s32 %s32, 1
        // Predicated region
        $region13: #{tpu_custom_call.1} parent=11 // pred_check
          %p459 = pneg %p171
        $region14: #{tpu_custom_call.1} parent=11 // pred_check_branch
          %461 = sbr.rel (%p459) target = $region16
        $region15: #{tpu_custom_call.1} parent=11 // pred_region
          %s463 = ssub.s32 1024, 1024
          %464 = vsyncadd [#allocation7], %s463
          %s465 = sshll.u32 [#allocation6], 4
          %s466 = int_to_ptr.vmem [resolvable:$true] %s465
          %471 = dma.hbm_to_vmem [thread:$0]  %s4, 1024, %s466, [#allocation7], 64, 64, 4
        $region16: #{tpu_custom_call.1} parent=11 // pred_fallthru
          _
        // Predicated region
        $region17: #{tpu_custom_call.1} parent=11 // pred_check
          %p472 = pneg %p192
        $region18: #{tpu_custom_call.1} parent=11 // pred_check_branch
          %474 = sbr.rel (%p472) target = $region20
        $region19: #{tpu_custom_call.1} parent=11 // pred_region
          _
        $region20: #{tpu_custom_call.1} parent=11 // pred_fallthru
          _
        // Predicated region
        $region21: #{tpu_custom_call.1} parent=11 // pred_check
          %p475 = pneg %p213
        $region22: #{tpu_custom_call.1} parent=11 // pred_check_branch
          %477 = sbr.rel (%p475) target = $region24
        $region23: #{tpu_custom_call.1} parent=11 // pred_region
          %s479 = ssub.s32 1024, 1024
          %480 = vsyncadd [#allocation10], %s479
          %s481 = sshll.u32 [#allocation9], 4
          %s482 = int_to_ptr.vmem [resolvable:$true] %s481
          %487 = dma.hbm_to_vmem [thread:$0]  %s6, 1024, %s482, [#allocation10], 64, 64, 4
        $region24: #{tpu_custom_call.1} parent=11 // pred_fallthru
          _
        // Predicated region
        $region25: #{tpu_custom_call.1} parent=11 // pred_check
          %p488 = pneg %p234
        $region26: #{tpu_custom_call.1} parent=11 // pred_check_branch
          %490 = sbr.rel (%p488) target = $region28
        $region27: #{tpu_custom_call.1} parent=11 // pred_region
          _
        $region28: #{tpu_custom_call.1} parent=11 // pred_fallthru
          _
        // Predicated region
        $region29: #{tpu_custom_call.1} parent=11 // pred_check
          %p491 = pneg %p255
        $region30: #{tpu_custom_call.1} parent=11 // pred_check_branch
          %493 = sbr.rel (%p491) target = $region32
        $region31: #{tpu_custom_call.1} parent=11 // pred_region
          _
        $region32: #{tpu_custom_call.1} parent=11 // pred_fallthru
          _
        // Predicated region
        $region33: #{tpu_custom_call.1} parent=11 // pred_check
          %p494 = pneg %p276
        $region34: #{tpu_custom_call.1} parent=11 // pred_check_branch
          %496 = sbr.rel (%p494) target = $region36
        $region35: #{tpu_custom_call.1} parent=11 // pred_region
          %s498 = ssub.s32 16, 16
          %499 = vsyncadd [#allocation10], %s498
          %s501 = sshll.u32 [#allocation11], 4
          %s502 = int_to_ptr.vmem [resolvable:$true] %s501
          %504 = dma.hbm_to_vmem [thread:$0]  %s9, 16, %s502, [#allocation10]
        $region36: #{tpu_custom_call.1} parent=11 // pred_fallthru
          _
        // Predicated region
        $region37: #{tpu_custom_call.1} parent=11 // pred_check
          %p505 = pneg %p297
        $region38: #{tpu_custom_call.1} parent=11 // pred_check_branch
          %507 = sbr.rel (%p505) target = $region40
        $region39: #{tpu_custom_call.1} parent=11 // pred_region
          _
        $region40: #{tpu_custom_call.1} parent=11 // pred_fallthru
          _
        // Predicated region
        $region41: #{tpu_custom_call.1} parent=11 // pred_check
          %p508 = pneg %p318
        $region42: #{tpu_custom_call.1} parent=11 // pred_check_branch
          %510 = sbr.rel (%p508) target = $region44
        $region43: #{tpu_custom_call.1} parent=11 // pred_region
          %s512 = ssub.s32 16, 16
          %513 = vsyncadd [#allocation13], %s512
          %s515 = sshll.u32 [#allocation12], 4
          %s516 = int_to_ptr.vmem [resolvable:$true] %s515
          %518 = dma.hbm_to_vmem [thread:$0]  %s11, 16, %s516, [#allocation13]
        $region44: #{tpu_custom_call.1} parent=11 // pred_fallthru
          _
        // Predicated region
        $region45: #{tpu_custom_call.1} parent=11 // pred_check
          %p519 = pneg %p339
        $region46: #{tpu_custom_call.1} parent=11 // pred_check_branch
          %521 = sbr.rel (%p519) target = $region48
        $region47: #{tpu_custom_call.1} parent=11 // pred_region
          _
        $region48: #{tpu_custom_call.1} parent=11 // pred_fallthru
          _
        // Predicated region
        $region49: #{tpu_custom_call.1} parent=11 // pred_check
          %p522 = pneg %p360
        $region50: #{tpu_custom_call.1} parent=11 // pred_check_branch
          %524 = sbr.rel (%p522) target = $region52
        $region51: #{tpu_custom_call.1} parent=11 // pred_region
          _
        $region52: #{tpu_custom_call.1} parent=11 // pred_fallthru
          _
      $region12: #{tpu_custom_call.1} parent=5 // pred_fallthru
        _
      %p525 = scmp.lt.s32.totalorder %s32, 2
      // Predicated region
      $region53: #{tpu_custom_call.1} parent=5 // pred_check
        %p526 = pneg %p525
      $region54: #{tpu_custom_call.1} parent=5 // pred_check_branch
        %528 = sbr.rel (%p526) target = $region56
      $region55: #{tpu_custom_call.1} parent=5 // pred_region
        // Predicated region
        $region57: #{tpu_custom_call.1} parent=55 // pred_check
          %p529 = pneg %p64
        $region58: #{tpu_custom_call.1} parent=55 // pred_check_branch
          %531 = sbr.rel (%p529) target = $region60
        $region59: #{tpu_custom_call.1} parent=55 // pred_region
          %p532 = scmp.lt.s32.totalorder %s39, 1
          %s533 = scalar_select %p532, %s39, 1
          %s534 = smul.addr %s533, 4
          %s535 = scalar_lea.vmem %s0, %s534
        $region60: #{tpu_custom_call.1} parent=55 // pred_fallthru
          _
        // Predicated region
        $region61: #{tpu_custom_call.1} parent=55 // pred_check
          %p536 = pneg %p90
        $region62: #{tpu_custom_call.1} parent=55 // pred_check_branch
          %538 = sbr.rel (%p536) target = $region64
        $region63: #{tpu_custom_call.1} parent=55 // pred_region
          %p539 = scmp.lt.s32.totalorder %s39, 1
          %s540 = scalar_select %p539, %s39, 1
          %s541 = smul.addr %s540, 4
          %s542 = scalar_lea.vmem %s1, %s541
        $region64: #{tpu_custom_call.1} parent=55 // pred_fallthru
          _
        // Predicated region
        $region65: #{tpu_custom_call.1} parent=55 // pred_check
          %p543 = pneg %p118
        $region66: #{tpu_custom_call.1} parent=55 // pred_check_branch
          %545 = sbr.rel (%p543) target = $region68
        $region67: #{tpu_custom_call.1} parent=55 // pred_region
          %p546 = scmp.lt.s32.totalorder %s39, 1
          %s547 = scalar_select %p546, %s39, 1
          %p548 = scmp.lt.s32.totalorder %s40, 0
          %s549 = scalar_select %p548, %s40, 0
          %s550 = sadd.s32 %s549, %s547
          %s551 = smul.addr %s550, 4
          %s552 = scalar_lea.vmem %s2, %s551
        $region68: #{tpu_custom_call.1} parent=55 // pred_fallthru
          _
        // Predicated region
        $region69: #{tpu_custom_call.1} parent=55 // pred_check
          %p553 = pneg %p144
        $region70: #{tpu_custom_call.1} parent=55 // pred_check_branch
          %555 = sbr.rel (%p553) target = $region72
        $region71: #{tpu_custom_call.1} parent=55 // pred_region
          %p556 = scmp.lt.s32.totalorder %s39, 1
          %s557 = scalar_select %p556, %s39, 1
          %s558 = scalar_lea.vmem %s3, %s557
        $region72: #{tpu_custom_call.1} parent=55 // pred_fallthru
          _
      $region56: #{tpu_custom_call.1} parent=5 // pred_fallthru
        _
      %p559 = scmp.le.s32.totalorder 1, %s32
      %p560 = scmp.lt.s32.totalorder %s32, 3
      %p561 = pnand %p559, %p560
      %p562 = pneg %p561
      // Predicated region
      $region73: #{tpu_custom_call.1} parent=5 // pred_check
        _
      $region74: #{tpu_custom_call.1} parent=5 // pred_check_branch
        %564 = sbr.rel (%p561) target = $region76
      $region75: #{tpu_custom_call.1} parent=5 // pred_region
        %s565 = ssub.s32 %s32, 1
        // Predicated region
        $region77: #{tpu_custom_call.1} parent=75 // pred_check
          %p566 = pneg %p171
        $region78: #{tpu_custom_call.1} parent=75 // pred_check_branch
          %568 = sbr.rel (%p566) target = $region80
        $region79: #{tpu_custom_call.1} parent=75 // pred_region
          %569 = dma.done [#allocation7], 1024
        $region80: #{tpu_custom_call.1} parent=75 // pred_fallthru
          _
        // Predicated region
        $region81: #{tpu_custom_call.1} parent=75 // pred_check
          %p570 = pneg %p213
        $region82: #{tpu_custom_call.1} parent=75 // pred_check_branch
          %572 = sbr.rel (%p570) target = $region84
        $region83: #{tpu_custom_call.1} parent=75 // pred_region
          %573 = dma.done [#allocation10], 1024
        $region84: #{tpu_custom_call.1} parent=75 // pred_fallthru
          _
        // Predicated region
        $region85: #{tpu_custom_call.1} parent=75 // pred_check
          %p574 = pneg %p276
        $region86: #{tpu_custom_call.1} parent=75 // pred_check_branch
          %576 = sbr.rel (%p574) target = $region88
        $region87: #{tpu_custom_call.1} parent=75 // pred_region
          %577 = dma.done [#allocation10], 16
        $region88: #{tpu_custom_call.1} parent=75 // pred_fallthru
          _
        // Predicated region
        $region89: #{tpu_custom_call.1} parent=75 // pred_check
          %p578 = pneg %p318
        $region90: #{tpu_custom_call.1} parent=75 // pred_check_branch
          %580 = sbr.rel (%p578) target = $region92
        $region91: #{tpu_custom_call.1} parent=75 // pred_region
          %581 = dma.done [#allocation13], 16
        $region92: #{tpu_custom_call.1} parent=75 // pred_fallthru
          _
        %p582 = scmp.lt.s32.totalorder %s41, 1
        %s583 = scalar_select %p582, %s41, 1
        %s584 = smul.addr %s583, 4
        %s585 = scalar_lea.vmem %s0, %s584
        %p586 = pneg %p70
        %p587 = pneg %p67
        %p588 = scmp.lt.s32.totalorder %s41, 1
        %s589 = scalar_select %p588, %s41, 1
        %s590 = smul.addr %s589, 4
        %s591 = scalar_lea.vmem %s1, %s590
        %p592 = pneg %p96
        %p593 = pneg %p93
        %p594 = scmp.lt.s32.totalorder %s41, 1
        %s595 = scalar_select %p594, %s41, 1
        %p596 = scmp.lt.s32.totalorder %s42, 0
        %s597 = scalar_select %p596, %s42, 0
        %s598 = sadd.s32 %s597, %s595
        %s599 = smul.addr %s598, 4
        %s600 = scalar_lea.vmem %s2, %s599
        %p601 = pneg %p124
        %p602 = pneg %p121
        %p603 = scmp.lt.s32.totalorder %s41, 1
        %s604 = scalar_select %p603, %s41, 1
        %s605 = scalar_lea.vmem %s3, %s604
        %p606 = pneg %p150
        %p607 = pneg %p147
        %p608 = pneg %p171
        %p609 = pneg %p168
        %p610 = pneg %p192
        %p611 = pneg %p189
        %p612 = pneg %p213
        %p613 = pneg %p210
        %p614 = pneg %p234
        %p615 = pneg %p231
        %p616 = pneg %p255
        %p617 = pneg %p252
        %p618 = pneg %p276
        %p619 = pneg %p273
        %p620 = pneg %p297
        %p621 = pneg %p294
        %p622 = pneg %p318
        %p623 = pneg %p315
        %p624 = pneg %p339
        %p625 = pneg %p336
        %p626 = pneg %p360
        %p627 = pneg %p357
        %p628 = pneg %p388
        %p629 = pneg %p385
        %s630 = sand.u32 %s375, 1
        %s631 = scalar_lea.sflag [#allocation8], %s630
        %s632 = sand.u32 %s375, 1
        %s633 = smul.addr %s632, 8
        %s634 = scalar_lea.vmem [#allocation14], %s633
        %p635 = pneg %p416
        %p636 = pneg %p413
        %s637 = sand.u32 %s37, 1
        %s638 = scalar_lea.sflag [#allocation16], %s637
        %s639 = sand.u32 %s403, 1
        %s640 = smul.addr %s639, 16
        %s641 = scalar_lea.vmem [#allocation15], %s640
        %p642 = pneg %p444
        %p643 = pneg %p441
        %s644 = sand.u32 %s37, 1
        %s645 = scalar_lea.sflag [#allocation16], %s644
        %s646 = sand.u32 %s431, 1
        %s647 = smul.addr %s646, 16
        %s648 = scalar_lea.vmem [#allocation17], %s647
        %p649 = scmp.lt.s32.totalorder %s41, 1
        %s650 = scalar_select %p649, %s41, 1
        %s651 = smul.addr %s650, 4
        %s652 = scalar_lea.vmem %s0, %s651
        %p653 = scmp.lt.s32.totalorder %s41, 1
        %s654 = scalar_select %p653, %s41, 1
        %s655 = smul.addr %s654, 4
        %s656 = scalar_lea.vmem %s1, %s655
        %p657 = scmp.lt.s32.totalorder %s41, 1
        %s658 = scalar_select %p657, %s41, 1
        %p659 = scmp.lt.s32.totalorder %s42, 0
        %s660 = scalar_select %p659, %s42, 0
        %s661 = sadd.s32 %s660, %s658
        %s662 = smul.addr %s661, 4
        %s663 = scalar_lea.vmem %s2, %s662
        %p664 = scmp.lt.s32.totalorder %s41, 1
        %s665 = scalar_select %p664, %s41, 1
        %s666 = scalar_lea.vmem %s3, %s665
        %p668 = scmp.eq.s32.totalorder %s42, 0
        // Predicated region
        $region93: #{tpu_custom_call.1} parent=75 // pred_check
          %p669 = pneg %p668
        $region94: #{tpu_custom_call.1} parent=75 // pred_check_branch
          %671 = sbr.rel (%p669) target = $region96
        $region95: #{tpu_custom_call.1} parent=75 // pred_region
          %v672 = vld [vmem:[%s652] sm:$0xf]
          %v673 = vld [vmem:[%s656] sm:$0xf]
          %s674 = scalar_lea.vmem [#allocation6], 16
          %v675 = vld [vmem:[%s674] sm:$0xf]
          %v676 = vld [vmem:[%s674 + $0x4] sm:$0xf]
          %v677 = vld [vmem:[%s674 + $0x8] sm:$0xf]
          %v678 = vld [vmem:[%s674 + $0xc] sm:$0xf]
          %v679 = vld [vmem:[%s5 + $0x1] sm:$0x1]
          %v680 = vlaneseq
          %v681 = vshrl.u32 %v680, 7
          %v682 = vsub.s32 0, %v681
          %v683 = vrot.slane %v679, %v682
          %v688 = vunpack.c.l.b16 %v675
          %v689 = vunpack.c.l.b16 %v676
          %v690 = vunpack.c.l.b16 %v677
          %v691 = vunpack.c.l.b16 %v678
          %v692 = vpack.c.b16 %v689, %v688
          %v693 = vpack.c.b16 %v691, %v690
          %vm696 = vcmask 261120
          %v698 = vsel %vm696, %v672, 0
          %700 = vmatprep.subr.bf16.mxu0 0
          %701 = vmatpush1.bf16.msra.mxu0 0
          %702 = vmatprep.subr.bf16.mxu0 0
          %703 = vmatpush1.bf16.msra.mxu0 0
          %704 = vmatprep.subr.bf16.mxu0 0
          %705 = vmatpush1.bf16.msra.mxu0 0
          %706 = vmatprep.subr.bf16.mxu0 0
          %707 = vmatpush1.bf16.msra.mxu0 0
          %708 = vmatprep.subr.bf16.mxu0 0
          %709 = vmatpush1.bf16.msra.mxu0 0
          %710 = vmatprep.subr.bf16.mxu0 0
          %711 = vmatpush1.bf16.msra.mxu0 0
          %712 = vmatprep.subr.bf16.mxu0 0
          %713 = vmatpush1.bf16.msra.mxu0 %v693
          %714 = vmatprep.subr.bf16.mxu0 0
          %715 = vmatpush1.bf16.msra.mxu0 %v692
          %716 = vmatprep.subr.bf16.mxu0 0
          %717 = vmatpush2.bf16.msra.mxu0 0
          %718 = vmatprep.subr.bf16.mxu0 0
          %719 = vmatpush2.bf16.msra.mxu0 0
          %720 = vmatprep.subr.bf16.mxu0 0
          %721 = vmatpush2.bf16.msra.mxu0 0
          %722 = vmatprep.subr.bf16.mxu0 0
          %723 = vmatpush2.bf16.msra.mxu0 0
          %724 = vmatprep.subr.bf16.mxu0 0
          %725 = vmatpush2.bf16.msra.mxu0 0
          %726 = vmatprep.subr.bf16.mxu0 0
          %727 = vmatpush2.bf16.msra.mxu0 0
          %728 = vmatprep.subr.bf16.mxu0 0
          %729 = vmatpush2.bf16.msra.mxu0 0
          %730 = vmatprep.subr.bf16.mxu0 0
          %731 = vmatpush2.bf16.msra.mxu0 0
          %732 = vmatprep.mubr.bf16.mxu0 0
          %733 = vmatmul.mubr.bf16.gmra.mxu0 %v698
          %v734 = vpop.f32.mrf.mxu0
          %v735 = vadd.f32 %v683, %v734
          %v736 = vpop.f32.mrf.mxu0
          %v737 = vpop.f32.mrf.mxu0
          %v738 = vpop.f32.mrf.mxu0
          %739 = vdwg.mxu0
          %v740 = vpack.c.bf16 %v735, %v735
          %vm741 = vcmask 257024
          %742 = vst.msk [vmem:[#allocation2] sm:$0xf] %vm741, %v740
          %s743 = scalar_lea.vmem [#allocation6], 32
          %v744 = vld [vmem:[%s743] sm:$0xf]
          %v745 = vld [vmem:[%s743 + $0x4] sm:$0xf]
          %v746 = vld [vmem:[%s743 + $0x8] sm:$0xf]
          %v747 = vld [vmem:[%s743 + $0xc] sm:$0xf]
          %v748 = vld [vmem:[%s5 + $0x2] sm:$0x1]
          %v749 = vlaneseq
          %v750 = vshrl.u32 %v749, 7
          %v751 = vsub.s32 0, %v750
          %v752 = vrot.slane %v748, %v751
          %v757 = vunpack.c.l.b16 %v744
          %v758 = vunpack.c.l.b16 %v745
          %v759 = vunpack.c.l.b16 %v746
          %v760 = vunpack.c.l.b16 %v747
          %v761 = vpack.c.b16 %v758, %v757
          %v762 = vpack.c.b16 %v760, %v759
          %765 = vmatprep.subr.bf16.mxu0 0
          %766 = vmatpush1.bf16.msra.mxu0 0
          %767 = vmatprep.subr.bf16.mxu0 0
          %768 = vmatpush1.bf16.msra.mxu0 0
          %769 = vmatprep.subr.bf16.mxu0 0
          %770 = vmatpush1.bf16.msra.mxu0 0
          %771 = vmatprep.subr.bf16.mxu0 0
          %772 = vmatpush1.bf16.msra.mxu0 0
          %773 = vmatprep.subr.bf16.mxu0 0
          %774 = vmatpush1.bf16.msra.mxu0 0
          %775 = vmatprep.subr.bf16.mxu0 0
          %776 = vmatpush1.bf16.msra.mxu0 0
          %777 = vmatprep.subr.bf16.mxu0 0
          %778 = vmatpush1.bf16.msra.mxu0 %v762
          %779 = vmatprep.subr.bf16.mxu0 0
          %780 = vmatpush1.bf16.msra.mxu0 %v761
          %781 = vmatprep.subr.bf16.mxu0 0
          %782 = vmatpush2.bf16.msra.mxu0 0
          %783 = vmatprep.subr.bf16.mxu0 0
          %784 = vmatpush2.bf16.msra.mxu0 0
          %785 = vmatprep.subr.bf16.mxu0 0
          %786 = vmatpush2.bf16.msra.mxu0 0
          %787 = vmatprep.subr.bf16.mxu0 0
          %788 = vmatpush2.bf16.msra.mxu0 0
          %789 = vmatprep.subr.bf16.mxu0 0
          %790 = vmatpush2.bf16.msra.mxu0 0
          %791 = vmatprep.subr.bf16.mxu0 0
          %792 = vmatpush2.bf16.msra.mxu0 0
          %793 = vmatprep.subr.bf16.mxu0 0
          %794 = vmatpush2.bf16.msra.mxu0 0
          %795 = vmatprep.subr.bf16.mxu0 0
          %796 = vmatpush2.bf16.msra.mxu0 0
          %797 = vmatprep.mubr.bf16.mxu0 0
          %798 = vmatmul.mubr.bf16.gmra.mxu0 %v698
          %v799 = vpop.f32.mrf.mxu0
          %v800 = vadd.f32 %v752, %v799
          %v801 = vpop.f32.mrf.mxu0
          %v802 = vpop.f32.mrf.mxu0
          %v803 = vpop.f32.mrf.mxu0
          %804 = vdwg.mxu0
          %v805 = vpack.c.bf16 %v800, %v800
          %806 = vst.msk [vmem:[#allocation3] sm:$0xf] %vm741, %v805
          %s807 = scalar_lea.vmem [#allocation9], 16
          %v808 = vld [vmem:[%s807] sm:$0xf]
          %v809 = vld [vmem:[%s807 + $0x4] sm:$0xf]
          %v810 = vld [vmem:[%s807 + $0x8] sm:$0xf]
          %v811 = vld [vmem:[%s807 + $0xc] sm:$0xf]
          %v812 = vld [vmem:[%s7 + $0x1] sm:$0x1]
          %v813 = vlaneseq
          %v814 = vshrl.u32 %v813, 7
          %v815 = vsub.s32 0, %v814
          %v816 = vrot.slane %v812, %v815
          %v821 = vunpack.c.l.b16 %v808
          %v822 = vunpack.c.l.b16 %v809
          %v823 = vunpack.c.l.b16 %v810
          %v824 = vunpack.c.l.b16 %v811
          %v825 = vpack.c.b16 %v822, %v821
          %v826 = vpack.c.b16 %v824, %v823
          %v830 = vsel %vm696, %v673, 0
          %832 = vmatprep.subr.bf16.mxu0 0
          %833 = vmatpush1.bf16.msra.mxu0 0
          %834 = vmatprep.subr.bf16.mxu0 0
          %835 = vmatpush1.bf16.msra.mxu0 0
          %836 = vmatprep.subr.bf16.mxu0 0
          %837 = vmatpush1.bf16.msra.mxu0 0
          %838 = vmatprep.subr.bf16.mxu0 0
          %839 = vmatpush1.bf16.msra.mxu0 0
          %840 = vmatprep.subr.bf16.mxu0 0
          %841 = vmatpush1.bf16.msra.mxu0 0
          %842 = vmatprep.subr.bf16.mxu0 0
          %843 = vmatpush1.bf16.msra.mxu0 0
          %844 = vmatprep.subr.bf16.mxu0 0
          %845 = vmatpush1.bf16.msra.mxu0 %v826
          %846 = vmatprep.subr.bf16.mxu0 0
          %847 = vmatpush1.bf16.msra.mxu0 %v825
          %848 = vmatprep.subr.bf16.mxu0 0
          %849 = vmatpush2.bf16.msra.mxu0 0
          %850 = vmatprep.subr.bf16.mxu0 0
          %851 = vmatpush2.bf16.msra.mxu0 0
          %852 = vmatprep.subr.bf16.mxu0 0
          %853 = vmatpush2.bf16.msra.mxu0 0
          %854 = vmatprep.subr.bf16.mxu0 0
          %855 = vmatpush2.bf16.msra.mxu0 0
          %856 = vmatprep.subr.bf16.mxu0 0
          %857 = vmatpush2.bf16.msra.mxu0 0
          %858 = vmatprep.subr.bf16.mxu0 0
          %859 = vmatpush2.bf16.msra.mxu0 0
          %860 = vmatprep.subr.bf16.mxu0 0
          %861 = vmatpush2.bf16.msra.mxu0 0
          %862 = vmatprep.subr.bf16.mxu0 0
          %863 = vmatpush2.bf16.msra.mxu0 0
          %864 = vmatprep.mubr.bf16.mxu0 0
          %865 = vmatmul.mubr.bf16.gmra.mxu0 %v830
          %v866 = vpop.f32.mrf.mxu0
          %v867 = vadd.f32 %v816, %v866
          %v868 = vpop.f32.mrf.mxu0
          %v869 = vpop.f32.mrf.mxu0
          %v870 = vpop.f32.mrf.mxu0
          %871 = vdwg.mxu0
          %v872 = vpack.c.bf16 %v867, %v867
          %873 = vst.msk [vmem:[#allocation4] sm:$0xf] %vm741, %v872
          %s874 = scalar_lea.vmem [#allocation9], 32
          %v875 = vld [vmem:[%s874] sm:$0xf]
          %v876 = vld [vmem:[%s874 + $0x4] sm:$0xf]
          %v877 = vld [vmem:[%s874 + $0x8] sm:$0xf]
          %v878 = vld [vmem:[%s874 + $0xc] sm:$0xf]
          %v879 = vld [vmem:[%s7 + $0x2] sm:$0x1]
          %v880 = vlaneseq
          %v881 = vshrl.u32 %v880, 7
          %v882 = vsub.s32 0, %v881
          %v883 = vrot.slane %v879, %v882
          %v888 = vunpack.c.l.b16 %v875
          %v889 = vunpack.c.l.b16 %v876
          %v890 = vunpack.c.l.b16 %v877
          %v891 = vunpack.c.l.b16 %v878
          %v892 = vpack.c.b16 %v889, %v888
          %v893 = vpack.c.b16 %v891, %v890
          %896 = vmatprep.subr.bf16.mxu0 0
          %897 = vmatpush1.bf16.msra.mxu0 0
          %898 = vmatprep.subr.bf16.mxu0 0
          %899 = vmatpush1.bf16.msra.mxu0 0
          %900 = vmatprep.subr.bf16.mxu0 0
          %901 = vmatpush1.bf16.msra.mxu0 0
          %902 = vmatprep.subr.bf16.mxu0 0
          %903 = vmatpush1.bf16.msra.mxu0 0
          %904 = vmatprep.subr.bf16.mxu0 0
          %905 = vmatpush1.bf16.msra.mxu0 0
          %906 = vmatprep.subr.bf16.mxu0 0
          %907 = vmatpush1.bf16.msra.mxu0 0
          %908 = vmatprep.subr.bf16.mxu0 0
          %909 = vmatpush1.bf16.msra.mxu0 %v893
          %910 = vmatprep.subr.bf16.mxu0 0
          %911 = vmatpush1.bf16.msra.mxu0 %v892
          %912 = vmatprep.subr.bf16.mxu0 0
          %913 = vmatpush2.bf16.msra.mxu0 0
          %914 = vmatprep.subr.bf16.mxu0 0
          %915 = vmatpush2.bf16.msra.mxu0 0
          %916 = vmatprep.subr.bf16.mxu0 0
          %917 = vmatpush2.bf16.msra.mxu0 0
          %918 = vmatprep.subr.bf16.mxu0 0
          %919 = vmatpush2.bf16.msra.mxu0 0
          %920 = vmatprep.subr.bf16.mxu0 0
          %921 = vmatpush2.bf16.msra.mxu0 0
          %922 = vmatprep.subr.bf16.mxu0 0
          %923 = vmatpush2.bf16.msra.mxu0 0
          %924 = vmatprep.subr.bf16.mxu0 0
          %925 = vmatpush2.bf16.msra.mxu0 0
          %926 = vmatprep.subr.bf16.mxu0 0
          %927 = vmatpush2.bf16.msra.mxu0 0
          %928 = vmatprep.mubr.bf16.mxu0 0
          %929 = vmatmul.mubr.bf16.gmra.mxu0 %v830
          %v930 = vpop.f32.mrf.mxu0
          %v931 = vadd.f32 %v883, %v930
          %v932 = vpop.f32.mrf.mxu0
          %v933 = vpop.f32.mrf.mxu0
          %v934 = vpop.f32.mrf.mxu0
          %935 = vdwg.mxu0
          %v936 = vpack.c.bf16 %v931, %v931
          %937 = vst.msk [vmem:[#allocation5] sm:$0xf] %vm741, %v936
        $region96: #{tpu_custom_call.1} parent=75 // pred_fallthru
          _
        %s938 = smul.u32 %s42, 8
        %s939 = sshra.s32 %s938, 3
        %s940 = sand.u32 %s938, 7
        %s941 = smul.addr %s939, 4
        %s942 = scalar_lea.vmem %s652, %s941
        %v943 = vld [vmem:[%s942] sm:$0xf]
        %v944 = vld [vmem:[%s663] sm:$0xf]
        %v945 = vunpack.c.l.bf16 %v944
        %v946 = vmul.f32 %v945, -1e+09
        %v947 = vld [vmem:[%s666] sm:$0x1]
        %v948 = vunpack.c.l.bf16 %v947
        %v949 = vmul.f32 %v948, -1e+09
        %v950 = vld [vmem:[%s12] sm:$0x7]
        %v951 = vld [vmem:[%s13] sm:$0x7]
        %v952 = vld [vmem:[#allocation6] sm:$0xf]
        %v953 = vld [vmem:[#allocation6 + $0x4] sm:$0xf]
        %v954 = vld [vmem:[#allocation6 + $0x8] sm:$0xf]
        %v955 = vld [vmem:[#allocation6 + $0xc] sm:$0xf]
        %v956 = vld [vmem:[%s5] sm:$0x1]
        %v957 = vlaneseq
        %v958 = vshrl.u32 %v957, 7
        %v959 = vsub.s32 0, %v958
        %v960 = vrot.slane %v956, %v959
        %v965 = vunpack.c.l.b16 %v952
        %v966 = vunpack.c.l.b16 %v953
        %v967 = vunpack.c.l.b16 %v954
        %v968 = vunpack.c.l.b16 %v955
        %v969 = vpack.c.b16 %v966, %v965
        %v970 = vpack.c.b16 %v968, %v967
        %vm973 = vcmask 261120
        %v975 = vsel %vm973, %v943, 0
        %977 = vmatprep.subr.bf16.mxu0 0
        %978 = vmatpush1.bf16.msra.mxu0 0
        %979 = vmatprep.subr.bf16.mxu0 0
        %980 = vmatpush1.bf16.msra.mxu0 0
        %981 = vmatprep.subr.bf16.mxu0 0
        %982 = vmatpush1.bf16.msra.mxu0 0
        %983 = vmatprep.subr.bf16.mxu0 0
        %984 = vmatpush1.bf16.msra.mxu0 0
        %985 = vmatprep.subr.bf16.mxu0 0
        %986 = vmatpush1.bf16.msra.mxu0 0
        %987 = vmatprep.subr.bf16.mxu0 0
        %988 = vmatpush1.bf16.msra.mxu0 0
        %989 = vmatprep.subr.bf16.mxu0 0
        %990 = vmatpush1.bf16.msra.mxu0 %v970
        %991 = vmatprep.subr.bf16.mxu0 0
        %992 = vmatpush1.bf16.msra.mxu0 %v969
        %993 = vmatprep.subr.bf16.mxu0 0
        %994 = vmatpush2.bf16.msra.mxu0 0
        %995 = vmatprep.subr.bf16.mxu0 0
        %996 = vmatpush2.bf16.msra.mxu0 0
        %997 = vmatprep.subr.bf16.mxu0 0
        %998 = vmatpush2.bf16.msra.mxu0 0
        %999 = vmatprep.subr.bf16.mxu0 0
        %1000 = vmatpush2.bf16.msra.mxu0 0
        %1001 = vmatprep.subr.bf16.mxu0 0
        %1002 = vmatpush2.bf16.msra.mxu0 0
        %1003 = vmatprep.subr.bf16.mxu0 0
        %1004 = vmatpush2.bf16.msra.mxu0 0
        %1005 = vmatprep.subr.bf16.mxu0 0
        %1006 = vmatpush2.bf16.msra.mxu0 0
        %1007 = vmatprep.subr.bf16.mxu0 0
        %1008 = vmatpush2.bf16.msra.mxu0 0
        %1009 = vmatprep.mubr.bf16.mxu0 0
        %1010 = vmatmul.mubr.bf16.gmra.mxu0 %v975
        %v1011 = vpop.f32.mrf.mxu0
        %v1012 = vadd.f32 %v960, %v1011
        %v1013 = vpop.f32.mrf.mxu0
        %v1014 = vpop.f32.mrf.mxu0
        %v1015 = vpop.f32.mrf.mxu0
        %1016 = vdwg.mxu0
        %v1017 = vmul.f32 %v1012, 0.35355338
        %1019 = vrot.lane.b32.xlu0 %v1017, 120
        %v1020 = vpop.permute.xlu0 %1019
        %1022 = vrot.lane.b32.xlu0 %v1017, 112
        %v1023 = vpop.permute.xlu0 %1022
        %1025 = vrot.lane.b32.xlu0 %v1017, 104
        %v1026 = vpop.permute.xlu0 %1025
        %v1028 = vcombine.low %v1017, %v1023
        %v1029 = vcombine.high %v1017, %v1023
        %v1031 = vunpack.c.l.s4 1983009808
        %v1032 = vunpack.c.0.s8 %v1031
        %v1033 = vlaneseq
        %v1034 = vshrl.u32 %v1033, 7
        %v1035 = vsub.s32 %v1032, %v1034
        %v1036 = vrot.slane %v1028, %v1035
        %v1038 = vunpack.c.l.s4 1983009808
        %v1039 = vunpack.c.0.s8 %v1038
        %v1040 = vlaneseq
        %v1041 = vshrl.u32 %v1040, 7
        %v1042 = vsub.s32 %v1039, %v1041
        %v1043 = vrot.slane %v1029, %v1042
        %v1044 = vcombine.low %v1020, %v1026
        %v1045 = vcombine.high %v1020, %v1026
        %v1047 = vunpack.c.l.s4 1983009808
        %v1048 = vunpack.c.0.s8 %v1047
        %v1049 = vlaneseq
        %v1050 = vshrl.u32 %v1049, 7
        %v1051 = vsub.s32 %v1048, %v1050
        %v1052 = vrot.slane %v1044, %v1051
        %v1054 = vunpack.c.l.s4 1983009808
        %v1055 = vunpack.c.0.s8 %v1054
        %v1056 = vlaneseq
        %v1057 = vshrl.u32 %v1056, 7
        %v1058 = vsub.s32 %v1055, %v1057
        %v1059 = vrot.slane %v1045, %v1058
        %v1060 = vcombine.low %v1036, %v1052
        %v1061 = vcombine.high %v1036, %v1052
        %v1063 = vunpack.c.l.s4 1934713408
        %v1064 = vunpack.c.0.s8 %v1063
        %v1065 = vlaneseq
        %v1066 = vshrl.u32 %v1065, 7
        %v1067 = vsub.s32 %v1064, %v1066
        %v1068 = vrot.slane %v1060, %v1067
        %v1070 = vunpack.c.l.s4 1934713408
        %v1071 = vunpack.c.0.s8 %v1070
        %v1072 = vlaneseq
        %v1073 = vshrl.u32 %v1072, 7
        %v1074 = vsub.s32 %v1071, %v1073
        %v1075 = vrot.slane %v1061, %v1074
        %v1076 = vcombine.low %v1043, %v1059
        %v1077 = vcombine.high %v1043, %v1059
        %v1079 = vunpack.c.l.s4 1934713408
        %v1080 = vunpack.c.0.s8 %v1079
        %v1081 = vlaneseq
        %v1082 = vshrl.u32 %v1081, 7
        %v1083 = vsub.s32 %v1080, %v1082
        %v1084 = vrot.slane %v1076, %v1083
        %v1086 = vunpack.c.l.s4 1934713408
        %v1087 = vunpack.c.0.s8 %v1086
        %v1088 = vlaneseq
        %v1089 = vshrl.u32 %v1088, 7
        %v1090 = vsub.s32 %v1087, %v1089
        %v1091 = vrot.slane %v1077, %v1090
        %v1092 = vcombine.high %v1068, 0.0
        %v1093 = vcombine.high %v1075, 0.0
        %v1094 = vcombine.high %v1084, 0.0
        %v1095 = vcombine.high %v1091, 0.0
        %v1096 = vpack.c.bf16 %v1068, %v1068
        %v1097 = vpack.c.bf16 %v1092, %v1092
        %v1098 = vpack.c.bf16 %v1075, %v1075
        %v1099 = vpack.c.bf16 %v1093, %v1093
        %v1100 = vpack.c.bf16 %v1084, %v1084
        %v1101 = vpack.c.bf16 %v1094, %v1094
        %v1102 = vpack.c.bf16 %v1091, %v1091
        %v1103 = vpack.c.bf16 %v1095, %v1095
        %v1104 = vld [vmem:[#allocation2] sm:$0xf]
        %1106 = vrot.lane.b32.xlu0 %v1104, 120
        %v1107 = vpop.permute.xlu0 %1106
        %1109 = vrot.lane.b32.xlu0 %v1104, 112
        %v1110 = vpop.permute.xlu0 %1109
        %1112 = vrot.lane.b32.xlu0 %v1104, 104
        %v1113 = vpop.permute.xlu0 %1112
        %v1115 = vld [vmem:[#allocation3] sm:$0xf]
        %1117 = vrot.lane.b32.xlu0 %v1115, 120
        %v1118 = vpop.permute.xlu0 %1117
        %1120 = vrot.lane.b32.xlu0 %v1115, 112
        %v1121 = vpop.permute.xlu0 %1120
        %1123 = vrot.lane.b32.xlu0 %v1115, 104
        %v1124 = vpop.permute.xlu0 %1123
        %v1126 = vcombine.low %v1096, %v1100
        %v1128 = vunpack.c.l.s4 1983009808
        %v1129 = vunpack.c.0.s8 %v1128
        %v1130 = vlaneseq
        %v1131 = vshrl.u32 %v1130, 7
        %v1132 = vsub.s32 %v1129, %v1131
        %v1133 = vrot.slane %v1126, %v1132
        %v1134 = vcombine.low %v1098, %v1102
        %v1136 = vunpack.c.l.s4 1983009808
        %v1137 = vunpack.c.0.s8 %v1136
        %v1138 = vlaneseq
        %v1139 = vshrl.u32 %v1138, 7
        %v1140 = vsub.s32 %v1137, %v1139
        %v1141 = vrot.slane %v1134, %v1140
        %v1142 = vcombine.low %v1133, %v1141
        %v1144 = vunpack.c.l.s4 1934713408
        %v1145 = vunpack.c.0.s8 %v1144
        %v1146 = vlaneseq
        %v1147 = vshrl.u32 %v1146, 7
        %v1148 = vsub.s32 %v1145, %v1147
        %v1149 = vrot.slane %v1142, %v1148
        %v1150 = vcombine.high %v1149, 0
        %v1151 = vcombine.low %v1097, %v1101
        %v1153 = vunpack.c.l.s4 1983009808
        %v1154 = vunpack.c.0.s8 %v1153
        %v1155 = vlaneseq
        %v1156 = vshrl.u32 %v1155, 7
        %v1157 = vsub.s32 %v1154, %v1156
        %v1158 = vrot.slane %v1151, %v1157
        %v1159 = vcombine.low %v1099, %v1103
        %v1161 = vunpack.c.l.s4 1983009808
        %v1162 = vunpack.c.0.s8 %v1161
        %v1163 = vlaneseq
        %v1164 = vshrl.u32 %v1163, 7
        %v1165 = vsub.s32 %v1162, %v1164
        %v1166 = vrot.slane %v1159, %v1165
        %v1167 = vcombine.low %v1158, %v1166
        %v1169 = vunpack.c.l.s4 1934713408
        %v1170 = vunpack.c.0.s8 %v1169
        %v1171 = vlaneseq
        %v1172 = vshrl.u32 %v1171, 7
        %v1173 = vsub.s32 %v1170, %v1172
        %v1174 = vrot.slane %v1167, %v1173
        %v1175 = vcombine.high %v1174, 0
        %v1178 = vpack.i.b16 %v1174, %v1149
        %v1179 = vshrl.u32 %v1149, 16
        %v1180 = vshrl.u32 %v1174, 16
        %v1181 = vpack.i.b16 %v1180, %v1179
        %v1184 = vpack.i.b16 %v1175, %v1150
        %v1185 = vshrl.u32 %v1150, 16
        %v1186 = vshrl.u32 %v1175, 16
        %v1187 = vpack.i.b16 %v1186, %v1185
        %1188 = vxpose.xlu0.c.b16.start [1/8] %v1104, 128
        %1189 = vxpose.xlu0.c.b16.cont [2/8] 0, 128
        %1190 = vxpose.xlu0.c.b16.cont [3/8] 0, 128
        %1191 = vxpose.xlu0.c.b16.cont [4/8] 0, 128
        %1192 = vxpose.xlu0.c.b16.cont [5/8] 0, 128
        %1193 = vxpose.xlu0.c.b16.cont [6/8] 0, 128
        %1194 = vxpose.xlu0.c.b16.cont [7/8] 0, 128
        %1195 = vxpose.xlu0.c.b16.end [8/8] 0, 128
        %v1196 = vpop.trf.xlu0
        %v1197 = vpop.trf.xlu0
        %v1198 = vpop.trf.xlu0
        %v1199 = vpop.trf.xlu0
        %v1200 = vpop.trf.xlu0
        %v1201 = vpop.trf.xlu0
        %v1202 = vpop.trf.xlu0
        %v1203 = vpop.trf.xlu0
        %1204 = vxpose.xlu0.c.b16.start [1/8] %v1107, 128
        %1205 = vxpose.xlu0.c.b16.cont [2/8] 0, 128
        %1206 = vxpose.xlu0.c.b16.cont [3/8] 0, 128
        %1207 = vxpose.xlu0.c.b16.cont [4/8] 0, 128
        %1208 = vxpose.xlu0.c.b16.cont [5/8] 0, 128
        %1209 = vxpose.xlu0.c.b16.cont [6/8] 0, 128
        %1210 = vxpose.xlu0.c.b16.cont [7/8] 0, 128
        %1211 = vxpose.xlu0.c.b16.end [8/8] 0, 128
        %v1212 = vpop.trf.xlu0
        %v1213 = vpop.trf.xlu0
        %v1214 = vpop.trf.xlu0
        %v1215 = vpop.trf.xlu0
        %v1216 = vpop.trf.xlu0
        %v1217 = vpop.trf.xlu0
        %v1218 = vpop.trf.xlu0
        %v1219 = vpop.trf.xlu0
        %1220 = vxpose.xlu0.c.b16.start [1/8] %v1110, 128
        %1221 = vxpose.xlu0.c.b16.cont [2/8] 0, 128
        %1222 = vxpose.xlu0.c.b16.cont [3/8] 0, 128
        %1223 = vxpose.xlu0.c.b16.cont [4/8] 0, 128
        %1224 = vxpose.xlu0.c.b16.cont [5/8] 0, 128
        %1225 = vxpose.xlu0.c.b16.cont [6/8] 0, 128
        %1226 = vxpose.xlu0.c.b16.cont [7/8] 0, 128
        %1227 = vxpose.xlu0.c.b16.end [8/8] 0, 128
        %v1228 = vpop.trf.xlu0
        %v1229 = vpop.trf.xlu0
        %v1230 = vpop.trf.xlu0
        %v1231 = vpop.trf.xlu0
        %v1232 = vpop.trf.xlu0
        %v1233 = vpop.trf.xlu0
        %v1234 = vpop.trf.xlu0
        %v1235 = vpop.trf.xlu0
        %1236 = vxpose.xlu0.c.b16.start [1/8] %v1113, 128
        %1237 = vxpose.xlu0.c.b16.cont [2/8] 0, 128
        %1238 = vxpose.xlu0.c.b16.cont [3/8] 0, 128
        %1239 = vxpose.xlu0.c.b16.cont [4/8] 0, 128
        %1240 = vxpose.xlu0.c.b16.cont [5/8] 0, 128
        %1241 = vxpose.xlu0.c.b16.cont [6/8] 0, 128
        %1242 = vxpose.xlu0.c.b16.cont [7/8] 0, 128
        %1243 = vxpose.xlu0.c.b16.end [8/8] 0, 128
        %v1244 = vpop.trf.xlu0
        %v1245 = vpop.trf.xlu0
        %v1246 = vpop.trf.xlu0
        %v1247 = vpop.trf.xlu0
        %v1248 = vpop.trf.xlu0
        %v1249 = vpop.trf.xlu0
        %v1250 = vpop.trf.xlu0
        %v1251 = vpop.trf.xlu0
        %vm1252 = vcmask 64512
        %v1254 = vsel %vm1252, %v1178, 0
        %vm1256 = vcmask 1043456
        %v1258 = vsel %vm1256, %v1196, 0
        %1260 = vmatprep.subr.bf16.mxu0 0
        %1261 = vmatpush1.bf16.msra.mxu0 0
        %1262 = vmatprep.subr.bf16.mxu0 0
        %1263 = vmatpush1.bf16.msra.mxu0 0
        %1264 = vmatprep.subr.bf16.mxu0 0
        %1265 = vmatpush1.bf16.msra.mxu0 0
        %1266 = vmatprep.subr.bf16.mxu0 0
        %1267 = vmatpush1.bf16.msra.mxu0 0
        %1268 = vmatprep.subr.bf16.mxu0 0
        %1269 = vmatpush1.bf16.msra.mxu0 0
        %1270 = vmatprep.subr.bf16.mxu0 0
        %1271 = vmatpush1.bf16.msra.mxu0 0
        %1272 = vmatprep.subr.bf16.mxu0 0
        %1273 = vmatpush1.bf16.msra.mxu0 0
        %1274 = vmatprep.subr.bf16.mxu0 0
        %1275 = vmatpush1.bf16.msra.mxu0 %v1258
        %1276 = vmatprep.subr.bf16.mxu0 0
        %1277 = vmatpush2.bf16.msra.mxu0 0
        %1278 = vmatprep.subr.bf16.mxu0 0
        %1279 = vmatpush2.bf16.msra.mxu0 0
        %1280 = vmatprep.subr.bf16.mxu0 0
        %1281 = vmatpush2.bf16.msra.mxu0 0
        %1282 = vmatprep.subr.bf16.mxu0 0
        %1283 = vmatpush2.bf16.msra.mxu0 0
        %1284 = vmatprep.subr.bf16.mxu0 0
        %1285 = vmatpush2.bf16.msra.mxu0 0
        %1286 = vmatprep.subr.bf16.mxu0 0
        %1287 = vmatpush2.bf16.msra.mxu0 0
        %1288 = vmatprep.subr.bf16.mxu0 0
        %1289 = vmatpush2.bf16.msra.mxu0 0
        %1290 = vmatprep.subr.bf16.mxu0 0
        %1291 = vmatpush2.bf16.msra.mxu0 0
        %1292 = vmatprep.mubr.bf16.mxu0 0
        %1293 = vmatmul.mubr.bf16.gmra.mxu0 %v1254
        %v1294 = vpop.f32.mrf.mxu0
        %v1295 = vadd.f32 %v946, %v1294
        %v1296 = vpop.f32.mrf.mxu0
        %v1297 = vpop.f32.mrf.mxu0
        %v1298 = vpop.f32.mrf.mxu0
        %1299 = vdwg.mxu0
        %v1301 = vsel %vm1252, %v1181, 0
        %v1304 = vsel %vm1256, %v1212, 0
        %1306 = vmatprep.subr.bf16.mxu0 0
        %1307 = vmatpush1.bf16.msra.mxu0 0
        %1308 = vmatprep.subr.bf16.mxu0 0
        %1309 = vmatpush1.bf16.msra.mxu0 0
        %1310 = vmatprep.subr.bf16.mxu0 0
        %1311 = vmatpush1.bf16.msra.mxu0 0
        %1312 = vmatprep.subr.bf16.mxu0 0
        %1313 = vmatpush1.bf16.msra.mxu0 0
        %1314 = vmatprep.subr.bf16.mxu0 0
        %1315 = vmatpush1.bf16.msra.mxu0 0
        %1316 = vmatprep.subr.bf16.mxu0 0
        %1317 = vmatpush1.bf16.msra.mxu0 0
        %1318 = vmatprep.subr.bf16.mxu0 0
        %1319 = vmatpush1.bf16.msra.mxu0 0
        %1320 = vmatprep.subr.bf16.mxu0 0
        %1321 = vmatpush1.bf16.msra.mxu0 %v1304
        %1322 = vmatprep.subr.bf16.mxu0 0
        %1323 = vmatpush2.bf16.msra.mxu0 0
        %1324 = vmatprep.subr.bf16.mxu0 0
        %1325 = vmatpush2.bf16.msra.mxu0 0
        %1326 = vmatprep.subr.bf16.mxu0 0
        %1327 = vmatpush2.bf16.msra.mxu0 0
        %1328 = vmatprep.subr.bf16.mxu0 0
        %1329 = vmatpush2.bf16.msra.mxu0 0
        %1330 = vmatprep.subr.bf16.mxu0 0
        %1331 = vmatpush2.bf16.msra.mxu0 0
        %1332 = vmatprep.subr.bf16.mxu0 0
        %1333 = vmatpush2.bf16.msra.mxu0 0
        %1334 = vmatprep.subr.bf16.mxu0 0
        %1335 = vmatpush2.bf16.msra.mxu0 0
        %1336 = vmatprep.subr.bf16.mxu0 0
        %1337 = vmatpush2.bf16.msra.mxu0 0
        %1338 = vmatprep.mubr.bf16.mxu0 0
        %1339 = vmatmul.mubr.bf16.gmra.mxu0 %v1301
        %v1340 = vpop.f32.mrf.mxu0
        %v1341 = vadd.f32 %v946, %v1340
        %v1342 = vpop.f32.mrf.mxu0
        %v1343 = vpop.f32.mrf.mxu0
        %v1344 = vpop.f32.mrf.mxu0
        %1345 = vdwg.mxu0
        %v1347 = vsel %vm1252, %v1184, 0
        %v1350 = vsel %vm1256, %v1228, 0
        %1352 = vmatprep.subr.bf16.mxu0 0
        %1353 = vmatpush1.bf16.msra.mxu0 0
        %1354 = vmatprep.subr.bf16.mxu0 0
        %1355 = vmatpush1.bf16.msra.mxu0 0
        %1356 = vmatprep.subr.bf16.mxu0 0
        %1357 = vmatpush1.bf16.msra.mxu0 0
        %1358 = vmatprep.subr.bf16.mxu0 0
        %1359 = vmatpush1.bf16.msra.mxu0 0
        %1360 = vmatprep.subr.bf16.mxu0 0
        %1361 = vmatpush1.bf16.msra.mxu0 0
        %1362 = vmatprep.subr.bf16.mxu0 0
        %1363 = vmatpush1.bf16.msra.mxu0 0
        %1364 = vmatprep.subr.bf16.mxu0 0
        %1365 = vmatpush1.bf16.msra.mxu0 0
        %1366 = vmatprep.subr.bf16.mxu0 0
        %1367 = vmatpush1.bf16.msra.mxu0 %v1350
        %1368 = vmatprep.subr.bf16.mxu0 0
        %1369 = vmatpush2.bf16.msra.mxu0 0
        %1370 = vmatprep.subr.bf16.mxu0 0
        %1371 = vmatpush2.bf16.msra.mxu0 0
        %1372 = vmatprep.subr.bf16.mxu0 0
        %1373 = vmatpush2.bf16.msra.mxu0 0
        %1374 = vmatprep.subr.bf16.mxu0 0
        %1375 = vmatpush2.bf16.msra.mxu0 0
        %1376 = vmatprep.subr.bf16.mxu0 0
        %1377 = vmatpush2.bf16.msra.mxu0 0
        %1378 = vmatprep.subr.bf16.mxu0 0
        %1379 = vmatpush2.bf16.msra.mxu0 0
        %1380 = vmatprep.subr.bf16.mxu0 0
        %1381 = vmatpush2.bf16.msra.mxu0 0
        %1382 = vmatprep.subr.bf16.mxu0 0
        %1383 = vmatpush2.bf16.msra.mxu0 0
        %1384 = vmatprep.mubr.bf16.mxu0 0
        %1385 = vmatmul.mubr.bf16.gmra.mxu0 %v1347
        %v1386 = vpop.f32.mrf.mxu0
        %v1387 = vadd.f32 %v946, %v1386
        %v1388 = vpop.f32.mrf.mxu0
        %v1389 = vpop.f32.mrf.mxu0
        %v1390 = vpop.f32.mrf.mxu0
        %1391 = vdwg.mxu0
        %v1393 = vsel %vm1252, %v1187, 0
        %v1396 = vsel %vm1256, %v1244, 0
        %1398 = vmatprep.subr.bf16.mxu0 0
        %1399 = vmatpush1.bf16.msra.mxu0 0
        %1400 = vmatprep.subr.bf16.mxu0 0
        %1401 = vmatpush1.bf16.msra.mxu0 0
        %1402 = vmatprep.subr.bf16.mxu0 0
        %1403 = vmatpush1.bf16.msra.mxu0 0
        %1404 = vmatprep.subr.bf16.mxu0 0
        %1405 = vmatpush1.bf16.msra.mxu0 0
        %1406 = vmatprep.subr.bf16.mxu0 0
        %1407 = vmatpush1.bf16.msra.mxu0 0
        %1408 = vmatprep.subr.bf16.mxu0 0
        %1409 = vmatpush1.bf16.msra.mxu0 0
        %1410 = vmatprep.subr.bf16.mxu0 0
        %1411 = vmatpush1.bf16.msra.mxu0 0
        %1412 = vmatprep.subr.bf16.mxu0 0
        %1413 = vmatpush1.bf16.msra.mxu0 %v1396
        %1414 = vmatprep.subr.bf16.mxu0 0
        %1415 = vmatpush2.bf16.msra.mxu0 0
        %1416 = vmatprep.subr.bf16.mxu0 0
        %1417 = vmatpush2.bf16.msra.mxu0 0
        %1418 = vmatprep.subr.bf16.mxu0 0
        %1419 = vmatpush2.bf16.msra.mxu0 0
        %1420 = vmatprep.subr.bf16.mxu0 0
        %1421 = vmatpush2.bf16.msra.mxu0 0
        %1422 = vmatprep.subr.bf16.mxu0 0
        %1423 = vmatpush2.bf16.msra.mxu0 0
        %1424 = vmatprep.subr.bf16.mxu0 0
        %1425 = vmatpush2.bf16.msra.mxu0 0
        %1426 = vmatprep.subr.bf16.mxu0 0
        %1427 = vmatpush2.bf16.msra.mxu0 0
        %1428 = vmatprep.subr.bf16.mxu0 0
        %1429 = vmatpush2.bf16.msra.mxu0 0
        %1430 = vmatprep.mubr.bf16.mxu0 0
        %1431 = vmatmul.mubr.bf16.gmra.mxu0 %v1393
        %v1432 = vpop.f32.mrf.mxu0
        %v1433 = vadd.f32 %v946, %v1432
        %v1434 = vpop.f32.mrf.mxu0
        %v1435 = vpop.f32.mrf.mxu0
        %v1436 = vpop.f32.mrf.mxu0
        %1437 = vdwg.mxu0
        %v1438 = vsel %vm1252, %v1295, -inf
        %1439 = vmax.xlane.f32.xlu0 %v1438
        %v1440 = vpop.xlane.xlu0 %1439
        %v1441 = vsel %vm1252, %v1341, -inf
        %1442 = vmax.xlane.f32.xlu0 %v1441
        %v1443 = vpop.xlane.xlu0 %1442
        %v1444 = vsel %vm1252, %v1387, -inf
        %1445 = vmax.xlane.f32.xlu0 %v1444
        %v1446 = vpop.xlane.xlu0 %1445
        %v1447 = vsel %vm1252, %v1433, -inf
        %1448 = vmax.xlane.f32.xlu0 %v1447
        %v1449 = vpop.xlane.xlu0 %1448
        %v1450 = vsub.f32 %v1295, %v1440
        %v1451 = vsub.f32 %v1341, %v1443
        %v1452 = vsub.f32 %v1387, %v1446
        %v1453 = vsub.f32 %v1433, %v1449
        %v1454 = vmul.f32 %v1450, 1.442695
        %v1455 = vpow.pop %v1454
        %v1456 = vmul.f32 %v1451, 1.442695
        %v1457 = vpow.pop %v1456
        %v1458 = vmul.f32 %v1452, 1.442695
        %v1459 = vpow.pop %v1458
        %v1460 = vmul.f32 %v1453, 1.442695
        %v1461 = vpow.pop %v1460
        %v1462 = vsel %vm1252, %v1455, 0.0
        %1463 = vadd.xlane.f32.xlu0 %v1462
        %v1464 = vpop.xlane.xlu0 %1463
        %v1465 = vsel %vm1252, %v1457, 0.0
        %1466 = vadd.xlane.f32.xlu0 %v1465
        %v1467 = vpop.xlane.xlu0 %1466
        %v1468 = vsel %vm1252, %v1459, 0.0
        %1469 = vadd.xlane.f32.xlu0 %v1468
        %v1470 = vpop.xlane.xlu0 %1469
        %v1471 = vsel %vm1252, %v1461, 0.0
        %1472 = vadd.xlane.f32.xlu0 %v1471
        %v1473 = vpop.xlane.xlu0 %1472
        %v1474 = vrcp.pop %v1464
        %v1475 = vrcp.pop %v1467
        %v1476 = vrcp.pop %v1470
        %v1477 = vrcp.pop %v1473
        %v1478 = vmul.f32 %v1455, %v1474
        %v1479 = vmul.f32 %v1457, %v1475
        %v1480 = vmul.f32 %v1459, %v1476
        %v1481 = vmul.f32 %v1461, %v1477
        %v1482 = vpack.c.bf16 %v1478, %v1478
        %v1483 = vpack.c.bf16 %v1479, %v1479
        %v1484 = vpack.c.bf16 %v1480, %v1480
        %v1485 = vpack.c.bf16 %v1481, %v1481
        %vm1486 = vcmask 60416
        %1487 = vst.msk [vmem:[%s641] sm:$0xf] %vm1486, %v1482
        %1488 = vst.msk [vmem:[%s641 + $0x4] sm:$0xf] %vm1486, %v1483
        %1489 = vst.msk [vmem:[%s641 + $0x8] sm:$0xf] %vm1486, %v1484
        %1490 = vst.msk [vmem:[%s641 + $0xc] sm:$0xf] %vm1486, %v1485
        %1491 = vxpose.xlu0.c.b16.start [1/8] %v1115, 128
        %1492 = vxpose.xlu0.c.b16.cont [2/8] 0, 128
        %1493 = vxpose.xlu0.c.b16.cont [3/8] 0, 128
        %1494 = vxpose.xlu0.c.b16.cont [4/8] 0, 128
        %1495 = vxpose.xlu0.c.b16.cont [5/8] 0, 128
        %1496 = vxpose.xlu0.c.b16.cont [6/8] 0, 128
        %1497 = vxpose.xlu0.c.b16.cont [7/8] 0, 128
        %1498 = vxpose.xlu0.c.b16.end [8/8] 0, 128
        %v1499 = vpop.trf.xlu0
        %v1500 = vpop.trf.xlu0
        %v1501 = vpop.trf.xlu0
        %v1502 = vpop.trf.xlu0
        %v1503 = vpop.trf.xlu0
        %v1504 = vpop.trf.xlu0
        %v1505 = vpop.trf.xlu0
        %v1506 = vpop.trf.xlu0
        %1507 = vxpose.xlu0.c.b16.start [1/8] %v1118, 128
        %1508 = vxpose.xlu0.c.b16.cont [2/8] 0, 128
        %1509 = vxpose.xlu0.c.b16.cont [3/8] 0, 128
        %1510 = vxpose.xlu0.c.b16.cont [4/8] 0, 128
        %1511 = vxpose.xlu0.c.b16.cont [5/8] 0, 128
        %1512 = vxpose.xlu0.c.b16.cont [6/8] 0, 128
        %1513 = vxpose.xlu0.c.b16.cont [7/8] 0, 128
        %1514 = vxpose.xlu0.c.b16.end [8/8] 0, 128
        %v1515 = vpop.trf.xlu0
        %v1516 = vpop.trf.xlu0
        %v1517 = vpop.trf.xlu0
        %v1518 = vpop.trf.xlu0
        %v1519 = vpop.trf.xlu0
        %v1520 = vpop.trf.xlu0
        %v1521 = vpop.trf.xlu0
        %v1522 = vpop.trf.xlu0
        %1523 = vxpose.xlu0.c.b16.start [1/8] %v1121, 128
        %1524 = vxpose.xlu0.c.b16.cont [2/8] 0, 128
        %1525 = vxpose.xlu0.c.b16.cont [3/8] 0, 128
        %1526 = vxpose.xlu0.c.b16.cont [4/8] 0, 128
        %1527 = vxpose.xlu0.c.b16.cont [5/8] 0, 128
        %1528 = vxpose.xlu0.c.b16.cont [6/8] 0, 128
        %1529 = vxpose.xlu0.c.b16.cont [7/8] 0, 128
        %1530 = vxpose.xlu0.c.b16.end [8/8] 0, 128
        %v1531 = vpop.trf.xlu0
        %v1532 = vpop.trf.xlu0
        %v1533 = vpop.trf.xlu0
        %v1534 = vpop.trf.xlu0
        %v1535 = vpop.trf.xlu0
        %v1536 = vpop.trf.xlu0
        %v1537 = vpop.trf.xlu0
        %v1538 = vpop.trf.xlu0
        %1539 = vxpose.xlu0.c.b16.start [1/8] %v1124, 128
        %1540 = vxpose.xlu0.c.b16.cont [2/8] 0, 128
        %1541 = vxpose.xlu0.c.b16.cont [3/8] 0, 128
        %1542 = vxpose.xlu0.c.b16.cont [4/8] 0, 128
        %1543 = vxpose.xlu0.c.b16.cont [5/8] 0, 128
        %1544 = vxpose.xlu0.c.b16.cont [6/8] 0, 128
        %1545 = vxpose.xlu0.c.b16.cont [7/8] 0, 128
        %1546 = vxpose.xlu0.c.b16.end [8/8] 0, 128
        %v1547 = vpop.trf.xlu0
        %v1548 = vpop.trf.xlu0
        %v1549 = vpop.trf.xlu0
        %v1550 = vpop.trf.xlu0
        %v1551 = vpop.trf.xlu0
        %v1552 = vpop.trf.xlu0
        %v1553 = vpop.trf.xlu0
        %v1554 = vpop.trf.xlu0
        %v1556 = vsel %vm1252, %v1499, 0
        %v1559 = vsel %vm1252, %v1482, 0
        %1561 = vmatprep.subr.bf16.mxu0 0
        %1562 = vmatpush1.bf16.xpose.msra.mxu0 0
        %1563 = vmatprep.subr.bf16.mxu0 0
        %1564 = vmatpush1.bf16.xpose.msra.mxu0 0
        %1565 = vmatprep.subr.bf16.mxu0 0
        %1566 = vmatpush1.bf16.xpose.msra.mxu0 0
        %1567 = vmatprep.subr.bf16.mxu0 0
        %1568 = vmatpush1.bf16.xpose.msra.mxu0 0
        %1569 = vmatprep.subr.bf16.mxu0 0
        %1570 = vmatpush1.bf16.xpose.msra.mxu0 0
        %1571 = vmatprep.subr.bf16.mxu0 0
        %1572 = vmatpush1.bf16.xpose.msra.mxu0 0
        %1573 = vmatprep.subr.bf16.mxu0 0
        %1574 = vmatpush1.bf16.xpose.msra.mxu0 0
        %1575 = vmatprep.subr.bf16.mxu0 0
        %1576 = vmatpush1.bf16.xpose.msra.mxu0 %v1559
        %1577 = vmatprep.subr.bf16.mxu0 0
        %1578 = vmatpush2.bf16.xpose.msra.mxu0 0
        %1579 = vmatprep.subr.bf16.mxu0 0
        %1580 = vmatpush2.bf16.xpose.msra.mxu0 0
        %1581 = vmatprep.subr.bf16.mxu0 0
        %1582 = vmatpush2.bf16.xpose.msra.mxu0 0
        %1583 = vmatprep.subr.bf16.mxu0 0
        %1584 = vmatpush2.bf16.xpose.msra.mxu0 0
        %1585 = vmatprep.subr.bf16.mxu0 0
        %1586 = vmatpush2.bf16.xpose.msra.mxu0 0
        %1587 = vmatprep.subr.bf16.mxu0 0
        %1588 = vmatpush2.bf16.xpose.msra.mxu0 0
        %1589 = vmatprep.subr.bf16.mxu0 0
        %1590 = vmatpush2.bf16.xpose.msra.mxu0 0
        %1591 = vmatprep.subr.bf16.mxu0 0
        %1592 = vmatpush2.bf16.xpose.msra.mxu0 0
        %1593 = vmatprep.mubr.bf16.mxu0 0
        %1594 = vmatmul.mubr.bf16.gmra.mxu0 %v1556
        %v1595 = vpop.f32.mrf.mxu0
        %v1596 = vadd.f32 0.0, %v1595
        %v1597 = vpop.f32.mrf.mxu0
        %v1598 = vpop.f32.mrf.mxu0
        %v1599 = vpop.f32.mrf.mxu0
        %1600 = vdwg.mxu0
        %v1602 = vsel %vm1252, %v1515, 0
        %v1605 = vsel %vm1252, %v1483, 0
        %1607 = vmatprep.subr.bf16.mxu0 0
        %1608 = vmatpush1.bf16.xpose.msra.mxu0 0
        %1609 = vmatprep.subr.bf16.mxu0 0
        %1610 = vmatpush1.bf16.xpose.msra.mxu0 0
        %1611 = vmatprep.subr.bf16.mxu0 0
        %1612 = vmatpush1.bf16.xpose.msra.mxu0 0
        %1613 = vmatprep.subr.bf16.mxu0 0
        %1614 = vmatpush1.bf16.xpose.msra.mxu0 0
        %1615 = vmatprep.subr.bf16.mxu0 0
        %1616 = vmatpush1.bf16.xpose.msra.mxu0 0
        %1617 = vmatprep.subr.bf16.mxu0 0
        %1618 = vmatpush1.bf16.xpose.msra.mxu0 0
        %1619 = vmatprep.subr.bf16.mxu0 0
        %1620 = vmatpush1.bf16.xpose.msra.mxu0 0
        %1621 = vmatprep.subr.bf16.mxu0 0
        %1622 = vmatpush1.bf16.xpose.msra.mxu0 %v1605
        %1623 = vmatprep.subr.bf16.mxu0 0
        %1624 = vmatpush2.bf16.xpose.msra.mxu0 0
        %1625 = vmatprep.subr.bf16.mxu0 0
        %1626 = vmatpush2.bf16.xpose.msra.mxu0 0
        %1627 = vmatprep.subr.bf16.mxu0 0
        %1628 = vmatpush2.bf16.xpose.msra.mxu0 0
        %1629 = vmatprep.subr.bf16.mxu0 0
        %1630 = vmatpush2.bf16.xpose.msra.mxu0 0
        %1631 = vmatprep.subr.bf16.mxu0 0
        %1632 = vmatpush2.bf16.xpose.msra.mxu0 0
        %1633 = vmatprep.subr.bf16.mxu0 0
        %1634 = vmatpush2.bf16.xpose.msra.mxu0 0
        %1635 = vmatprep.subr.bf16.mxu0 0
        %1636 = vmatpush2.bf16.xpose.msra.mxu0 0
        %1637 = vmatprep.subr.bf16.mxu0 0
        %1638 = vmatpush2.bf16.xpose.msra.mxu0 0
        %1639 = vmatprep.mubr.bf16.mxu0 0
        %1640 = vmatmul.mubr.bf16.gmra.mxu0 %v1602
        %v1641 = vpop.f32.mrf.mxu0
        %v1642 = vadd.f32 0.0, %v1641
        %v1643 = vpop.f32.mrf.mxu0
        %v1644 = vpop.f32.mrf.mxu0
        %v1645 = vpop.f32.mrf.mxu0
        %1646 = vdwg.mxu0
        %v1648 = vsel %vm1252, %v1531, 0
        %v1651 = vsel %vm1252, %v1484, 0
        %1653 = vmatprep.subr.bf16.mxu0 0
        %1654 = vmatpush1.bf16.xpose.msra.mxu0 0
        %1655 = vmatprep.subr.bf16.mxu0 0
        %1656 = vmatpush1.bf16.xpose.msra.mxu0 0
        %1657 = vmatprep.subr.bf16.mxu0 0
        %1658 = vmatpush1.bf16.xpose.msra.mxu0 0
        %1659 = vmatprep.subr.bf16.mxu0 0
        %1660 = vmatpush1.bf16.xpose.msra.mxu0 0
        %1661 = vmatprep.subr.bf16.mxu0 0
        %1662 = vmatpush1.bf16.xpose.msra.mxu0 0
        %1663 = vmatprep.subr.bf16.mxu0 0
        %1664 = vmatpush1.bf16.xpose.msra.mxu0 0
        %1665 = vmatprep.subr.bf16.mxu0 0
        %1666 = vmatpush1.bf16.xpose.msra.mxu0 0
        %1667 = vmatprep.subr.bf16.mxu0 0
        %1668 = vmatpush1.bf16.xpose.msra.mxu0 %v1651
        %1669 = vmatprep.subr.bf16.mxu0 0
        %1670 = vmatpush2.bf16.xpose.msra.mxu0 0
        %1671 = vmatprep.subr.bf16.mxu0 0
        %1672 = vmatpush2.bf16.xpose.msra.mxu0 0
        %1673 = vmatprep.subr.bf16.mxu0 0
        %1674 = vmatpush2.bf16.xpose.msra.mxu0 0
        %1675 = vmatprep.subr.bf16.mxu0 0
        %1676 = vmatpush2.bf16.xpose.msra.mxu0 0
        %1677 = vmatprep.subr.bf16.mxu0 0
        %1678 = vmatpush2.bf16.xpose.msra.mxu0 0
        %1679 = vmatprep.subr.bf16.mxu0 0
        %1680 = vmatpush2.bf16.xpose.msra.mxu0 0
        %1681 = vmatprep.subr.bf16.mxu0 0
        %1682 = vmatpush2.bf16.xpose.msra.mxu0 0
        %1683 = vmatprep.subr.bf16.mxu0 0
        %1684 = vmatpush2.bf16.xpose.msra.mxu0 0
        %1685 = vmatprep.mubr.bf16.mxu0 0
        %1686 = vmatmul.mubr.bf16.gmra.mxu0 %v1648
        %v1687 = vpop.f32.mrf.mxu0
        %v1688 = vadd.f32 0.0, %v1687
        %v1689 = vpop.f32.mrf.mxu0
        %v1690 = vpop.f32.mrf.mxu0
        %v1691 = vpop.f32.mrf.mxu0
        %1692 = vdwg.mxu0
        %v1694 = vsel %vm1252, %v1547, 0
        %v1697 = vsel %vm1252, %v1485, 0
        %1699 = vmatprep.subr.bf16.mxu0 0
        %1700 = vmatpush1.bf16.xpose.msra.mxu0 0
        %1701 = vmatprep.subr.bf16.mxu0 0
        %1702 = vmatpush1.bf16.xpose.msra.mxu0 0
        %1703 = vmatprep.subr.bf16.mxu0 0
        %1704 = vmatpush1.bf16.xpose.msra.mxu0 0
        %1705 = vmatprep.subr.bf16.mxu0 0
        %1706 = vmatpush1.bf16.xpose.msra.mxu0 0
        %1707 = vmatprep.subr.bf16.mxu0 0
        %1708 = vmatpush1.bf16.xpose.msra.mxu0 0
        %1709 = vmatprep.subr.bf16.mxu0 0
        %1710 = vmatpush1.bf16.xpose.msra.mxu0 0
        %1711 = vmatprep.subr.bf16.mxu0 0
        %1712 = vmatpush1.bf16.xpose.msra.mxu0 0
        %1713 = vmatprep.subr.bf16.mxu0 0
        %1714 = vmatpush1.bf16.xpose.msra.mxu0 %v1697
        %1715 = vmatprep.subr.bf16.mxu0 0
        %1716 = vmatpush2.bf16.xpose.msra.mxu0 0
        %1717 = vmatprep.subr.bf16.mxu0 0
        %1718 = vmatpush2.bf16.xpose.msra.mxu0 0
        %1719 = vmatprep.subr.bf16.mxu0 0
        %1720 = vmatpush2.bf16.xpose.msra.mxu0 0
        %1721 = vmatprep.subr.bf16.mxu0 0
        %1722 = vmatpush2.bf16.xpose.msra.mxu0 0
        %1723 = vmatprep.subr.bf16.mxu0 0
        %1724 = vmatpush2.bf16.xpose.msra.mxu0 0
        %1725 = vmatprep.subr.bf16.mxu0 0
        %1726 = vmatpush2.bf16.xpose.msra.mxu0 0
        %1727 = vmatprep.subr.bf16.mxu0 0
        %1728 = vmatpush2.bf16.xpose.msra.mxu0 0
        %1729 = vmatprep.subr.bf16.mxu0 0
        %1730 = vmatpush2.bf16.xpose.msra.mxu0 0
        %1731 = vmatprep.mubr.bf16.mxu0 0
        %1732 = vmatmul.mubr.bf16.gmra.mxu0 %v1694
        %v1733 = vpop.f32.mrf.mxu0
        %v1734 = vadd.f32 0.0, %v1733
        %v1735 = vpop.f32.mrf.mxu0
        %v1736 = vpop.f32.mrf.mxu0
        %v1737 = vpop.f32.mrf.mxu0
        %1738 = vdwg.mxu0
        %1739 = vxpose.xlu0.b32.start [1/16] %v1596, 128
        %1740 = vxpose.xlu0.b32.cont [2/16] 0.0, 128
        %1741 = vxpose.xlu0.b32.cont [3/16] 0.0, 128
        %1742 = vxpose.xlu0.b32.cont [4/16] 0.0, 128
        %1743 = vxpose.xlu0.b32.cont [5/16] 0.0, 128
        %1744 = vxpose.xlu0.b32.cont [6/16] 0.0, 128
        %1745 = vxpose.xlu0.b32.cont [7/16] 0.0, 128
        %1746 = vxpose.xlu0.b32.cont [8/16] 0.0, 128
        %1747 = vxpose.xlu0.b32.cont [9/16] 0.0, 128
        %1748 = vxpose.xlu0.b32.cont [10/16] 0.0, 128
        %1749 = vxpose.xlu0.b32.cont [11/16] 0.0, 128
        %1750 = vxpose.xlu0.b32.cont [12/16] 0.0, 128
        %1751 = vxpose.xlu0.b32.cont [13/16] 0.0, 128
        %1752 = vxpose.xlu0.b32.cont [14/16] 0.0, 128
        %1753 = vxpose.xlu0.b32.cont [15/16] 0.0, 128
        %1754 = vxpose.xlu0.b32.end [16/16] 0.0, 128
        %v1755 = vpop.trf.xlu0
        %v1756 = vpop.trf.xlu0
        %v1757 = vpop.trf.xlu0
        %v1758 = vpop.trf.xlu0
        %v1759 = vpop.trf.xlu0
        %v1760 = vpop.trf.xlu0
        %v1761 = vpop.trf.xlu0
        %v1762 = vpop.trf.xlu0
        %v1763 = vpop.trf.xlu0
        %v1764 = vpop.trf.xlu0
        %v1765 = vpop.trf.xlu0
        %v1766 = vpop.trf.xlu0
        %v1767 = vpop.trf.xlu0
        %v1768 = vpop.trf.xlu0
        %v1769 = vpop.trf.xlu0
        %v1770 = vpop.trf.xlu0
        %1771 = vxpose.xlu0.b32.start [1/16] %v1642, 128
        %1772 = vxpose.xlu0.b32.cont [2/16] 0.0, 128
        %1773 = vxpose.xlu0.b32.cont [3/16] 0.0, 128
        %1774 = vxpose.xlu0.b32.cont [4/16] 0.0, 128
        %1775 = vxpose.xlu0.b32.cont [5/16] 0.0, 128
        %1776 = vxpose.xlu0.b32.cont [6/16] 0.0, 128
        %1777 = vxpose.xlu0.b32.cont [7/16] 0.0, 128
        %1778 = vxpose.xlu0.b32.cont [8/16] 0.0, 128
        %1779 = vxpose.xlu0.b32.cont [9/16] 0.0, 128
        %1780 = vxpose.xlu0.b32.cont [10/16] 0.0, 128
        %1781 = vxpose.xlu0.b32.cont [11/16] 0.0, 128
        %1782 = vxpose.xlu0.b32.cont [12/16] 0.0, 128
        %1783 = vxpose.xlu0.b32.cont [13/16] 0.0, 128
        %1784 = vxpose.xlu0.b32.cont [14/16] 0.0, 128
        %1785 = vxpose.xlu0.b32.cont [15/16] 0.0, 128
        %1786 = vxpose.xlu0.b32.end [16/16] 0.0, 128
        %v1787 = vpop.trf.xlu0
        %v1788 = vpop.trf.xlu0
        %v1789 = vpop.trf.xlu0
        %v1790 = vpop.trf.xlu0
        %v1791 = vpop.trf.xlu0
        %v1792 = vpop.trf.xlu0
        %v1793 = vpop.trf.xlu0
        %v1794 = vpop.trf.xlu0
        %v1795 = vpop.trf.xlu0
        %v1796 = vpop.trf.xlu0
        %v1797 = vpop.trf.xlu0
        %v1798 = vpop.trf.xlu0
        %v1799 = vpop.trf.xlu0
        %v1800 = vpop.trf.xlu0
        %v1801 = vpop.trf.xlu0
        %v1802 = vpop.trf.xlu0
        %1803 = vxpose.xlu0.b32.start [1/16] %v1688, 128
        %1804 = vxpose.xlu0.b32.cont [2/16] 0.0, 128
        %1805 = vxpose.xlu0.b32.cont [3/16] 0.0, 128
        %1806 = vxpose.xlu0.b32.cont [4/16] 0.0, 128
        %1807 = vxpose.xlu0.b32.cont [5/16] 0.0, 128
        %1808 = vxpose.xlu0.b32.cont [6/16] 0.0, 128
        %1809 = vxpose.xlu0.b32.cont [7/16] 0.0, 128
        %1810 = vxpose.xlu0.b32.cont [8/16] 0.0, 128
        %1811 = vxpose.xlu0.b32.cont [9/16] 0.0, 128
        %1812 = vxpose.xlu0.b32.cont [10/16] 0.0, 128
        %1813 = vxpose.xlu0.b32.cont [11/16] 0.0, 128
        %1814 = vxpose.xlu0.b32.cont [12/16] 0.0, 128
        %1815 = vxpose.xlu0.b32.cont [13/16] 0.0, 128
        %1816 = vxpose.xlu0.b32.cont [14/16] 0.0, 128
        %1817 = vxpose.xlu0.b32.cont [15/16] 0.0, 128
        %1818 = vxpose.xlu0.b32.end [16/16] 0.0, 128
        %v1819 = vpop.trf.xlu0
        %v1820 = vpop.trf.xlu0
        %v1821 = vpop.trf.xlu0
        %v1822 = vpop.trf.xlu0
        %v1823 = vpop.trf.xlu0
        %v1824 = vpop.trf.xlu0
        %v1825 = vpop.trf.xlu0
        %v1826 = vpop.trf.xlu0
        %v1827 = vpop.trf.xlu0
        %v1828 = vpop.trf.xlu0
        %v1829 = vpop.trf.xlu0
        %v1830 = vpop.trf.xlu0
        %v1831 = vpop.trf.xlu0
        %v1832 = vpop.trf.xlu0
        %v1833 = vpop.trf.xlu0
        %v1834 = vpop.trf.xlu0
        %1835 = vxpose.xlu0.b32.start [1/16] %v1734, 128
        %1836 = vxpose.xlu0.b32.cont [2/16] 0.0, 128
        %1837 = vxpose.xlu0.b32.cont [3/16] 0.0, 128
        %1838 = vxpose.xlu0.b32.cont [4/16] 0.0, 128
        %1839 = vxpose.xlu0.b32.cont [5/16] 0.0, 128
        %1840 = vxpose.xlu0.b32.cont [6/16] 0.0, 128
        %1841 = vxpose.xlu0.b32.cont [7/16] 0.0, 128
        %1842 = vxpose.xlu0.b32.cont [8/16] 0.0, 128
        %1843 = vxpose.xlu0.b32.cont [9/16] 0.0, 128
        %1844 = vxpose.xlu0.b32.cont [10/16] 0.0, 128
        %1845 = vxpose.xlu0.b32.cont [11/16] 0.0, 128
        %1846 = vxpose.xlu0.b32.cont [12/16] 0.0, 128
        %1847 = vxpose.xlu0.b32.cont [13/16] 0.0, 128
        %1848 = vxpose.xlu0.b32.cont [14/16] 0.0, 128
        %1849 = vxpose.xlu0.b32.cont [15/16] 0.0, 128
        %1850 = vxpose.xlu0.b32.end [16/16] 0.0, 128
        %v1851 = vpop.trf.xlu0
        %v1852 = vpop.trf.xlu0
        %v1853 = vpop.trf.xlu0
        %v1854 = vpop.trf.xlu0
        %v1855 = vpop.trf.xlu0
        %v1856 = vpop.trf.xlu0
        %v1857 = vpop.trf.xlu0
        %v1858 = vpop.trf.xlu0
        %v1859 = vpop.trf.xlu0
        %v1860 = vpop.trf.xlu0
        %v1861 = vpop.trf.xlu0
        %v1862 = vpop.trf.xlu0
        %v1863 = vpop.trf.xlu0
        %v1864 = vpop.trf.xlu0
        %v1865 = vpop.trf.xlu0
        %v1866 = vpop.trf.xlu0
        %v1867 = vcombine.low %v1755, %v1819
        %v1868 = vcombine.high %v1755, %v1819
        %v1870 = vunpack.c.l.s4 1983009808
        %v1871 = vunpack.c.0.s8 %v1870
        %v1872 = vlaneseq
        %v1873 = vshrl.u32 %v1872, 7
        %v1874 = vsub.s32 %v1871, %v1873
        %v1875 = vrot.slane %v1867, %v1874
        %v1877 = vunpack.c.l.s4 1983009808
        %v1878 = vunpack.c.0.s8 %v1877
        %v1879 = vlaneseq
        %v1880 = vshrl.u32 %v1879, 7
        %v1881 = vsub.s32 %v1878, %v1880
        %v1882 = vrot.slane %v1868, %v1881
        %v1883 = vcombine.low %v1787, %v1851
        %v1884 = vcombine.high %v1787, %v1851
        %v1886 = vunpack.c.l.s4 1983009808
        %v1887 = vunpack.c.0.s8 %v1886
        %v1888 = vlaneseq
        %v1889 = vshrl.u32 %v1888, 7
        %v1890 = vsub.s32 %v1887, %v1889
        %v1891 = vrot.slane %v1883, %v1890
        %v1893 = vunpack.c.l.s4 1983009808
        %v1894 = vunpack.c.0.s8 %v1893
        %v1895 = vlaneseq
        %v1896 = vshrl.u32 %v1895, 7
        %v1897 = vsub.s32 %v1894, %v1896
        %v1898 = vrot.slane %v1884, %v1897
        %v1899 = vcombine.low %v1875, %v1891
        %v1900 = vcombine.high %v1875, %v1891
        %v1902 = vunpack.c.l.s4 1934713408
        %v1903 = vunpack.c.0.s8 %v1902
        %v1904 = vlaneseq
        %v1905 = vshrl.u32 %v1904, 7
        %v1906 = vsub.s32 %v1903, %v1905
        %v1907 = vrot.slane %v1899, %v1906
        %v1909 = vunpack.c.l.s4 1934713408
        %v1910 = vunpack.c.0.s8 %v1909
        %v1911 = vlaneseq
        %v1912 = vshrl.u32 %v1911, 7
        %v1913 = vsub.s32 %v1910, %v1912
        %v1914 = vrot.slane %v1900, %v1913
        %v1915 = vcombine.low %v1882, %v1898
        %v1916 = vcombine.high %v1882, %v1898
        %v1918 = vunpack.c.l.s4 1934713408
        %v1919 = vunpack.c.0.s8 %v1918
        %v1920 = vlaneseq
        %v1921 = vshrl.u32 %v1920, 7
        %v1922 = vsub.s32 %v1919, %v1921
        %v1923 = vrot.slane %v1915, %v1922
        %v1925 = vunpack.c.l.s4 1934713408
        %v1926 = vunpack.c.0.s8 %v1925
        %v1927 = vlaneseq
        %v1928 = vshrl.u32 %v1927, 7
        %v1929 = vsub.s32 %v1926, %v1928
        %v1930 = vrot.slane %v1916, %v1929
        %v1931 = vcombine.high %v1907, 0.0
        %v1932 = vcombine.high %v1914, 0.0
        %v1933 = vcombine.high %v1923, 0.0
        %v1934 = vcombine.high %v1930, 0.0
        %v1935 = vcombine.low %v1907, %v1914
        %v1937 = vunpack.c.l.s4 1983009808
        %v1938 = vunpack.c.0.s8 %v1937
        %v1939 = vlaneseq
        %v1940 = vshrl.u32 %v1939, 7
        %v1941 = vsub.s32 %v1938, %v1940
        %v1942 = vrot.slane %v1935, %v1941
        %v1943 = vcombine.low %v1931, %v1932
        %v1945 = vunpack.c.l.s4 1983009808
        %v1946 = vunpack.c.0.s8 %v1945
        %v1947 = vlaneseq
        %v1948 = vshrl.u32 %v1947, 7
        %v1949 = vsub.s32 %v1946, %v1948
        %v1950 = vrot.slane %v1943, %v1949
        %v1951 = vcombine.low %v1923, %v1930
        %v1953 = vunpack.c.l.s4 1983009808
        %v1954 = vunpack.c.0.s8 %v1953
        %v1955 = vlaneseq
        %v1956 = vshrl.u32 %v1955, 7
        %v1957 = vsub.s32 %v1954, %v1956
        %v1958 = vrot.slane %v1951, %v1957
        %v1959 = vcombine.low %v1933, %v1934
        %v1961 = vunpack.c.l.s4 1983009808
        %v1962 = vunpack.c.0.s8 %v1961
        %v1963 = vlaneseq
        %v1964 = vshrl.u32 %v1963, 7
        %v1965 = vsub.s32 %v1962, %v1964
        %v1966 = vrot.slane %v1959, %v1965
        %v1967 = vcombine.low %v1942, %v1950
        %v1968 = vcombine.high %v1942, %v1950
        %v1970 = vunpack.c.l.s4 1934713408
        %v1971 = vunpack.c.0.s8 %v1970
        %v1972 = vlaneseq
        %v1973 = vshrl.u32 %v1972, 7
        %v1974 = vsub.s32 %v1971, %v1973
        %v1975 = vrot.slane %v1967, %v1974
        %v1977 = vunpack.c.l.s4 1934713408
        %v1978 = vunpack.c.0.s8 %v1977
        %v1979 = vlaneseq
        %v1980 = vshrl.u32 %v1979, 7
        %v1981 = vsub.s32 %v1978, %v1980
        %v1982 = vrot.slane %v1968, %v1981
        %v1983 = vcombine.low %v1958, %v1966
        %v1984 = vcombine.high %v1958, %v1966
        %v1986 = vunpack.c.l.s4 1934713408
        %v1987 = vunpack.c.0.s8 %v1986
        %v1988 = vlaneseq
        %v1989 = vshrl.u32 %v1988, 7
        %v1990 = vsub.s32 %v1987, %v1989
        %v1991 = vrot.slane %v1983, %v1990
        %v1993 = vunpack.c.l.s4 1934713408
        %v1994 = vunpack.c.0.s8 %v1993
        %v1995 = vlaneseq
        %v1996 = vshrl.u32 %v1995, 7
        %v1997 = vsub.s32 %v1994, %v1996
        %v1998 = vrot.slane %v1984, %v1997
        %v1999 = vcombine.low %v1975, %v1991
        %v2000 = vcombine.high %v1975, %v1991
        %v2001 = vcombine.low %v1982, %v1998
        %v2002 = vcombine.high %v1982, %v1998
        %2004 = vrot.lane.b32.xlu0 %v2000, 8
        %v2005 = vpop.permute.xlu0 %2004
        %2008 = vrot.lane.b32.xlu0 %v2001, 16
        %v2009 = vpop.permute.xlu0 %2008
        %2012 = vrot.lane.b32.xlu0 %v2002, 24
        %v2013 = vpop.permute.xlu0 %2012
        %v2015 = vsel %vm1252, %v1999, %v2005
        %vm2016 = vcmask 130048
        %v2017 = vsel %vm2016, %v2015, %v2009
        %vm2018 = vcmask 195584
        %v2019 = vsel %vm2018, %v2017, %v2013
        %v2020 = vpack.c.bf16 %v2019, %v2019
        %s2021 = scalar_lea.vmem [#allocation6], 48
        %v2022 = vld [vmem:[%s2021] sm:$0xf]
        %v2023 = vld [vmem:[%s2021 + $0x4] sm:$0xf]
        %v2024 = vld [vmem:[%s2021 + $0x8] sm:$0xf]
        %v2025 = vld [vmem:[%s2021 + $0xc] sm:$0xf]
        %v2026 = vld [vmem:[%s5 + $0x3] sm:$0x1]
        %v2027 = vlaneseq
        %v2028 = vshrl.u32 %v2027, 7
        %v2029 = vsub.s32 0, %v2028
        %v2030 = vrot.slane %v2026, %v2029
        %v2035 = vunpack.c.l.b16 %v2022
        %v2036 = vunpack.c.l.b16 %v2023
        %v2037 = vunpack.c.l.b16 %v2024
        %v2038 = vunpack.c.l.b16 %v2025
        %v2039 = vpack.c.b16 %v2036, %v2035
        %v2040 = vpack.c.b16 %v2038, %v2037
        %v2044 = vsel %vm973, %v2020, 0
        %2046 = vmatprep.subr.bf16.mxu0 0
        %2047 = vmatpush1.bf16.msra.mxu0 0
        %2048 = vmatprep.subr.bf16.mxu0 0
        %2049 = vmatpush1.bf16.msra.mxu0 0
        %2050 = vmatprep.subr.bf16.mxu0 0
        %2051 = vmatpush1.bf16.msra.mxu0 0
        %2052 = vmatprep.subr.bf16.mxu0 0
        %2053 = vmatpush1.bf16.msra.mxu0 0
        %2054 = vmatprep.subr.bf16.mxu0 0
        %2055 = vmatpush1.bf16.msra.mxu0 0
        %2056 = vmatprep.subr.bf16.mxu0 0
        %2057 = vmatpush1.bf16.msra.mxu0 0
        %2058 = vmatprep.subr.bf16.mxu0 0
        %2059 = vmatpush1.bf16.msra.mxu0 %v2040
        %2060 = vmatprep.subr.bf16.mxu0 0
        %2061 = vmatpush1.bf16.msra.mxu0 %v2039
        %2062 = vmatprep.subr.bf16.mxu0 0
        %2063 = vmatpush2.bf16.msra.mxu0 0
        %2064 = vmatprep.subr.bf16.mxu0 0
        %2065 = vmatpush2.bf16.msra.mxu0 0
        %2066 = vmatprep.subr.bf16.mxu0 0
        %2067 = vmatpush2.bf16.msra.mxu0 0
        %2068 = vmatprep.subr.bf16.mxu0 0
        %2069 = vmatpush2.bf16.msra.mxu0 0
        %2070 = vmatprep.subr.bf16.mxu0 0
        %2071 = vmatpush2.bf16.msra.mxu0 0
        %2072 = vmatprep.subr.bf16.mxu0 0
        %2073 = vmatpush2.bf16.msra.mxu0 0
        %2074 = vmatprep.subr.bf16.mxu0 0
        %2075 = vmatpush2.bf16.msra.mxu0 0
        %2076 = vmatprep.subr.bf16.mxu0 0
        %2077 = vmatpush2.bf16.msra.mxu0 0
        %2078 = vmatprep.mubr.bf16.mxu0 0
        %2079 = vmatmul.mubr.bf16.gmra.mxu0 %v2044
        %v2080 = vpop.f32.mrf.mxu0
        %v2081 = vadd.f32 %v2030, %v2080
        %v2082 = vpop.f32.mrf.mxu0
        %v2083 = vpop.f32.mrf.mxu0
        %v2084 = vpop.f32.mrf.mxu0
        %2085 = vdwg.mxu0
        %v2086 = vunpack.c.l.bf16 %v943
        %v2087 = vadd.f32 %v2086, %v2081
        %v2088 = vsel %vm973, %v2087, 0.0
        %2089 = vadd.xlane.f32.xlu0 %v2088
        %v2090 = vpop.xlane.xlu0 %2089
        %v2091 = vrcp.pop 32.0
        %v2092 = vmul.f32 %v2090, %v2091
        %v2093 = vsub.f32 %v2087, %v2092
        %v2094 = vmul.f32 %v2093, %v2093
        %v2095 = vsel %vm973, %v2094, 0.0
        %2096 = vadd.xlane.f32.xlu0 %v2095
        %v2097 = vpop.xlane.xlu0 %2096
        %v2098 = vmul.f32 %v2097, %v2091
        %v2099 = vadd.f32 %v2098, 1e-06
        %v2100 = vrsqrt.pop %v2099
        %v2101 = vmul.f32 %v2093, %v2100
        %v2102 = vlaneseq
        %v2103 = vshrl.u32 %v2102, 7
        %v2104 = vsub.s32 0, %v2103
        %v2105 = vrot.slane %v950, %v2104
        %v2106 = vmul.f32 %v2101, %v2105
        %v2107 = vlaneseq
        %v2108 = vshrl.u32 %v2107, 7
        %v2109 = vsub.s32 0, %v2108
        %v2110 = vrot.slane %v951, %v2109
        %v2111 = vadd.f32 %v2106, %v2110
        %v2112 = vpack.c.bf16 %v2111, %v2111
        %v2113 = vld [vmem:[#allocation9] sm:$0xf]
        %v2114 = vld [vmem:[#allocation9 + $0x4] sm:$0xf]
        %v2115 = vld [vmem:[#allocation9 + $0x8] sm:$0xf]
        %v2116 = vld [vmem:[#allocation9 + $0xc] sm:$0xf]
        %v2117 = vld [vmem:[%s7] sm:$0x1]
        %v2118 = vlaneseq
        %v2119 = vshrl.u32 %v2118, 7
        %v2120 = vsub.s32 0, %v2119
        %v2121 = vrot.slane %v2117, %v2120
        %v2126 = vunpack.c.l.b16 %v2113
        %v2127 = vunpack.c.l.b16 %v2114
        %v2128 = vunpack.c.l.b16 %v2115
        %v2129 = vunpack.c.l.b16 %v2116
        %v2130 = vpack.c.b16 %v2127, %v2126
        %v2131 = vpack.c.b16 %v2129, %v2128
        %v2135 = vsel %vm973, %v2112, 0
        %2137 = vmatprep.subr.bf16.mxu0 0
        %2138 = vmatpush1.bf16.msra.mxu0 0
        %2139 = vmatprep.subr.bf16.mxu0 0
        %2140 = vmatpush1.bf16.msra.mxu0 0
        %2141 = vmatprep.subr.bf16.mxu0 0
        %2142 = vmatpush1.bf16.msra.mxu0 0
        %2143 = vmatprep.subr.bf16.mxu0 0
        %2144 = vmatpush1.bf16.msra.mxu0 0
        %2145 = vmatprep.subr.bf16.mxu0 0
        %2146 = vmatpush1.bf16.msra.mxu0 0
        %2147 = vmatprep.subr.bf16.mxu0 0
        %2148 = vmatpush1.bf16.msra.mxu0 0
        %2149 = vmatprep.subr.bf16.mxu0 0
        %2150 = vmatpush1.bf16.msra.mxu0 %v2131
        %2151 = vmatprep.subr.bf16.mxu0 0
        %2152 = vmatpush1.bf16.msra.mxu0 %v2130
        %2153 = vmatprep.subr.bf16.mxu0 0
        %2154 = vmatpush2.bf16.msra.mxu0 0
        %2155 = vmatprep.subr.bf16.mxu0 0
        %2156 = vmatpush2.bf16.msra.mxu0 0
        %2157 = vmatprep.subr.bf16.mxu0 0
        %2158 = vmatpush2.bf16.msra.mxu0 0
        %2159 = vmatprep.subr.bf16.mxu0 0
        %2160 = vmatpush2.bf16.msra.mxu0 0
        %2161 = vmatprep.subr.bf16.mxu0 0
        %2162 = vmatpush2.bf16.msra.mxu0 0
        %2163 = vmatprep.subr.bf16.mxu0 0
        %2164 = vmatpush2.bf16.msra.mxu0 0
        %2165 = vmatprep.subr.bf16.mxu0 0
        %2166 = vmatpush2.bf16.msra.mxu0 0
        %2167 = vmatprep.subr.bf16.mxu0 0
        %2168 = vmatpush2.bf16.msra.mxu0 0
        %2169 = vmatprep.mubr.bf16.mxu0 0
        %2170 = vmatmul.mubr.bf16.gmra.mxu0 %v2135
        %v2171 = vpop.f32.mrf.mxu0
        %v2172 = vadd.f32 %v2121, %v2171
        %v2173 = vpop.f32.mrf.mxu0
        %v2174 = vpop.f32.mrf.mxu0
        %v2175 = vpop.f32.mrf.mxu0
        %2176 = vdwg.mxu0
        %v2177 = vmul.f32 %v2172, 0.35355338
        %2179 = vrot.lane.b32.xlu0 %v2177, 120
        %v2180 = vpop.permute.xlu0 %2179
        %2182 = vrot.lane.b32.xlu0 %v2177, 112
        %v2183 = vpop.permute.xlu0 %2182
        %2185 = vrot.lane.b32.xlu0 %v2177, 104
        %v2186 = vpop.permute.xlu0 %2185
        %v2188 = vcombine.low %v2177, %v2183
        %v2189 = vcombine.high %v2177, %v2183
        %v2191 = vunpack.c.l.s4 1983009808
        %v2192 = vunpack.c.0.s8 %v2191
        %v2193 = vlaneseq
        %v2194 = vshrl.u32 %v2193, 7
        %v2195 = vsub.s32 %v2192, %v2194
        %v2196 = vrot.slane %v2188, %v2195
        %v2198 = vunpack.c.l.s4 1983009808
        %v2199 = vunpack.c.0.s8 %v2198
        %v2200 = vlaneseq
        %v2201 = vshrl.u32 %v2200, 7
        %v2202 = vsub.s32 %v2199, %v2201
        %v2203 = vrot.slane %v2189, %v2202
        %v2204 = vcombine.low %v2180, %v2186
        %v2205 = vcombine.high %v2180, %v2186
        %v2207 = vunpack.c.l.s4 1983009808
        %v2208 = vunpack.c.0.s8 %v2207
        %v2209 = vlaneseq
        %v2210 = vshrl.u32 %v2209, 7
        %v2211 = vsub.s32 %v2208, %v2210
        %v2212 = vrot.slane %v2204, %v2211
        %v2214 = vunpack.c.l.s4 1983009808
        %v2215 = vunpack.c.0.s8 %v2214
        %v2216 = vlaneseq
        %v2217 = vshrl.u32 %v2216, 7
        %v2218 = vsub.s32 %v2215, %v2217
        %v2219 = vrot.slane %v2205, %v2218
        %v2220 = vcombine.low %v2196, %v2212
        %v2221 = vcombine.high %v2196, %v2212
        %v2223 = vunpack.c.l.s4 1934713408
        %v2224 = vunpack.c.0.s8 %v2223
        %v2225 = vlaneseq
        %v2226 = vshrl.u32 %v2225, 7
        %v2227 = vsub.s32 %v2224, %v2226
        %v2228 = vrot.slane %v2220, %v2227
        %v2230 = vunpack.c.l.s4 1934713408
        %v2231 = vunpack.c.0.s8 %v2230
        %v2232 = vlaneseq
        %v2233 = vshrl.u32 %v2232, 7
        %v2234 = vsub.s32 %v2231, %v2233
        %v2235 = vrot.slane %v2221, %v2234
        %v2236 = vcombine.low %v2203, %v2219
        %v2237 = vcombine.high %v2203, %v2219
        %v2239 = vunpack.c.l.s4 1934713408
        %v2240 = vunpack.c.0.s8 %v2239
        %v2241 = vlaneseq
        %v2242 = vshrl.u32 %v2241, 7
        %v2243 = vsub.s32 %v2240, %v2242
        %v2244 = vrot.slane %v2236, %v2243
        %v2246 = vunpack.c.l.s4 1934713408
        %v2247 = vunpack.c.0.s8 %v2246
        %v2248 = vlaneseq
        %v2249 = vshrl.u32 %v2248, 7
        %v2250 = vsub.s32 %v2247, %v2249
        %v2251 = vrot.slane %v2237, %v2250
        %v2252 = vcombine.high %v2228, 0.0
        %v2253 = vcombine.high %v2235, 0.0
        %v2254 = vcombine.high %v2244, 0.0
        %v2255 = vcombine.high %v2251, 0.0
        %v2256 = vpack.c.bf16 %v2228, %v2228
        %v2257 = vpack.c.bf16 %v2252, %v2252
        %v2258 = vpack.c.bf16 %v2235, %v2235
        %v2259 = vpack.c.bf16 %v2253, %v2253
        %v2260 = vpack.c.bf16 %v2244, %v2244
        %v2261 = vpack.c.bf16 %v2254, %v2254
        %v2262 = vpack.c.bf16 %v2251, %v2251
        %v2263 = vpack.c.bf16 %v2255, %v2255
        %v2264 = vld [vmem:[#allocation4] sm:$0xf]
        %2266 = vrot.lane.b32.xlu0 %v2264, 120
        %v2267 = vpop.permute.xlu0 %2266
        %2269 = vrot.lane.b32.xlu0 %v2264, 112
        %v2270 = vpop.permute.xlu0 %2269
        %2272 = vrot.lane.b32.xlu0 %v2264, 104
        %v2273 = vpop.permute.xlu0 %2272
        %v2275 = vld [vmem:[#allocation5] sm:$0xf]
        %2277 = vrot.lane.b32.xlu0 %v2275, 120
        %v2278 = vpop.permute.xlu0 %2277
        %2280 = vrot.lane.b32.xlu0 %v2275, 112
        %v2281 = vpop.permute.xlu0 %2280
        %2283 = vrot.lane.b32.xlu0 %v2275, 104
        %v2284 = vpop.permute.xlu0 %2283
        %v2286 = vlaneseq
        %v2287 = vshrl.u32 %v2286, 7
        %v2288 = vsub.s32 0, %v2287
        %v2289 = vrot.slane %v949, %v2288
        %v2290 = vcombine.low %v2256, %v2260
        %v2292 = vunpack.c.l.s4 1983009808
        %v2293 = vunpack.c.0.s8 %v2292
        %v2294 = vlaneseq
        %v2295 = vshrl.u32 %v2294, 7
        %v2296 = vsub.s32 %v2293, %v2295
        %v2297 = vrot.slane %v2290, %v2296
        %v2298 = vcombine.low %v2258, %v2262
        %v2300 = vunpack.c.l.s4 1983009808
        %v2301 = vunpack.c.0.s8 %v2300
        %v2302 = vlaneseq
        %v2303 = vshrl.u32 %v2302, 7
        %v2304 = vsub.s32 %v2301, %v2303
        %v2305 = vrot.slane %v2298, %v2304
        %v2306 = vcombine.low %v2297, %v2305
        %v2308 = vunpack.c.l.s4 1934713408
        %v2309 = vunpack.c.0.s8 %v2308
        %v2310 = vlaneseq
        %v2311 = vshrl.u32 %v2310, 7
        %v2312 = vsub.s32 %v2309, %v2311
        %v2313 = vrot.slane %v2306, %v2312
        %v2314 = vcombine.high %v2313, 0
        %v2315 = vcombine.low %v2257, %v2261
        %v2317 = vunpack.c.l.s4 1983009808
        %v2318 = vunpack.c.0.s8 %v2317
        %v2319 = vlaneseq
        %v2320 = vshrl.u32 %v2319, 7
        %v2321 = vsub.s32 %v2318, %v2320
        %v2322 = vrot.slane %v2315, %v2321
        %v2323 = vcombine.low %v2259, %v2263
        %v2325 = vunpack.c.l.s4 1983009808
        %v2326 = vunpack.c.0.s8 %v2325
        %v2327 = vlaneseq
        %v2328 = vshrl.u32 %v2327, 7
        %v2329 = vsub.s32 %v2326, %v2328
        %v2330 = vrot.slane %v2323, %v2329
        %v2331 = vcombine.low %v2322, %v2330
        %v2333 = vunpack.c.l.s4 1934713408
        %v2334 = vunpack.c.0.s8 %v2333
        %v2335 = vlaneseq
        %v2336 = vshrl.u32 %v2335, 7
        %v2337 = vsub.s32 %v2334, %v2336
        %v2338 = vrot.slane %v2331, %v2337
        %v2339 = vcombine.high %v2338, 0
        %v2342 = vpack.i.b16 %v2338, %v2313
        %v2343 = vshrl.u32 %v2313, 16
        %v2344 = vshrl.u32 %v2338, 16
        %v2345 = vpack.i.b16 %v2344, %v2343
        %v2348 = vpack.i.b16 %v2339, %v2314
        %v2349 = vshrl.u32 %v2314, 16
        %v2350 = vshrl.u32 %v2339, 16
        %v2351 = vpack.i.b16 %v2350, %v2349
        %2352 = vxpose.xlu0.c.b16.start [1/8] %v2264, 128
        %2353 = vxpose.xlu0.c.b16.cont [2/8] 0, 128
        %2354 = vxpose.xlu0.c.b16.cont [3/8] 0, 128
        %2355 = vxpose.xlu0.c.b16.cont [4/8] 0, 128
        %2356 = vxpose.xlu0.c.b16.cont [5/8] 0, 128
        %2357 = vxpose.xlu0.c.b16.cont [6/8] 0, 128
        %2358 = vxpose.xlu0.c.b16.cont [7/8] 0, 128
        %2359 = vxpose.xlu0.c.b16.end [8/8] 0, 128
        %v2360 = vpop.trf.xlu0
        %v2361 = vpop.trf.xlu0
        %v2362 = vpop.trf.xlu0
        %v2363 = vpop.trf.xlu0
        %v2364 = vpop.trf.xlu0
        %v2365 = vpop.trf.xlu0
        %v2366 = vpop.trf.xlu0
        %v2367 = vpop.trf.xlu0
        %2368 = vxpose.xlu0.c.b16.start [1/8] %v2267, 128
        %2369 = vxpose.xlu0.c.b16.cont [2/8] 0, 128
        %2370 = vxpose.xlu0.c.b16.cont [3/8] 0, 128
        %2371 = vxpose.xlu0.c.b16.cont [4/8] 0, 128
        %2372 = vxpose.xlu0.c.b16.cont [5/8] 0, 128
        %2373 = vxpose.xlu0.c.b16.cont [6/8] 0, 128
        %2374 = vxpose.xlu0.c.b16.cont [7/8] 0, 128
        %2375 = vxpose.xlu0.c.b16.end [8/8] 0, 128
        %v2376 = vpop.trf.xlu0
        %v2377 = vpop.trf.xlu0
        %v2378 = vpop.trf.xlu0
        %v2379 = vpop.trf.xlu0
        %v2380 = vpop.trf.xlu0
        %v2381 = vpop.trf.xlu0
        %v2382 = vpop.trf.xlu0
        %v2383 = vpop.trf.xlu0
        %2384 = vxpose.xlu0.c.b16.start [1/8] %v2270, 128
        %2385 = vxpose.xlu0.c.b16.cont [2/8] 0, 128
        %2386 = vxpose.xlu0.c.b16.cont [3/8] 0, 128
        %2387 = vxpose.xlu0.c.b16.cont [4/8] 0, 128
        %2388 = vxpose.xlu0.c.b16.cont [5/8] 0, 128
        %2389 = vxpose.xlu0.c.b16.cont [6/8] 0, 128
        %2390 = vxpose.xlu0.c.b16.cont [7/8] 0, 128
        %2391 = vxpose.xlu0.c.b16.end [8/8] 0, 128
        %v2392 = vpop.trf.xlu0
        %v2393 = vpop.trf.xlu0
        %v2394 = vpop.trf.xlu0
        %v2395 = vpop.trf.xlu0
        %v2396 = vpop.trf.xlu0
        %v2397 = vpop.trf.xlu0
        %v2398 = vpop.trf.xlu0
        %v2399 = vpop.trf.xlu0
        %2400 = vxpose.xlu0.c.b16.start [1/8] %v2273, 128
        %2401 = vxpose.xlu0.c.b16.cont [2/8] 0, 128
        %2402 = vxpose.xlu0.c.b16.cont [3/8] 0, 128
        %2403 = vxpose.xlu0.c.b16.cont [4/8] 0, 128
        %2404 = vxpose.xlu0.c.b16.cont [5/8] 0, 128
        %2405 = vxpose.xlu0.c.b16.cont [6/8] 0, 128
        %2406 = vxpose.xlu0.c.b16.cont [7/8] 0, 128
        %2407 = vxpose.xlu0.c.b16.end [8/8] 0, 128
        %v2408 = vpop.trf.xlu0
        %v2409 = vpop.trf.xlu0
        %v2410 = vpop.trf.xlu0
        %v2411 = vpop.trf.xlu0
        %v2412 = vpop.trf.xlu0
        %v2413 = vpop.trf.xlu0
        %v2414 = vpop.trf.xlu0
        %v2415 = vpop.trf.xlu0
        %v2417 = vsel %vm1252, %v2342, 0
        %v2420 = vsel %vm1256, %v2360, 0
        %2422 = vmatprep.subr.bf16.mxu0 0
        %2423 = vmatpush1.bf16.msra.mxu0 0
        %2424 = vmatprep.subr.bf16.mxu0 0
        %2425 = vmatpush1.bf16.msra.mxu0 0
        %2426 = vmatprep.subr.bf16.mxu0 0
        %2427 = vmatpush1.bf16.msra.mxu0 0
        %2428 = vmatprep.subr.bf16.mxu0 0
        %2429 = vmatpush1.bf16.msra.mxu0 0
        %2430 = vmatprep.subr.bf16.mxu0 0
        %2431 = vmatpush1.bf16.msra.mxu0 0
        %2432 = vmatprep.subr.bf16.mxu0 0
        %2433 = vmatpush1.bf16.msra.mxu0 0
        %2434 = vmatprep.subr.bf16.mxu0 0
        %2435 = vmatpush1.bf16.msra.mxu0 0
        %2436 = vmatprep.subr.bf16.mxu0 0
        %2437 = vmatpush1.bf16.msra.mxu0 %v2420
        %2438 = vmatprep.subr.bf16.mxu0 0
        %2439 = vmatpush2.bf16.msra.mxu0 0
        %2440 = vmatprep.subr.bf16.mxu0 0
        %2441 = vmatpush2.bf16.msra.mxu0 0
        %2442 = vmatprep.subr.bf16.mxu0 0
        %2443 = vmatpush2.bf16.msra.mxu0 0
        %2444 = vmatprep.subr.bf16.mxu0 0
        %2445 = vmatpush2.bf16.msra.mxu0 0
        %2446 = vmatprep.subr.bf16.mxu0 0
        %2447 = vmatpush2.bf16.msra.mxu0 0
        %2448 = vmatprep.subr.bf16.mxu0 0
        %2449 = vmatpush2.bf16.msra.mxu0 0
        %2450 = vmatprep.subr.bf16.mxu0 0
        %2451 = vmatpush2.bf16.msra.mxu0 0
        %2452 = vmatprep.subr.bf16.mxu0 0
        %2453 = vmatpush2.bf16.msra.mxu0 0
        %2454 = vmatprep.mubr.bf16.mxu0 0
        %2455 = vmatmul.mubr.bf16.gmra.mxu0 %v2417
        %v2456 = vpop.f32.mrf.mxu0
        %v2457 = vadd.f32 %v2289, %v2456
        %v2458 = vpop.f32.mrf.mxu0
        %v2459 = vpop.f32.mrf.mxu0
        %v2460 = vpop.f32.mrf.mxu0
        %2461 = vdwg.mxu0
        %v2463 = vsel %vm1252, %v2345, 0
        %v2466 = vsel %vm1256, %v2376, 0
        %2468 = vmatprep.subr.bf16.mxu0 0
        %2469 = vmatpush1.bf16.msra.mxu0 0
        %2470 = vmatprep.subr.bf16.mxu0 0
        %2471 = vmatpush1.bf16.msra.mxu0 0
        %2472 = vmatprep.subr.bf16.mxu0 0
        %2473 = vmatpush1.bf16.msra.mxu0 0
        %2474 = vmatprep.subr.bf16.mxu0 0
        %2475 = vmatpush1.bf16.msra.mxu0 0
        %2476 = vmatprep.subr.bf16.mxu0 0
        %2477 = vmatpush1.bf16.msra.mxu0 0
        %2478 = vmatprep.subr.bf16.mxu0 0
        %2479 = vmatpush1.bf16.msra.mxu0 0
        %2480 = vmatprep.subr.bf16.mxu0 0
        %2481 = vmatpush1.bf16.msra.mxu0 0
        %2482 = vmatprep.subr.bf16.mxu0 0
        %2483 = vmatpush1.bf16.msra.mxu0 %v2466
        %2484 = vmatprep.subr.bf16.mxu0 0
        %2485 = vmatpush2.bf16.msra.mxu0 0
        %2486 = vmatprep.subr.bf16.mxu0 0
        %2487 = vmatpush2.bf16.msra.mxu0 0
        %2488 = vmatprep.subr.bf16.mxu0 0
        %2489 = vmatpush2.bf16.msra.mxu0 0
        %2490 = vmatprep.subr.bf16.mxu0 0
        %2491 = vmatpush2.bf16.msra.mxu0 0
        %2492 = vmatprep.subr.bf16.mxu0 0
        %2493 = vmatpush2.bf16.msra.mxu0 0
        %2494 = vmatprep.subr.bf16.mxu0 0
        %2495 = vmatpush2.bf16.msra.mxu0 0
        %2496 = vmatprep.subr.bf16.mxu0 0
        %2497 = vmatpush2.bf16.msra.mxu0 0
        %2498 = vmatprep.subr.bf16.mxu0 0
        %2499 = vmatpush2.bf16.msra.mxu0 0
        %2500 = vmatprep.mubr.bf16.mxu0 0
        %2501 = vmatmul.mubr.bf16.gmra.mxu0 %v2463
        %v2502 = vpop.f32.mrf.mxu0
        %v2503 = vadd.f32 %v2289, %v2502
        %v2504 = vpop.f32.mrf.mxu0
        %v2505 = vpop.f32.mrf.mxu0
        %v2506 = vpop.f32.mrf.mxu0
        %2507 = vdwg.mxu0
        %v2509 = vsel %vm1252, %v2348, 0
        %v2512 = vsel %vm1256, %v2392, 0
        %2514 = vmatprep.subr.bf16.mxu0 0
        %2515 = vmatpush1.bf16.msra.mxu0 0
        %2516 = vmatprep.subr.bf16.mxu0 0
        %2517 = vmatpush1.bf16.msra.mxu0 0
        %2518 = vmatprep.subr.bf16.mxu0 0
        %2519 = vmatpush1.bf16.msra.mxu0 0
        %2520 = vmatprep.subr.bf16.mxu0 0
        %2521 = vmatpush1.bf16.msra.mxu0 0
        %2522 = vmatprep.subr.bf16.mxu0 0
        %2523 = vmatpush1.bf16.msra.mxu0 0
        %2524 = vmatprep.subr.bf16.mxu0 0
        %2525 = vmatpush1.bf16.msra.mxu0 0
        %2526 = vmatprep.subr.bf16.mxu0 0
        %2527 = vmatpush1.bf16.msra.mxu0 0
        %2528 = vmatprep.subr.bf16.mxu0 0
        %2529 = vmatpush1.bf16.msra.mxu0 %v2512
        %2530 = vmatprep.subr.bf16.mxu0 0
        %2531 = vmatpush2.bf16.msra.mxu0 0
        %2532 = vmatprep.subr.bf16.mxu0 0
        %2533 = vmatpush2.bf16.msra.mxu0 0
        %2534 = vmatprep.subr.bf16.mxu0 0
        %2535 = vmatpush2.bf16.msra.mxu0 0
        %2536 = vmatprep.subr.bf16.mxu0 0
        %2537 = vmatpush2.bf16.msra.mxu0 0
        %2538 = vmatprep.subr.bf16.mxu0 0
        %2539 = vmatpush2.bf16.msra.mxu0 0
        %2540 = vmatprep.subr.bf16.mxu0 0
        %2541 = vmatpush2.bf16.msra.mxu0 0
        %2542 = vmatprep.subr.bf16.mxu0 0
        %2543 = vmatpush2.bf16.msra.mxu0 0
        %2544 = vmatprep.subr.bf16.mxu0 0
        %2545 = vmatpush2.bf16.msra.mxu0 0
        %2546 = vmatprep.mubr.bf16.mxu0 0
        %2547 = vmatmul.mubr.bf16.gmra.mxu0 %v2509
        %v2548 = vpop.f32.mrf.mxu0
        %v2549 = vadd.f32 %v2289, %v2548
        %v2550 = vpop.f32.mrf.mxu0
        %v2551 = vpop.f32.mrf.mxu0
        %v2552 = vpop.f32.mrf.mxu0
        %2553 = vdwg.mxu0
        %v2555 = vsel %vm1252, %v2351, 0
        %v2558 = vsel %vm1256, %v2408, 0
        %2560 = vmatprep.subr.bf16.mxu0 0
        %2561 = vmatpush1.bf16.msra.mxu0 0
        %2562 = vmatprep.subr.bf16.mxu0 0
        %2563 = vmatpush1.bf16.msra.mxu0 0
        %2564 = vmatprep.subr.bf16.mxu0 0
        %2565 = vmatpush1.bf16.msra.mxu0 0
        %2566 = vmatprep.subr.bf16.mxu0 0
        %2567 = vmatpush1.bf16.msra.mxu0 0
        %2568 = vmatprep.subr.bf16.mxu0 0
        %2569 = vmatpush1.bf16.msra.mxu0 0
        %2570 = vmatprep.subr.bf16.mxu0 0
        %2571 = vmatpush1.bf16.msra.mxu0 0
        %2572 = vmatprep.subr.bf16.mxu0 0
        %2573 = vmatpush1.bf16.msra.mxu0 0
        %2574 = vmatprep.subr.bf16.mxu0 0
        %2575 = vmatpush1.bf16.msra.mxu0 %v2558
        %2576 = vmatprep.subr.bf16.mxu0 0
        %2577 = vmatpush2.bf16.msra.mxu0 0
        %2578 = vmatprep.subr.bf16.mxu0 0
        %2579 = vmatpush2.bf16.msra.mxu0 0
        %2580 = vmatprep.subr.bf16.mxu0 0
        %2581 = vmatpush2.bf16.msra.mxu0 0
        %2582 = vmatprep.subr.bf16.mxu0 0
        %2583 = vmatpush2.bf16.msra.mxu0 0
        %2584 = vmatprep.subr.bf16.mxu0 0
        %2585 = vmatpush2.bf16.msra.mxu0 0
        %2586 = vmatprep.subr.bf16.mxu0 0
        %2587 = vmatpush2.bf16.msra.mxu0 0
        %2588 = vmatprep.subr.bf16.mxu0 0
        %2589 = vmatpush2.bf16.msra.mxu0 0
        %2590 = vmatprep.subr.bf16.mxu0 0
        %2591 = vmatpush2.bf16.msra.mxu0 0
        %2592 = vmatprep.mubr.bf16.mxu0 0
        %2593 = vmatmul.mubr.bf16.gmra.mxu0 %v2555
        %v2594 = vpop.f32.mrf.mxu0
        %v2595 = vadd.f32 %v2289, %v2594
        %v2596 = vpop.f32.mrf.mxu0
        %v2597 = vpop.f32.mrf.mxu0
        %v2598 = vpop.f32.mrf.mxu0
        %2599 = vdwg.mxu0
        %v2600 = vsel %vm1252, %v2457, -inf
        %2601 = vmax.xlane.f32.xlu0 %v2600
        %v2602 = vpop.xlane.xlu0 %2601
        %v2603 = vsel %vm1252, %v2503, -inf
        %2604 = vmax.xlane.f32.xlu0 %v2603
        %v2605 = vpop.xlane.xlu0 %2604
        %v2606 = vsel %vm1252, %v2549, -inf
        %2607 = vmax.xlane.f32.xlu0 %v2606
        %v2608 = vpop.xlane.xlu0 %2607
        %v2609 = vsel %vm1252, %v2595, -inf
        %2610 = vmax.xlane.f32.xlu0 %v2609
        %v2611 = vpop.xlane.xlu0 %2610
        %v2612 = vsub.f32 %v2457, %v2602
        %v2613 = vsub.f32 %v2503, %v2605
        %v2614 = vsub.f32 %v2549, %v2608
        %v2615 = vsub.f32 %v2595, %v2611
        %v2616 = vmul.f32 %v2612, 1.442695
        %v2617 = vpow.pop %v2616
        %v2618 = vmul.f32 %v2613, 1.442695
        %v2619 = vpow.pop %v2618
        %v2620 = vmul.f32 %v2614, 1.442695
        %v2621 = vpow.pop %v2620
        %v2622 = vmul.f32 %v2615, 1.442695
        %v2623 = vpow.pop %v2622
        %v2624 = vsel %vm1252, %v2617, 0.0
        %2625 = vadd.xlane.f32.xlu0 %v2624
        %v2626 = vpop.xlane.xlu0 %2625
        %v2627 = vsel %vm1252, %v2619, 0.0
        %2628 = vadd.xlane.f32.xlu0 %v2627
        %v2629 = vpop.xlane.xlu0 %2628
        %v2630 = vsel %vm1252, %v2621, 0.0
        %2631 = vadd.xlane.f32.xlu0 %v2630
        %v2632 = vpop.xlane.xlu0 %2631
        %v2633 = vsel %vm1252, %v2623, 0.0
        %2634 = vadd.xlane.f32.xlu0 %v2633
        %v2635 = vpop.xlane.xlu0 %2634
        %v2636 = vrcp.pop %v2626
        %v2637 = vrcp.pop %v2629
        %v2638 = vrcp.pop %v2632
        %v2639 = vrcp.pop %v2635
        %v2640 = vmul.f32 %v2617, %v2636
        %v2641 = vmul.f32 %v2619, %v2637
        %v2642 = vmul.f32 %v2621, %v2638
        %v2643 = vmul.f32 %v2623, %v2639
        %v2644 = vpack.c.bf16 %v2640, %v2640
        %v2645 = vpack.c.bf16 %v2641, %v2641
        %v2646 = vpack.c.bf16 %v2642, %v2642
        %v2647 = vpack.c.bf16 %v2643, %v2643
        %2648 = vst.msk [vmem:[%s648] sm:$0xf] %vm1486, %v2644
        %2649 = vst.msk [vmem:[%s648 + $0x4] sm:$0xf] %vm1486, %v2645
        %2650 = vst.msk [vmem:[%s648 + $0x8] sm:$0xf] %vm1486, %v2646
        %2651 = vst.msk [vmem:[%s648 + $0xc] sm:$0xf] %vm1486, %v2647
        %2652 = vxpose.xlu0.c.b16.start [1/8] %v2275, 128
        %2653 = vxpose.xlu0.c.b16.cont [2/8] 0, 128
        %2654 = vxpose.xlu0.c.b16.cont [3/8] 0, 128
        %2655 = vxpose.xlu0.c.b16.cont [4/8] 0, 128
        %2656 = vxpose.xlu0.c.b16.cont [5/8] 0, 128
        %2657 = vxpose.xlu0.c.b16.cont [6/8] 0, 128
        %2658 = vxpose.xlu0.c.b16.cont [7/8] 0, 128
        %2659 = vxpose.xlu0.c.b16.end [8/8] 0, 128
        %v2660 = vpop.trf.xlu0
        %v2661 = vpop.trf.xlu0
        %v2662 = vpop.trf.xlu0
        %v2663 = vpop.trf.xlu0
        %v2664 = vpop.trf.xlu0
        %v2665 = vpop.trf.xlu0
        %v2666 = vpop.trf.xlu0
        %v2667 = vpop.trf.xlu0
        %2668 = vxpose.xlu0.c.b16.start [1/8] %v2278, 128
        %2669 = vxpose.xlu0.c.b16.cont [2/8] 0, 128
        %2670 = vxpose.xlu0.c.b16.cont [3/8] 0, 128
        %2671 = vxpose.xlu0.c.b16.cont [4/8] 0, 128
        %2672 = vxpose.xlu0.c.b16.cont [5/8] 0, 128
        %2673 = vxpose.xlu0.c.b16.cont [6/8] 0, 128
        %2674 = vxpose.xlu0.c.b16.cont [7/8] 0, 128
        %2675 = vxpose.xlu0.c.b16.end [8/8] 0, 128
        %v2676 = vpop.trf.xlu0
        %v2677 = vpop.trf.xlu0
        %v2678 = vpop.trf.xlu0
        %v2679 = vpop.trf.xlu0
        %v2680 = vpop.trf.xlu0
        %v2681 = vpop.trf.xlu0
        %v2682 = vpop.trf.xlu0
        %v2683 = vpop.trf.xlu0
        %2684 = vxpose.xlu0.c.b16.start [1/8] %v2281, 128
        %2685 = vxpose.xlu0.c.b16.cont [2/8] 0, 128
        %2686 = vxpose.xlu0.c.b16.cont [3/8] 0, 128
        %2687 = vxpose.xlu0.c.b16.cont [4/8] 0, 128
        %2688 = vxpose.xlu0.c.b16.cont [5/8] 0, 128
        %2689 = vxpose.xlu0.c.b16.cont [6/8] 0, 128
        %2690 = vxpose.xlu0.c.b16.cont [7/8] 0, 128
        %2691 = vxpose.xlu0.c.b16.end [8/8] 0, 128
        %v2692 = vpop.trf.xlu0
        %v2693 = vpop.trf.xlu0
        %v2694 = vpop.trf.xlu0
        %v2695 = vpop.trf.xlu0
        %v2696 = vpop.trf.xlu0
        %v2697 = vpop.trf.xlu0
        %v2698 = vpop.trf.xlu0
        %v2699 = vpop.trf.xlu0
        %2700 = vxpose.xlu0.c.b16.start [1/8] %v2284, 128
        %2701 = vxpose.xlu0.c.b16.cont [2/8] 0, 128
        %2702 = vxpose.xlu0.c.b16.cont [3/8] 0, 128
        %2703 = vxpose.xlu0.c.b16.cont [4/8] 0, 128
        %2704 = vxpose.xlu0.c.b16.cont [5/8] 0, 128
        %2705 = vxpose.xlu0.c.b16.cont [6/8] 0, 128
        %2706 = vxpose.xlu0.c.b16.cont [7/8] 0, 128
        %2707 = vxpose.xlu0.c.b16.end [8/8] 0, 128
        %v2708 = vpop.trf.xlu0
        %v2709 = vpop.trf.xlu0
        %v2710 = vpop.trf.xlu0
        %v2711 = vpop.trf.xlu0
        %v2712 = vpop.trf.xlu0
        %v2713 = vpop.trf.xlu0
        %v2714 = vpop.trf.xlu0
        %v2715 = vpop.trf.xlu0
        %v2717 = vsel %vm1252, %v2660, 0
        %v2720 = vsel %vm1252, %v2644, 0
        %2722 = vmatprep.subr.bf16.mxu0 0
        %2723 = vmatpush1.bf16.xpose.msra.mxu0 0
        %2724 = vmatprep.subr.bf16.mxu0 0
        %2725 = vmatpush1.bf16.xpose.msra.mxu0 0
        %2726 = vmatprep.subr.bf16.mxu0 0
        %2727 = vmatpush1.bf16.xpose.msra.mxu0 0
        %2728 = vmatprep.subr.bf16.mxu0 0
        %2729 = vmatpush1.bf16.xpose.msra.mxu0 0
        %2730 = vmatprep.subr.bf16.mxu0 0
        %2731 = vmatpush1.bf16.xpose.msra.mxu0 0
        %2732 = vmatprep.subr.bf16.mxu0 0
        %2733 = vmatpush1.bf16.xpose.msra.mxu0 0
        %2734 = vmatprep.subr.bf16.mxu0 0
        %2735 = vmatpush1.bf16.xpose.msra.mxu0 0
        %2736 = vmatprep.subr.bf16.mxu0 0
        %2737 = vmatpush1.bf16.xpose.msra.mxu0 %v2720
        %2738 = vmatprep.subr.bf16.mxu0 0
        %2739 = vmatpush2.bf16.xpose.msra.mxu0 0
        %2740 = vmatprep.subr.bf16.mxu0 0
        %2741 = vmatpush2.bf16.xpose.msra.mxu0 0
        %2742 = vmatprep.subr.bf16.mxu0 0
        %2743 = vmatpush2.bf16.xpose.msra.mxu0 0
        %2744 = vmatprep.subr.bf16.mxu0 0
        %2745 = vmatpush2.bf16.xpose.msra.mxu0 0
        %2746 = vmatprep.subr.bf16.mxu0 0
        %2747 = vmatpush2.bf16.xpose.msra.mxu0 0
        %2748 = vmatprep.subr.bf16.mxu0 0
        %2749 = vmatpush2.bf16.xpose.msra.mxu0 0
        %2750 = vmatprep.subr.bf16.mxu0 0
        %2751 = vmatpush2.bf16.xpose.msra.mxu0 0
        %2752 = vmatprep.subr.bf16.mxu0 0
        %2753 = vmatpush2.bf16.xpose.msra.mxu0 0
        %2754 = vmatprep.mubr.bf16.mxu0 0
        %2755 = vmatmul.mubr.bf16.gmra.mxu0 %v2717
        %v2756 = vpop.f32.mrf.mxu0
        %v2757 = vadd.f32 0.0, %v2756
        %v2758 = vpop.f32.mrf.mxu0
        %v2759 = vpop.f32.mrf.mxu0
        %v2760 = vpop.f32.mrf.mxu0
        %2761 = vdwg.mxu0
        %v2763 = vsel %vm1252, %v2676, 0
        %v2766 = vsel %vm1252, %v2645, 0
        %2768 = vmatprep.subr.bf16.mxu0 0
        %2769 = vmatpush1.bf16.xpose.msra.mxu0 0
        %2770 = vmatprep.subr.bf16.mxu0 0
        %2771 = vmatpush1.bf16.xpose.msra.mxu0 0
        %2772 = vmatprep.subr.bf16.mxu0 0
        %2773 = vmatpush1.bf16.xpose.msra.mxu0 0
        %2774 = vmatprep.subr.bf16.mxu0 0
        %2775 = vmatpush1.bf16.xpose.msra.mxu0 0
        %2776 = vmatprep.subr.bf16.mxu0 0
        %2777 = vmatpush1.bf16.xpose.msra.mxu0 0
        %2778 = vmatprep.subr.bf16.mxu0 0
        %2779 = vmatpush1.bf16.xpose.msra.mxu0 0
        %2780 = vmatprep.subr.bf16.mxu0 0
        %2781 = vmatpush1.bf16.xpose.msra.mxu0 0
        %2782 = vmatprep.subr.bf16.mxu0 0
        %2783 = vmatpush1.bf16.xpose.msra.mxu0 %v2766
        %2784 = vmatprep.subr.bf16.mxu0 0
        %2785 = vmatpush2.bf16.xpose.msra.mxu0 0
        %2786 = vmatprep.subr.bf16.mxu0 0
        %2787 = vmatpush2.bf16.xpose.msra.mxu0 0
        %2788 = vmatprep.subr.bf16.mxu0 0
        %2789 = vmatpush2.bf16.xpose.msra.mxu0 0
        %2790 = vmatprep.subr.bf16.mxu0 0
        %2791 = vmatpush2.bf16.xpose.msra.mxu0 0
        %2792 = vmatprep.subr.bf16.mxu0 0
        %2793 = vmatpush2.bf16.xpose.msra.mxu0 0
        %2794 = vmatprep.subr.bf16.mxu0 0
        %2795 = vmatpush2.bf16.xpose.msra.mxu0 0
        %2796 = vmatprep.subr.bf16.mxu0 0
        %2797 = vmatpush2.bf16.xpose.msra.mxu0 0
        %2798 = vmatprep.subr.bf16.mxu0 0
        %2799 = vmatpush2.bf16.xpose.msra.mxu0 0
        %2800 = vmatprep.mubr.bf16.mxu0 0
        %2801 = vmatmul.mubr.bf16.gmra.mxu0 %v2763
        %v2802 = vpop.f32.mrf.mxu0
        %v2803 = vadd.f32 0.0, %v2802
        %v2804 = vpop.f32.mrf.mxu0
        %v2805 = vpop.f32.mrf.mxu0
        %v2806 = vpop.f32.mrf.mxu0
        %2807 = vdwg.mxu0
        %v2809 = vsel %vm1252, %v2692, 0
        %v2812 = vsel %vm1252, %v2646, 0
        %2814 = vmatprep.subr.bf16.mxu0 0
        %2815 = vmatpush1.bf16.xpose.msra.mxu0 0
        %2816 = vmatprep.subr.bf16.mxu0 0
        %2817 = vmatpush1.bf16.xpose.msra.mxu0 0
        %2818 = vmatprep.subr.bf16.mxu0 0
        %2819 = vmatpush1.bf16.xpose.msra.mxu0 0
        %2820 = vmatprep.subr.bf16.mxu0 0
        %2821 = vmatpush1.bf16.xpose.msra.mxu0 0
        %2822 = vmatprep.subr.bf16.mxu0 0
        %2823 = vmatpush1.bf16.xpose.msra.mxu0 0
        %2824 = vmatprep.subr.bf16.mxu0 0
        %2825 = vmatpush1.bf16.xpose.msra.mxu0 0
        %2826 = vmatprep.subr.bf16.mxu0 0
        %2827 = vmatpush1.bf16.xpose.msra.mxu0 0
        %2828 = vmatprep.subr.bf16.mxu0 0
        %2829 = vmatpush1.bf16.xpose.msra.mxu0 %v2812
        %2830 = vmatprep.subr.bf16.mxu0 0
        %2831 = vmatpush2.bf16.xpose.msra.mxu0 0
        %2832 = vmatprep.subr.bf16.mxu0 0
        %2833 = vmatpush2.bf16.xpose.msra.mxu0 0
        %2834 = vmatprep.subr.bf16.mxu0 0
        %2835 = vmatpush2.bf16.xpose.msra.mxu0 0
        %2836 = vmatprep.subr.bf16.mxu0 0
        %2837 = vmatpush2.bf16.xpose.msra.mxu0 0
        %2838 = vmatprep.subr.bf16.mxu0 0
        %2839 = vmatpush2.bf16.xpose.msra.mxu0 0
        %2840 = vmatprep.subr.bf16.mxu0 0
        %2841 = vmatpush2.bf16.xpose.msra.mxu0 0
        %2842 = vmatprep.subr.bf16.mxu0 0
        %2843 = vmatpush2.bf16.xpose.msra.mxu0 0
        %2844 = vmatprep.subr.bf16.mxu0 0
        %2845 = vmatpush2.bf16.xpose.msra.mxu0 0
        %2846 = vmatprep.mubr.bf16.mxu0 0
        %2847 = vmatmul.mubr.bf16.gmra.mxu0 %v2809
        %v2848 = vpop.f32.mrf.mxu0
        %v2849 = vadd.f32 0.0, %v2848
        %v2850 = vpop.f32.mrf.mxu0
        %v2851 = vpop.f32.mrf.mxu0
        %v2852 = vpop.f32.mrf.mxu0
        %2853 = vdwg.mxu0
        %v2855 = vsel %vm1252, %v2708, 0
        %v2858 = vsel %vm1252, %v2647, 0
        %2860 = vmatprep.subr.bf16.mxu0 0
        %2861 = vmatpush1.bf16.xpose.msra.mxu0 0
        %2862 = vmatprep.subr.bf16.mxu0 0
        %2863 = vmatpush1.bf16.xpose.msra.mxu0 0
        %2864 = vmatprep.subr.bf16.mxu0 0
        %2865 = vmatpush1.bf16.xpose.msra.mxu0 0
        %2866 = vmatprep.subr.bf16.mxu0 0
        %2867 = vmatpush1.bf16.xpose.msra.mxu0 0
        %2868 = vmatprep.subr.bf16.mxu0 0
        %2869 = vmatpush1.bf16.xpose.msra.mxu0 0
        %2870 = vmatprep.subr.bf16.mxu0 0
        %2871 = vmatpush1.bf16.xpose.msra.mxu0 0
        %2872 = vmatprep.subr.bf16.mxu0 0
        %2873 = vmatpush1.bf16.xpose.msra.mxu0 0
        %2874 = vmatprep.subr.bf16.mxu0 0
        %2875 = vmatpush1.bf16.xpose.msra.mxu0 %v2858
        %2876 = vmatprep.subr.bf16.mxu0 0
        %2877 = vmatpush2.bf16.xpose.msra.mxu0 0
        %2878 = vmatprep.subr.bf16.mxu0 0
        %2879 = vmatpush2.bf16.xpose.msra.mxu0 0
        %2880 = vmatprep.subr.bf16.mxu0 0
        %2881 = vmatpush2.bf16.xpose.msra.mxu0 0
        %2882 = vmatprep.subr.bf16.mxu0 0
        %2883 = vmatpush2.bf16.xpose.msra.mxu0 0
        %2884 = vmatprep.subr.bf16.mxu0 0
        %2885 = vmatpush2.bf16.xpose.msra.mxu0 0
        %2886 = vmatprep.subr.bf16.mxu0 0
        %2887 = vmatpush2.bf16.xpose.msra.mxu0 0
        %2888 = vmatprep.subr.bf16.mxu0 0
        %2889 = vmatpush2.bf16.xpose.msra.mxu0 0
        %2890 = vmatprep.subr.bf16.mxu0 0
        %2891 = vmatpush2.bf16.xpose.msra.mxu0 0
        %2892 = vmatprep.mubr.bf16.mxu0 0
        %2893 = vmatmul.mubr.bf16.gmra.mxu0 %v2855
        %v2894 = vpop.f32.mrf.mxu0
        %v2895 = vadd.f32 0.0, %v2894
        %v2896 = vpop.f32.mrf.mxu0
        %v2897 = vpop.f32.mrf.mxu0
        %v2898 = vpop.f32.mrf.mxu0
        %2899 = vdwg.mxu0
        %2900 = vxpose.xlu0.b32.start [1/16] %v2757, 128
        %2901 = vxpose.xlu0.b32.cont [2/16] 0.0, 128
        %2902 = vxpose.xlu0.b32.cont [3/16] 0.0, 128
        %2903 = vxpose.xlu0.b32.cont [4/16] 0.0, 128
        %2904 = vxpose.xlu0.b32.cont [5/16] 0.0, 128
        %2905 = vxpose.xlu0.b32.cont [6/16] 0.0, 128
        %2906 = vxpose.xlu0.b32.cont [7/16] 0.0, 128
        %2907 = vxpose.xlu0.b32.cont [8/16] 0.0, 128
        %2908 = vxpose.xlu0.b32.cont [9/16] 0.0, 128
        %2909 = vxpose.xlu0.b32.cont [10/16] 0.0, 128
        %2910 = vxpose.xlu0.b32.cont [11/16] 0.0, 128
        %2911 = vxpose.xlu0.b32.cont [12/16] 0.0, 128
        %2912 = vxpose.xlu0.b32.cont [13/16] 0.0, 128
        %2913 = vxpose.xlu0.b32.cont [14/16] 0.0, 128
        %2914 = vxpose.xlu0.b32.cont [15/16] 0.0, 128
        %2915 = vxpose.xlu0.b32.end [16/16] 0.0, 128
        %v2916 = vpop.trf.xlu0
        %v2917 = vpop.trf.xlu0
        %v2918 = vpop.trf.xlu0
        %v2919 = vpop.trf.xlu0
        %v2920 = vpop.trf.xlu0
        %v2921 = vpop.trf.xlu0
        %v2922 = vpop.trf.xlu0
        %v2923 = vpop.trf.xlu0
        %v2924 = vpop.trf.xlu0
        %v2925 = vpop.trf.xlu0
        %v2926 = vpop.trf.xlu0
        %v2927 = vpop.trf.xlu0
        %v2928 = vpop.trf.xlu0
        %v2929 = vpop.trf.xlu0
        %v2930 = vpop.trf.xlu0
        %v2931 = vpop.trf.xlu0
        %2932 = vxpose.xlu0.b32.start [1/16] %v2803, 128
        %2933 = vxpose.xlu0.b32.cont [2/16] 0.0, 128
        %2934 = vxpose.xlu0.b32.cont [3/16] 0.0, 128
        %2935 = vxpose.xlu0.b32.cont [4/16] 0.0, 128
        %2936 = vxpose.xlu0.b32.cont [5/16] 0.0, 128
        %2937 = vxpose.xlu0.b32.cont [6/16] 0.0, 128
        %2938 = vxpose.xlu0.b32.cont [7/16] 0.0, 128
        %2939 = vxpose.xlu0.b32.cont [8/16] 0.0, 128
        %2940 = vxpose.xlu0.b32.cont [9/16] 0.0, 128
        %2941 = vxpose.xlu0.b32.cont [10/16] 0.0, 128
        %2942 = vxpose.xlu0.b32.cont [11/16] 0.0, 128
        %2943 = vxpose.xlu0.b32.cont [12/16] 0.0, 128
        %2944 = vxpose.xlu0.b32.cont [13/16] 0.0, 128
        %2945 = vxpose.xlu0.b32.cont [14/16] 0.0, 128
        %2946 = vxpose.xlu0.b32.cont [15/16] 0.0, 128
        %2947 = vxpose.xlu0.b32.end [16/16] 0.0, 128
        %v2948 = vpop.trf.xlu0
        %v2949 = vpop.trf.xlu0
        %v2950 = vpop.trf.xlu0
        %v2951 = vpop.trf.xlu0
        %v2952 = vpop.trf.xlu0
        %v2953 = vpop.trf.xlu0
        %v2954 = vpop.trf.xlu0
        %v2955 = vpop.trf.xlu0
        %v2956 = vpop.trf.xlu0
        %v2957 = vpop.trf.xlu0
        %v2958 = vpop.trf.xlu0
        %v2959 = vpop.trf.xlu0
        %v2960 = vpop.trf.xlu0
        %v2961 = vpop.trf.xlu0
        %v2962 = vpop.trf.xlu0
        %v2963 = vpop.trf.xlu0
        %2964 = vxpose.xlu0.b32.start [1/16] %v2849, 128
        %2965 = vxpose.xlu0.b32.cont [2/16] 0.0, 128
        %2966 = vxpose.xlu0.b32.cont [3/16] 0.0, 128
        %2967 = vxpose.xlu0.b32.cont [4/16] 0.0, 128
        %2968 = vxpose.xlu0.b32.cont [5/16] 0.0, 128
        %2969 = vxpose.xlu0.b32.cont [6/16] 0.0, 128
        %2970 = vxpose.xlu0.b32.cont [7/16] 0.0, 128
        %2971 = vxpose.xlu0.b32.cont [8/16] 0.0, 128
        %2972 = vxpose.xlu0.b32.cont [9/16] 0.0, 128
        %2973 = vxpose.xlu0.b32.cont [10/16] 0.0, 128
        %2974 = vxpose.xlu0.b32.cont [11/16] 0.0, 128
        %2975 = vxpose.xlu0.b32.cont [12/16] 0.0, 128
        %2976 = vxpose.xlu0.b32.cont [13/16] 0.0, 128
        %2977 = vxpose.xlu0.b32.cont [14/16] 0.0, 128
        %2978 = vxpose.xlu0.b32.cont [15/16] 0.0, 128
        %2979 = vxpose.xlu0.b32.end [16/16] 0.0, 128
        %v2980 = vpop.trf.xlu0
        %v2981 = vpop.trf.xlu0
        %v2982 = vpop.trf.xlu0
        %v2983 = vpop.trf.xlu0
        %v2984 = vpop.trf.xlu0
        %v2985 = vpop.trf.xlu0
        %v2986 = vpop.trf.xlu0
        %v2987 = vpop.trf.xlu0
        %v2988 = vpop.trf.xlu0
        %v2989 = vpop.trf.xlu0
        %v2990 = vpop.trf.xlu0
        %v2991 = vpop.trf.xlu0
        %v2992 = vpop.trf.xlu0
        %v2993 = vpop.trf.xlu0
        %v2994 = vpop.trf.xlu0
        %v2995 = vpop.trf.xlu0
        %2996 = vxpose.xlu0.b32.start [1/16] %v2895, 128
        %2997 = vxpose.xlu0.b32.cont [2/16] 0.0, 128
        %2998 = vxpose.xlu0.b32.cont [3/16] 0.0, 128
        %2999 = vxpose.xlu0.b32.cont [4/16] 0.0, 128
        %3000 = vxpose.xlu0.b32.cont [5/16] 0.0, 128
        %3001 = vxpose.xlu0.b32.cont [6/16] 0.0, 128
        %3002 = vxpose.xlu0.b32.cont [7/16] 0.0, 128
        %3003 = vxpose.xlu0.b32.cont [8/16] 0.0, 128
        %3004 = vxpose.xlu0.b32.cont [9/16] 0.0, 128
        %3005 = vxpose.xlu0.b32.cont [10/16] 0.0, 128
        %3006 = vxpose.xlu0.b32.cont [11/16] 0.0, 128
        %3007 = vxpose.xlu0.b32.cont [12/16] 0.0, 128
        %3008 = vxpose.xlu0.b32.cont [13/16] 0.0, 128
        %3009 = vxpose.xlu0.b32.cont [14/16] 0.0, 128
        %3010 = vxpose.xlu0.b32.cont [15/16] 0.0, 128
        %3011 = vxpose.xlu0.b32.end [16/16] 0.0, 128
        %v3012 = vpop.trf.xlu0
        %v3013 = vpop.trf.xlu0
        %v3014 = vpop.trf.xlu0
        %v3015 = vpop.trf.xlu0
        %v3016 = vpop.trf.xlu0
        %v3017 = vpop.trf.xlu0
        %v3018 = vpop.trf.xlu0
        %v3019 = vpop.trf.xlu0
        %v3020 = vpop.trf.xlu0
        %v3021 = vpop.trf.xlu0
        %v3022 = vpop.trf.xlu0
        %v3023 = vpop.trf.xlu0
        %v3024 = vpop.trf.xlu0
        %v3025 = vpop.trf.xlu0
        %v3026 = vpop.trf.xlu0
        %v3027 = vpop.trf.xlu0
        %v3028 = vcombine.low %v2916, %v2980
        %v3029 = vcombine.high %v2916, %v2980
        %v3031 = vunpack.c.l.s4 1983009808
        %v3032 = vunpack.c.0.s8 %v3031
        %v3033 = vlaneseq
        %v3034 = vshrl.u32 %v3033, 7
        %v3035 = vsub.s32 %v3032, %v3034
        %v3036 = vrot.slane %v3028, %v3035
        %v3038 = vunpack.c.l.s4 1983009808
        %v3039 = vunpack.c.0.s8 %v3038
        %v3040 = vlaneseq
        %v3041 = vshrl.u32 %v3040, 7
        %v3042 = vsub.s32 %v3039, %v3041
        %v3043 = vrot.slane %v3029, %v3042
        %v3044 = vcombine.low %v2948, %v3012
        %v3045 = vcombine.high %v2948, %v3012
        %v3047 = vunpack.c.l.s4 1983009808
        %v3048 = vunpack.c.0.s8 %v3047
        %v3049 = vlaneseq
        %v3050 = vshrl.u32 %v3049, 7
        %v3051 = vsub.s32 %v3048, %v3050
        %v3052 = vrot.slane %v3044, %v3051
        %v3054 = vunpack.c.l.s4 1983009808
        %v3055 = vunpack.c.0.s8 %v3054
        %v3056 = vlaneseq
        %v3057 = vshrl.u32 %v3056, 7
        %v3058 = vsub.s32 %v3055, %v3057
        %v3059 = vrot.slane %v3045, %v3058
        %v3060 = vcombine.low %v3036, %v3052
        %v3061 = vcombine.high %v3036, %v3052
        %v3063 = vunpack.c.l.s4 1934713408
        %v3064 = vunpack.c.0.s8 %v3063
        %v3065 = vlaneseq
        %v3066 = vshrl.u32 %v3065, 7
        %v3067 = vsub.s32 %v3064, %v3066
        %v3068 = vrot.slane %v3060, %v3067
        %v3070 = vunpack.c.l.s4 1934713408
        %v3071 = vunpack.c.0.s8 %v3070
        %v3072 = vlaneseq
        %v3073 = vshrl.u32 %v3072, 7
        %v3074 = vsub.s32 %v3071, %v3073
        %v3075 = vrot.slane %v3061, %v3074
        %v3076 = vcombine.low %v3043, %v3059
        %v3077 = vcombine.high %v3043, %v3059
        %v3079 = vunpack.c.l.s4 1934713408
        %v3080 = vunpack.c.0.s8 %v3079
        %v3081 = vlaneseq
        %v3082 = vshrl.u32 %v3081, 7
        %v3083 = vsub.s32 %v3080, %v3082
        %v3084 = vrot.slane %v3076, %v3083
        %v3086 = vunpack.c.l.s4 1934713408
        %v3087 = vunpack.c.0.s8 %v3086
        %v3088 = vlaneseq
        %v3089 = vshrl.u32 %v3088, 7
        %v3090 = vsub.s32 %v3087, %v3089
        %v3091 = vrot.slane %v3077, %v3090
        %v3092 = vcombine.high %v3068, 0.0
        %v3093 = vcombine.high %v3075, 0.0
        %v3094 = vcombine.high %v3084, 0.0
        %v3095 = vcombine.high %v3091, 0.0
        %v3096 = vcombine.low %v3068, %v3075
        %v3098 = vunpack.c.l.s4 1983009808
        %v3099 = vunpack.c.0.s8 %v3098
        %v3100 = vlaneseq
        %v3101 = vshrl.u32 %v3100, 7
        %v3102 = vsub.s32 %v3099, %v3101
        %v3103 = vrot.slane %v3096, %v3102
        %v3104 = vcombine.low %v3092, %v3093
        %v3106 = vunpack.c.l.s4 1983009808
        %v3107 = vunpack.c.0.s8 %v3106
        %v3108 = vlaneseq
        %v3109 = vshrl.u32 %v3108, 7
        %v3110 = vsub.s32 %v3107, %v3109
        %v3111 = vrot.slane %v3104, %v3110
        %v3112 = vcombine.low %v3084, %v3091
        %v3114 = vunpack.c.l.s4 1983009808
        %v3115 = vunpack.c.0.s8 %v3114
        %v3116 = vlaneseq
        %v3117 = vshrl.u32 %v3116, 7
        %v3118 = vsub.s32 %v3115, %v3117
        %v3119 = vrot.slane %v3112, %v3118
        %v3120 = vcombine.low %v3094, %v3095
        %v3122 = vunpack.c.l.s4 1983009808
        %v3123 = vunpack.c.0.s8 %v3122
        %v3124 = vlaneseq
        %v3125 = vshrl.u32 %v3124, 7
        %v3126 = vsub.s32 %v3123, %v3125
        %v3127 = vrot.slane %v3120, %v3126
        %v3128 = vcombine.low %v3103, %v3111
        %v3129 = vcombine.high %v3103, %v3111
        %v3131 = vunpack.c.l.s4 1934713408
        %v3132 = vunpack.c.0.s8 %v3131
        %v3133 = vlaneseq
        %v3134 = vshrl.u32 %v3133, 7
        %v3135 = vsub.s32 %v3132, %v3134
        %v3136 = vrot.slane %v3128, %v3135
        %v3138 = vunpack.c.l.s4 1934713408
        %v3139 = vunpack.c.0.s8 %v3138
        %v3140 = vlaneseq
        %v3141 = vshrl.u32 %v3140, 7
        %v3142 = vsub.s32 %v3139, %v3141
        %v3143 = vrot.slane %v3129, %v3142
        %v3144 = vcombine.low %v3119, %v3127
        %v3145 = vcombine.high %v3119, %v3127
        %v3147 = vunpack.c.l.s4 1934713408
        %v3148 = vunpack.c.0.s8 %v3147
        %v3149 = vlaneseq
        %v3150 = vshrl.u32 %v3149, 7
        %v3151 = vsub.s32 %v3148, %v3150
        %v3152 = vrot.slane %v3144, %v3151
        %v3154 = vunpack.c.l.s4 1934713408
        %v3155 = vunpack.c.0.s8 %v3154
        %v3156 = vlaneseq
        %v3157 = vshrl.u32 %v3156, 7
        %v3158 = vsub.s32 %v3155, %v3157
        %v3159 = vrot.slane %v3145, %v3158
        %v3160 = vcombine.low %v3136, %v3152
        %v3161 = vcombine.high %v3136, %v3152
        %v3162 = vcombine.low %v3143, %v3159
        %v3163 = vcombine.high %v3143, %v3159
        %3165 = vrot.lane.b32.xlu0 %v3161, 8
        %v3166 = vpop.permute.xlu0 %3165
        %3169 = vrot.lane.b32.xlu0 %v3162, 16
        %v3170 = vpop.permute.xlu0 %3169
        %3173 = vrot.lane.b32.xlu0 %v3163, 24
        %v3174 = vpop.permute.xlu0 %3173
        %v3176 = vsel %vm1252, %v3160, %v3166
        %v3177 = vsel %vm2016, %v3176, %v3170
        %v3178 = vsel %vm2018, %v3177, %v3174
        %v3179 = vpack.c.bf16 %v3178, %v3178
        %s3180 = scalar_lea.vmem [#allocation9], 48
        %v3181 = vld [vmem:[%s3180] sm:$0xf]
        %v3182 = vld [vmem:[%s3180 + $0x4] sm:$0xf]
        %v3183 = vld [vmem:[%s3180 + $0x8] sm:$0xf]
        %v3184 = vld [vmem:[%s3180 + $0xc] sm:$0xf]
        %v3185 = vld [vmem:[%s7 + $0x3] sm:$0x1]
        %v3186 = vlaneseq
        %v3187 = vshrl.u32 %v3186, 7
        %v3188 = vsub.s32 0, %v3187
        %v3189 = vrot.slane %v3185, %v3188
        %v3194 = vunpack.c.l.b16 %v3181
        %v3195 = vunpack.c.l.b16 %v3182
        %v3196 = vunpack.c.l.b16 %v3183
        %v3197 = vunpack.c.l.b16 %v3184
        %v3198 = vpack.c.b16 %v3195, %v3194
        %v3199 = vpack.c.b16 %v3197, %v3196
        %v3203 = vsel %vm973, %v3179, 0
        %3205 = vmatprep.subr.bf16.mxu0 0
        %3206 = vmatpush1.bf16.msra.mxu0 0
        %3207 = vmatprep.subr.bf16.mxu0 0
        %3208 = vmatpush1.bf16.msra.mxu0 0
        %3209 = vmatprep.subr.bf16.mxu0 0
        %3210 = vmatpush1.bf16.msra.mxu0 0
        %3211 = vmatprep.subr.bf16.mxu0 0
        %3212 = vmatpush1.bf16.msra.mxu0 0
        %3213 = vmatprep.subr.bf16.mxu0 0
        %3214 = vmatpush1.bf16.msra.mxu0 0
        %3215 = vmatprep.subr.bf16.mxu0 0
        %3216 = vmatpush1.bf16.msra.mxu0 0
        %3217 = vmatprep.subr.bf16.mxu0 0
        %3218 = vmatpush1.bf16.msra.mxu0 %v3199
        %3219 = vmatprep.subr.bf16.mxu0 0
        %3220 = vmatpush1.bf16.msra.mxu0 %v3198
        %3221 = vmatprep.subr.bf16.mxu0 0
        %3222 = vmatpush2.bf16.msra.mxu0 0
        %3223 = vmatprep.subr.bf16.mxu0 0
        %3224 = vmatpush2.bf16.msra.mxu0 0
        %3225 = vmatprep.subr.bf16.mxu0 0
        %3226 = vmatpush2.bf16.msra.mxu0 0
        %3227 = vmatprep.subr.bf16.mxu0 0
        %3228 = vmatpush2.bf16.msra.mxu0 0
        %3229 = vmatprep.subr.bf16.mxu0 0
        %3230 = vmatpush2.bf16.msra.mxu0 0
        %3231 = vmatprep.subr.bf16.mxu0 0
        %3232 = vmatpush2.bf16.msra.mxu0 0
        %3233 = vmatprep.subr.bf16.mxu0 0
        %3234 = vmatpush2.bf16.msra.mxu0 0
        %3235 = vmatprep.subr.bf16.mxu0 0
        %3236 = vmatpush2.bf16.msra.mxu0 0
        %3237 = vmatprep.mubr.bf16.mxu0 0
        %3238 = vmatmul.mubr.bf16.gmra.mxu0 %v3203
        %v3239 = vpop.f32.mrf.mxu0
        %v3240 = vadd.f32 %v3189, %v3239
        %v3241 = vpop.f32.mrf.mxu0
        %v3242 = vpop.f32.mrf.mxu0
        %v3243 = vpop.f32.mrf.mxu0
        %3244 = vdwg.mxu0
        %v3245 = vadd.f32 %v2111, %v3240
        %v3246 = vsel %vm973, %v3245, 0.0
        %3247 = vadd.xlane.f32.xlu0 %v3246
        %v3248 = vpop.xlane.xlu0 %3247
        %v3249 = vmul.f32 %v3248, %v2091
        %v3250 = vsub.f32 %v3245, %v3249
        %v3251 = vmul.f32 %v3250, %v3250
        %v3252 = vsel %vm973, %v3251, 0.0
        %3253 = vadd.xlane.f32.xlu0 %v3252
        %v3254 = vpop.xlane.xlu0 %3253
        %v3255 = vmul.f32 %v3254, %v2091
        %v3256 = vadd.f32 %v3255, 1e-06
        %v3257 = vrsqrt.pop %v3256
        %v3258 = vmul.f32 %v3250, %v3257
        %v3259 = vlaneseq
        %v3260 = vshrl.u32 %v3259, 7
        %v3261 = vsub.s32 1, %v3260
        %v3262 = vrot.slane %v950, %v3261
        %v3263 = vmul.f32 %v3258, %v3262
        %v3264 = vlaneseq
        %v3265 = vshrl.u32 %v3264, 7
        %v3266 = vsub.s32 1, %v3265
        %v3267 = vrot.slane %v951, %v3266
        %v3268 = vadd.f32 %v3263, %v3267
        %v3269 = vpack.c.bf16 %v3268, %v3268
        %v3270 = vld [vmem:[%s8] sm:$0xf]
        %v3271 = vld [vmem:[%s8 + $0x4] sm:$0xf]
        %v3272 = vld [vmem:[%s8 + $0x8] sm:$0xf]
        %v3273 = vld [vmem:[%s8 + $0xc] sm:$0xf]
        %v3274 = vld [vmem:[#allocation11] sm:$0x1]
        %v3276 = vlaneseq
        %v3277 = vshrl.u32 %v3276, 7
        %v3278 = vsub.s32 0, %v3277
        %v3279 = vrot.slane %v3274, %v3278
        %v3285 = vunpack.c.l.b16 %v3270
        %v3286 = vunpack.c.l.b16 %v3271
        %v3287 = vunpack.c.l.b16 %v3272
        %v3288 = vunpack.c.l.b16 %v3273
        %v3289 = vpack.c.b16 %v3286, %v3285
        %v3290 = vpack.c.b16 %v3288, %v3287
        %v3294 = vsel %vm973, %v3269, 0
        %3296 = vmatprep.subr.bf16.mxu0 0
        %3297 = vmatpush1.bf16.msra.mxu0 0
        %3298 = vmatprep.subr.bf16.mxu0 0
        %3299 = vmatpush1.bf16.msra.mxu0 0
        %3300 = vmatprep.subr.bf16.mxu0 0
        %3301 = vmatpush1.bf16.msra.mxu0 0
        %3302 = vmatprep.subr.bf16.mxu0 0
        %3303 = vmatpush1.bf16.msra.mxu0 0
        %3304 = vmatprep.subr.bf16.mxu0 0
        %3305 = vmatpush1.bf16.msra.mxu0 0
        %3306 = vmatprep.subr.bf16.mxu0 0
        %3307 = vmatpush1.bf16.msra.mxu0 0
        %3308 = vmatprep.subr.bf16.mxu0 0
        %3309 = vmatpush1.bf16.msra.mxu0 %v3290
        %3310 = vmatprep.subr.bf16.mxu0 0
        %3311 = vmatpush1.bf16.msra.mxu0 %v3289
        %3312 = vmatprep.subr.bf16.mxu0 0
        %3313 = vmatpush2.bf16.msra.mxu0 0
        %3314 = vmatprep.subr.bf16.mxu0 0
        %3315 = vmatpush2.bf16.msra.mxu0 0
        %3316 = vmatprep.subr.bf16.mxu0 0
        %3317 = vmatpush2.bf16.msra.mxu0 0
        %3318 = vmatprep.subr.bf16.mxu0 0
        %3319 = vmatpush2.bf16.msra.mxu0 0
        %3320 = vmatprep.subr.bf16.mxu0 0
        %3321 = vmatpush2.bf16.msra.mxu0 0
        %3322 = vmatprep.subr.bf16.mxu0 0
        %3323 = vmatpush2.bf16.msra.mxu0 0
        %3324 = vmatprep.subr.bf16.mxu0 0
        %3325 = vmatpush2.bf16.msra.mxu0 0
        %3326 = vmatprep.subr.bf16.mxu0 0
        %3327 = vmatpush2.bf16.msra.mxu0 0
        %3328 = vmatprep.mubr.bf16.mxu0 0
        %3329 = vmatmul.mubr.bf16.gmra.mxu0 %v3294
        %v3330 = vpop.f32.mrf.mxu0
        %v3331 = vadd.f32 %v3279, %v3330
        %v3332 = vpop.f32.mrf.mxu0
        %v3333 = vpop.f32.mrf.mxu0
        %v3334 = vpop.f32.mrf.mxu0
        %3335 = vdwg.mxu0
        %v3336 = vmax.f32 %v3331, 0.0
        %v3337 = vpack.c.bf16 %v3336, %v3336
        %v3338 = vld [vmem:[%s10] sm:$0xf]
        %v3339 = vld [vmem:[%s10 + $0x4] sm:$0xf]
        %v3340 = vld [vmem:[%s10 + $0x8] sm:$0xf]
        %v3341 = vld [vmem:[%s10 + $0xc] sm:$0xf]
        %v3342 = vld [vmem:[%s10 + $0x10] sm:$0xf]
        %v3343 = vld [vmem:[%s10 + $0x14] sm:$0xf]
        %v3344 = vld [vmem:[%s10 + $0x18] sm:$0xf]
        %v3345 = vld [vmem:[%s10 + $0x1c] sm:$0xf]
        %v3346 = vld [vmem:[#allocation12] sm:$0x1]
        %v3348 = vlaneseq
        %v3349 = vshrl.u32 %v3348, 7
        %v3350 = vsub.s32 0, %v3349
        %v3351 = vrot.slane %v3346, %v3350
        %v3361 = vunpack.c.l.b16 %v3338
        %v3362 = vunpack.c.l.b16 %v3339
        %v3363 = vunpack.c.l.b16 %v3340
        %v3364 = vunpack.c.l.b16 %v3341
        %v3365 = vunpack.c.l.b16 %v3342
        %v3366 = vunpack.c.l.b16 %v3343
        %v3367 = vunpack.c.l.b16 %v3344
        %v3368 = vunpack.c.l.b16 %v3345
        %v3369 = vpack.c.b16 %v3362, %v3361
        %v3370 = vpack.c.b16 %v3364, %v3363
        %v3371 = vpack.c.b16 %v3366, %v3365
        %v3372 = vpack.c.b16 %v3368, %v3367
        %vm3377 = vcmask 523264
        %v3379 = vsel %vm3377, %v3337, 0
        %3381 = vmatprep.subr.bf16.mxu0 0
        %3382 = vmatpush1.bf16.msra.mxu0 0
        %3383 = vmatprep.subr.bf16.mxu0 0
        %3384 = vmatpush1.bf16.msra.mxu0 0
        %3385 = vmatprep.subr.bf16.mxu0 0
        %3386 = vmatpush1.bf16.msra.mxu0 0
        %3387 = vmatprep.subr.bf16.mxu0 0
        %3388 = vmatpush1.bf16.msra.mxu0 0
        %3389 = vmatprep.subr.bf16.mxu0 0
        %3390 = vmatpush1.bf16.msra.mxu0 %v3372
        %3391 = vmatprep.subr.bf16.mxu0 0
        %3392 = vmatpush1.bf16.msra.mxu0 %v3371
        %3393 = vmatprep.subr.bf16.mxu0 0
        %3394 = vmatpush1.bf16.msra.mxu0 %v3370
        %3395 = vmatprep.subr.bf16.mxu0 0
        %3396 = vmatpush1.bf16.msra.mxu0 %v3369
        %3397 = vmatprep.subr.bf16.mxu0 0
        %3398 = vmatpush2.bf16.msra.mxu0 0
        %3399 = vmatprep.subr.bf16.mxu0 0
        %3400 = vmatpush2.bf16.msra.mxu0 0
        %3401 = vmatprep.subr.bf16.mxu0 0
        %3402 = vmatpush2.bf16.msra.mxu0 0
        %3403 = vmatprep.subr.bf16.mxu0 0
        %3404 = vmatpush2.bf16.msra.mxu0 0
        %3405 = vmatprep.subr.bf16.mxu0 0
        %3406 = vmatpush2.bf16.msra.mxu0 0
        %3407 = vmatprep.subr.bf16.mxu0 0
        %3408 = vmatpush2.bf16.msra.mxu0 0
        %3409 = vmatprep.subr.bf16.mxu0 0
        %3410 = vmatpush2.bf16.msra.mxu0 0
        %3411 = vmatprep.subr.bf16.mxu0 0
        %3412 = vmatpush2.bf16.msra.mxu0 0
        %3413 = vmatprep.mubr.bf16.mxu0 0
        %3414 = vmatmul.mubr.bf16.gmra.mxu0 %v3379
        %v3415 = vpop.f32.mrf.mxu0
        %v3416 = vadd.f32 %v3351, %v3415
        %v3417 = vpop.f32.mrf.mxu0
        %v3418 = vpop.f32.mrf.mxu0
        %v3419 = vpop.f32.mrf.mxu0
        %3420 = vdwg.mxu0
        %v3421 = vadd.f32 %v3268, %v3416
        %v3422 = vsel %vm973, %v3421, 0.0
        %3423 = vadd.xlane.f32.xlu0 %v3422
        %v3424 = vpop.xlane.xlu0 %3423
        %v3425 = vmul.f32 %v3424, %v2091
        %v3426 = vsub.f32 %v3421, %v3425
        %v3427 = vmul.f32 %v3426, %v3426
        %v3428 = vsel %vm973, %v3427, 0.0
        %3429 = vadd.xlane.f32.xlu0 %v3428
        %v3430 = vpop.xlane.xlu0 %3429
        %v3431 = vmul.f32 %v3430, %v2091
        %v3432 = vadd.f32 %v3431, 1e-06
        %v3433 = vrsqrt.pop %v3432
        %v3434 = vmul.f32 %v3426, %v3433
        %v3435 = vlaneseq
        %v3436 = vshrl.u32 %v3435, 7
        %v3437 = vsub.s32 2, %v3436
        %v3438 = vrot.slane %v950, %v3437
        %v3439 = vmul.f32 %v3434, %v3438
        %v3440 = vlaneseq
        %v3441 = vshrl.u32 %v3440, 7
        %v3442 = vsub.s32 2, %v3441
        %v3443 = vrot.slane %v951, %v3442
        %v3444 = vadd.f32 %v3439, %v3443
        %3445 = vst.msk [vmem:[%s634] sm:$0xff] %vm973, %v3444
        %s3446 = sand.u32 %s375, 1
        %s3447 = scalar_lea.sflag [#allocation8], %s3446
        %s3448 = sand.u32 %s375, 1
        %s3449 = smul.addr %s3448, 8
        %s3450 = scalar_lea.vmem [#allocation14], %s3449
        %s3451 = sand.u32 %s37, 1
        %s3452 = scalar_lea.sflag [#allocation16], %s3451
        %s3453 = sand.u32 %s403, 1
        %s3454 = smul.addr %s3453, 16
        %s3455 = scalar_lea.vmem [#allocation15], %s3454
        %s3456 = sand.u32 %s37, 1
        %s3457 = scalar_lea.sflag [#allocation16], %s3456
        %s3458 = sand.u32 %s431, 1
        %s3459 = smul.addr %s3458, 16
        %s3460 = scalar_lea.vmem [#allocation17], %s3459
        // Predicated region
        $region97: #{tpu_custom_call.1} parent=75 // pred_check
          %p3461 = pneg %p385
        $region98: #{tpu_custom_call.1} parent=75 // pred_check_branch
          %3463 = sbr.rel (%p3461) target = $region100
        $region99: #{tpu_custom_call.1} parent=75 // pred_region
          %s3465 = ssub.s32 128, 128
          %3466 = vsyncadd %s3447, %s3465
          %s3467 = sadd.s32 %s42, %s41
          %s3468 = smul.addr %s3467, 128
          %s3469 = scalar_lea.hbm %s14, %s3468
          %s3471 = sshll.u32 %s3450, 4
          %s3472 = int_to_ptr.vmem [resolvable:$true] %s3471
          %3474 = dma.vmem_to_hbm [thread:$0]  %s3472, 128, %s3469, %s3447
        $region100: #{tpu_custom_call.1} parent=75 // pred_fallthru
          _
        // Predicated region
        $region101: #{tpu_custom_call.1} parent=75 // pred_check
          %p3475 = pneg %p413
        $region102: #{tpu_custom_call.1} parent=75 // pred_check_branch
          %3477 = sbr.rel (%p3475) target = $region104
        $region103: #{tpu_custom_call.1} parent=75 // pred_region
          %s3479 = ssub.s32 256, 256
          %3480 = vsyncadd %s3452, %s3479
          %s3481 = smul.addr %s41, 4
          %s3482 = sadd.s32 %s42, %s3481
          %s3483 = smul.addr %s3482, 64
          %s3484 = scalar_lea.hbm %s15, %s3483
          %s3485 = sshll.u32 %s3455, 4
          %s3486 = int_to_ptr.vmem [resolvable:$true] %s3485
          %3491 = dma.vmem_to_hbm [thread:$0]  %s3486, 256, %s3484, %s3452, 64, 64, 4
        $region104: #{tpu_custom_call.1} parent=75 // pred_fallthru
          _
        // Predicated region
        $region105: #{tpu_custom_call.1} parent=75 // pred_check
          %p3492 = pneg %p441
        $region106: #{tpu_custom_call.1} parent=75 // pred_check_branch
          %3494 = sbr.rel (%p3492) target = $region108
        $region107: #{tpu_custom_call.1} parent=75 // pred_region
          %s3496 = ssub.s32 256, 256
          %3497 = vsyncadd %s3457, %s3496
          %s3498 = smul.addr %s41, 4
          %s3499 = sadd.s32 %s42, %s3498
          %s3500 = smul.addr %s3499, 64
          %s3501 = scalar_lea.hbm %s16, %s3500
          %s3502 = sshll.u32 %s3460, 4
          %s3503 = int_to_ptr.vmem [resolvable:$true] %s3502
          %3508 = dma.vmem_to_hbm [thread:$0]  %s3503, 256, %s3501, %s3457, 64, 64, 4
        $region108: #{tpu_custom_call.1} parent=75 // pred_fallthru
          _
      $region76: #{tpu_custom_call.1} parent=5 // pred_fallthru
        _
      %p3509 = scmp.le.s32.totalorder 2, %s32
      // Predicated region
      $region109: #{tpu_custom_call.1} parent=5 // pred_check
        %p3510 = pneg %p3509
      $region110: #{tpu_custom_call.1} parent=5 // pred_check_branch
        %3512 = sbr.rel (%p3510) target = $region112
      $region111: #{tpu_custom_call.1} parent=5 // pred_region
        %s3513 = ssub.s32 %s32, 2
        // Predicated region
        $region113: #{tpu_custom_call.1} parent=111 // pred_check
          %p3514 = pneg %p391
        $region114: #{tpu_custom_call.1} parent=111 // pred_check_branch
          %3516 = sbr.rel (%p3514) target = $region116
        $region115: #{tpu_custom_call.1} parent=111 // pred_region
          %s3517 = sand.u32 %s376, 1
          %s3518 = scalar_lea.sflag [#allocation8], %s3517
          %s3519 = sand.u32 %s376, 1
          %s3520 = smul.addr %s3519, 8
          %s3521 = scalar_lea.vmem [#allocation14], %s3520
          %3522 = dma.done %s3518, 128
        $region116: #{tpu_custom_call.1} parent=111 // pred_fallthru
          _
        // Predicated region
        $region117: #{tpu_custom_call.1} parent=111 // pred_check
          %p3523 = pneg %p419
        $region118: #{tpu_custom_call.1} parent=111 // pred_check_branch
          %3525 = sbr.rel (%p3523) target = $region120
        $region119: #{tpu_custom_call.1} parent=111 // pred_region
          %s3526 = sand.u32 %s38, 1
          %s3527 = scalar_lea.sflag [#allocation16], %s3526
          %s3528 = sand.u32 %s404, 1
          %s3529 = smul.addr %s3528, 16
          %s3530 = scalar_lea.vmem [#allocation15], %s3529
          %3531 = dma.done %s3527, 256
        $region120: #{tpu_custom_call.1} parent=111 // pred_fallthru
          _
        // Predicated region
        $region121: #{tpu_custom_call.1} parent=111 // pred_check
          %p3532 = pneg %p447
        $region122: #{tpu_custom_call.1} parent=111 // pred_check_branch
          %3534 = sbr.rel (%p3532) target = $region124
        $region123: #{tpu_custom_call.1} parent=111 // pred_region
          %s3535 = sand.u32 %s38, 1
          %s3536 = scalar_lea.sflag [#allocation16], %s3535
          %s3537 = sand.u32 %s432, 1
          %s3538 = smul.addr %s3537, 16
          %s3539 = scalar_lea.vmem [#allocation17], %s3538
          %3540 = dma.done %s3536, 256
        $region124: #{tpu_custom_call.1} parent=111 // pred_fallthru
          _
      $region112: #{tpu_custom_call.1} parent=5 // pred_fallthru
        _
    $region6: #{tpu_custom_call.1} parent=1 // loop_footer
      %s36 = sadd.s32 1, %s32
    $region7: #{tpu_custom_call.1} parent=1 // loop_footer_branch
      %31 = sbr.rel target = $region3
    $region8: #{tpu_custom_call.1} parent=1 // loop_exit
      _
    %3541 = vsyncpa [#allocation7], 1
    %s3542 = scalar_lea.sflag [#allocation7], 1
    %3543 = vsyncpa %s3542, 1
    %3544 = vsyncpa [#allocation10], 1
    %3545 = vsyncpa [#allocation13], 1
    %3546 = vsyncpa [#allocation8], 1
    %s3547 = scalar_lea.sflag [#allocation8], 1
    %3548 = vsyncpa %s3547, 1
    %3549 = vsyncpa [#allocation16], 1
    %s3550 = scalar_lea.sflag [#allocation16], 1
    %3551 = vsyncpa %s3550, 1

</llo_original>
